<compile_context>
chip_gen: v7x
topology: tpu7x:2x2x1
jax: 0.10.0
libtpu: 0.0.40
codegen_flags: <defaults>
</compile_context>

<pallas_src>
import jax
import jax.numpy as jnp
from jax.experimental import pallas as pl
from jax.experimental.pallas import tpu as pltpu

# ----------------------------- configuration --------------------------------
B = 2                 # batch
C = 32                # embedding_dim (channels of NCHW input)
H = W = 8             # spatial
N = H * W             # tokens per sample (nheads for quantize='spatial')
DC = 8                # codebook_dim
K = 16                # num_embeddings
NCLASSES = 3
LN_EPS = 1e-5


# ------------------------------- kernel -------------------------------------
def vq_kernel(y_ref,          # SMEM (B,) int32 -- per-sample class label (scalar prefetch)
              x_ref,          # (B*N, C)            tokens, batch fused
              cb_ref,         # (NCLASSES, K, DC)   all class codebooks, VMEM-resident
              w_ref,          # (2C+2DC, C)         packed weights [w1; w4; w3; w2^T]
              v32_ref,        # (5, C)              packed [b1; b3; b4; gout; bout]
              v8_ref,         # (3, DC)             packed [b2; gin; bin]
              q_ref,          # out (B*N, C)        quantized
              enc_ref):       # out (B*N, K)        one-hot encodings
    batch = y_ref.shape[0]
    bn, c = x_ref.shape
    n = bn // batch
    _, k, dc = cb_ref.shape

    x = x_ref[...]                                   # (BN, C)

    # ---- unpack weight slab (all slices static & sublane-tile aligned) ----
    w1 = w_ref[0:c, :]                               # (C, C)
    w4 = w_ref[c:2 * c, :]                           # (C, C)
    w3 = w_ref[2 * c:2 * c + dc, :]                  # (DC, C)
    w2t = w_ref[2 * c + dc:2 * c + 2 * dc, :]        # (DC, C)  == w2^T

    b1 = v32_ref[0:1, :]
    b3 = v32_ref[1:2, :]
    b4 = v32_ref[2:3, :]
    gout = v32_ref[3:4, :]
    bout = v32_ref[4:5, :]
    b2 = v8_ref[0:1, :]
    gin = v8_ref[1:2, :]
    bin_ = v8_ref[2:3, :]

    # ---- project_in: Linear(C->C) + ReLU + Linear(C->DC), batch-fused ----
    h = jnp.maximum(
        jnp.dot(x, w1, preferred_element_type=jnp.float32) + b1, 0.0)
    f = jnp.dot(h, w2t.T, preferred_element_type=jnp.float32) + b2          # (BN, DC)

    # ---- norm_in: LayerNorm over codebook_dim ----
    mu = jnp.mean(f, axis=-1, keepdims=True)
    var = jnp.mean((f - mu) ** 2, axis=-1, keepdims=True)
    f = (f - mu) * jax.lax.rsqrt(var + LN_EPS) * gin + bin_

    # ---- per-sample nearest-codebook search (class codebook from y in SMEM) ----
    q_parts = []
    for b in range(batch):                           # B is tiny (static unroll)
        cls = y_ref[b]
        cb_b = cb_ref[cls]                           # (K, DC) dynamic leading-axis load
        fb = f[b * n:(b + 1) * n]                    # (N, DC) static slice

        # ||f||^2 dropped: constant per row, cannot change the argmin.
        d = (jnp.sum(cb_b * cb_b, axis=-1)[None, :]
             - 2.0 * jnp.dot(fb, cb_b.T, preferred_element_type=jnp.float32))   # (N, K)

        # first-min tie-break, matching torch.min
        dmin = jnp.min(d, axis=-1, keepdims=True)
        col = jax.lax.broadcasted_iota(jnp.int32, (n, k), 1)
        idx_b = jnp.min(jnp.where(d <= dmin, col, k), axis=-1)                  # (N,)

        onehot_b = (col == idx_b[:, None]).astype(jnp.float32)                  # (N, K)
        enc_ref[b * n:(b + 1) * n, :] = onehot_b
        q_parts.append(jnp.dot(onehot_b, cb_b, preferred_element_type=jnp.float32))

    qcode = jnp.concatenate(q_parts, axis=0)         # (BN, DC)

    # ---- project_out: Linear(DC->C) + ReLU + Linear(C->C), batch-fused ----
    h2 = jnp.maximum(
        jnp.dot(qcode, w3, preferred_element_type=jnp.float32) + b3, 0.0)
    q2 = jnp.dot(h2, w4, preferred_element_type=jnp.float32) + b4

    # ---- norm_out: LayerNorm over embedding_dim ----
    mu2 = jnp.mean(q2, axis=-1, keepdims=True)
    var2 = jnp.mean((q2 - mu2) ** 2, axis=-1, keepdims=True)
    q_ref[...] = (q2 - mu2) * jax.lax.rsqrt(var2 + LN_EPS) * gout + bout


# ------------------------------ wrapper --------------------------------------
def vq_sample_pallas(x_nchw, y, codebooks, params):
    (w1, b1, w2, b2, gin, bin_, w3, b3, w4, b4, gout, bout) = params
    bn_, cn, hn, wn = x_nchw.shape
    n_tok = hn * wn
    m = bn_ * n_tok

    # NCHW -> (B*HW, C)  (quantize='spatial' path, batch fused into token dim)
    tokens = jnp.transpose(x_nchw.reshape(bn_, cn, n_tok), (0, 2, 1)).reshape(m, cn)

    # Pack the 14 tiny param tensors into 3 slabs (fewer DMA descriptors).
    w_slab = jnp.concatenate([w1, w4, w3, jnp.transpose(w2)], axis=0)   # (2C+2DC, C)
    v32 = jnp.concatenate([b1, b3, b4, gout, bout], axis=0)             # (5, C)
    v8 = jnp.concatenate([b2, gin, bin_], axis=0)                       # (3, DC)

    nclasses, k, dc = codebooks.shape

    grid_spec = pltpu.PrefetchScalarGridSpec(
        num_scalar_prefetch=1,          # y -> SMEM, read inside the kernel
        grid=(1,),                      # single step: whole problem is a few KB
        in_specs=[
            pl.BlockSpec((m, cn), lambda i, y_ref: (0, 0)),             # tokens
            pl.BlockSpec((nclasses, k, dc), lambda i, y_ref: (0, 0, 0)),# all codebooks
            pl.BlockSpec(w_slab.shape, lambda i, y_ref: (0, 0)),        # packed weights
            pl.BlockSpec(v32.shape, lambda i, y_ref: (0, 0)),           # packed biases (C)
            pl.BlockSpec(v8.shape, lambda i, y_ref: (0, 0)),            # packed biases (DC)
        ],
        out_specs=[
            pl.BlockSpec((m, cn), lambda i, y_ref: (0, 0)),             # quantized
            pl.BlockSpec((m, k), lambda i, y_ref: (0, 0)),              # one-hot encodings
        ],
    )

    q_flat, enc_flat = pl.pallas_call(
        vq_kernel,
        grid_spec=grid_spec,
        out_shape=(
            jax.ShapeDtypeStruct((m, cn), jnp.float32),
            jax.ShapeDtypeStruct((m, k), jnp.float32),
        ),
        compiler_params=pltpu.CompilerParams(
            dimension_semantics=("arbitrary",)),
    )(y, tokens, codebooks, w_slab, v32, v8)

    quantized = q_flat.reshape(bn_, n_tok, cn)
    encodings = enc_flat.reshape(bn_, n_tok, k)
    # Index output removed from the kernel (worst masked-store offender); the
    # one-hot has a single 1 per row, so argmax recovers exactly the in-kernel
    # first-min index.  sample() reshapes encoding_indices to (-1, 1).
    enc_idx = jnp.argmax(enc_flat, axis=-1).astype(jnp.int32).reshape(-1, 1)
    return quantized, enc_idx, encodings


# --------------------------- pure-JAX reference ------------------------------
def vq_sample_ref(x_nchw, y, codebooks, params):
    (w1, b1, w2, b2, gin, bin_, w3, b3, w4, b4, gout, bout) = params
    bn_, cn, hn, wn = x_nchw.shape
    tokens = jnp.transpose(x_nchw.reshape(bn_, cn, hn * wn), (0, 2, 1))
    h = jnp.maximum(tokens @ w1 + b1, 0.0)
    f = h @ w2 + b2
    mu = f.mean(-1, keepdims=True)
    var = ((f - mu) ** 2).mean(-1, keepdims=True)
    f = (f - mu) / jnp.sqrt(var + LN_EPS) * gin + bin_
    cb = codebooks[y]                                    # (B, K, DC)
    d = (jnp.sum(f * f, -1, keepdims=True)
         + jnp.sum(cb * cb, -1)[:, None, :]
         - 2.0 * jnp.einsum('bnd,bkd->bnk', f, cb))
    idx = jnp.argmin(d, axis=-1)
    onehot = jax.nn.one_hot(idx, K, dtype=jnp.float32)
    q = jnp.einsum('bnk,bkd->bnd', onehot, cb)
    h2 = jnp.maximum(q @ w3 + b3, 0.0)
    q2 = h2 @ w4 + b4
    mu2 = q2.mean(-1, keepdims=True)
    var2 = ((q2 - mu2) ** 2).mean(-1, keepdims=True)
    out = (q2 - mu2) / jnp.sqrt(var2 + LN_EPS) * gout + bout
    return out, idx.reshape(-1, 1).astype(jnp.int32), onehot


# ----------------------------------- main ------------------------------------
if __name__ == "__main__":
    key = jax.random.PRNGKey(0)
    ks = jax.random.split(key, 8)

    x = jax.random.normal(ks[0], (B, C, H, W), dtype=jnp.float32)
    y = jnp.array([0, 2], dtype=jnp.int32)                       # per-sample class

    # Deterministic synthetic parameters (shapes per module __init__).
    codebooks = jax.random.normal(ks[1], (NCLASSES, K, DC), jnp.float32)   # nn.Embedding weights
    w1 = jax.random.normal(ks[2], (C, C), jnp.float32) * 0.1
    b1 = jnp.zeros((1, C), jnp.float32)
    w2 = jax.random.normal(ks[3], (C, DC), jnp.float32) * 0.1
    b2 = jnp.zeros((1, DC), jnp.float32)
    gin = jnp.ones((1, DC), jnp.float32)                         # LayerNorm(codebook_dim)
    bin_ = jnp.zeros((1, DC), jnp.float32)
    w3 = jax.random.normal(ks[4], (DC, C), jnp.float32) * 0.1
    b3 = jnp.zeros((1, C), jnp.float32)
    w4 = jax.random.normal(ks[5], (C, C), jnp.float32) * 0.1
    b4 = jnp.zeros((1, C), jnp.float32)
    gout = jnp.ones((1, C), jnp.float32)                         # LayerNorm(embedding_dim)
    bout = jnp.zeros((1, C), jnp.float32)
    params = (w1, b1, w2, b2, gin, bin_, w3, b3, w4, b4, gout, bout)

    q, idx, enc = vq_sample_pallas(x, y, codebooks, params)
    jax.block_until_ready((q, idx, enc))

    q_exp, idx_exp, enc_exp = vq_sample_ref(x, y, codebooks, params)
    assert jnp.allclose(q, q_exp, atol=1e-4), "quantized mismatch"
    assert jnp.array_equal(idx, idx_exp), "indices mismatch"
    assert jnp.allclose(enc, enc_exp), "encodings mismatch"

    print("KERNEL_OK")
</pallas_src>

<mosaic_0001>
module attributes {stable_mosaic.version = 11 : i64} {
  func.func @vq_kernel(%arg0: i32, %arg1: memref<2xi32, #tpu.memory_space<smem>>, %arg2: memref<128x32xf32, #tpu.memory_space<vmem>>, %arg3: memref<3x16x8xf32, #tpu.memory_space<vmem>>, %arg4: memref<80x32xf32, #tpu.memory_space<vmem>>, %arg5: memref<5x32xf32, #tpu.memory_space<vmem>>, %arg6: memref<3x8xf32, #tpu.memory_space<vmem>>, %arg7: memref<128x32xf32, #tpu.memory_space<vmem>>, %arg8: memref<128x16xf32, #tpu.memory_space<vmem>>) attributes {dimension_semantics = [#tpu.dimension_semantics<arbitrary>], iteration_bounds = array<i64: 1>, scalar_prefetch = 1 : i64, scratch_operands = 0 : i64, tpu.core_type = #tpu.core_type<tc>, window_params = [{pipeline_mode = #tpu.pipeline_mode<synchronous>, transform_indices = @transform_0, window_bounds = array<i64: 128, 32>}, {pipeline_mode = #tpu.pipeline_mode<synchronous>, transform_indices = @transform_1, window_bounds = array<i64: 3, 16, 8>}, {pipeline_mode = #tpu.pipeline_mode<synchronous>, transform_indices = @transform_2, window_bounds = array<i64: 80, 32>}, {pipeline_mode = #tpu.pipeline_mode<synchronous>, transform_indices = @transform_3, window_bounds = array<i64: 5, 32>}, {pipeline_mode = #tpu.pipeline_mode<synchronous>, transform_indices = @transform_4, window_bounds = array<i64: 3, 8>}, {pipeline_mode = #tpu.pipeline_mode<synchronous>, transform_indices = @transform_5, window_bounds = array<i64: 128, 32>}, {pipeline_mode = #tpu.pipeline_mode<synchronous>, transform_indices = @transform_6, window_bounds = array<i64: 128, 16>}]} {
    %c0 = arith.constant 0 : index
    %c0_0 = arith.constant 0 : index
    %0 = vector.load %arg2[%c0, %c0_0] : memref<128x32xf32, #tpu.memory_space<vmem>>, vector<128x32xf32>
    %c0_1 = arith.constant 0 : index
    %c0_2 = arith.constant 0 : index
    %1 = vector.load %arg4[%c0_1, %c0_2] : memref<80x32xf32, #tpu.memory_space<vmem>>, vector<32x32xf32>
    %c32 = arith.constant 32 : index
    %c0_3 = arith.constant 0 : index
    %2 = vector.load %arg4[%c32, %c0_3] : memref<80x32xf32, #tpu.memory_space<vmem>>, vector<32x32xf32>
    %c64 = arith.constant 64 : index
    %c0_4 = arith.constant 0 : index
    %3 = vector.load %arg4[%c64, %c0_4] : memref<80x32xf32, #tpu.memory_space<vmem>>, vector<8x32xf32>
    %c72 = arith.constant 72 : index
    %c0_5 = arith.constant 0 : index
    %4 = vector.load %arg4[%c72, %c0_5] : memref<80x32xf32, #tpu.memory_space<vmem>>, vector<8x32xf32>
    %c0_6 = arith.constant 0 : index
    %c0_7 = arith.constant 0 : index
    %5 = vector.load %arg5[%c0_6, %c0_7] : memref<5x32xf32, #tpu.memory_space<vmem>>, vector<1x32xf32>
    %c1 = arith.constant 1 : index
    %c0_8 = arith.constant 0 : index
    %6 = vector.load %arg5[%c1, %c0_8] : memref<5x32xf32, #tpu.memory_space<vmem>>, vector<1x32xf32>
    %c2 = arith.constant 2 : index
    %c0_9 = arith.constant 0 : index
    %7 = vector.load %arg5[%c2, %c0_9] : memref<5x32xf32, #tpu.memory_space<vmem>>, vector<1x32xf32>
    %c3 = arith.constant 3 : index
    %c0_10 = arith.constant 0 : index
    %8 = vector.load %arg5[%c3, %c0_10] : memref<5x32xf32, #tpu.memory_space<vmem>>, vector<1x32xf32>
    %c4 = arith.constant 4 : index
    %c0_11 = arith.constant 0 : index
    %9 = vector.load %arg5[%c4, %c0_11] : memref<5x32xf32, #tpu.memory_space<vmem>>, vector<1x32xf32>
    %c0_12 = arith.constant 0 : index
    %c0_13 = arith.constant 0 : index
    %10 = vector.load %arg6[%c0_12, %c0_13] : memref<3x8xf32, #tpu.memory_space<vmem>>, vector<1x8xf32>
    %c1_14 = arith.constant 1 : index
    %c0_15 = arith.constant 0 : index
    %11 = vector.load %arg6[%c1_14, %c0_15] : memref<3x8xf32, #tpu.memory_space<vmem>>, vector<1x8xf32>
    %c2_16 = arith.constant 2 : index
    %c0_17 = arith.constant 0 : index
    %12 = vector.load %arg6[%c2_16, %c0_17] : memref<3x8xf32, #tpu.memory_space<vmem>>, vector<1x8xf32>
    %cst = arith.constant dense<0.000000e+00> : vector<128x32xf32>
    %13 = tpu.matmul %0, %1, %cst {dimension_numbers = #tpu.dot_dimension_numbers<[1], [0], [0], [1], [0, 0, 1, 1], [], []>} : vector<128x32xf32>, vector<32x32xf32>, vector<128x32xf32> -> vector<128x32xf32>
    %14 = vector.broadcast %5 : vector<1x32xf32> to vector<128x32xf32>
    %15 = arith.addf %13, %14 : vector<128x32xf32>
    %cst_18 = arith.constant 0.000000e+00 : f32
    %16 = vector.broadcast %cst_18 : f32 to vector<128x32xf32>
    %17 = arith.maximumf %15, %16 : vector<128x32xf32>
    %18 = tpu.transpose %4, [1, 0] : vector<8x32xf32> -> vector<32x8xf32>
    %cst_19 = arith.constant dense<0.000000e+00> : vector<128x8xf32>
    %19 = tpu.matmul %17, %18, %cst_19 {dimension_numbers = #tpu.dot_dimension_numbers<[1], [0], [0], [1], [0, 0, 1, 1], [], []>} : vector<128x32xf32>, vector<32x8xf32>, vector<128x8xf32> -> vector<128x8xf32>
    %20 = vector.broadcast %10 : vector<1x8xf32> to vector<128x8xf32>
    %21 = arith.addf %19, %20 : vector<128x8xf32>
    %cst_20 = arith.constant dense<0.000000e+00> : vector<128xf32>
    %22 = vector.multi_reduction <add>, %21, %cst_20 [1] : vector<128x8xf32> to vector<128xf32>
    %23 = vector.shape_cast %22 : vector<128xf32> to vector<128x1xf32>
    %cst_21 = arith.constant 8.000000e+00 : f32
    %24 = vector.broadcast %cst_21 : f32 to vector<128x1xf32>
    %25 = arith.divf %23, %24 : vector<128x1xf32>
    %26 = vector.broadcast %25 : vector<128x1xf32> to vector<128x8xf32>
    %27 = arith.subf %21, %26 : vector<128x8xf32>
    %28 = arith.mulf %27, %27 : vector<128x8xf32>
    %cst_22 = arith.constant dense<0.000000e+00> : vector<128xf32>
    %29 = vector.multi_reduction <add>, %28, %cst_22 [1] : vector<128x8xf32> to vector<128xf32>
    %30 = vector.shape_cast %29 : vector<128xf32> to vector<128x1xf32>
    %cst_23 = arith.constant 8.000000e+00 : f32
    %31 = vector.broadcast %cst_23 : f32 to vector<128x1xf32>
    %32 = arith.divf %30, %31 : vector<128x1xf32>
    %33 = vector.broadcast %25 : vector<128x1xf32> to vector<128x8xf32>
    %34 = arith.subf %21, %33 : vector<128x8xf32>
    %cst_24 = arith.constant 9.99999974E-6 : f32
    %35 = vector.broadcast %cst_24 : f32 to vector<128x1xf32>
    %36 = arith.addf %32, %35 : vector<128x1xf32>
    %37 = math.rsqrt %36 : vector<128x1xf32>
    %38 = vector.broadcast %37 : vector<128x1xf32> to vector<128x8xf32>
    %39 = arith.mulf %34, %38 : vector<128x8xf32>
    %40 = vector.broadcast %11 : vector<1x8xf32> to vector<128x8xf32>
    %41 = arith.mulf %39, %40 : vector<128x8xf32>
    %42 = vector.broadcast %12 : vector<1x8xf32> to vector<128x8xf32>
    %43 = arith.addf %41, %42 : vector<128x8xf32>
    %c0_25 = arith.constant 0 : index
    %44 = memref.load %arg1[%c0_25] : memref<2xi32, #tpu.memory_space<smem>>
    %45 = arith.index_cast %44 : i32 to index
    %c0_26 = arith.constant 0 : index
    %c0_27 = arith.constant 0 : index
    %46 = vector.load %arg3[%45, %c0_26, %c0_27] : memref<3x16x8xf32, #tpu.memory_space<vmem>>, vector<1x16x8xf32>
    %47 = vector.shape_cast %46 : vector<1x16x8xf32> to vector<16x8xf32>
    %48 = vector.extract_strided_slice %43 {offsets = [0, 0], sizes = [64, 8], strides = [1, 1]} : vector<128x8xf32> to vector<64x8xf32>
    %49 = arith.mulf %47, %47 : vector<16x8xf32>
    %cst_28 = arith.constant dense<0.000000e+00> : vector<16xf32>
    %50 = vector.multi_reduction <add>, %49, %cst_28 [1] : vector<16x8xf32> to vector<16xf32>
    %51 = vector.shape_cast %50 : vector<16xf32> to vector<1x16xf32>
    %52 = tpu.transpose %47, [1, 0] : vector<16x8xf32> -> vector<8x16xf32>
    %cst_29 = arith.constant dense<0.000000e+00> : vector<64x16xf32>
    %53 = tpu.matmul %48, %52, %cst_29 {dimension_numbers = #tpu.dot_dimension_numbers<[1], [0], [0], [1], [0, 0, 1, 1], [], []>} : vector<64x8xf32>, vector<8x16xf32>, vector<64x16xf32> -> vector<64x16xf32>
    %cst_30 = arith.constant 2.000000e+00 : f32
    %54 = vector.broadcast %cst_30 : f32 to vector<64x16xf32>
    %55 = arith.mulf %54, %53 : vector<64x16xf32>
    %56 = vector.broadcast %51 : vector<1x16xf32> to vector<64x16xf32>
    %57 = arith.subf %56, %55 : vector<64x16xf32>
    %cst_31 = arith.constant dense<0x7F800000> : vector<64xf32>
    %58 = vector.multi_reduction <minimumf>, %57, %cst_31 [1] : vector<64x16xf32> to vector<64xf32>
    %59 = vector.shape_cast %58 : vector<64xf32> to vector<64x1xf32>
    %60 = tpu.iota {dimensions = array<i32: 1>} : vector<64x16xi32>
    %61 = vector.broadcast %59 : vector<64x1xf32> to vector<64x16xf32>
    %62 = arith.cmpf ole, %57, %61 : vector<64x16xf32>
    %c16_i32 = arith.constant 16 : i32
    %63 = vector.broadcast %c16_i32 : i32 to vector<64x16xi32>
    %64 = arith.select %62, %60, %63 : vector<64x16xi1>, vector<64x16xi32>
    %cst_32 = arith.constant dense<2147483647> : vector<64xi32>
    %65 = vector.multi_reduction <minsi>, %64, %cst_32 [1] : vector<64x16xi32> to vector<64xi32>
    %66 = vector.shape_cast %65 : vector<64xi32> to vector<64x1xi32>
    %67 = vector.broadcast %66 : vector<64x1xi32> to vector<64x16xi32>
    %68 = arith.cmpi eq, %60, %67 : vector<64x16xi32>
    %69 = arith.extui %68 : vector<64x16xi1> to vector<64x16xi32>
    %70 = arith.sitofp %69 : vector<64x16xi32> to vector<64x16xf32>
    %c0_33 = arith.constant 0 : index
    %c0_34 = arith.constant 0 : index
    %71 = vector.load %arg8[%c0_33, %c0_34] : memref<128x16xf32, #tpu.memory_space<vmem>>, vector<64x16xf32>
    tpu.vector_store %arg8[%c0_33, %c0_34], %70 {strides = array<i32>} : memref<128x16xf32, #tpu.memory_space<vmem>>, vector<64x16xf32>,
    %cst_35 = arith.constant dense<0.000000e+00> : vector<64x8xf32>
    %72 = tpu.matmul %70, %47, %cst_35 {dimension_numbers = #tpu.dot_dimension_numbers<[1], [0], [0], [1], [0, 0, 1, 1], [], []>} : vector<64x16xf32>, vector<16x8xf32>, vector<64x8xf32> -> vector<64x8xf32>
    %c1_36 = arith.constant 1 : index
    %73 = memref.load %arg1[%c1_36] : memref<2xi32, #tpu.memory_space<smem>>
    %74 = arith.index_cast %73 : i32 to index
    %c0_37 = arith.constant 0 : index
    %c0_38 = arith.constant 0 : index
    %75 = vector.load %arg3[%74, %c0_37, %c0_38] : memref<3x16x8xf32, #tpu.memory_space<vmem>>, vector<1x16x8xf32>
    %76 = vector.shape_cast %75 : vector<1x16x8xf32> to vector<16x8xf32>
    %77 = vector.extract_strided_slice %43 {offsets = [64, 0], sizes = [64, 8], strides = [1, 1]} : vector<128x8xf32> to vector<64x8xf32>
    %78 = arith.mulf %76, %76 : vector<16x8xf32>
    %cst_39 = arith.constant dense<0.000000e+00> : vector<16xf32>
    %79 = vector.multi_reduction <add>, %78, %cst_39 [1] : vector<16x8xf32> to vector<16xf32>
    %80 = vector.shape_cast %79 : vector<16xf32> to vector<1x16xf32>
    %81 = tpu.transpose %76, [1, 0] : vector<16x8xf32> -> vector<8x16xf32>
    %cst_40 = arith.constant dense<0.000000e+00> : vector<64x16xf32>
    %82 = tpu.matmul %77, %81, %cst_40 {dimension_numbers = #tpu.dot_dimension_numbers<[1], [0], [0], [1], [0, 0, 1, 1], [], []>} : vector<64x8xf32>, vector<8x16xf32>, vector<64x16xf32> -> vector<64x16xf32>
    %cst_41 = arith.constant 2.000000e+00 : f32
    %83 = vector.broadcast %cst_41 : f32 to vector<64x16xf32>
    %84 = arith.mulf %83, %82 : vector<64x16xf32>
    %85 = vector.broadcast %80 : vector<1x16xf32> to vector<64x16xf32>
    %86 = arith.subf %85, %84 : vector<64x16xf32>
    %cst_42 = arith.constant dense<0x7F800000> : vector<64xf32>
    %87 = vector.multi_reduction <minimumf>, %86, %cst_42 [1] : vector<64x16xf32> to vector<64xf32>
    %88 = vector.shape_cast %87 : vector<64xf32> to vector<64x1xf32>
    %89 = tpu.iota {dimensions = array<i32: 1>} : vector<64x16xi32>
    %90 = vector.broadcast %88 : vector<64x1xf32> to vector<64x16xf32>
    %91 = arith.cmpf ole, %86, %90 : vector<64x16xf32>
    %c16_i32_43 = arith.constant 16 : i32
    %92 = vector.broadcast %c16_i32_43 : i32 to vector<64x16xi32>
    %93 = arith.select %91, %89, %92 : vector<64x16xi1>, vector<64x16xi32>
    %cst_44 = arith.constant dense<2147483647> : vector<64xi32>
    %94 = vector.multi_reduction <minsi>, %93, %cst_44 [1] : vector<64x16xi32> to vector<64xi32>
    %95 = vector.shape_cast %94 : vector<64xi32> to vector<64x1xi32>
    %96 = vector.broadcast %95 : vector<64x1xi32> to vector<64x16xi32>
    %97 = arith.cmpi eq, %89, %96 : vector<64x16xi32>
    %98 = arith.extui %97 : vector<64x16xi1> to vector<64x16xi32>
    %99 = arith.sitofp %98 : vector<64x16xi32> to vector<64x16xf32>
    %c64_45 = arith.constant 64 : index
    %c0_46 = arith.constant 0 : index
    %100 = vector.load %arg8[%c64_45, %c0_46] : memref<128x16xf32, #tpu.memory_space<vmem>>, vector<64x16xf32>
    tpu.vector_store %arg8[%c64_45, %c0_46], %99 {strides = array<i32>} : memref<128x16xf32, #tpu.memory_space<vmem>>, vector<64x16xf32>,
    %cst_47 = arith.constant dense<0.000000e+00> : vector<64x8xf32>
    %101 = tpu.matmul %99, %76, %cst_47 {dimension_numbers = #tpu.dot_dimension_numbers<[1], [0], [0], [1], [0, 0, 1, 1], [], []>} : vector<64x16xf32>, vector<16x8xf32>, vector<64x8xf32> -> vector<64x8xf32>
    %102 = tpu.concatenate %72, %101 in 0 : vector<64x8xf32>, vector<64x8xf32> -> vector<128x8xf32>
    %cst_48 = arith.constant dense<0.000000e+00> : vector<128x32xf32>
    %103 = tpu.matmul %102, %3, %cst_48 {dimension_numbers = #tpu.dot_dimension_numbers<[1], [0], [0], [1], [0, 0, 1, 1], [], []>} : vector<128x8xf32>, vector<8x32xf32>, vector<128x32xf32> -> vector<128x32xf32>
    %104 = vector.broadcast %6 : vector<1x32xf32> to vector<128x32xf32>
    %105 = arith.addf %103, %104 : vector<128x32xf32>
    %cst_49 = arith.constant 0.000000e+00 : f32
    %106 = vector.broadcast %cst_49 : f32 to vector<128x32xf32>
    %107 = arith.maximumf %105, %106 : vector<128x32xf32>
    %cst_50 = arith.constant dense<0.000000e+00> : vector<128x32xf32>
    %108 = tpu.matmul %107, %2, %cst_50 {dimension_numbers = #tpu.dot_dimension_numbers<[1], [0], [0], [1], [0, 0, 1, 1], [], []>} : vector<128x32xf32>, vector<32x32xf32>, vector<128x32xf32> -> vector<128x32xf32>
    %109 = vector.broadcast %7 : vector<1x32xf32> to vector<128x32xf32>
    %110 = arith.addf %108, %109 : vector<128x32xf32>
    %cst_51 = arith.constant dense<0.000000e+00> : vector<128xf32>
    %111 = vector.multi_reduction <add>, %110, %cst_51 [1] : vector<128x32xf32> to vector<128xf32>
    %112 = vector.shape_cast %111 : vector<128xf32> to vector<128x1xf32>
    %cst_52 = arith.constant 3.200000e+01 : f32
    %113 = vector.broadcast %cst_52 : f32 to vector<128x1xf32>
    %114 = arith.divf %112, %113 : vector<128x1xf32>
    %115 = vector.broadcast %114 : vector<128x1xf32> to vector<128x32xf32>
    %116 = arith.subf %110, %115 : vector<128x32xf32>
    %117 = arith.mulf %116, %116 : vector<128x32xf32>
    %cst_53 = arith.constant dense<0.000000e+00> : vector<128xf32>
    %118 = vector.multi_reduction <add>, %117, %cst_53 [1] : vector<128x32xf32> to vector<128xf32>
    %119 = vector.shape_cast %118 : vector<128xf32> to vector<128x1xf32>
    %cst_54 = arith.constant 3.200000e+01 : f32
    %120 = vector.broadcast %cst_54 : f32 to vector<128x1xf32>
    %121 = arith.divf %119, %120 : vector<128x1xf32>
    %122 = vector.broadcast %114 : vector<128x1xf32> to vector<128x32xf32>
    %123 = arith.subf %110, %122 : vector<128x32xf32>
    %cst_55 = arith.constant 9.99999974E-6 : f32
    %124 = vector.broadcast %cst_55 : f32 to vector<128x1xf32>
    %125 = arith.addf %121, %124 : vector<128x1xf32>
    %126 = math.rsqrt %125 : vector<128x1xf32>
    %127 = vector.broadcast %126 : vector<128x1xf32> to vector<128x32xf32>
    %128 = arith.mulf %123, %127 : vector<128x32xf32>
    %129 = vector.broadcast %8 : vector<1x32xf32> to vector<128x32xf32>
    %130 = arith.mulf %128, %129 : vector<128x32xf32>
    %131 = vector.broadcast %9 : vector<1x32xf32> to vector<128x32xf32>
    %132 = arith.addf %130, %131 : vector<128x32xf32>
    %c0_56 = arith.constant 0 : index
    %c0_57 = arith.constant 0 : index
    %133 = vector.load %arg7[%c0_56, %c0_57] : memref<128x32xf32, #tpu.memory_space<vmem>>, vector<128x32xf32>
    tpu.vector_store %arg7[%c0_56, %c0_57], %132 {strides = array<i32>} : memref<128x32xf32, #tpu.memory_space<vmem>>, vector<128x32xf32>,
    return
  }
  func.func @transform_0(%arg0: i32, %arg1: memref<2xi32, #tpu.memory_space<smem>>) -> (i32, i32) {
    %c0_i32 = arith.constant 0 : i32
    %c0_i32_0 = arith.constant 0 : i32
    %c0_i32_1 = arith.constant 0 : i32
    return %c0_i32, %c0_i32_0 : i32, i32
  }
  func.func @transform_1(%arg0: i32, %arg1: memref<2xi32, #tpu.memory_space<smem>>) -> (i32, i32, i32) {
    %c0_i32 = arith.constant 0 : i32
    %c0_i32_0 = arith.constant 0 : i32
    %c0_i32_1 = arith.constant 0 : i32
    %c0_i32_2 = arith.constant 0 : i32
    return %c0_i32, %c0_i32_0, %c0_i32_1 : i32, i32, i32
  }
  func.func @transform_2(%arg0: i32, %arg1: memref<2xi32, #tpu.memory_space<smem>>) -> (i32, i32) {
    %c0_i32 = arith.constant 0 : i32
    %c0_i32_0 = arith.constant 0 : i32
    %c0_i32_1 = arith.constant 0 : i32
    return %c0_i32, %c0_i32_0 : i32, i32
  }
  func.func @transform_3(%arg0: i32, %arg1: memref<2xi32, #tpu.memory_space<smem>>) -> (i32, i32) {
    %c0_i32 = arith.constant 0 : i32
    %c0_i32_0 = arith.constant 0 : i32
    %c0_i32_1 = arith.constant 0 : i32
    return %c0_i32, %c0_i32_0 : i32, i32
  }
  func.func @transform_4(%arg0: i32, %arg1: memref<2xi32, #tpu.memory_space<smem>>) -> (i32, i32) {
    %c0_i32 = arith.constant 0 : i32
    %c0_i32_0 = arith.constant 0 : i32
    %c0_i32_1 = arith.constant 0 : i32
    return %c0_i32, %c0_i32_0 : i32, i32
  }
  func.func @transform_5(%arg0: i32, %arg1: memref<2xi32, #tpu.memory_space<smem>>) -> (i32, i32) {
    %c0_i32 = arith.constant 0 : i32
    %c0_i32_0 = arith.constant 0 : i32
    %c0_i32_1 = arith.constant 0 : i32
    return %c0_i32, %c0_i32_0 : i32, i32
  }
  func.func @transform_6(%arg0: i32, %arg1: memref<2xi32, #tpu.memory_space<smem>>) -> (i32, i32) {
    %c0_i32 = arith.constant 0 : i32
    %c0_i32_0 = arith.constant 0 : i32
    %c0_i32_1 = arith.constant 0 : i32
    return %c0_i32, %c0_i32_0 : i32, i32
  }
}

</mosaic_0001>

<llo_original>
// kernel: tpu_custom_call.1
$region0: #{tpu_custom_call.1}
  #allocation0 [shape = 'u32[]', space=smem, size = 0x4, offset = 0x4, fixed_abs, tag = 'smem constant byte address 0x4 - core index']
  #allocation1 [shape = 'u32[144,128]{1,0:T(1,128)}', space=vmem, size = 0x12000, scoped, tag = 'internal scratch']
  #allocation2 [shape = 's32[1]{0}', space=sflag, size = 0x4, scoped, tag = 'scoped memory for tpu_custom_call.1']
  #allocation3 [shape = 'u8[512]{0}', space=smem, size = 0x200, scoped, tag = 'prefetched SMEM operand 0']
  %s0 = inlined_call_operand.vmem [shape: s32[2], index: 0, kind: input, shape index: {}]
  %s1 = inlined_call_operand.vmem [shape: f32[128,32], index: 1, kind: input, shape index: {}]
  %s2 = inlined_call_operand.vmem [shape: f32[3,16,8], index: 2, kind: input, shape index: {}]
  %s3 = inlined_call_operand.vmem [shape: f32[80,32], index: 3, kind: input, shape index: {}]
  %s4 = inlined_call_operand.vmem [shape: f32[5,32], index: 4, kind: input, shape index: {}]
  %s5 = inlined_call_operand.vmem [shape: f32[3,8], index: 5, kind: input, shape index: {}]
  %s6 = inlined_call_operand.vmem [shape: f32[128,32], index: 6, kind: output, shape index: {0}]
  %s7 = inlined_call_operand.vmem [shape: f32[128,16], index: 7, kind: output, shape index: {1}]
  %8 = xla_tuple %s6, %s7
  %s9 = sld [smem:[#allocation0]]
  $region38: #{tpu_custom_call.1} parent=0
    _
  %s11 = ssub.s32 1, %s9
  %s12 = scalar_select 0, %s11, %s9
  %s13 = sshll.u32 %s0, 4
  %s14 = int_to_ptr.vmem [resolvable:$true] %s13
  %16 = dma.vmem_to_smem %s14, 16, [#allocation3], [#allocation2]
  %17 = dma.done [#allocation2], 16
  %18 = sfence
  // Predicated region
  $region2: #{tpu_custom_call.1} parent=0 // pred_check
    _
  $region3: #{tpu_custom_call.1} parent=0 // pred_check_branch
    %20 = sbr.rel (0) target = $region5
  $region4: #{tpu_custom_call.1} parent=0 // pred_region
    _
  $region5: #{tpu_custom_call.1} parent=0 // pred_fallthru
    _
  // Predicated region
  $region6: #{tpu_custom_call.1} parent=0 // pred_check
    _
  $region7: #{tpu_custom_call.1} parent=0 // pred_check_branch
    %22 = sbr.rel (0) target = $region9
  $region8: #{tpu_custom_call.1} parent=0 // pred_region
    _
  $region9: #{tpu_custom_call.1} parent=0 // pred_fallthru
    _
  // Predicated region
  $region10: #{tpu_custom_call.1} parent=0 // pred_check
    _
  $region11: #{tpu_custom_call.1} parent=0 // pred_check_branch
    %24 = sbr.rel (0) target = $region13
  $region12: #{tpu_custom_call.1} parent=0 // pred_region
    _
  $region13: #{tpu_custom_call.1} parent=0 // pred_fallthru
    _
  // Predicated region
  $region14: #{tpu_custom_call.1} parent=0 // pred_check
    _
  $region15: #{tpu_custom_call.1} parent=0 // pred_check_branch
    %26 = sbr.rel (0) target = $region17
  $region16: #{tpu_custom_call.1} parent=0 // pred_region
    _
  $region17: #{tpu_custom_call.1} parent=0 // pred_fallthru
    _
  // Predicated region
  $region18: #{tpu_custom_call.1} parent=0 // pred_check
    _
  $region19: #{tpu_custom_call.1} parent=0 // pred_check_branch
    %28 = sbr.rel (0) target = $region21
  $region20: #{tpu_custom_call.1} parent=0 // pred_region
    _
  $region21: #{tpu_custom_call.1} parent=0 // pred_fallthru
    _
  %v29 = vld [vmem:[%s1] sm:$0xff]
  %v30 = vld [vmem:[%s1 + $0x8] sm:$0xff]
  %v31 = vld [vmem:[%s1 + $0x10] sm:$0xff]
  %v32 = vld [vmem:[%s1 + $0x18] sm:$0xff]
  %v33 = vld [vmem:[%s1 + $0x20] sm:$0xff]
  %v34 = vld [vmem:[%s1 + $0x28] sm:$0xff]
  %v35 = vld [vmem:[%s1 + $0x30] sm:$0xff]
  %v36 = vld [vmem:[%s1 + $0x38] sm:$0xff]
  %v37 = vld [vmem:[%s1 + $0x40] sm:$0xff]
  %v38 = vld [vmem:[%s1 + $0x48] sm:$0xff]
  %v39 = vld [vmem:[%s1 + $0x50] sm:$0xff]
  %v40 = vld [vmem:[%s1 + $0x58] sm:$0xff]
  %v41 = vld [vmem:[%s1 + $0x60] sm:$0xff]
  %v42 = vld [vmem:[%s1 + $0x68] sm:$0xff]
  %v43 = vld [vmem:[%s1 + $0x70] sm:$0xff]
  %v44 = vld [vmem:[%s1 + $0x78] sm:$0xff]
  %v45 = vld [vmem:[%s3] sm:$0xff]
  %v46 = vld [vmem:[%s3 + $0x8] sm:$0xff]
  %v47 = vld [vmem:[%s3 + $0x10] sm:$0xff]
  %v48 = vld [vmem:[%s3 + $0x18] sm:$0xff]
  %v49 = vld [vmem:[%s3 + $0x20] sm:$0xff]
  %v50 = vld [vmem:[%s3 + $0x28] sm:$0xff]
  %v51 = vld [vmem:[%s3 + $0x30] sm:$0xff]
  %v52 = vld [vmem:[%s3 + $0x38] sm:$0xff]
  %v53 = vld [vmem:[%s3 + $0x40] sm:$0xff]
  %v54 = vld [vmem:[%s3 + $0x48] sm:$0xff]
  %v55 = vld [vmem:[%s4] sm:$0x1]
  %v56 = vld [vmem:[%s4 + $0x1] sm:$0x1]
  %v57 = vld [vmem:[%s4 + $0x2] sm:$0x1]
  %v58 = vld [vmem:[%s4 + $0x3] sm:$0x1]
  %v59 = vld [vmem:[%s4 + $0x4] sm:$0x1]
  %v60 = vld [vmem:[%s5] sm:$0x1]
  %v61 = vld [vmem:[%s5 + $0x1] sm:$0x1]
  %v62 = vld [vmem:[%s5 + $0x2] sm:$0x1]
  %v63 = vlaneseq
  %v64 = vshrl.u32 %v63, 7
  %v65 = vsub.s32 0, %v64
  %v66 = vrot.slane %v55, %v65
  %vm67 = vcmask 261120
  %v69 = vsel %vm67, %v29, 0
  %v72 = vsel %vm67, %v30, 0
  %v75 = vsel %vm67, %v31, 0
  %v78 = vsel %vm67, %v32, 0
  %v81 = vsel %vm67, %v33, 0
  %v84 = vsel %vm67, %v34, 0
  %v87 = vsel %vm67, %v35, 0
  %v90 = vsel %vm67, %v36, 0
  %v93 = vsel %vm67, %v37, 0
  %v96 = vsel %vm67, %v38, 0
  %v99 = vsel %vm67, %v39, 0
  %v102 = vsel %vm67, %v40, 0
  %v105 = vsel %vm67, %v41, 0
  %v108 = vsel %vm67, %v42, 0
  %v111 = vsel %vm67, %v43, 0
  %v114 = vsel %vm67, %v44, 0
  %116 = vmatprep.subr.mxu0 0.0
  %117 = vmatpush1.msra.mxu0 %v45
  %118 = vmatprep.subr.mxu0 0.0
  %119 = vmatpush1.msra.mxu0 %v46
  %120 = vmatprep.subr.mxu0 0.0
  %121 = vmatpush1.msra.mxu0 %v47
  %122 = vmatprep.subr.mxu0 0.0
  %123 = vmatpush1.msra.mxu0 %v48
  %124 = vmatprep.subr.mxu0 0.0
  %125 = vmatpush1.msra.mxu0 0.0
  %126 = vmatprep.subr.mxu0 0.0
  %127 = vmatpush1.msra.mxu0 0.0
  %128 = vmatprep.subr.mxu0 0.0
  %129 = vmatpush1.msra.mxu0 0.0
  %130 = vmatprep.subr.mxu0 0.0
  %131 = vmatpush1.msra.mxu0 0.0
  %132 = vmatprep.subr.mxu0 0.0
  %133 = vmatpush1.msra.mxu0 0.0
  %134 = vmatprep.subr.mxu0 0.0
  %135 = vmatpush1.msra.mxu0 0.0
  %136 = vmatprep.subr.mxu0 0.0
  %137 = vmatpush1.msra.mxu0 0.0
  %138 = vmatprep.subr.mxu0 0.0
  %139 = vmatpush1.msra.mxu0 0.0
  %140 = vmatprep.subr.mxu0 0.0
  %141 = vmatpush1.msra.mxu0 0.0
  %142 = vmatprep.subr.mxu0 0.0
  %143 = vmatpush1.msra.mxu0 0.0
  %144 = vmatprep.subr.mxu0 0.0
  %145 = vmatpush1.msra.mxu0 0.0
  %146 = vmatprep.subr.mxu0 0.0
  %147 = vmatpush1.msra.mxu0 0.0
  %148 = vmatprep.subr.mxu0 0.0
  %149 = vmatpush1.msra.mxu0 0.0
  %150 = vmatprep.subr.mxu0 0.0
  %151 = vmatpush1.msra.mxu0 0.0
  %152 = vmatprep.subr.mxu0 0.0
  %153 = vmatpush1.msra.mxu0 0.0
  %154 = vmatprep.subr.mxu0 0.0
  %155 = vmatpush1.msra.mxu0 0.0
  %156 = vmatprep.subr.mxu0 0.0
  %157 = vmatpush1.msra.mxu0 0.0
  %158 = vmatprep.subr.mxu0 0.0
  %159 = vmatpush1.msra.mxu0 0.0
  %160 = vmatprep.subr.mxu0 0.0
  %161 = vmatpush1.msra.mxu0 0.0
  %162 = vmatprep.subr.mxu0 0.0
  %163 = vmatpush1.msra.mxu0 0.0
  %164 = vmatprep.subr.mxu0 0.0
  %165 = vmatpush1.msra.mxu0 0.0
  %166 = vmatprep.subr.mxu0 0.0
  %167 = vmatpush1.msra.mxu0 0.0
  %168 = vmatprep.subr.mxu0 0.0
  %169 = vmatpush1.msra.mxu0 0.0
  %170 = vmatprep.subr.mxu0 0.0
  %171 = vmatpush1.msra.mxu0 0.0
  %172 = vmatprep.subr.mxu0 0.0
  %173 = vmatpush1.msra.mxu0 0.0
  %174 = vmatprep.subr.mxu0 0.0
  %175 = vmatpush1.msra.mxu0 0.0
  %176 = vmatprep.subr.mxu0 0.0
  %177 = vmatpush1.msra.mxu0 0.0
  %178 = vmatprep.subr.mxu0 0.0
  %179 = vmatpush1.msra.mxu0 0.0
  %180 = vmatprep.mubr.f32.mxu0 0.0
  %181 = vmatmul.mubr.f32.gmra.mrb[0].mxu0 %v69
  %v182 = vpop.f32.mrb[0].mxu0
  %v183 = vadd.f32 %v66, %v182
  %v184 = vpop.f32.mrb[0].mxu0
  %185 = vmatprep.mubr.f32.mxu0 0.0
  %186 = vmatmul.mubr.f32.gmra.mrb[0].mxu0 %v72
  %v187 = vpop.f32.mrb[0].mxu0
  %v188 = vadd.f32 %v66, %v187
  %v189 = vpop.f32.mrb[0].mxu0
  %190 = vmatprep.mubr.f32.mxu0 0.0
  %191 = vmatmul.mubr.f32.gmra.mrb[0].mxu0 %v75
  %v192 = vpop.f32.mrb[0].mxu0
  %v193 = vadd.f32 %v66, %v192
  %v194 = vpop.f32.mrb[0].mxu0
  %195 = vmatprep.mubr.f32.mxu0 0.0
  %196 = vmatmul.mubr.f32.gmra.mrb[0].mxu0 %v78
  %v197 = vpop.f32.mrb[0].mxu0
  %v198 = vadd.f32 %v66, %v197
  %v199 = vpop.f32.mrb[0].mxu0
  %200 = vmatprep.mubr.f32.mxu0 0.0
  %201 = vmatmul.mubr.f32.gmra.mrb[0].mxu0 %v81
  %v202 = vpop.f32.mrb[0].mxu0
  %v203 = vadd.f32 %v66, %v202
  %v204 = vpop.f32.mrb[0].mxu0
  %205 = vmatprep.mubr.f32.mxu0 0.0
  %206 = vmatmul.mubr.f32.gmra.mrb[0].mxu0 %v84
  %v207 = vpop.f32.mrb[0].mxu0
  %v208 = vadd.f32 %v66, %v207
  %v209 = vpop.f32.mrb[0].mxu0
  %210 = vmatprep.mubr.f32.mxu0 0.0
  %211 = vmatmul.mubr.f32.gmra.mrb[0].mxu0 %v87
  %v212 = vpop.f32.mrb[0].mxu0
  %v213 = vadd.f32 %v66, %v212
  %v214 = vpop.f32.mrb[0].mxu0
  %215 = vmatprep.mubr.f32.mxu0 0.0
  %216 = vmatmul.mubr.f32.gmra.mrb[0].mxu0 %v90
  %v217 = vpop.f32.mrb[0].mxu0
  %v218 = vadd.f32 %v66, %v217
  %v219 = vpop.f32.mrb[0].mxu0
  %220 = vmatprep.mubr.f32.mxu0 0.0
  %221 = vmatmul.mubr.f32.gmra.mrb[0].mxu0 %v93
  %v222 = vpop.f32.mrb[0].mxu0
  %v223 = vadd.f32 %v66, %v222
  %v224 = vpop.f32.mrb[0].mxu0
  %225 = vmatprep.mubr.f32.mxu0 0.0
  %226 = vmatmul.mubr.f32.gmra.mrb[0].mxu0 %v96
  %v227 = vpop.f32.mrb[0].mxu0
  %v228 = vadd.f32 %v66, %v227
  %v229 = vpop.f32.mrb[0].mxu0
  %230 = vmatprep.mubr.f32.mxu0 0.0
  %231 = vmatmul.mubr.f32.gmra.mrb[0].mxu0 %v99
  %v232 = vpop.f32.mrb[0].mxu0
  %v233 = vadd.f32 %v66, %v232
  %v234 = vpop.f32.mrb[0].mxu0
  %235 = vmatprep.mubr.f32.mxu0 0.0
  %236 = vmatmul.mubr.f32.gmra.mrb[0].mxu0 %v102
  %v237 = vpop.f32.mrb[0].mxu0
  %v238 = vadd.f32 %v66, %v237
  %v239 = vpop.f32.mrb[0].mxu0
  %240 = vmatprep.mubr.f32.mxu0 0.0
  %241 = vmatmul.mubr.f32.gmra.mrb[0].mxu0 %v105
  %v242 = vpop.f32.mrb[0].mxu0
  %v243 = vadd.f32 %v66, %v242
  %v244 = vpop.f32.mrb[0].mxu0
  %245 = vmatprep.mubr.f32.mxu0 0.0
  %246 = vmatmul.mubr.f32.gmra.mrb[0].mxu0 %v108
  %v247 = vpop.f32.mrb[0].mxu0
  %v248 = vadd.f32 %v66, %v247
  %v249 = vpop.f32.mrb[0].mxu0
  %250 = vmatprep.mubr.f32.mxu0 0.0
  %251 = vmatmul.mubr.f32.gmra.mrb[0].mxu0 %v111
  %v252 = vpop.f32.mrb[0].mxu0
  %v253 = vadd.f32 %v66, %v252
  %v254 = vpop.f32.mrb[0].mxu0
  %255 = vmatprep.mubr.f32.mxu0 0.0
  %256 = vmatmul.mubr.f32.gmra.mrb[0].mxu0 %v114
  %v257 = vpop.f32.mrb[0].mxu0
  %v258 = vadd.f32 %v66, %v257
  %v259 = vpop.f32.mrb[0].mxu0
  %260 = vdwg.mxu0
  %v261 = vmax.f32 %v183, 0.0
  %v262 = vmax.f32 %v188, 0.0
  %v263 = vmax.f32 %v193, 0.0
  %v264 = vmax.f32 %v198, 0.0
  %v265 = vmax.f32 %v203, 0.0
  %v266 = vmax.f32 %v208, 0.0
  %v267 = vmax.f32 %v213, 0.0
  %v268 = vmax.f32 %v218, 0.0
  %v269 = vmax.f32 %v223, 0.0
  %v270 = vmax.f32 %v228, 0.0
  %v271 = vmax.f32 %v233, 0.0
  %v272 = vmax.f32 %v238, 0.0
  %v273 = vmax.f32 %v243, 0.0
  %v274 = vmax.f32 %v248, 0.0
  %v275 = vmax.f32 %v253, 0.0
  %v276 = vmax.f32 %v258, 0.0
  %v277 = vlaneseq
  %v278 = vshrl.u32 %v277, 7
  %v279 = vsub.s32 0, %v278
  %v280 = vrot.slane %v60, %v279
  %v282 = vsel %vm67, %v261, 0
  %v285 = vsel %vm67, %v262, 0
  %v288 = vsel %vm67, %v263, 0
  %v291 = vsel %vm67, %v264, 0
  %v294 = vsel %vm67, %v265, 0
  %v297 = vsel %vm67, %v266, 0
  %v300 = vsel %vm67, %v267, 0
  %v303 = vsel %vm67, %v268, 0
  %v306 = vsel %vm67, %v269, 0
  %v309 = vsel %vm67, %v270, 0
  %v312 = vsel %vm67, %v271, 0
  %v315 = vsel %vm67, %v272, 0
  %v318 = vsel %vm67, %v273, 0
  %v321 = vsel %vm67, %v274, 0
  %v324 = vsel %vm67, %v275, 0
  %v327 = vsel %vm67, %v276, 0
  %v330 = vsel %vm67, %v54, 0
  %332 = vmatprep.subr.mxu0 0.0
  %333 = vmatpush1.xpose.msra.mxu0 %v330
  %334 = vmatprep.subr.mxu0 0.0
  %335 = vmatpush1.xpose.msra.mxu0 0.0
  %336 = vmatprep.subr.mxu0 0.0
  %337 = vmatpush1.xpose.msra.mxu0 0.0
  %338 = vmatprep.subr.mxu0 0.0
  %339 = vmatpush1.xpose.msra.mxu0 0.0
  %340 = vmatprep.subr.mxu0 0.0
  %341 = vmatpush1.xpose.msra.mxu0 0.0
  %342 = vmatprep.subr.mxu0 0.0
  %343 = vmatpush1.xpose.msra.mxu0 0.0
  %344 = vmatprep.subr.mxu0 0.0
  %345 = vmatpush1.xpose.msra.mxu0 0.0
  %346 = vmatprep.subr.mxu0 0.0
  %347 = vmatpush1.xpose.msra.mxu0 0.0
  %348 = vmatprep.subr.mxu0 0.0
  %349 = vmatpush1.xpose.msra.mxu0 0.0
  %350 = vmatprep.subr.mxu0 0.0
  %351 = vmatpush1.xpose.msra.mxu0 0.0
  %352 = vmatprep.subr.mxu0 0.0
  %353 = vmatpush1.xpose.msra.mxu0 0.0
  %354 = vmatprep.subr.mxu0 0.0
  %355 = vmatpush1.xpose.msra.mxu0 0.0
  %356 = vmatprep.subr.mxu0 0.0
  %357 = vmatpush1.xpose.msra.mxu0 0.0
  %358 = vmatprep.subr.mxu0 0.0
  %359 = vmatpush1.xpose.msra.mxu0 0.0
  %360 = vmatprep.subr.mxu0 0.0
  %361 = vmatpush1.xpose.msra.mxu0 0.0
  %362 = vmatprep.subr.mxu0 0.0
  %363 = vmatpush1.xpose.msra.mxu0 0.0
  %364 = vmatprep.subr.mxu0 0.0
  %365 = vmatpush1.xpose.msra.mxu0 0.0
  %366 = vmatprep.subr.mxu0 0.0
  %367 = vmatpush1.xpose.msra.mxu0 0.0
  %368 = vmatprep.subr.mxu0 0.0
  %369 = vmatpush1.xpose.msra.mxu0 0.0
  %370 = vmatprep.subr.mxu0 0.0
  %371 = vmatpush1.xpose.msra.mxu0 0.0
  %372 = vmatprep.subr.mxu0 0.0
  %373 = vmatpush1.xpose.msra.mxu0 0.0
  %374 = vmatprep.subr.mxu0 0.0
  %375 = vmatpush1.xpose.msra.mxu0 0.0
  %376 = vmatprep.subr.mxu0 0.0
  %377 = vmatpush1.xpose.msra.mxu0 0.0
  %378 = vmatprep.subr.mxu0 0.0
  %379 = vmatpush1.xpose.msra.mxu0 0.0
  %380 = vmatprep.subr.mxu0 0.0
  %381 = vmatpush1.xpose.msra.mxu0 0.0
  %382 = vmatprep.subr.mxu0 0.0
  %383 = vmatpush1.xpose.msra.mxu0 0.0
  %384 = vmatprep.subr.mxu0 0.0
  %385 = vmatpush1.xpose.msra.mxu0 0.0
  %386 = vmatprep.subr.mxu0 0.0
  %387 = vmatpush1.xpose.msra.mxu0 0.0
  %388 = vmatprep.subr.mxu0 0.0
  %389 = vmatpush1.xpose.msra.mxu0 0.0
  %390 = vmatprep.subr.mxu0 0.0
  %391 = vmatpush1.xpose.msra.mxu0 0.0
  %392 = vmatprep.subr.mxu0 0.0
  %393 = vmatpush1.xpose.msra.mxu0 0.0
  %394 = vmatprep.subr.mxu0 0.0
  %395 = vmatpush1.xpose.msra.mxu0 0.0
  %396 = vmatprep.mubr.f32.mxu0 0.0
  %397 = vmatmul.mubr.f32.gmra.mrb[0].mxu0 %v282
  %v398 = vpop.f32.mrb[0].mxu0
  %v399 = vadd.f32 %v280, %v398
  %v400 = vpop.f32.mrb[0].mxu0
  %401 = vmatprep.mubr.f32.mxu0 0.0
  %402 = vmatmul.mubr.f32.gmra.mrb[0].mxu0 %v285
  %v403 = vpop.f32.mrb[0].mxu0
  %v404 = vadd.f32 %v280, %v403
  %v405 = vpop.f32.mrb[0].mxu0
  %406 = vmatprep.mubr.f32.mxu0 0.0
  %407 = vmatmul.mubr.f32.gmra.mrb[0].mxu0 %v288
  %v408 = vpop.f32.mrb[0].mxu0
  %v409 = vadd.f32 %v280, %v408
  %v410 = vpop.f32.mrb[0].mxu0
  %411 = vmatprep.mubr.f32.mxu0 0.0
  %412 = vmatmul.mubr.f32.gmra.mrb[0].mxu0 %v291
  %v413 = vpop.f32.mrb[0].mxu0
  %v414 = vadd.f32 %v280, %v413
  %v415 = vpop.f32.mrb[0].mxu0
  %416 = vmatprep.mubr.f32.mxu0 0.0
  %417 = vmatmul.mubr.f32.gmra.mrb[0].mxu0 %v294
  %v418 = vpop.f32.mrb[0].mxu0
  %v419 = vadd.f32 %v280, %v418
  %v420 = vpop.f32.mrb[0].mxu0
  %421 = vmatprep.mubr.f32.mxu0 0.0
  %422 = vmatmul.mubr.f32.gmra.mrb[0].mxu0 %v297
  %v423 = vpop.f32.mrb[0].mxu0
  %v424 = vadd.f32 %v280, %v423
  %v425 = vpop.f32.mrb[0].mxu0
  %426 = vmatprep.mubr.f32.mxu0 0.0
  %427 = vmatmul.mubr.f32.gmra.mrb[0].mxu0 %v300
  %v428 = vpop.f32.mrb[0].mxu0
  %v429 = vadd.f32 %v280, %v428
  %v430 = vpop.f32.mrb[0].mxu0
  %431 = vmatprep.mubr.f32.mxu0 0.0
  %432 = vmatmul.mubr.f32.gmra.mrb[0].mxu0 %v303
  %v433 = vpop.f32.mrb[0].mxu0
  %v434 = vadd.f32 %v280, %v433
  %v435 = vpop.f32.mrb[0].mxu0
  %436 = vmatprep.mubr.f32.mxu0 0.0
  %437 = vmatmul.mubr.f32.gmra.mrb[0].mxu0 %v306
  %v438 = vpop.f32.mrb[0].mxu0
  %v439 = vadd.f32 %v280, %v438
  %v440 = vpop.f32.mrb[0].mxu0
  %441 = vmatprep.mubr.f32.mxu0 0.0
  %442 = vmatmul.mubr.f32.gmra.mrb[0].mxu0 %v309
  %v443 = vpop.f32.mrb[0].mxu0
  %v444 = vadd.f32 %v280, %v443
  %v445 = vpop.f32.mrb[0].mxu0
  %446 = vmatprep.mubr.f32.mxu0 0.0
  %447 = vmatmul.mubr.f32.gmra.mrb[0].mxu0 %v312
  %v448 = vpop.f32.mrb[0].mxu0
  %v449 = vadd.f32 %v280, %v448
  %v450 = vpop.f32.mrb[0].mxu0
  %451 = vmatprep.mubr.f32.mxu0 0.0
  %452 = vmatmul.mubr.f32.gmra.mrb[0].mxu0 %v315
  %v453 = vpop.f32.mrb[0].mxu0
  %v454 = vadd.f32 %v280, %v453
  %v455 = vpop.f32.mrb[0].mxu0
  %456 = vmatprep.mubr.f32.mxu0 0.0
  %457 = vmatmul.mubr.f32.gmra.mrb[0].mxu0 %v318
  %v458 = vpop.f32.mrb[0].mxu0
  %v459 = vadd.f32 %v280, %v458
  %v460 = vpop.f32.mrb[0].mxu0
  %461 = vmatprep.mubr.f32.mxu0 0.0
  %462 = vmatmul.mubr.f32.gmra.mrb[0].mxu0 %v321
  %v463 = vpop.f32.mrb[0].mxu0
  %v464 = vadd.f32 %v280, %v463
  %v465 = vpop.f32.mrb[0].mxu0
  %466 = vmatprep.mubr.f32.mxu0 0.0
  %467 = vmatmul.mubr.f32.gmra.mrb[0].mxu0 %v324
  %v468 = vpop.f32.mrb[0].mxu0
  %v469 = vadd.f32 %v280, %v468
  %v470 = vpop.f32.mrb[0].mxu0
  %471 = vmatprep.mubr.f32.mxu0 0.0
  %472 = vmatmul.mubr.f32.gmra.mrb[0].mxu0 %v327
  %v473 = vpop.f32.mrb[0].mxu0
  %v474 = vadd.f32 %v280, %v473
  %v475 = vpop.f32.mrb[0].mxu0
  %476 = vdwg.mxu0
  %vm477 = vcmask 64512
  %v478 = vsel %vm477, %v399, 0.0
  %479 = vadd.xlane.f32.xlu0 %v478
  %v480 = vpop.xlane.xlu0 %479
  %v481 = vsel %vm477, %v404, 0.0
  %482 = vadd.xlane.f32.xlu0 %v481
  %v483 = vpop.xlane.xlu0 %482
  %v484 = vsel %vm477, %v409, 0.0
  %485 = vadd.xlane.f32.xlu0 %v484
  %v486 = vpop.xlane.xlu0 %485
  %v487 = vsel %vm477, %v414, 0.0
  %488 = vadd.xlane.f32.xlu0 %v487
  %v489 = vpop.xlane.xlu0 %488
  %v490 = vsel %vm477, %v419, 0.0
  %491 = vadd.xlane.f32.xlu0 %v490
  %v492 = vpop.xlane.xlu0 %491
  %v493 = vsel %vm477, %v424, 0.0
  %494 = vadd.xlane.f32.xlu0 %v493
  %v495 = vpop.xlane.xlu0 %494
  %v496 = vsel %vm477, %v429, 0.0
  %497 = vadd.xlane.f32.xlu0 %v496
  %v498 = vpop.xlane.xlu0 %497
  %v499 = vsel %vm477, %v434, 0.0
  %500 = vadd.xlane.f32.xlu0 %v499
  %v501 = vpop.xlane.xlu0 %500
  %v502 = vsel %vm477, %v439, 0.0
  %503 = vadd.xlane.f32.xlu0 %v502
  %v504 = vpop.xlane.xlu0 %503
  %v505 = vsel %vm477, %v444, 0.0
  %506 = vadd.xlane.f32.xlu0 %v505
  %v507 = vpop.xlane.xlu0 %506
  %v508 = vsel %vm477, %v449, 0.0
  %509 = vadd.xlane.f32.xlu0 %v508
  %v510 = vpop.xlane.xlu0 %509
  %v511 = vsel %vm477, %v454, 0.0
  %512 = vadd.xlane.f32.xlu0 %v511
  %v513 = vpop.xlane.xlu0 %512
  %v514 = vsel %vm477, %v459, 0.0
  %515 = vadd.xlane.f32.xlu0 %v514
  %v516 = vpop.xlane.xlu0 %515
  %v517 = vsel %vm477, %v464, 0.0
  %518 = vadd.xlane.f32.xlu0 %v517
  %v519 = vpop.xlane.xlu0 %518
  %v520 = vsel %vm477, %v469, 0.0
  %521 = vadd.xlane.f32.xlu0 %v520
  %v522 = vpop.xlane.xlu0 %521
  %v523 = vsel %vm477, %v474, 0.0
  %524 = vadd.xlane.f32.xlu0 %v523
  %v525 = vpop.xlane.xlu0 %524
  %v526 = vrcp.pop 8.0
  %v527 = vmul.f32 %v480, %v526
  %v528 = vmul.f32 %v483, %v526
  %v529 = vmul.f32 %v486, %v526
  %v530 = vmul.f32 %v489, %v526
  %v531 = vmul.f32 %v492, %v526
  %v532 = vmul.f32 %v495, %v526
  %v533 = vmul.f32 %v498, %v526
  %v534 = vmul.f32 %v501, %v526
  %v535 = vmul.f32 %v504, %v526
  %v536 = vmul.f32 %v507, %v526
  %v537 = vmul.f32 %v510, %v526
  %v538 = vmul.f32 %v513, %v526
  %v539 = vmul.f32 %v516, %v526
  %v540 = vmul.f32 %v519, %v526
  %v541 = vmul.f32 %v522, %v526
  %v542 = vmul.f32 %v525, %v526
  %v543 = vsub.f32 %v399, %v527
  %v544 = vsub.f32 %v404, %v528
  %v545 = vsub.f32 %v409, %v529
  %v546 = vsub.f32 %v414, %v530
  %v547 = vsub.f32 %v419, %v531
  %v548 = vsub.f32 %v424, %v532
  %v549 = vsub.f32 %v429, %v533
  %v550 = vsub.f32 %v434, %v534
  %v551 = vsub.f32 %v439, %v535
  %v552 = vsub.f32 %v444, %v536
  %v553 = vsub.f32 %v449, %v537
  %v554 = vsub.f32 %v454, %v538
  %v555 = vsub.f32 %v459, %v539
  %v556 = vsub.f32 %v464, %v540
  %v557 = vsub.f32 %v469, %v541
  %v558 = vsub.f32 %v474, %v542
  %v559 = vmul.f32 %v543, %v543
  %v560 = vmul.f32 %v544, %v544
  %v561 = vmul.f32 %v545, %v545
  %v562 = vmul.f32 %v546, %v546
  %v563 = vmul.f32 %v547, %v547
  %v564 = vmul.f32 %v548, %v548
  %v565 = vmul.f32 %v549, %v549
  %v566 = vmul.f32 %v550, %v550
  %v567 = vmul.f32 %v551, %v551
  %v568 = vmul.f32 %v552, %v552
  %v569 = vmul.f32 %v553, %v553
  %v570 = vmul.f32 %v554, %v554
  %v571 = vmul.f32 %v555, %v555
  %v572 = vmul.f32 %v556, %v556
  %v573 = vmul.f32 %v557, %v557
  %v574 = vmul.f32 %v558, %v558
  %v575 = vsel %vm477, %v559, 0.0
  %576 = vadd.xlane.f32.xlu0 %v575
  %v577 = vpop.xlane.xlu0 %576
  %v578 = vsel %vm477, %v560, 0.0
  %579 = vadd.xlane.f32.xlu0 %v578
  %v580 = vpop.xlane.xlu0 %579
  %v581 = vsel %vm477, %v561, 0.0
  %582 = vadd.xlane.f32.xlu0 %v581
  %v583 = vpop.xlane.xlu0 %582
  %v584 = vsel %vm477, %v562, 0.0
  %585 = vadd.xlane.f32.xlu0 %v584
  %v586 = vpop.xlane.xlu0 %585
  %v587 = vsel %vm477, %v563, 0.0
  %588 = vadd.xlane.f32.xlu0 %v587
  %v589 = vpop.xlane.xlu0 %588
  %v590 = vsel %vm477, %v564, 0.0
  %591 = vadd.xlane.f32.xlu0 %v590
  %v592 = vpop.xlane.xlu0 %591
  %v593 = vsel %vm477, %v565, 0.0
  %594 = vadd.xlane.f32.xlu0 %v593
  %v595 = vpop.xlane.xlu0 %594
  %v596 = vsel %vm477, %v566, 0.0
  %597 = vadd.xlane.f32.xlu0 %v596
  %v598 = vpop.xlane.xlu0 %597
  %v599 = vsel %vm477, %v567, 0.0
  %600 = vadd.xlane.f32.xlu0 %v599
  %v601 = vpop.xlane.xlu0 %600
  %v602 = vsel %vm477, %v568, 0.0
  %603 = vadd.xlane.f32.xlu0 %v602
  %v604 = vpop.xlane.xlu0 %603
  %v605 = vsel %vm477, %v569, 0.0
  %606 = vadd.xlane.f32.xlu0 %v605
  %v607 = vpop.xlane.xlu0 %606
  %v608 = vsel %vm477, %v570, 0.0
  %609 = vadd.xlane.f32.xlu0 %v608
  %v610 = vpop.xlane.xlu0 %609
  %v611 = vsel %vm477, %v571, 0.0
  %612 = vadd.xlane.f32.xlu0 %v611
  %v613 = vpop.xlane.xlu0 %612
  %v614 = vsel %vm477, %v572, 0.0
  %615 = vadd.xlane.f32.xlu0 %v614
  %v616 = vpop.xlane.xlu0 %615
  %v617 = vsel %vm477, %v573, 0.0
  %618 = vadd.xlane.f32.xlu0 %v617
  %v619 = vpop.xlane.xlu0 %618
  %v620 = vsel %vm477, %v574, 0.0
  %621 = vadd.xlane.f32.xlu0 %v620
  %v622 = vpop.xlane.xlu0 %621
  %v623 = vmul.f32 %v577, %v526
  %v624 = vmul.f32 %v580, %v526
  %v625 = vmul.f32 %v583, %v526
  %v626 = vmul.f32 %v586, %v526
  %v627 = vmul.f32 %v589, %v526
  %v628 = vmul.f32 %v592, %v526
  %v629 = vmul.f32 %v595, %v526
  %v630 = vmul.f32 %v598, %v526
  %v631 = vmul.f32 %v601, %v526
  %v632 = vmul.f32 %v604, %v526
  %v633 = vmul.f32 %v607, %v526
  %v634 = vmul.f32 %v610, %v526
  %v635 = vmul.f32 %v613, %v526
  %v636 = vmul.f32 %v616, %v526
  %v637 = vmul.f32 %v619, %v526
  %v638 = vmul.f32 %v622, %v526
  %v639 = vadd.f32 %v623, 1e-05
  %v640 = vadd.f32 %v624, 1e-05
  %v641 = vadd.f32 %v625, 1e-05
  %v642 = vadd.f32 %v626, 1e-05
  %v643 = vadd.f32 %v627, 1e-05
  %v644 = vadd.f32 %v628, 1e-05
  %v645 = vadd.f32 %v629, 1e-05
  %v646 = vadd.f32 %v630, 1e-05
  %v647 = vadd.f32 %v631, 1e-05
  %v648 = vadd.f32 %v632, 1e-05
  %v649 = vadd.f32 %v633, 1e-05
  %v650 = vadd.f32 %v634, 1e-05
  %v651 = vadd.f32 %v635, 1e-05
  %v652 = vadd.f32 %v636, 1e-05
  %v653 = vadd.f32 %v637, 1e-05
  %v654 = vadd.f32 %v638, 1e-05
  %v655 = vrsqrt.pop %v639
  %v656 = vrsqrt.pop %v640
  %v657 = vrsqrt.pop %v641
  %v658 = vrsqrt.pop %v642
  %v659 = vrsqrt.pop %v643
  %v660 = vrsqrt.pop %v644
  %v661 = vrsqrt.pop %v645
  %v662 = vrsqrt.pop %v646
  %v663 = vrsqrt.pop %v647
  %v664 = vrsqrt.pop %v648
  %v665 = vrsqrt.pop %v649
  %v666 = vrsqrt.pop %v650
  %v667 = vrsqrt.pop %v651
  %v668 = vrsqrt.pop %v652
  %v669 = vrsqrt.pop %v653
  %v670 = vrsqrt.pop %v654
  %v671 = vmul.f32 %v543, %v655
  %v672 = vmul.f32 %v544, %v656
  %v673 = vmul.f32 %v545, %v657
  %v674 = vmul.f32 %v546, %v658
  %v675 = vmul.f32 %v547, %v659
  %v676 = vmul.f32 %v548, %v660
  %v677 = vmul.f32 %v549, %v661
  %v678 = vmul.f32 %v550, %v662
  %v679 = vmul.f32 %v551, %v663
  %v680 = vmul.f32 %v552, %v664
  %v681 = vmul.f32 %v553, %v665
  %v682 = vmul.f32 %v554, %v666
  %v683 = vmul.f32 %v555, %v667
  %v684 = vmul.f32 %v556, %v668
  %v685 = vmul.f32 %v557, %v669
  %v686 = vmul.f32 %v558, %v670
  %v687 = vlaneseq
  %v688 = vshrl.u32 %v687, 7
  %v689 = vsub.s32 0, %v688
  %v690 = vrot.slane %v61, %v689
  %v691 = vmul.f32 %v671, %v690
  %v692 = vmul.f32 %v672, %v690
  %v693 = vmul.f32 %v673, %v690
  %v694 = vmul.f32 %v674, %v690
  %v695 = vmul.f32 %v675, %v690
  %v696 = vmul.f32 %v676, %v690
  %v697 = vmul.f32 %v677, %v690
  %v698 = vmul.f32 %v678, %v690
  %v699 = vmul.f32 %v679, %v690
  %v700 = vmul.f32 %v680, %v690
  %v701 = vmul.f32 %v681, %v690
  %v702 = vmul.f32 %v682, %v690
  %v703 = vmul.f32 %v683, %v690
  %v704 = vmul.f32 %v684, %v690
  %v705 = vmul.f32 %v685, %v690
  %v706 = vmul.f32 %v686, %v690
  %v707 = vlaneseq
  %v708 = vshrl.u32 %v707, 7
  %v709 = vsub.s32 0, %v708
  %v710 = vrot.slane %v62, %v709
  %v711 = vadd.f32 %v691, %v710
  %v712 = vadd.f32 %v692, %v710
  %v713 = vadd.f32 %v693, %v710
  %v714 = vadd.f32 %v694, %v710
  %v715 = vadd.f32 %v695, %v710
  %v716 = vadd.f32 %v696, %v710
  %v717 = vadd.f32 %v697, %v710
  %v718 = vadd.f32 %v698, %v710
  %v719 = vadd.f32 %v699, %v710
  %v720 = vadd.f32 %v700, %v710
  %v721 = vadd.f32 %v701, %v710
  %v722 = vadd.f32 %v702, %v710
  %v723 = vadd.f32 %v703, %v710
  %v724 = vadd.f32 %v704, %v710
  %v725 = vadd.f32 %v705, %v710
  %v726 = vadd.f32 %v706, %v710
  %s727 = sld [smem:[#allocation3]]
  %s728 = smul.u32 %s727, 16
  %s729 = scalar_lea.vmem %s2, %s728
  %v730 = vld [vmem:[%s729] sm:$0xff]
  %v731 = vld [vmem:[%s729 + $0x8] sm:$0xff]
  %v732 = vmul.f32 %v730, %v730
  %v733 = vmul.f32 %v731, %v731
  %v734 = vsel %vm477, %v732, 0.0
  %735 = vadd.xlane.f32.xlu0 %v734
  %v736 = vpop.xlane.xlu0 %735
  %v737 = vsel %vm477, %v733, 0.0
  %738 = vadd.xlane.f32.xlu0 %v737
  %v739 = vpop.xlane.xlu0 %738
  %v741 = vsel %vm477, %v711, 0
  %v744 = vsel %vm477, %v712, 0
  %v747 = vsel %vm477, %v713, 0
  %v750 = vsel %vm477, %v714, 0
  %v753 = vsel %vm477, %v715, 0
  %v756 = vsel %vm477, %v716, 0
  %v759 = vsel %vm477, %v717, 0
  %v762 = vsel %vm477, %v718, 0
  %v765 = vsel %vm477, %v730, 0
  %v768 = vsel %vm477, %v731, 0
  %770 = vmatprep.subr.mxu0 0.0
  %771 = vmatpush1.xpose.msra.mxu0 %v765
  %772 = vmatprep.subr.mxu0 0.0
  %773 = vmatpush1.xpose.msra.mxu0 %v768
  %774 = vmatprep.subr.mxu0 0.0
  %775 = vmatpush1.xpose.msra.mxu0 0.0
  %776 = vmatprep.subr.mxu0 0.0
  %777 = vmatpush1.xpose.msra.mxu0 0.0
  %778 = vmatprep.subr.mxu0 0.0
  %779 = vmatpush1.xpose.msra.mxu0 0.0
  %780 = vmatprep.subr.mxu0 0.0
  %781 = vmatpush1.xpose.msra.mxu0 0.0
  %782 = vmatprep.subr.mxu0 0.0
  %783 = vmatpush1.xpose.msra.mxu0 0.0
  %784 = vmatprep.subr.mxu0 0.0
  %785 = vmatpush1.xpose.msra.mxu0 0.0
  %786 = vmatprep.subr.mxu0 0.0
  %787 = vmatpush1.xpose.msra.mxu0 0.0
  %788 = vmatprep.subr.mxu0 0.0
  %789 = vmatpush1.xpose.msra.mxu0 0.0
  %790 = vmatprep.subr.mxu0 0.0
  %791 = vmatpush1.xpose.msra.mxu0 0.0
  %792 = vmatprep.subr.mxu0 0.0
  %793 = vmatpush1.xpose.msra.mxu0 0.0
  %794 = vmatprep.subr.mxu0 0.0
  %795 = vmatpush1.xpose.msra.mxu0 0.0
  %796 = vmatprep.subr.mxu0 0.0
  %797 = vmatpush1.xpose.msra.mxu0 0.0
  %798 = vmatprep.subr.mxu0 0.0
  %799 = vmatpush1.xpose.msra.mxu0 0.0
  %800 = vmatprep.subr.mxu0 0.0
  %801 = vmatpush1.xpose.msra.mxu0 0.0
  %802 = vmatprep.subr.mxu0 0.0
  %803 = vmatpush1.xpose.msra.mxu0 0.0
  %804 = vmatprep.subr.mxu0 0.0
  %805 = vmatpush1.xpose.msra.mxu0 0.0
  %806 = vmatprep.subr.mxu0 0.0
  %807 = vmatpush1.xpose.msra.mxu0 0.0
  %808 = vmatprep.subr.mxu0 0.0
  %809 = vmatpush1.xpose.msra.mxu0 0.0
  %810 = vmatprep.subr.mxu0 0.0
  %811 = vmatpush1.xpose.msra.mxu0 0.0
  %812 = vmatprep.subr.mxu0 0.0
  %813 = vmatpush1.xpose.msra.mxu0 0.0
  %814 = vmatprep.subr.mxu0 0.0
  %815 = vmatpush1.xpose.msra.mxu0 0.0
  %816 = vmatprep.subr.mxu0 0.0
  %817 = vmatpush1.xpose.msra.mxu0 0.0
  %818 = vmatprep.subr.mxu0 0.0
  %819 = vmatpush1.xpose.msra.mxu0 0.0
  %820 = vmatprep.subr.mxu0 0.0
  %821 = vmatpush1.xpose.msra.mxu0 0.0
  %822 = vmatprep.subr.mxu0 0.0
  %823 = vmatpush1.xpose.msra.mxu0 0.0
  %824 = vmatprep.subr.mxu0 0.0
  %825 = vmatpush1.xpose.msra.mxu0 0.0
  %826 = vmatprep.subr.mxu0 0.0
  %827 = vmatpush1.xpose.msra.mxu0 0.0
  %828 = vmatprep.subr.mxu0 0.0
  %829 = vmatpush1.xpose.msra.mxu0 0.0
  %830 = vmatprep.subr.mxu0 0.0
  %831 = vmatpush1.xpose.msra.mxu0 0.0
  %832 = vmatprep.subr.mxu0 0.0
  %833 = vmatpush1.xpose.msra.mxu0 0.0
  %834 = vmatprep.mubr.f32.mxu0 0.0
  %835 = vmatmul.mubr.f32.gmra.mrb[0].mxu0 %v741
  %v836 = vpop.f32.mrb[0].mxu0
  %v837 = vadd.f32 0.0, %v836
  %v838 = vpop.f32.mrb[0].mxu0
  %839 = vmatprep.mubr.f32.mxu0 0.0
  %840 = vmatmul.mubr.f32.gmra.mrb[0].mxu0 %v744
  %v841 = vpop.f32.mrb[0].mxu0
  %v842 = vadd.f32 0.0, %v841
  %v843 = vpop.f32.mrb[0].mxu0
  %844 = vmatprep.mubr.f32.mxu0 0.0
  %845 = vmatmul.mubr.f32.gmra.mrb[0].mxu0 %v747
  %v846 = vpop.f32.mrb[0].mxu0
  %v847 = vadd.f32 0.0, %v846
  %v848 = vpop.f32.mrb[0].mxu0
  %849 = vmatprep.mubr.f32.mxu0 0.0
  %850 = vmatmul.mubr.f32.gmra.mrb[0].mxu0 %v750
  %v851 = vpop.f32.mrb[0].mxu0
  %v852 = vadd.f32 0.0, %v851
  %v853 = vpop.f32.mrb[0].mxu0
  %854 = vmatprep.mubr.f32.mxu0 0.0
  %855 = vmatmul.mubr.f32.gmra.mrb[0].mxu0 %v753
  %v856 = vpop.f32.mrb[0].mxu0
  %v857 = vadd.f32 0.0, %v856
  %v858 = vpop.f32.mrb[0].mxu0
  %859 = vmatprep.mubr.f32.mxu0 0.0
  %860 = vmatmul.mubr.f32.gmra.mrb[0].mxu0 %v756
  %v861 = vpop.f32.mrb[0].mxu0
  %v862 = vadd.f32 0.0, %v861
  %v863 = vpop.f32.mrb[0].mxu0
  %864 = vmatprep.mubr.f32.mxu0 0.0
  %865 = vmatmul.mubr.f32.gmra.mrb[0].mxu0 %v759
  %v866 = vpop.f32.mrb[0].mxu0
  %v867 = vadd.f32 0.0, %v866
  %v868 = vpop.f32.mrb[0].mxu0
  %869 = vmatprep.mubr.f32.mxu0 0.0
  %870 = vmatmul.mubr.f32.gmra.mrb[0].mxu0 %v762
  %v871 = vpop.f32.mrb[0].mxu0
  %v872 = vadd.f32 0.0, %v871
  %v873 = vpop.f32.mrb[0].mxu0
  %874 = vdwg.mxu0
  %v875 = vmul.f32 %v837, 2.0
  %v876 = vmul.f32 %v842, 2.0
  %v877 = vmul.f32 %v847, 2.0
  %v878 = vmul.f32 %v852, 2.0
  %v879 = vmul.f32 %v857, 2.0
  %v880 = vmul.f32 %v862, 2.0
  %v881 = vmul.f32 %v867, 2.0
  %v882 = vmul.f32 %v872, 2.0
  %v891 = vlaneseq
  %v892 = vshrl.u32 %v891, 7
  %v893 = vsub.s32 0, %v892
  %v894 = vrot.slane %v875, %v893
  %896 = vbcast.lane.b32.xlu0 %v894, 256
  %v897 = vpop.permute.xlu0 %896
  %s899 = sor.u32 256, 8
  %900 = vbcast.lane.b32.xlu0 %v894, %s899
  %v901 = vpop.permute.xlu0 %900
  %v902 = vlaneseq
  %v903 = vshrl.u32 %v902, 7
  %v904 = vsub.s32 1, %v903
  %v905 = vrot.slane %v875, %v904
  %907 = vbcast.lane.b32.xlu0 %v905, 256
  %v908 = vpop.permute.xlu0 %907
  %s910 = sor.u32 256, 8
  %911 = vbcast.lane.b32.xlu0 %v905, %s910
  %v912 = vpop.permute.xlu0 %911
  %v913 = vlaneseq
  %v914 = vshrl.u32 %v913, 7
  %v915 = vsub.s32 2, %v914
  %v916 = vrot.slane %v875, %v915
  %918 = vbcast.lane.b32.xlu0 %v916, 256
  %v919 = vpop.permute.xlu0 %918
  %s921 = sor.u32 256, 8
  %922 = vbcast.lane.b32.xlu0 %v916, %s921
  %v923 = vpop.permute.xlu0 %922
  %v924 = vlaneseq
  %v925 = vshrl.u32 %v924, 7
  %v926 = vsub.s32 3, %v925
  %v927 = vrot.slane %v875, %v926
  %929 = vbcast.lane.b32.xlu0 %v927, 256
  %v930 = vpop.permute.xlu0 %929
  %s932 = sor.u32 256, 8
  %933 = vbcast.lane.b32.xlu0 %v927, %s932
  %v934 = vpop.permute.xlu0 %933
  %v935 = vlaneseq
  %v936 = vshrl.u32 %v935, 7
  %v937 = vsub.s32 4, %v936
  %v938 = vrot.slane %v875, %v937
  %940 = vbcast.lane.b32.xlu0 %v938, 256
  %v941 = vpop.permute.xlu0 %940
  %s943 = sor.u32 256, 8
  %944 = vbcast.lane.b32.xlu0 %v938, %s943
  %v945 = vpop.permute.xlu0 %944
  %v946 = vlaneseq
  %v947 = vshrl.u32 %v946, 7
  %v948 = vsub.s32 5, %v947
  %v949 = vrot.slane %v875, %v948
  %951 = vbcast.lane.b32.xlu0 %v949, 256
  %v952 = vpop.permute.xlu0 %951
  %s954 = sor.u32 256, 8
  %955 = vbcast.lane.b32.xlu0 %v949, %s954
  %v956 = vpop.permute.xlu0 %955
  %v957 = vlaneseq
  %v958 = vshrl.u32 %v957, 7
  %v959 = vsub.s32 6, %v958
  %v960 = vrot.slane %v875, %v959
  %962 = vbcast.lane.b32.xlu0 %v960, 256
  %v963 = vpop.permute.xlu0 %962
  %s965 = sor.u32 256, 8
  %966 = vbcast.lane.b32.xlu0 %v960, %s965
  %v967 = vpop.permute.xlu0 %966
  %v968 = vlaneseq
  %v969 = vshrl.u32 %v968, 7
  %v970 = vsub.s32 7, %v969
  %v971 = vrot.slane %v875, %v970
  %973 = vbcast.lane.b32.xlu0 %v971, 256
  %v974 = vpop.permute.xlu0 %973
  %s976 = sor.u32 256, 8
  %977 = vbcast.lane.b32.xlu0 %v971, %s976
  %v978 = vpop.permute.xlu0 %977
  %v979 = vlaneseq
  %v980 = vshrl.u32 %v979, 7
  %v981 = vsub.s32 0, %v980
  %v982 = vrot.slane %v876, %v981
  %984 = vbcast.lane.b32.xlu0 %v982, 256
  %v985 = vpop.permute.xlu0 %984
  %s987 = sor.u32 256, 8
  %988 = vbcast.lane.b32.xlu0 %v982, %s987
  %v989 = vpop.permute.xlu0 %988
  %v990 = vlaneseq
  %v991 = vshrl.u32 %v990, 7
  %v992 = vsub.s32 1, %v991
  %v993 = vrot.slane %v876, %v992
  %995 = vbcast.lane.b32.xlu0 %v993, 256
  %v996 = vpop.permute.xlu0 %995
  %s998 = sor.u32 256, 8
  %999 = vbcast.lane.b32.xlu0 %v993, %s998
  %v1000 = vpop.permute.xlu0 %999
  %v1001 = vlaneseq
  %v1002 = vshrl.u32 %v1001, 7
  %v1003 = vsub.s32 2, %v1002
  %v1004 = vrot.slane %v876, %v1003
  %1006 = vbcast.lane.b32.xlu0 %v1004, 256
  %v1007 = vpop.permute.xlu0 %1006
  %s1009 = sor.u32 256, 8
  %1010 = vbcast.lane.b32.xlu0 %v1004, %s1009
  %v1011 = vpop.permute.xlu0 %1010
  %v1012 = vlaneseq
  %v1013 = vshrl.u32 %v1012, 7
  %v1014 = vsub.s32 3, %v1013
  %v1015 = vrot.slane %v876, %v1014
  %1017 = vbcast.lane.b32.xlu0 %v1015, 256
  %v1018 = vpop.permute.xlu0 %1017
  %s1020 = sor.u32 256, 8
  %1021 = vbcast.lane.b32.xlu0 %v1015, %s1020
  %v1022 = vpop.permute.xlu0 %1021
  %v1023 = vlaneseq
  %v1024 = vshrl.u32 %v1023, 7
  %v1025 = vsub.s32 4, %v1024
  %v1026 = vrot.slane %v876, %v1025
  %1028 = vbcast.lane.b32.xlu0 %v1026, 256
  %v1029 = vpop.permute.xlu0 %1028
  %s1031 = sor.u32 256, 8
  %1032 = vbcast.lane.b32.xlu0 %v1026, %s1031
  %v1033 = vpop.permute.xlu0 %1032
  %v1034 = vlaneseq
  %v1035 = vshrl.u32 %v1034, 7
  %v1036 = vsub.s32 5, %v1035
  %v1037 = vrot.slane %v876, %v1036
  %1039 = vbcast.lane.b32.xlu0 %v1037, 256
  %v1040 = vpop.permute.xlu0 %1039
  %s1042 = sor.u32 256, 8
  %1043 = vbcast.lane.b32.xlu0 %v1037, %s1042
  %v1044 = vpop.permute.xlu0 %1043
  %v1045 = vlaneseq
  %v1046 = vshrl.u32 %v1045, 7
  %v1047 = vsub.s32 6, %v1046
  %v1048 = vrot.slane %v876, %v1047
  %1050 = vbcast.lane.b32.xlu0 %v1048, 256
  %v1051 = vpop.permute.xlu0 %1050
  %s1053 = sor.u32 256, 8
  %1054 = vbcast.lane.b32.xlu0 %v1048, %s1053
  %v1055 = vpop.permute.xlu0 %1054
  %v1056 = vlaneseq
  %v1057 = vshrl.u32 %v1056, 7
  %v1058 = vsub.s32 7, %v1057
  %v1059 = vrot.slane %v876, %v1058
  %1061 = vbcast.lane.b32.xlu0 %v1059, 256
  %v1062 = vpop.permute.xlu0 %1061
  %s1064 = sor.u32 256, 8
  %1065 = vbcast.lane.b32.xlu0 %v1059, %s1064
  %v1066 = vpop.permute.xlu0 %1065
  %v1067 = vlaneseq
  %v1068 = vshrl.u32 %v1067, 7
  %v1069 = vsub.s32 0, %v1068
  %v1070 = vrot.slane %v877, %v1069
  %1072 = vbcast.lane.b32.xlu0 %v1070, 256
  %v1073 = vpop.permute.xlu0 %1072
  %s1075 = sor.u32 256, 8
  %1076 = vbcast.lane.b32.xlu0 %v1070, %s1075
  %v1077 = vpop.permute.xlu0 %1076
  %v1078 = vlaneseq
  %v1079 = vshrl.u32 %v1078, 7
  %v1080 = vsub.s32 1, %v1079
  %v1081 = vrot.slane %v877, %v1080
  %1083 = vbcast.lane.b32.xlu0 %v1081, 256
  %v1084 = vpop.permute.xlu0 %1083
  %s1086 = sor.u32 256, 8
  %1087 = vbcast.lane.b32.xlu0 %v1081, %s1086
  %v1088 = vpop.permute.xlu0 %1087
  %v1089 = vlaneseq
  %v1090 = vshrl.u32 %v1089, 7
  %v1091 = vsub.s32 2, %v1090
  %v1092 = vrot.slane %v877, %v1091
  %1094 = vbcast.lane.b32.xlu0 %v1092, 256
  %v1095 = vpop.permute.xlu0 %1094
  %s1097 = sor.u32 256, 8
  %1098 = vbcast.lane.b32.xlu0 %v1092, %s1097
  %v1099 = vpop.permute.xlu0 %1098
  %v1100 = vlaneseq
  %v1101 = vshrl.u32 %v1100, 7
  %v1102 = vsub.s32 3, %v1101
  %v1103 = vrot.slane %v877, %v1102
  %1105 = vbcast.lane.b32.xlu0 %v1103, 256
  %v1106 = vpop.permute.xlu0 %1105
  %s1108 = sor.u32 256, 8
  %1109 = vbcast.lane.b32.xlu0 %v1103, %s1108
  %v1110 = vpop.permute.xlu0 %1109
  %v1111 = vlaneseq
  %v1112 = vshrl.u32 %v1111, 7
  %v1113 = vsub.s32 4, %v1112
  %v1114 = vrot.slane %v877, %v1113
  %1116 = vbcast.lane.b32.xlu0 %v1114, 256
  %v1117 = vpop.permute.xlu0 %1116
  %s1119 = sor.u32 256, 8
  %1120 = vbcast.lane.b32.xlu0 %v1114, %s1119
  %v1121 = vpop.permute.xlu0 %1120
  %v1122 = vlaneseq
  %v1123 = vshrl.u32 %v1122, 7
  %v1124 = vsub.s32 5, %v1123
  %v1125 = vrot.slane %v877, %v1124
  %1127 = vbcast.lane.b32.xlu0 %v1125, 256
  %v1128 = vpop.permute.xlu0 %1127
  %s1130 = sor.u32 256, 8
  %1131 = vbcast.lane.b32.xlu0 %v1125, %s1130
  %v1132 = vpop.permute.xlu0 %1131
  %v1133 = vlaneseq
  %v1134 = vshrl.u32 %v1133, 7
  %v1135 = vsub.s32 6, %v1134
  %v1136 = vrot.slane %v877, %v1135
  %1138 = vbcast.lane.b32.xlu0 %v1136, 256
  %v1139 = vpop.permute.xlu0 %1138
  %s1141 = sor.u32 256, 8
  %1142 = vbcast.lane.b32.xlu0 %v1136, %s1141
  %v1143 = vpop.permute.xlu0 %1142
  %v1144 = vlaneseq
  %v1145 = vshrl.u32 %v1144, 7
  %v1146 = vsub.s32 7, %v1145
  %v1147 = vrot.slane %v877, %v1146
  %1149 = vbcast.lane.b32.xlu0 %v1147, 256
  %v1150 = vpop.permute.xlu0 %1149
  %s1152 = sor.u32 256, 8
  %1153 = vbcast.lane.b32.xlu0 %v1147, %s1152
  %v1154 = vpop.permute.xlu0 %1153
  %v1155 = vlaneseq
  %v1156 = vshrl.u32 %v1155, 7
  %v1157 = vsub.s32 0, %v1156
  %v1158 = vrot.slane %v878, %v1157
  %1160 = vbcast.lane.b32.xlu0 %v1158, 256
  %v1161 = vpop.permute.xlu0 %1160
  %s1163 = sor.u32 256, 8
  %1164 = vbcast.lane.b32.xlu0 %v1158, %s1163
  %v1165 = vpop.permute.xlu0 %1164
  %v1166 = vlaneseq
  %v1167 = vshrl.u32 %v1166, 7
  %v1168 = vsub.s32 1, %v1167
  %v1169 = vrot.slane %v878, %v1168
  %1171 = vbcast.lane.b32.xlu0 %v1169, 256
  %v1172 = vpop.permute.xlu0 %1171
  %s1174 = sor.u32 256, 8
  %1175 = vbcast.lane.b32.xlu0 %v1169, %s1174
  %v1176 = vpop.permute.xlu0 %1175
  %v1177 = vlaneseq
  %v1178 = vshrl.u32 %v1177, 7
  %v1179 = vsub.s32 2, %v1178
  %v1180 = vrot.slane %v878, %v1179
  %1182 = vbcast.lane.b32.xlu0 %v1180, 256
  %v1183 = vpop.permute.xlu0 %1182
  %s1185 = sor.u32 256, 8
  %1186 = vbcast.lane.b32.xlu0 %v1180, %s1185
  %v1187 = vpop.permute.xlu0 %1186
  %v1188 = vlaneseq
  %v1189 = vshrl.u32 %v1188, 7
  %v1190 = vsub.s32 3, %v1189
  %v1191 = vrot.slane %v878, %v1190
  %1193 = vbcast.lane.b32.xlu0 %v1191, 256
  %v1194 = vpop.permute.xlu0 %1193
  %s1196 = sor.u32 256, 8
  %1197 = vbcast.lane.b32.xlu0 %v1191, %s1196
  %v1198 = vpop.permute.xlu0 %1197
  %v1199 = vlaneseq
  %v1200 = vshrl.u32 %v1199, 7
  %v1201 = vsub.s32 4, %v1200
  %v1202 = vrot.slane %v878, %v1201
  %1204 = vbcast.lane.b32.xlu0 %v1202, 256
  %v1205 = vpop.permute.xlu0 %1204
  %s1207 = sor.u32 256, 8
  %1208 = vbcast.lane.b32.xlu0 %v1202, %s1207
  %v1209 = vpop.permute.xlu0 %1208
  %v1210 = vlaneseq
  %v1211 = vshrl.u32 %v1210, 7
  %v1212 = vsub.s32 5, %v1211
  %v1213 = vrot.slane %v878, %v1212
  %1215 = vbcast.lane.b32.xlu0 %v1213, 256
  %v1216 = vpop.permute.xlu0 %1215
  %s1218 = sor.u32 256, 8
  %1219 = vbcast.lane.b32.xlu0 %v1213, %s1218
  %v1220 = vpop.permute.xlu0 %1219
  %v1221 = vlaneseq
  %v1222 = vshrl.u32 %v1221, 7
  %v1223 = vsub.s32 6, %v1222
  %v1224 = vrot.slane %v878, %v1223
  %1226 = vbcast.lane.b32.xlu0 %v1224, 256
  %v1227 = vpop.permute.xlu0 %1226
  %s1229 = sor.u32 256, 8
  %1230 = vbcast.lane.b32.xlu0 %v1224, %s1229
  %v1231 = vpop.permute.xlu0 %1230
  %v1232 = vlaneseq
  %v1233 = vshrl.u32 %v1232, 7
  %v1234 = vsub.s32 7, %v1233
  %v1235 = vrot.slane %v878, %v1234
  %1237 = vbcast.lane.b32.xlu0 %v1235, 256
  %v1238 = vpop.permute.xlu0 %1237
  %s1240 = sor.u32 256, 8
  %1241 = vbcast.lane.b32.xlu0 %v1235, %s1240
  %v1242 = vpop.permute.xlu0 %1241
  %v1243 = vlaneseq
  %v1244 = vshrl.u32 %v1243, 7
  %v1245 = vsub.s32 0, %v1244
  %v1246 = vrot.slane %v879, %v1245
  %1248 = vbcast.lane.b32.xlu0 %v1246, 256
  %v1249 = vpop.permute.xlu0 %1248
  %s1251 = sor.u32 256, 8
  %1252 = vbcast.lane.b32.xlu0 %v1246, %s1251
  %v1253 = vpop.permute.xlu0 %1252
  %v1254 = vlaneseq
  %v1255 = vshrl.u32 %v1254, 7
  %v1256 = vsub.s32 1, %v1255
  %v1257 = vrot.slane %v879, %v1256
  %1259 = vbcast.lane.b32.xlu0 %v1257, 256
  %v1260 = vpop.permute.xlu0 %1259
  %s1262 = sor.u32 256, 8
  %1263 = vbcast.lane.b32.xlu0 %v1257, %s1262
  %v1264 = vpop.permute.xlu0 %1263
  %v1265 = vlaneseq
  %v1266 = vshrl.u32 %v1265, 7
  %v1267 = vsub.s32 2, %v1266
  %v1268 = vrot.slane %v879, %v1267
  %1270 = vbcast.lane.b32.xlu0 %v1268, 256
  %v1271 = vpop.permute.xlu0 %1270
  %s1273 = sor.u32 256, 8
  %1274 = vbcast.lane.b32.xlu0 %v1268, %s1273
  %v1275 = vpop.permute.xlu0 %1274
  %v1276 = vlaneseq
  %v1277 = vshrl.u32 %v1276, 7
  %v1278 = vsub.s32 3, %v1277
  %v1279 = vrot.slane %v879, %v1278
  %1281 = vbcast.lane.b32.xlu0 %v1279, 256
  %v1282 = vpop.permute.xlu0 %1281
  %s1284 = sor.u32 256, 8
  %1285 = vbcast.lane.b32.xlu0 %v1279, %s1284
  %v1286 = vpop.permute.xlu0 %1285
  %v1287 = vlaneseq
  %v1288 = vshrl.u32 %v1287, 7
  %v1289 = vsub.s32 4, %v1288
  %v1290 = vrot.slane %v879, %v1289
  %1292 = vbcast.lane.b32.xlu0 %v1290, 256
  %v1293 = vpop.permute.xlu0 %1292
  %s1295 = sor.u32 256, 8
  %1296 = vbcast.lane.b32.xlu0 %v1290, %s1295
  %v1297 = vpop.permute.xlu0 %1296
  %v1298 = vlaneseq
  %v1299 = vshrl.u32 %v1298, 7
  %v1300 = vsub.s32 5, %v1299
  %v1301 = vrot.slane %v879, %v1300
  %1303 = vbcast.lane.b32.xlu0 %v1301, 256
  %v1304 = vpop.permute.xlu0 %1303
  %s1306 = sor.u32 256, 8
  %1307 = vbcast.lane.b32.xlu0 %v1301, %s1306
  %v1308 = vpop.permute.xlu0 %1307
  %v1309 = vlaneseq
  %v1310 = vshrl.u32 %v1309, 7
  %v1311 = vsub.s32 6, %v1310
  %v1312 = vrot.slane %v879, %v1311
  %1314 = vbcast.lane.b32.xlu0 %v1312, 256
  %v1315 = vpop.permute.xlu0 %1314
  %s1317 = sor.u32 256, 8
  %1318 = vbcast.lane.b32.xlu0 %v1312, %s1317
  %v1319 = vpop.permute.xlu0 %1318
  %v1320 = vlaneseq
  %v1321 = vshrl.u32 %v1320, 7
  %v1322 = vsub.s32 7, %v1321
  %v1323 = vrot.slane %v879, %v1322
  %1325 = vbcast.lane.b32.xlu0 %v1323, 256
  %v1326 = vpop.permute.xlu0 %1325
  %s1328 = sor.u32 256, 8
  %1329 = vbcast.lane.b32.xlu0 %v1323, %s1328
  %v1330 = vpop.permute.xlu0 %1329
  %v1331 = vlaneseq
  %v1332 = vshrl.u32 %v1331, 7
  %v1333 = vsub.s32 0, %v1332
  %v1334 = vrot.slane %v880, %v1333
  %1336 = vbcast.lane.b32.xlu0 %v1334, 256
  %v1337 = vpop.permute.xlu0 %1336
  %s1339 = sor.u32 256, 8
  %1340 = vbcast.lane.b32.xlu0 %v1334, %s1339
  %v1341 = vpop.permute.xlu0 %1340
  %v1342 = vlaneseq
  %v1343 = vshrl.u32 %v1342, 7
  %v1344 = vsub.s32 1, %v1343
  %v1345 = vrot.slane %v880, %v1344
  %1347 = vbcast.lane.b32.xlu0 %v1345, 256
  %v1348 = vpop.permute.xlu0 %1347
  %s1350 = sor.u32 256, 8
  %1351 = vbcast.lane.b32.xlu0 %v1345, %s1350
  %v1352 = vpop.permute.xlu0 %1351
  %v1353 = vlaneseq
  %v1354 = vshrl.u32 %v1353, 7
  %v1355 = vsub.s32 2, %v1354
  %v1356 = vrot.slane %v880, %v1355
  %1358 = vbcast.lane.b32.xlu0 %v1356, 256
  %v1359 = vpop.permute.xlu0 %1358
  %s1361 = sor.u32 256, 8
  %1362 = vbcast.lane.b32.xlu0 %v1356, %s1361
  %v1363 = vpop.permute.xlu0 %1362
  %v1364 = vlaneseq
  %v1365 = vshrl.u32 %v1364, 7
  %v1366 = vsub.s32 3, %v1365
  %v1367 = vrot.slane %v880, %v1366
  %1369 = vbcast.lane.b32.xlu0 %v1367, 256
  %v1370 = vpop.permute.xlu0 %1369
  %s1372 = sor.u32 256, 8
  %1373 = vbcast.lane.b32.xlu0 %v1367, %s1372
  %v1374 = vpop.permute.xlu0 %1373
  %v1375 = vlaneseq
  %v1376 = vshrl.u32 %v1375, 7
  %v1377 = vsub.s32 4, %v1376
  %v1378 = vrot.slane %v880, %v1377
  %1380 = vbcast.lane.b32.xlu0 %v1378, 256
  %v1381 = vpop.permute.xlu0 %1380
  %s1383 = sor.u32 256, 8
  %1384 = vbcast.lane.b32.xlu0 %v1378, %s1383
  %v1385 = vpop.permute.xlu0 %1384
  %v1386 = vlaneseq
  %v1387 = vshrl.u32 %v1386, 7
  %v1388 = vsub.s32 5, %v1387
  %v1389 = vrot.slane %v880, %v1388
  %1391 = vbcast.lane.b32.xlu0 %v1389, 256
  %v1392 = vpop.permute.xlu0 %1391
  %s1394 = sor.u32 256, 8
  %1395 = vbcast.lane.b32.xlu0 %v1389, %s1394
  %v1396 = vpop.permute.xlu0 %1395
  %v1397 = vlaneseq
  %v1398 = vshrl.u32 %v1397, 7
  %v1399 = vsub.s32 6, %v1398
  %v1400 = vrot.slane %v880, %v1399
  %1402 = vbcast.lane.b32.xlu0 %v1400, 256
  %v1403 = vpop.permute.xlu0 %1402
  %s1405 = sor.u32 256, 8
  %1406 = vbcast.lane.b32.xlu0 %v1400, %s1405
  %v1407 = vpop.permute.xlu0 %1406
  %v1408 = vlaneseq
  %v1409 = vshrl.u32 %v1408, 7
  %v1410 = vsub.s32 7, %v1409
  %v1411 = vrot.slane %v880, %v1410
  %1413 = vbcast.lane.b32.xlu0 %v1411, 256
  %v1414 = vpop.permute.xlu0 %1413
  %s1416 = sor.u32 256, 8
  %1417 = vbcast.lane.b32.xlu0 %v1411, %s1416
  %v1418 = vpop.permute.xlu0 %1417
  %v1419 = vlaneseq
  %v1420 = vshrl.u32 %v1419, 7
  %v1421 = vsub.s32 0, %v1420
  %v1422 = vrot.slane %v881, %v1421
  %1424 = vbcast.lane.b32.xlu0 %v1422, 256
  %v1425 = vpop.permute.xlu0 %1424
  %s1427 = sor.u32 256, 8
  %1428 = vbcast.lane.b32.xlu0 %v1422, %s1427
  %v1429 = vpop.permute.xlu0 %1428
  %v1430 = vlaneseq
  %v1431 = vshrl.u32 %v1430, 7
  %v1432 = vsub.s32 1, %v1431
  %v1433 = vrot.slane %v881, %v1432
  %1435 = vbcast.lane.b32.xlu0 %v1433, 256
  %v1436 = vpop.permute.xlu0 %1435
  %s1438 = sor.u32 256, 8
  %1439 = vbcast.lane.b32.xlu0 %v1433, %s1438
  %v1440 = vpop.permute.xlu0 %1439
  %v1441 = vlaneseq
  %v1442 = vshrl.u32 %v1441, 7
  %v1443 = vsub.s32 2, %v1442
  %v1444 = vrot.slane %v881, %v1443
  %1446 = vbcast.lane.b32.xlu0 %v1444, 256
  %v1447 = vpop.permute.xlu0 %1446
  %s1449 = sor.u32 256, 8
  %1450 = vbcast.lane.b32.xlu0 %v1444, %s1449
  %v1451 = vpop.permute.xlu0 %1450
  %v1452 = vlaneseq
  %v1453 = vshrl.u32 %v1452, 7
  %v1454 = vsub.s32 3, %v1453
  %v1455 = vrot.slane %v881, %v1454
  %1457 = vbcast.lane.b32.xlu0 %v1455, 256
  %v1458 = vpop.permute.xlu0 %1457
  %s1460 = sor.u32 256, 8
  %1461 = vbcast.lane.b32.xlu0 %v1455, %s1460
  %v1462 = vpop.permute.xlu0 %1461
  %v1463 = vlaneseq
  %v1464 = vshrl.u32 %v1463, 7
  %v1465 = vsub.s32 4, %v1464
  %v1466 = vrot.slane %v881, %v1465
  %1468 = vbcast.lane.b32.xlu0 %v1466, 256
  %v1469 = vpop.permute.xlu0 %1468
  %s1471 = sor.u32 256, 8
  %1472 = vbcast.lane.b32.xlu0 %v1466, %s1471
  %v1473 = vpop.permute.xlu0 %1472
  %v1474 = vlaneseq
  %v1475 = vshrl.u32 %v1474, 7
  %v1476 = vsub.s32 5, %v1475
  %v1477 = vrot.slane %v881, %v1476
  %1479 = vbcast.lane.b32.xlu0 %v1477, 256
  %v1480 = vpop.permute.xlu0 %1479
  %s1482 = sor.u32 256, 8
  %1483 = vbcast.lane.b32.xlu0 %v1477, %s1482
  %v1484 = vpop.permute.xlu0 %1483
  %v1485 = vlaneseq
  %v1486 = vshrl.u32 %v1485, 7
  %v1487 = vsub.s32 6, %v1486
  %v1488 = vrot.slane %v881, %v1487
  %1490 = vbcast.lane.b32.xlu0 %v1488, 256
  %v1491 = vpop.permute.xlu0 %1490
  %s1493 = sor.u32 256, 8
  %1494 = vbcast.lane.b32.xlu0 %v1488, %s1493
  %v1495 = vpop.permute.xlu0 %1494
  %v1496 = vlaneseq
  %v1497 = vshrl.u32 %v1496, 7
  %v1498 = vsub.s32 7, %v1497
  %v1499 = vrot.slane %v881, %v1498
  %1501 = vbcast.lane.b32.xlu0 %v1499, 256
  %v1502 = vpop.permute.xlu0 %1501
  %s1504 = sor.u32 256, 8
  %1505 = vbcast.lane.b32.xlu0 %v1499, %s1504
  %v1506 = vpop.permute.xlu0 %1505
  %v1507 = vlaneseq
  %v1508 = vshrl.u32 %v1507, 7
  %v1509 = vsub.s32 0, %v1508
  %v1510 = vrot.slane %v882, %v1509
  %1512 = vbcast.lane.b32.xlu0 %v1510, 256
  %v1513 = vpop.permute.xlu0 %1512
  %s1515 = sor.u32 256, 8
  %1516 = vbcast.lane.b32.xlu0 %v1510, %s1515
  %v1517 = vpop.permute.xlu0 %1516
  %v1518 = vlaneseq
  %v1519 = vshrl.u32 %v1518, 7
  %v1520 = vsub.s32 1, %v1519
  %v1521 = vrot.slane %v882, %v1520
  %1523 = vbcast.lane.b32.xlu0 %v1521, 256
  %v1524 = vpop.permute.xlu0 %1523
  %s1526 = sor.u32 256, 8
  %1527 = vbcast.lane.b32.xlu0 %v1521, %s1526
  %v1528 = vpop.permute.xlu0 %1527
  %v1529 = vlaneseq
  %v1530 = vshrl.u32 %v1529, 7
  %v1531 = vsub.s32 2, %v1530
  %v1532 = vrot.slane %v882, %v1531
  %1534 = vbcast.lane.b32.xlu0 %v1532, 256
  %v1535 = vpop.permute.xlu0 %1534
  %s1537 = sor.u32 256, 8
  %1538 = vbcast.lane.b32.xlu0 %v1532, %s1537
  %v1539 = vpop.permute.xlu0 %1538
  %v1540 = vlaneseq
  %v1541 = vshrl.u32 %v1540, 7
  %v1542 = vsub.s32 3, %v1541
  %v1543 = vrot.slane %v882, %v1542
  %1545 = vbcast.lane.b32.xlu0 %v1543, 256
  %v1546 = vpop.permute.xlu0 %1545
  %s1548 = sor.u32 256, 8
  %1549 = vbcast.lane.b32.xlu0 %v1543, %s1548
  %v1550 = vpop.permute.xlu0 %1549
  %v1551 = vlaneseq
  %v1552 = vshrl.u32 %v1551, 7
  %v1553 = vsub.s32 4, %v1552
  %v1554 = vrot.slane %v882, %v1553
  %1556 = vbcast.lane.b32.xlu0 %v1554, 256
  %v1557 = vpop.permute.xlu0 %1556
  %s1559 = sor.u32 256, 8
  %1560 = vbcast.lane.b32.xlu0 %v1554, %s1559
  %v1561 = vpop.permute.xlu0 %1560
  %v1562 = vlaneseq
  %v1563 = vshrl.u32 %v1562, 7
  %v1564 = vsub.s32 5, %v1563
  %v1565 = vrot.slane %v882, %v1564
  %1567 = vbcast.lane.b32.xlu0 %v1565, 256
  %v1568 = vpop.permute.xlu0 %1567
  %s1570 = sor.u32 256, 8
  %1571 = vbcast.lane.b32.xlu0 %v1565, %s1570
  %v1572 = vpop.permute.xlu0 %1571
  %v1573 = vlaneseq
  %v1574 = vshrl.u32 %v1573, 7
  %v1575 = vsub.s32 6, %v1574
  %v1576 = vrot.slane %v882, %v1575
  %1578 = vbcast.lane.b32.xlu0 %v1576, 256
  %v1579 = vpop.permute.xlu0 %1578
  %s1581 = sor.u32 256, 8
  %1582 = vbcast.lane.b32.xlu0 %v1576, %s1581
  %v1583 = vpop.permute.xlu0 %1582
  %v1584 = vlaneseq
  %v1585 = vshrl.u32 %v1584, 7
  %v1586 = vsub.s32 7, %v1585
  %v1587 = vrot.slane %v882, %v1586
  %1589 = vbcast.lane.b32.xlu0 %v1587, 256
  %v1590 = vpop.permute.xlu0 %1589
  %s1592 = sor.u32 256, 8
  %1593 = vbcast.lane.b32.xlu0 %v1587, %s1592
  %v1594 = vpop.permute.xlu0 %1593
  %v1723 = vsub.f32 %v736, %v897
  %v1724 = vsub.f32 %v739, %v901
  %v1725 = vsub.f32 %v736, %v908
  %v1726 = vsub.f32 %v739, %v912
  %v1727 = vsub.f32 %v736, %v919
  %v1728 = vsub.f32 %v739, %v923
  %v1729 = vsub.f32 %v736, %v930
  %v1730 = vsub.f32 %v739, %v934
  %v1731 = vsub.f32 %v736, %v941
  %v1732 = vsub.f32 %v739, %v945
  %v1733 = vsub.f32 %v736, %v952
  %v1734 = vsub.f32 %v739, %v956
  %v1735 = vsub.f32 %v736, %v963
  %v1736 = vsub.f32 %v739, %v967
  %v1737 = vsub.f32 %v736, %v974
  %v1738 = vsub.f32 %v739, %v978
  %v1739 = vsub.f32 %v736, %v985
  %v1740 = vsub.f32 %v739, %v989
  %v1741 = vsub.f32 %v736, %v996
  %v1742 = vsub.f32 %v739, %v1000
  %v1743 = vsub.f32 %v736, %v1007
  %v1744 = vsub.f32 %v739, %v1011
  %v1745 = vsub.f32 %v736, %v1018
  %v1746 = vsub.f32 %v739, %v1022
  %v1747 = vsub.f32 %v736, %v1029
  %v1748 = vsub.f32 %v739, %v1033
  %v1749 = vsub.f32 %v736, %v1040
  %v1750 = vsub.f32 %v739, %v1044
  %v1751 = vsub.f32 %v736, %v1051
  %v1752 = vsub.f32 %v739, %v1055
  %v1753 = vsub.f32 %v736, %v1062
  %v1754 = vsub.f32 %v739, %v1066
  %v1755 = vsub.f32 %v736, %v1073
  %v1756 = vsub.f32 %v739, %v1077
  %v1757 = vsub.f32 %v736, %v1084
  %v1758 = vsub.f32 %v739, %v1088
  %v1759 = vsub.f32 %v736, %v1095
  %v1760 = vsub.f32 %v739, %v1099
  %v1761 = vsub.f32 %v736, %v1106
  %v1762 = vsub.f32 %v739, %v1110
  %v1763 = vsub.f32 %v736, %v1117
  %v1764 = vsub.f32 %v739, %v1121
  %v1765 = vsub.f32 %v736, %v1128
  %v1766 = vsub.f32 %v739, %v1132
  %v1767 = vsub.f32 %v736, %v1139
  %v1768 = vsub.f32 %v739, %v1143
  %v1769 = vsub.f32 %v736, %v1150
  %v1770 = vsub.f32 %v739, %v1154
  %v1771 = vsub.f32 %v736, %v1161
  %v1772 = vsub.f32 %v739, %v1165
  %v1773 = vsub.f32 %v736, %v1172
  %v1774 = vsub.f32 %v739, %v1176
  %v1775 = vsub.f32 %v736, %v1183
  %v1776 = vsub.f32 %v739, %v1187
  %v1777 = vsub.f32 %v736, %v1194
  %v1778 = vsub.f32 %v739, %v1198
  %v1779 = vsub.f32 %v736, %v1205
  %v1780 = vsub.f32 %v739, %v1209
  %v1781 = vsub.f32 %v736, %v1216
  %v1782 = vsub.f32 %v739, %v1220
  %v1783 = vsub.f32 %v736, %v1227
  %v1784 = vsub.f32 %v739, %v1231
  %v1785 = vsub.f32 %v736, %v1238
  %v1786 = vsub.f32 %v739, %v1242
  %v1787 = vsub.f32 %v736, %v1249
  %v1788 = vsub.f32 %v739, %v1253
  %v1789 = vsub.f32 %v736, %v1260
  %v1790 = vsub.f32 %v739, %v1264
  %v1791 = vsub.f32 %v736, %v1271
  %v1792 = vsub.f32 %v739, %v1275
  %v1793 = vsub.f32 %v736, %v1282
  %v1794 = vsub.f32 %v739, %v1286
  %v1795 = vsub.f32 %v736, %v1293
  %v1796 = vsub.f32 %v739, %v1297
  %v1797 = vsub.f32 %v736, %v1304
  %v1798 = vsub.f32 %v739, %v1308
  %v1799 = vsub.f32 %v736, %v1315
  %v1800 = vsub.f32 %v739, %v1319
  %v1801 = vsub.f32 %v736, %v1326
  %v1802 = vsub.f32 %v739, %v1330
  %v1803 = vsub.f32 %v736, %v1337
  %v1804 = vsub.f32 %v739, %v1341
  %v1805 = vsub.f32 %v736, %v1348
  %v1806 = vsub.f32 %v739, %v1352
  %v1807 = vsub.f32 %v736, %v1359
  %v1808 = vsub.f32 %v739, %v1363
  %v1809 = vsub.f32 %v736, %v1370
  %v1810 = vsub.f32 %v739, %v1374
  %v1811 = vsub.f32 %v736, %v1381
  %v1812 = vsub.f32 %v739, %v1385
  %v1813 = vsub.f32 %v736, %v1392
  %v1814 = vsub.f32 %v739, %v1396
  %v1815 = vsub.f32 %v736, %v1403
  %v1816 = vsub.f32 %v739, %v1407
  %v1817 = vsub.f32 %v736, %v1414
  %v1818 = vsub.f32 %v739, %v1418
  %v1819 = vsub.f32 %v736, %v1425
  %v1820 = vsub.f32 %v739, %v1429
  %v1821 = vsub.f32 %v736, %v1436
  %v1822 = vsub.f32 %v739, %v1440
  %v1823 = vsub.f32 %v736, %v1447
  %v1824 = vsub.f32 %v739, %v1451
  %v1825 = vsub.f32 %v736, %v1458
  %v1826 = vsub.f32 %v739, %v1462
  %v1827 = vsub.f32 %v736, %v1469
  %v1828 = vsub.f32 %v739, %v1473
  %v1829 = vsub.f32 %v736, %v1480
  %v1830 = vsub.f32 %v739, %v1484
  %v1831 = vsub.f32 %v736, %v1491
  %v1832 = vsub.f32 %v739, %v1495
  %v1833 = vsub.f32 %v736, %v1502
  %v1834 = vsub.f32 %v739, %v1506
  %v1835 = vsub.f32 %v736, %v1513
  %v1836 = vsub.f32 %v739, %v1517
  %v1837 = vsub.f32 %v736, %v1524
  %v1838 = vsub.f32 %v739, %v1528
  %v1839 = vsub.f32 %v736, %v1535
  %v1840 = vsub.f32 %v739, %v1539
  %v1841 = vsub.f32 %v736, %v1546
  %v1842 = vsub.f32 %v739, %v1550
  %v1843 = vsub.f32 %v736, %v1557
  %v1844 = vsub.f32 %v739, %v1561
  %v1845 = vsub.f32 %v736, %v1568
  %v1846 = vsub.f32 %v739, %v1572
  %v1847 = vsub.f32 %v736, %v1579
  %v1848 = vsub.f32 %v739, %v1583
  %v1849 = vsub.f32 %v736, %v1590
  %v1850 = vsub.f32 %v739, %v1594
  %1979 = vset.pattern.permute.xlu0 0
  %1980 = vperm.xlu0 %1979, %v1723
  %v1981 = vpop.permute.xlu0 %1980
  %1982 = vset.pattern.permute.xlu0 0
  %1983 = vperm.xlu0 %1982, %v1724
  %v1984 = vpop.permute.xlu0 %1983
  %1985 = vset.pattern.permute.xlu0 0
  %1986 = vperm.xlu0 %1985, %v1725
  %v1987 = vpop.permute.xlu0 %1986
  %1988 = vset.pattern.permute.xlu0 0
  %1989 = vperm.xlu0 %1988, %v1726
  %v1990 = vpop.permute.xlu0 %1989
  %1991 = vset.pattern.permute.xlu0 0
  %1992 = vperm.xlu0 %1991, %v1727
  %v1993 = vpop.permute.xlu0 %1992
  %1994 = vset.pattern.permute.xlu0 0
  %1995 = vperm.xlu0 %1994, %v1728
  %v1996 = vpop.permute.xlu0 %1995
  %1997 = vset.pattern.permute.xlu0 0
  %1998 = vperm.xlu0 %1997, %v1729
  %v1999 = vpop.permute.xlu0 %1998
  %2000 = vset.pattern.permute.xlu0 0
  %2001 = vperm.xlu0 %2000, %v1730
  %v2002 = vpop.permute.xlu0 %2001
  %2003 = vset.pattern.permute.xlu0 0
  %2004 = vperm.xlu0 %2003, %v1731
  %v2005 = vpop.permute.xlu0 %2004
  %2006 = vset.pattern.permute.xlu0 0
  %2007 = vperm.xlu0 %2006, %v1732
  %v2008 = vpop.permute.xlu0 %2007
  %2009 = vset.pattern.permute.xlu0 0
  %2010 = vperm.xlu0 %2009, %v1733
  %v2011 = vpop.permute.xlu0 %2010
  %2012 = vset.pattern.permute.xlu0 0
  %2013 = vperm.xlu0 %2012, %v1734
  %v2014 = vpop.permute.xlu0 %2013
  %2015 = vset.pattern.permute.xlu0 0
  %2016 = vperm.xlu0 %2015, %v1735
  %v2017 = vpop.permute.xlu0 %2016
  %2018 = vset.pattern.permute.xlu0 0
  %2019 = vperm.xlu0 %2018, %v1736
  %v2020 = vpop.permute.xlu0 %2019
  %2021 = vset.pattern.permute.xlu0 0
  %2022 = vperm.xlu0 %2021, %v1737
  %v2023 = vpop.permute.xlu0 %2022
  %2024 = vset.pattern.permute.xlu0 0
  %2025 = vperm.xlu0 %2024, %v1738
  %v2026 = vpop.permute.xlu0 %2025
  %2027 = vset.pattern.permute.xlu0 0
  %2028 = vperm.xlu0 %2027, %v1739
  %v2029 = vpop.permute.xlu0 %2028
  %2030 = vset.pattern.permute.xlu0 0
  %2031 = vperm.xlu0 %2030, %v1740
  %v2032 = vpop.permute.xlu0 %2031
  %2033 = vset.pattern.permute.xlu0 0
  %2034 = vperm.xlu0 %2033, %v1741
  %v2035 = vpop.permute.xlu0 %2034
  %2036 = vset.pattern.permute.xlu0 0
  %2037 = vperm.xlu0 %2036, %v1742
  %v2038 = vpop.permute.xlu0 %2037
  %2039 = vset.pattern.permute.xlu0 0
  %2040 = vperm.xlu0 %2039, %v1743
  %v2041 = vpop.permute.xlu0 %2040
  %2042 = vset.pattern.permute.xlu0 0
  %2043 = vperm.xlu0 %2042, %v1744
  %v2044 = vpop.permute.xlu0 %2043
  %2045 = vset.pattern.permute.xlu0 0
  %2046 = vperm.xlu0 %2045, %v1745
  %v2047 = vpop.permute.xlu0 %2046
  %2048 = vset.pattern.permute.xlu0 0
  %2049 = vperm.xlu0 %2048, %v1746
  %v2050 = vpop.permute.xlu0 %2049
  %2051 = vset.pattern.permute.xlu0 0
  %2052 = vperm.xlu0 %2051, %v1747
  %v2053 = vpop.permute.xlu0 %2052
  %2054 = vset.pattern.permute.xlu0 0
  %2055 = vperm.xlu0 %2054, %v1748
  %v2056 = vpop.permute.xlu0 %2055
  %2057 = vset.pattern.permute.xlu0 0
  %2058 = vperm.xlu0 %2057, %v1749
  %v2059 = vpop.permute.xlu0 %2058
  %2060 = vset.pattern.permute.xlu0 0
  %2061 = vperm.xlu0 %2060, %v1750
  %v2062 = vpop.permute.xlu0 %2061
  %2063 = vset.pattern.permute.xlu0 0
  %2064 = vperm.xlu0 %2063, %v1751
  %v2065 = vpop.permute.xlu0 %2064
  %2066 = vset.pattern.permute.xlu0 0
  %2067 = vperm.xlu0 %2066, %v1752
  %v2068 = vpop.permute.xlu0 %2067
  %2069 = vset.pattern.permute.xlu0 0
  %2070 = vperm.xlu0 %2069, %v1753
  %v2071 = vpop.permute.xlu0 %2070
  %2072 = vset.pattern.permute.xlu0 0
  %2073 = vperm.xlu0 %2072, %v1754
  %v2074 = vpop.permute.xlu0 %2073
  %2075 = vset.pattern.permute.xlu0 0
  %2076 = vperm.xlu0 %2075, %v1755
  %v2077 = vpop.permute.xlu0 %2076
  %2078 = vset.pattern.permute.xlu0 0
  %2079 = vperm.xlu0 %2078, %v1756
  %v2080 = vpop.permute.xlu0 %2079
  %2081 = vset.pattern.permute.xlu0 0
  %2082 = vperm.xlu0 %2081, %v1757
  %v2083 = vpop.permute.xlu0 %2082
  %2084 = vset.pattern.permute.xlu0 0
  %2085 = vperm.xlu0 %2084, %v1758
  %v2086 = vpop.permute.xlu0 %2085
  %2087 = vset.pattern.permute.xlu0 0
  %2088 = vperm.xlu0 %2087, %v1759
  %v2089 = vpop.permute.xlu0 %2088
  %2090 = vset.pattern.permute.xlu0 0
  %2091 = vperm.xlu0 %2090, %v1760
  %v2092 = vpop.permute.xlu0 %2091
  %2093 = vset.pattern.permute.xlu0 0
  %2094 = vperm.xlu0 %2093, %v1761
  %v2095 = vpop.permute.xlu0 %2094
  %2096 = vset.pattern.permute.xlu0 0
  %2097 = vperm.xlu0 %2096, %v1762
  %v2098 = vpop.permute.xlu0 %2097
  %2099 = vset.pattern.permute.xlu0 0
  %2100 = vperm.xlu0 %2099, %v1763
  %v2101 = vpop.permute.xlu0 %2100
  %2102 = vset.pattern.permute.xlu0 0
  %2103 = vperm.xlu0 %2102, %v1764
  %v2104 = vpop.permute.xlu0 %2103
  %2105 = vset.pattern.permute.xlu0 0
  %2106 = vperm.xlu0 %2105, %v1765
  %v2107 = vpop.permute.xlu0 %2106
  %2108 = vset.pattern.permute.xlu0 0
  %2109 = vperm.xlu0 %2108, %v1766
  %v2110 = vpop.permute.xlu0 %2109
  %2111 = vset.pattern.permute.xlu0 0
  %2112 = vperm.xlu0 %2111, %v1767
  %v2113 = vpop.permute.xlu0 %2112
  %2114 = vset.pattern.permute.xlu0 0
  %2115 = vperm.xlu0 %2114, %v1768
  %v2116 = vpop.permute.xlu0 %2115
  %2117 = vset.pattern.permute.xlu0 0
  %2118 = vperm.xlu0 %2117, %v1769
  %v2119 = vpop.permute.xlu0 %2118
  %2120 = vset.pattern.permute.xlu0 0
  %2121 = vperm.xlu0 %2120, %v1770
  %v2122 = vpop.permute.xlu0 %2121
  %2123 = vset.pattern.permute.xlu0 0
  %2124 = vperm.xlu0 %2123, %v1771
  %v2125 = vpop.permute.xlu0 %2124
  %2126 = vset.pattern.permute.xlu0 0
  %2127 = vperm.xlu0 %2126, %v1772
  %v2128 = vpop.permute.xlu0 %2127
  %2129 = vset.pattern.permute.xlu0 0
  %2130 = vperm.xlu0 %2129, %v1773
  %v2131 = vpop.permute.xlu0 %2130
  %2132 = vset.pattern.permute.xlu0 0
  %2133 = vperm.xlu0 %2132, %v1774
  %v2134 = vpop.permute.xlu0 %2133
  %2135 = vset.pattern.permute.xlu0 0
  %2136 = vperm.xlu0 %2135, %v1775
  %v2137 = vpop.permute.xlu0 %2136
  %2138 = vset.pattern.permute.xlu0 0
  %2139 = vperm.xlu0 %2138, %v1776
  %v2140 = vpop.permute.xlu0 %2139
  %2141 = vset.pattern.permute.xlu0 0
  %2142 = vperm.xlu0 %2141, %v1777
  %v2143 = vpop.permute.xlu0 %2142
  %2144 = vset.pattern.permute.xlu0 0
  %2145 = vperm.xlu0 %2144, %v1778
  %v2146 = vpop.permute.xlu0 %2145
  %2147 = vset.pattern.permute.xlu0 0
  %2148 = vperm.xlu0 %2147, %v1779
  %v2149 = vpop.permute.xlu0 %2148
  %2150 = vset.pattern.permute.xlu0 0
  %2151 = vperm.xlu0 %2150, %v1780
  %v2152 = vpop.permute.xlu0 %2151
  %2153 = vset.pattern.permute.xlu0 0
  %2154 = vperm.xlu0 %2153, %v1781
  %v2155 = vpop.permute.xlu0 %2154
  %2156 = vset.pattern.permute.xlu0 0
  %2157 = vperm.xlu0 %2156, %v1782
  %v2158 = vpop.permute.xlu0 %2157
  %2159 = vset.pattern.permute.xlu0 0
  %2160 = vperm.xlu0 %2159, %v1783
  %v2161 = vpop.permute.xlu0 %2160
  %2162 = vset.pattern.permute.xlu0 0
  %2163 = vperm.xlu0 %2162, %v1784
  %v2164 = vpop.permute.xlu0 %2163
  %2165 = vset.pattern.permute.xlu0 0
  %2166 = vperm.xlu0 %2165, %v1785
  %v2167 = vpop.permute.xlu0 %2166
  %2168 = vset.pattern.permute.xlu0 0
  %2169 = vperm.xlu0 %2168, %v1786
  %v2170 = vpop.permute.xlu0 %2169
  %2171 = vset.pattern.permute.xlu0 0
  %2172 = vperm.xlu0 %2171, %v1787
  %v2173 = vpop.permute.xlu0 %2172
  %2174 = vset.pattern.permute.xlu0 0
  %2175 = vperm.xlu0 %2174, %v1788
  %v2176 = vpop.permute.xlu0 %2175
  %2177 = vset.pattern.permute.xlu0 0
  %2178 = vperm.xlu0 %2177, %v1789
  %v2179 = vpop.permute.xlu0 %2178
  %2180 = vset.pattern.permute.xlu0 0
  %2181 = vperm.xlu0 %2180, %v1790
  %v2182 = vpop.permute.xlu0 %2181
  %2183 = vset.pattern.permute.xlu0 0
  %2184 = vperm.xlu0 %2183, %v1791
  %v2185 = vpop.permute.xlu0 %2184
  %2186 = vset.pattern.permute.xlu0 0
  %2187 = vperm.xlu0 %2186, %v1792
  %v2188 = vpop.permute.xlu0 %2187
  %2189 = vset.pattern.permute.xlu0 0
  %2190 = vperm.xlu0 %2189, %v1793
  %v2191 = vpop.permute.xlu0 %2190
  %2192 = vset.pattern.permute.xlu0 0
  %2193 = vperm.xlu0 %2192, %v1794
  %v2194 = vpop.permute.xlu0 %2193
  %2195 = vset.pattern.permute.xlu0 0
  %2196 = vperm.xlu0 %2195, %v1795
  %v2197 = vpop.permute.xlu0 %2196
  %2198 = vset.pattern.permute.xlu0 0
  %2199 = vperm.xlu0 %2198, %v1796
  %v2200 = vpop.permute.xlu0 %2199
  %2201 = vset.pattern.permute.xlu0 0
  %2202 = vperm.xlu0 %2201, %v1797
  %v2203 = vpop.permute.xlu0 %2202
  %2204 = vset.pattern.permute.xlu0 0
  %2205 = vperm.xlu0 %2204, %v1798
  %v2206 = vpop.permute.xlu0 %2205
  %2207 = vset.pattern.permute.xlu0 0
  %2208 = vperm.xlu0 %2207, %v1799
  %v2209 = vpop.permute.xlu0 %2208
  %2210 = vset.pattern.permute.xlu0 0
  %2211 = vperm.xlu0 %2210, %v1800
  %v2212 = vpop.permute.xlu0 %2211
  %2213 = vset.pattern.permute.xlu0 0
  %2214 = vperm.xlu0 %2213, %v1801
  %v2215 = vpop.permute.xlu0 %2214
  %2216 = vset.pattern.permute.xlu0 0
  %2217 = vperm.xlu0 %2216, %v1802
  %v2218 = vpop.permute.xlu0 %2217
  %2219 = vset.pattern.permute.xlu0 0
  %2220 = vperm.xlu0 %2219, %v1803
  %v2221 = vpop.permute.xlu0 %2220
  %2222 = vset.pattern.permute.xlu0 0
  %2223 = vperm.xlu0 %2222, %v1804
  %v2224 = vpop.permute.xlu0 %2223
  %2225 = vset.pattern.permute.xlu0 0
  %2226 = vperm.xlu0 %2225, %v1805
  %v2227 = vpop.permute.xlu0 %2226
  %2228 = vset.pattern.permute.xlu0 0
  %2229 = vperm.xlu0 %2228, %v1806
  %v2230 = vpop.permute.xlu0 %2229
  %2231 = vset.pattern.permute.xlu0 0
  %2232 = vperm.xlu0 %2231, %v1807
  %v2233 = vpop.permute.xlu0 %2232
  %2234 = vset.pattern.permute.xlu0 0
  %2235 = vperm.xlu0 %2234, %v1808
  %v2236 = vpop.permute.xlu0 %2235
  %2237 = vset.pattern.permute.xlu0 0
  %2238 = vperm.xlu0 %2237, %v1809
  %v2239 = vpop.permute.xlu0 %2238
  %2240 = vset.pattern.permute.xlu0 0
  %2241 = vperm.xlu0 %2240, %v1810
  %v2242 = vpop.permute.xlu0 %2241
  %2243 = vset.pattern.permute.xlu0 0
  %2244 = vperm.xlu0 %2243, %v1811
  %v2245 = vpop.permute.xlu0 %2244
  %2246 = vset.pattern.permute.xlu0 0
  %2247 = vperm.xlu0 %2246, %v1812
  %v2248 = vpop.permute.xlu0 %2247
  %2249 = vset.pattern.permute.xlu0 0
  %2250 = vperm.xlu0 %2249, %v1813
  %v2251 = vpop.permute.xlu0 %2250
  %2252 = vset.pattern.permute.xlu0 0
  %2253 = vperm.xlu0 %2252, %v1814
  %v2254 = vpop.permute.xlu0 %2253
  %2255 = vset.pattern.permute.xlu0 0
  %2256 = vperm.xlu0 %2255, %v1815
  %v2257 = vpop.permute.xlu0 %2256
  %2258 = vset.pattern.permute.xlu0 0
  %2259 = vperm.xlu0 %2258, %v1816
  %v2260 = vpop.permute.xlu0 %2259
  %2261 = vset.pattern.permute.xlu0 0
  %2262 = vperm.xlu0 %2261, %v1817
  %v2263 = vpop.permute.xlu0 %2262
  %2264 = vset.pattern.permute.xlu0 0
  %2265 = vperm.xlu0 %2264, %v1818
  %v2266 = vpop.permute.xlu0 %2265
  %2267 = vset.pattern.permute.xlu0 0
  %2268 = vperm.xlu0 %2267, %v1819
  %v2269 = vpop.permute.xlu0 %2268
  %2270 = vset.pattern.permute.xlu0 0
  %2271 = vperm.xlu0 %2270, %v1820
  %v2272 = vpop.permute.xlu0 %2271
  %2273 = vset.pattern.permute.xlu0 0
  %2274 = vperm.xlu0 %2273, %v1821
  %v2275 = vpop.permute.xlu0 %2274
  %2276 = vset.pattern.permute.xlu0 0
  %2277 = vperm.xlu0 %2276, %v1822
  %v2278 = vpop.permute.xlu0 %2277
  %2279 = vset.pattern.permute.xlu0 0
  %2280 = vperm.xlu0 %2279, %v1823
  %v2281 = vpop.permute.xlu0 %2280
  %2282 = vset.pattern.permute.xlu0 0
  %2283 = vperm.xlu0 %2282, %v1824
  %v2284 = vpop.permute.xlu0 %2283
  %2285 = vset.pattern.permute.xlu0 0
  %2286 = vperm.xlu0 %2285, %v1825
  %v2287 = vpop.permute.xlu0 %2286
  %2288 = vset.pattern.permute.xlu0 0
  %2289 = vperm.xlu0 %2288, %v1826
  %v2290 = vpop.permute.xlu0 %2289
  %2291 = vset.pattern.permute.xlu0 0
  %2292 = vperm.xlu0 %2291, %v1827
  %v2293 = vpop.permute.xlu0 %2292
  %2294 = vset.pattern.permute.xlu0 0
  %2295 = vperm.xlu0 %2294, %v1828
  %v2296 = vpop.permute.xlu0 %2295
  %2297 = vset.pattern.permute.xlu0 0
  %2298 = vperm.xlu0 %2297, %v1829
  %v2299 = vpop.permute.xlu0 %2298
  %2300 = vset.pattern.permute.xlu0 0
  %2301 = vperm.xlu0 %2300, %v1830
  %v2302 = vpop.permute.xlu0 %2301
  %2303 = vset.pattern.permute.xlu0 0
  %2304 = vperm.xlu0 %2303, %v1831
  %v2305 = vpop.permute.xlu0 %2304
  %2306 = vset.pattern.permute.xlu0 0
  %2307 = vperm.xlu0 %2306, %v1832
  %v2308 = vpop.permute.xlu0 %2307
  %2309 = vset.pattern.permute.xlu0 0
  %2310 = vperm.xlu0 %2309, %v1833
  %v2311 = vpop.permute.xlu0 %2310
  %2312 = vset.pattern.permute.xlu0 0
  %2313 = vperm.xlu0 %2312, %v1834
  %v2314 = vpop.permute.xlu0 %2313
  %2315 = vset.pattern.permute.xlu0 0
  %2316 = vperm.xlu0 %2315, %v1835
  %v2317 = vpop.permute.xlu0 %2316
  %2318 = vset.pattern.permute.xlu0 0
  %2319 = vperm.xlu0 %2318, %v1836
  %v2320 = vpop.permute.xlu0 %2319
  %2321 = vset.pattern.permute.xlu0 0
  %2322 = vperm.xlu0 %2321, %v1837
  %v2323 = vpop.permute.xlu0 %2322
  %2324 = vset.pattern.permute.xlu0 0
  %2325 = vperm.xlu0 %2324, %v1838
  %v2326 = vpop.permute.xlu0 %2325
  %2327 = vset.pattern.permute.xlu0 0
  %2328 = vperm.xlu0 %2327, %v1839
  %v2329 = vpop.permute.xlu0 %2328
  %2330 = vset.pattern.permute.xlu0 0
  %2331 = vperm.xlu0 %2330, %v1840
  %v2332 = vpop.permute.xlu0 %2331
  %2333 = vset.pattern.permute.xlu0 0
  %2334 = vperm.xlu0 %2333, %v1841
  %v2335 = vpop.permute.xlu0 %2334
  %2336 = vset.pattern.permute.xlu0 0
  %2337 = vperm.xlu0 %2336, %v1842
  %v2338 = vpop.permute.xlu0 %2337
  %2339 = vset.pattern.permute.xlu0 0
  %2340 = vperm.xlu0 %2339, %v1843
  %v2341 = vpop.permute.xlu0 %2340
  %2342 = vset.pattern.permute.xlu0 0
  %2343 = vperm.xlu0 %2342, %v1844
  %v2344 = vpop.permute.xlu0 %2343
  %2345 = vset.pattern.permute.xlu0 0
  %2346 = vperm.xlu0 %2345, %v1845
  %v2347 = vpop.permute.xlu0 %2346
  %2348 = vset.pattern.permute.xlu0 0
  %2349 = vperm.xlu0 %2348, %v1846
  %v2350 = vpop.permute.xlu0 %2349
  %2351 = vset.pattern.permute.xlu0 0
  %2352 = vperm.xlu0 %2351, %v1847
  %v2353 = vpop.permute.xlu0 %2352
  %2354 = vset.pattern.permute.xlu0 0
  %2355 = vperm.xlu0 %2354, %v1848
  %v2356 = vpop.permute.xlu0 %2355
  %2357 = vset.pattern.permute.xlu0 0
  %2358 = vperm.xlu0 %2357, %v1849
  %v2359 = vpop.permute.xlu0 %2358
  %2360 = vset.pattern.permute.xlu0 0
  %2361 = vperm.xlu0 %2360, %v1850
  %v2362 = vpop.permute.xlu0 %2361
  %v2363 = vlaneseq
  %v2364 = vand.u32 %v2363, 127
  %v2365 = vlaneseq
  %v2366 = vshrl.u32 %v2365, 7
  %v2367 = vsub.s32 %v2364, %v2366
  %v2368 = vrot.slane %v1981, %v2367
  %v2369 = vadd.s32 %v2364, 4294967288
  %v2370 = vlaneseq
  %v2371 = vshrl.u32 %v2370, 7
  %v2372 = vsub.s32 %v2369, %v2371
  %v2373 = vrot.slane %v1984, %v2372
  %vm2374 = vcmask 130112
  %v2375 = vsel %vm2374, %v2373, %v2368
  %v2376 = vlaneseq
  %v2377 = vshrl.u32 %v2376, 7
  %v2378 = vsub.s32 %v2364, %v2377
  %v2379 = vrot.slane %v1987, %v2378
  %v2380 = vlaneseq
  %v2381 = vshrl.u32 %v2380, 7
  %v2382 = vsub.s32 %v2369, %v2381
  %v2383 = vrot.slane %v1990, %v2382
  %v2384 = vsel %vm2374, %v2383, %v2379
  %v2385 = vlaneseq
  %v2386 = vshrl.u32 %v2385, 7
  %v2387 = vsub.s32 %v2364, %v2386
  %v2388 = vrot.slane %v1993, %v2387
  %v2389 = vlaneseq
  %v2390 = vshrl.u32 %v2389, 7
  %v2391 = vsub.s32 %v2369, %v2390
  %v2392 = vrot.slane %v1996, %v2391
  %v2393 = vsel %vm2374, %v2392, %v2388
  %v2394 = vlaneseq
  %v2395 = vshrl.u32 %v2394, 7
  %v2396 = vsub.s32 %v2364, %v2395
  %v2397 = vrot.slane %v1999, %v2396
  %v2398 = vlaneseq
  %v2399 = vshrl.u32 %v2398, 7
  %v2400 = vsub.s32 %v2369, %v2399
  %v2401 = vrot.slane %v2002, %v2400
  %v2402 = vsel %vm2374, %v2401, %v2397
  %v2403 = vlaneseq
  %v2404 = vshrl.u32 %v2403, 7
  %v2405 = vsub.s32 %v2364, %v2404
  %v2406 = vrot.slane %v2005, %v2405
  %v2407 = vlaneseq
  %v2408 = vshrl.u32 %v2407, 7
  %v2409 = vsub.s32 %v2369, %v2408
  %v2410 = vrot.slane %v2008, %v2409
  %v2411 = vsel %vm2374, %v2410, %v2406
  %v2412 = vlaneseq
  %v2413 = vshrl.u32 %v2412, 7
  %v2414 = vsub.s32 %v2364, %v2413
  %v2415 = vrot.slane %v2011, %v2414
  %v2416 = vlaneseq
  %v2417 = vshrl.u32 %v2416, 7
  %v2418 = vsub.s32 %v2369, %v2417
  %v2419 = vrot.slane %v2014, %v2418
  %v2420 = vsel %vm2374, %v2419, %v2415
  %v2421 = vlaneseq
  %v2422 = vshrl.u32 %v2421, 7
  %v2423 = vsub.s32 %v2364, %v2422
  %v2424 = vrot.slane %v2017, %v2423
  %v2425 = vlaneseq
  %v2426 = vshrl.u32 %v2425, 7
  %v2427 = vsub.s32 %v2369, %v2426
  %v2428 = vrot.slane %v2020, %v2427
  %v2429 = vsel %vm2374, %v2428, %v2424
  %v2430 = vlaneseq
  %v2431 = vshrl.u32 %v2430, 7
  %v2432 = vsub.s32 %v2364, %v2431
  %v2433 = vrot.slane %v2023, %v2432
  %v2434 = vlaneseq
  %v2435 = vshrl.u32 %v2434, 7
  %v2436 = vsub.s32 %v2369, %v2435
  %v2437 = vrot.slane %v2026, %v2436
  %v2438 = vsel %vm2374, %v2437, %v2433
  %v2439 = vlaneseq
  %v2440 = vshrl.u32 %v2439, 7
  %v2441 = vsub.s32 %v2364, %v2440
  %v2442 = vrot.slane %v2029, %v2441
  %v2443 = vlaneseq
  %v2444 = vshrl.u32 %v2443, 7
  %v2445 = vsub.s32 %v2369, %v2444
  %v2446 = vrot.slane %v2032, %v2445
  %v2447 = vsel %vm2374, %v2446, %v2442
  %v2448 = vlaneseq
  %v2449 = vshrl.u32 %v2448, 7
  %v2450 = vsub.s32 %v2364, %v2449
  %v2451 = vrot.slane %v2035, %v2450
  %v2452 = vlaneseq
  %v2453 = vshrl.u32 %v2452, 7
  %v2454 = vsub.s32 %v2369, %v2453
  %v2455 = vrot.slane %v2038, %v2454
  %v2456 = vsel %vm2374, %v2455, %v2451
  %v2457 = vlaneseq
  %v2458 = vshrl.u32 %v2457, 7
  %v2459 = vsub.s32 %v2364, %v2458
  %v2460 = vrot.slane %v2041, %v2459
  %v2461 = vlaneseq
  %v2462 = vshrl.u32 %v2461, 7
  %v2463 = vsub.s32 %v2369, %v2462
  %v2464 = vrot.slane %v2044, %v2463
  %v2465 = vsel %vm2374, %v2464, %v2460
  %v2466 = vlaneseq
  %v2467 = vshrl.u32 %v2466, 7
  %v2468 = vsub.s32 %v2364, %v2467
  %v2469 = vrot.slane %v2047, %v2468
  %v2470 = vlaneseq
  %v2471 = vshrl.u32 %v2470, 7
  %v2472 = vsub.s32 %v2369, %v2471
  %v2473 = vrot.slane %v2050, %v2472
  %v2474 = vsel %vm2374, %v2473, %v2469
  %v2475 = vlaneseq
  %v2476 = vshrl.u32 %v2475, 7
  %v2477 = vsub.s32 %v2364, %v2476
  %v2478 = vrot.slane %v2053, %v2477
  %v2479 = vlaneseq
  %v2480 = vshrl.u32 %v2479, 7
  %v2481 = vsub.s32 %v2369, %v2480
  %v2482 = vrot.slane %v2056, %v2481
  %v2483 = vsel %vm2374, %v2482, %v2478
  %v2484 = vlaneseq
  %v2485 = vshrl.u32 %v2484, 7
  %v2486 = vsub.s32 %v2364, %v2485
  %v2487 = vrot.slane %v2059, %v2486
  %v2488 = vlaneseq
  %v2489 = vshrl.u32 %v2488, 7
  %v2490 = vsub.s32 %v2369, %v2489
  %v2491 = vrot.slane %v2062, %v2490
  %v2492 = vsel %vm2374, %v2491, %v2487
  %v2493 = vlaneseq
  %v2494 = vshrl.u32 %v2493, 7
  %v2495 = vsub.s32 %v2364, %v2494
  %v2496 = vrot.slane %v2065, %v2495
  %v2497 = vlaneseq
  %v2498 = vshrl.u32 %v2497, 7
  %v2499 = vsub.s32 %v2369, %v2498
  %v2500 = vrot.slane %v2068, %v2499
  %v2501 = vsel %vm2374, %v2500, %v2496
  %v2502 = vlaneseq
  %v2503 = vshrl.u32 %v2502, 7
  %v2504 = vsub.s32 %v2364, %v2503
  %v2505 = vrot.slane %v2071, %v2504
  %v2506 = vlaneseq
  %v2507 = vshrl.u32 %v2506, 7
  %v2508 = vsub.s32 %v2369, %v2507
  %v2509 = vrot.slane %v2074, %v2508
  %v2510 = vsel %vm2374, %v2509, %v2505
  %v2511 = vlaneseq
  %v2512 = vshrl.u32 %v2511, 7
  %v2513 = vsub.s32 %v2364, %v2512
  %v2514 = vrot.slane %v2077, %v2513
  %v2515 = vlaneseq
  %v2516 = vshrl.u32 %v2515, 7
  %v2517 = vsub.s32 %v2369, %v2516
  %v2518 = vrot.slane %v2080, %v2517
  %v2519 = vsel %vm2374, %v2518, %v2514
  %v2520 = vlaneseq
  %v2521 = vshrl.u32 %v2520, 7
  %v2522 = vsub.s32 %v2364, %v2521
  %v2523 = vrot.slane %v2083, %v2522
  %v2524 = vlaneseq
  %v2525 = vshrl.u32 %v2524, 7
  %v2526 = vsub.s32 %v2369, %v2525
  %v2527 = vrot.slane %v2086, %v2526
  %v2528 = vsel %vm2374, %v2527, %v2523
  %v2529 = vlaneseq
  %v2530 = vshrl.u32 %v2529, 7
  %v2531 = vsub.s32 %v2364, %v2530
  %v2532 = vrot.slane %v2089, %v2531
  %v2533 = vlaneseq
  %v2534 = vshrl.u32 %v2533, 7
  %v2535 = vsub.s32 %v2369, %v2534
  %v2536 = vrot.slane %v2092, %v2535
  %v2537 = vsel %vm2374, %v2536, %v2532
  %v2538 = vlaneseq
  %v2539 = vshrl.u32 %v2538, 7
  %v2540 = vsub.s32 %v2364, %v2539
  %v2541 = vrot.slane %v2095, %v2540
  %v2542 = vlaneseq
  %v2543 = vshrl.u32 %v2542, 7
  %v2544 = vsub.s32 %v2369, %v2543
  %v2545 = vrot.slane %v2098, %v2544
  %v2546 = vsel %vm2374, %v2545, %v2541
  %v2547 = vlaneseq
  %v2548 = vshrl.u32 %v2547, 7
  %v2549 = vsub.s32 %v2364, %v2548
  %v2550 = vrot.slane %v2101, %v2549
  %v2551 = vlaneseq
  %v2552 = vshrl.u32 %v2551, 7
  %v2553 = vsub.s32 %v2369, %v2552
  %v2554 = vrot.slane %v2104, %v2553
  %v2555 = vsel %vm2374, %v2554, %v2550
  %v2556 = vlaneseq
  %v2557 = vshrl.u32 %v2556, 7
  %v2558 = vsub.s32 %v2364, %v2557
  %v2559 = vrot.slane %v2107, %v2558
  %v2560 = vlaneseq
  %v2561 = vshrl.u32 %v2560, 7
  %v2562 = vsub.s32 %v2369, %v2561
  %v2563 = vrot.slane %v2110, %v2562
  %v2564 = vsel %vm2374, %v2563, %v2559
  %v2565 = vlaneseq
  %v2566 = vshrl.u32 %v2565, 7
  %v2567 = vsub.s32 %v2364, %v2566
  %v2568 = vrot.slane %v2113, %v2567
  %v2569 = vlaneseq
  %v2570 = vshrl.u32 %v2569, 7
  %v2571 = vsub.s32 %v2369, %v2570
  %v2572 = vrot.slane %v2116, %v2571
  %v2573 = vsel %vm2374, %v2572, %v2568
  %v2574 = vlaneseq
  %v2575 = vshrl.u32 %v2574, 7
  %v2576 = vsub.s32 %v2364, %v2575
  %v2577 = vrot.slane %v2119, %v2576
  %v2578 = vlaneseq
  %v2579 = vshrl.u32 %v2578, 7
  %v2580 = vsub.s32 %v2369, %v2579
  %v2581 = vrot.slane %v2122, %v2580
  %v2582 = vsel %vm2374, %v2581, %v2577
  %v2583 = vlaneseq
  %v2584 = vshrl.u32 %v2583, 7
  %v2585 = vsub.s32 %v2364, %v2584
  %v2586 = vrot.slane %v2125, %v2585
  %v2587 = vlaneseq
  %v2588 = vshrl.u32 %v2587, 7
  %v2589 = vsub.s32 %v2369, %v2588
  %v2590 = vrot.slane %v2128, %v2589
  %v2591 = vsel %vm2374, %v2590, %v2586
  %v2592 = vlaneseq
  %v2593 = vshrl.u32 %v2592, 7
  %v2594 = vsub.s32 %v2364, %v2593
  %v2595 = vrot.slane %v2131, %v2594
  %v2596 = vlaneseq
  %v2597 = vshrl.u32 %v2596, 7
  %v2598 = vsub.s32 %v2369, %v2597
  %v2599 = vrot.slane %v2134, %v2598
  %v2600 = vsel %vm2374, %v2599, %v2595
  %v2601 = vlaneseq
  %v2602 = vshrl.u32 %v2601, 7
  %v2603 = vsub.s32 %v2364, %v2602
  %v2604 = vrot.slane %v2137, %v2603
  %v2605 = vlaneseq
  %v2606 = vshrl.u32 %v2605, 7
  %v2607 = vsub.s32 %v2369, %v2606
  %v2608 = vrot.slane %v2140, %v2607
  %v2609 = vsel %vm2374, %v2608, %v2604
  %v2610 = vlaneseq
  %v2611 = vshrl.u32 %v2610, 7
  %v2612 = vsub.s32 %v2364, %v2611
  %v2613 = vrot.slane %v2143, %v2612
  %v2614 = vlaneseq
  %v2615 = vshrl.u32 %v2614, 7
  %v2616 = vsub.s32 %v2369, %v2615
  %v2617 = vrot.slane %v2146, %v2616
  %v2618 = vsel %vm2374, %v2617, %v2613
  %v2619 = vlaneseq
  %v2620 = vshrl.u32 %v2619, 7
  %v2621 = vsub.s32 %v2364, %v2620
  %v2622 = vrot.slane %v2149, %v2621
  %v2623 = vlaneseq
  %v2624 = vshrl.u32 %v2623, 7
  %v2625 = vsub.s32 %v2369, %v2624
  %v2626 = vrot.slane %v2152, %v2625
  %v2627 = vsel %vm2374, %v2626, %v2622
  %v2628 = vlaneseq
  %v2629 = vshrl.u32 %v2628, 7
  %v2630 = vsub.s32 %v2364, %v2629
  %v2631 = vrot.slane %v2155, %v2630
  %v2632 = vlaneseq
  %v2633 = vshrl.u32 %v2632, 7
  %v2634 = vsub.s32 %v2369, %v2633
  %v2635 = vrot.slane %v2158, %v2634
  %v2636 = vsel %vm2374, %v2635, %v2631
  %v2637 = vlaneseq
  %v2638 = vshrl.u32 %v2637, 7
  %v2639 = vsub.s32 %v2364, %v2638
  %v2640 = vrot.slane %v2161, %v2639
  %v2641 = vlaneseq
  %v2642 = vshrl.u32 %v2641, 7
  %v2643 = vsub.s32 %v2369, %v2642
  %v2644 = vrot.slane %v2164, %v2643
  %v2645 = vsel %vm2374, %v2644, %v2640
  %v2646 = vlaneseq
  %v2647 = vshrl.u32 %v2646, 7
  %v2648 = vsub.s32 %v2364, %v2647
  %v2649 = vrot.slane %v2167, %v2648
  %v2650 = vlaneseq
  %v2651 = vshrl.u32 %v2650, 7
  %v2652 = vsub.s32 %v2369, %v2651
  %v2653 = vrot.slane %v2170, %v2652
  %v2654 = vsel %vm2374, %v2653, %v2649
  %v2655 = vlaneseq
  %v2656 = vshrl.u32 %v2655, 7
  %v2657 = vsub.s32 %v2364, %v2656
  %v2658 = vrot.slane %v2173, %v2657
  %v2659 = vlaneseq
  %v2660 = vshrl.u32 %v2659, 7
  %v2661 = vsub.s32 %v2369, %v2660
  %v2662 = vrot.slane %v2176, %v2661
  %v2663 = vsel %vm2374, %v2662, %v2658
  %v2664 = vlaneseq
  %v2665 = vshrl.u32 %v2664, 7
  %v2666 = vsub.s32 %v2364, %v2665
  %v2667 = vrot.slane %v2179, %v2666
  %v2668 = vlaneseq
  %v2669 = vshrl.u32 %v2668, 7
  %v2670 = vsub.s32 %v2369, %v2669
  %v2671 = vrot.slane %v2182, %v2670
  %v2672 = vsel %vm2374, %v2671, %v2667
  %v2673 = vlaneseq
  %v2674 = vshrl.u32 %v2673, 7
  %v2675 = vsub.s32 %v2364, %v2674
  %v2676 = vrot.slane %v2185, %v2675
  %v2677 = vlaneseq
  %v2678 = vshrl.u32 %v2677, 7
  %v2679 = vsub.s32 %v2369, %v2678
  %v2680 = vrot.slane %v2188, %v2679
  %v2681 = vsel %vm2374, %v2680, %v2676
  %v2682 = vlaneseq
  %v2683 = vshrl.u32 %v2682, 7
  %v2684 = vsub.s32 %v2364, %v2683
  %v2685 = vrot.slane %v2191, %v2684
  %v2686 = vlaneseq
  %v2687 = vshrl.u32 %v2686, 7
  %v2688 = vsub.s32 %v2369, %v2687
  %v2689 = vrot.slane %v2194, %v2688
  %v2690 = vsel %vm2374, %v2689, %v2685
  %v2691 = vlaneseq
  %v2692 = vshrl.u32 %v2691, 7
  %v2693 = vsub.s32 %v2364, %v2692
  %v2694 = vrot.slane %v2197, %v2693
  %v2695 = vlaneseq
  %v2696 = vshrl.u32 %v2695, 7
  %v2697 = vsub.s32 %v2369, %v2696
  %v2698 = vrot.slane %v2200, %v2697
  %v2699 = vsel %vm2374, %v2698, %v2694
  %v2700 = vlaneseq
  %v2701 = vshrl.u32 %v2700, 7
  %v2702 = vsub.s32 %v2364, %v2701
  %v2703 = vrot.slane %v2203, %v2702
  %v2704 = vlaneseq
  %v2705 = vshrl.u32 %v2704, 7
  %v2706 = vsub.s32 %v2369, %v2705
  %v2707 = vrot.slane %v2206, %v2706
  %v2708 = vsel %vm2374, %v2707, %v2703
  %v2709 = vlaneseq
  %v2710 = vshrl.u32 %v2709, 7
  %v2711 = vsub.s32 %v2364, %v2710
  %v2712 = vrot.slane %v2209, %v2711
  %v2713 = vlaneseq
  %v2714 = vshrl.u32 %v2713, 7
  %v2715 = vsub.s32 %v2369, %v2714
  %v2716 = vrot.slane %v2212, %v2715
  %v2717 = vsel %vm2374, %v2716, %v2712
  %v2718 = vlaneseq
  %v2719 = vshrl.u32 %v2718, 7
  %v2720 = vsub.s32 %v2364, %v2719
  %v2721 = vrot.slane %v2215, %v2720
  %v2722 = vlaneseq
  %v2723 = vshrl.u32 %v2722, 7
  %v2724 = vsub.s32 %v2369, %v2723
  %v2725 = vrot.slane %v2218, %v2724
  %v2726 = vsel %vm2374, %v2725, %v2721
  %v2727 = vlaneseq
  %v2728 = vshrl.u32 %v2727, 7
  %v2729 = vsub.s32 %v2364, %v2728
  %v2730 = vrot.slane %v2221, %v2729
  %v2731 = vlaneseq
  %v2732 = vshrl.u32 %v2731, 7
  %v2733 = vsub.s32 %v2369, %v2732
  %v2734 = vrot.slane %v2224, %v2733
  %v2735 = vsel %vm2374, %v2734, %v2730
  %v2736 = vlaneseq
  %v2737 = vshrl.u32 %v2736, 7
  %v2738 = vsub.s32 %v2364, %v2737
  %v2739 = vrot.slane %v2227, %v2738
  %v2740 = vlaneseq
  %v2741 = vshrl.u32 %v2740, 7
  %v2742 = vsub.s32 %v2369, %v2741
  %v2743 = vrot.slane %v2230, %v2742
  %v2744 = vsel %vm2374, %v2743, %v2739
  %v2745 = vlaneseq
  %v2746 = vshrl.u32 %v2745, 7
  %v2747 = vsub.s32 %v2364, %v2746
  %v2748 = vrot.slane %v2233, %v2747
  %v2749 = vlaneseq
  %v2750 = vshrl.u32 %v2749, 7
  %v2751 = vsub.s32 %v2369, %v2750
  %v2752 = vrot.slane %v2236, %v2751
  %v2753 = vsel %vm2374, %v2752, %v2748
  %v2754 = vlaneseq
  %v2755 = vshrl.u32 %v2754, 7
  %v2756 = vsub.s32 %v2364, %v2755
  %v2757 = vrot.slane %v2239, %v2756
  %v2758 = vlaneseq
  %v2759 = vshrl.u32 %v2758, 7
  %v2760 = vsub.s32 %v2369, %v2759
  %v2761 = vrot.slane %v2242, %v2760
  %v2762 = vsel %vm2374, %v2761, %v2757
  %v2763 = vlaneseq
  %v2764 = vshrl.u32 %v2763, 7
  %v2765 = vsub.s32 %v2364, %v2764
  %v2766 = vrot.slane %v2245, %v2765
  %v2767 = vlaneseq
  %v2768 = vshrl.u32 %v2767, 7
  %v2769 = vsub.s32 %v2369, %v2768
  %v2770 = vrot.slane %v2248, %v2769
  %v2771 = vsel %vm2374, %v2770, %v2766
  %v2772 = vlaneseq
  %v2773 = vshrl.u32 %v2772, 7
  %v2774 = vsub.s32 %v2364, %v2773
  %v2775 = vrot.slane %v2251, %v2774
  %v2776 = vlaneseq
  %v2777 = vshrl.u32 %v2776, 7
  %v2778 = vsub.s32 %v2369, %v2777
  %v2779 = vrot.slane %v2254, %v2778
  %v2780 = vsel %vm2374, %v2779, %v2775
  %v2781 = vlaneseq
  %v2782 = vshrl.u32 %v2781, 7
  %v2783 = vsub.s32 %v2364, %v2782
  %v2784 = vrot.slane %v2257, %v2783
  %v2785 = vlaneseq
  %v2786 = vshrl.u32 %v2785, 7
  %v2787 = vsub.s32 %v2369, %v2786
  %v2788 = vrot.slane %v2260, %v2787
  %v2789 = vsel %vm2374, %v2788, %v2784
  %v2790 = vlaneseq
  %v2791 = vshrl.u32 %v2790, 7
  %v2792 = vsub.s32 %v2364, %v2791
  %v2793 = vrot.slane %v2263, %v2792
  %v2794 = vlaneseq
  %v2795 = vshrl.u32 %v2794, 7
  %v2796 = vsub.s32 %v2369, %v2795
  %v2797 = vrot.slane %v2266, %v2796
  %v2798 = vsel %vm2374, %v2797, %v2793
  %v2799 = vlaneseq
  %v2800 = vshrl.u32 %v2799, 7
  %v2801 = vsub.s32 %v2364, %v2800
  %v2802 = vrot.slane %v2269, %v2801
  %v2803 = vlaneseq
  %v2804 = vshrl.u32 %v2803, 7
  %v2805 = vsub.s32 %v2369, %v2804
  %v2806 = vrot.slane %v2272, %v2805
  %v2807 = vsel %vm2374, %v2806, %v2802
  %v2808 = vlaneseq
  %v2809 = vshrl.u32 %v2808, 7
  %v2810 = vsub.s32 %v2364, %v2809
  %v2811 = vrot.slane %v2275, %v2810
  %v2812 = vlaneseq
  %v2813 = vshrl.u32 %v2812, 7
  %v2814 = vsub.s32 %v2369, %v2813
  %v2815 = vrot.slane %v2278, %v2814
  %v2816 = vsel %vm2374, %v2815, %v2811
  %v2817 = vlaneseq
  %v2818 = vshrl.u32 %v2817, 7
  %v2819 = vsub.s32 %v2364, %v2818
  %v2820 = vrot.slane %v2281, %v2819
  %v2821 = vlaneseq
  %v2822 = vshrl.u32 %v2821, 7
  %v2823 = vsub.s32 %v2369, %v2822
  %v2824 = vrot.slane %v2284, %v2823
  %v2825 = vsel %vm2374, %v2824, %v2820
  %v2826 = vlaneseq
  %v2827 = vshrl.u32 %v2826, 7
  %v2828 = vsub.s32 %v2364, %v2827
  %v2829 = vrot.slane %v2287, %v2828
  %v2830 = vlaneseq
  %v2831 = vshrl.u32 %v2830, 7
  %v2832 = vsub.s32 %v2369, %v2831
  %v2833 = vrot.slane %v2290, %v2832
  %v2834 = vsel %vm2374, %v2833, %v2829
  %v2835 = vlaneseq
  %v2836 = vshrl.u32 %v2835, 7
  %v2837 = vsub.s32 %v2364, %v2836
  %v2838 = vrot.slane %v2293, %v2837
  %v2839 = vlaneseq
  %v2840 = vshrl.u32 %v2839, 7
  %v2841 = vsub.s32 %v2369, %v2840
  %v2842 = vrot.slane %v2296, %v2841
  %v2843 = vsel %vm2374, %v2842, %v2838
  %v2844 = vlaneseq
  %v2845 = vshrl.u32 %v2844, 7
  %v2846 = vsub.s32 %v2364, %v2845
  %v2847 = vrot.slane %v2299, %v2846
  %v2848 = vlaneseq
  %v2849 = vshrl.u32 %v2848, 7
  %v2850 = vsub.s32 %v2369, %v2849
  %v2851 = vrot.slane %v2302, %v2850
  %v2852 = vsel %vm2374, %v2851, %v2847
  %v2853 = vlaneseq
  %v2854 = vshrl.u32 %v2853, 7
  %v2855 = vsub.s32 %v2364, %v2854
  %v2856 = vrot.slane %v2305, %v2855
  %v2857 = vlaneseq
  %v2858 = vshrl.u32 %v2857, 7
  %v2859 = vsub.s32 %v2369, %v2858
  %v2860 = vrot.slane %v2308, %v2859
  %v2861 = vsel %vm2374, %v2860, %v2856
  %v2862 = vlaneseq
  %v2863 = vshrl.u32 %v2862, 7
  %v2864 = vsub.s32 %v2364, %v2863
  %v2865 = vrot.slane %v2311, %v2864
  %v2866 = vlaneseq
  %v2867 = vshrl.u32 %v2866, 7
  %v2868 = vsub.s32 %v2369, %v2867
  %v2869 = vrot.slane %v2314, %v2868
  %v2870 = vsel %vm2374, %v2869, %v2865
  %v2871 = vlaneseq
  %v2872 = vshrl.u32 %v2871, 7
  %v2873 = vsub.s32 %v2364, %v2872
  %v2874 = vrot.slane %v2317, %v2873
  %v2875 = vlaneseq
  %v2876 = vshrl.u32 %v2875, 7
  %v2877 = vsub.s32 %v2369, %v2876
  %v2878 = vrot.slane %v2320, %v2877
  %v2879 = vsel %vm2374, %v2878, %v2874
  %v2880 = vlaneseq
  %v2881 = vshrl.u32 %v2880, 7
  %v2882 = vsub.s32 %v2364, %v2881
  %v2883 = vrot.slane %v2323, %v2882
  %v2884 = vlaneseq
  %v2885 = vshrl.u32 %v2884, 7
  %v2886 = vsub.s32 %v2369, %v2885
  %v2887 = vrot.slane %v2326, %v2886
  %v2888 = vsel %vm2374, %v2887, %v2883
  %v2889 = vlaneseq
  %v2890 = vshrl.u32 %v2889, 7
  %v2891 = vsub.s32 %v2364, %v2890
  %v2892 = vrot.slane %v2329, %v2891
  %v2893 = vlaneseq
  %v2894 = vshrl.u32 %v2893, 7
  %v2895 = vsub.s32 %v2369, %v2894
  %v2896 = vrot.slane %v2332, %v2895
  %v2897 = vsel %vm2374, %v2896, %v2892
  %v2898 = vlaneseq
  %v2899 = vshrl.u32 %v2898, 7
  %v2900 = vsub.s32 %v2364, %v2899
  %v2901 = vrot.slane %v2335, %v2900
  %v2902 = vlaneseq
  %v2903 = vshrl.u32 %v2902, 7
  %v2904 = vsub.s32 %v2369, %v2903
  %v2905 = vrot.slane %v2338, %v2904
  %v2906 = vsel %vm2374, %v2905, %v2901
  %v2907 = vlaneseq
  %v2908 = vshrl.u32 %v2907, 7
  %v2909 = vsub.s32 %v2364, %v2908
  %v2910 = vrot.slane %v2341, %v2909
  %v2911 = vlaneseq
  %v2912 = vshrl.u32 %v2911, 7
  %v2913 = vsub.s32 %v2369, %v2912
  %v2914 = vrot.slane %v2344, %v2913
  %v2915 = vsel %vm2374, %v2914, %v2910
  %v2916 = vlaneseq
  %v2917 = vshrl.u32 %v2916, 7
  %v2918 = vsub.s32 %v2364, %v2917
  %v2919 = vrot.slane %v2347, %v2918
  %v2920 = vlaneseq
  %v2921 = vshrl.u32 %v2920, 7
  %v2922 = vsub.s32 %v2369, %v2921
  %v2923 = vrot.slane %v2350, %v2922
  %v2924 = vsel %vm2374, %v2923, %v2919
  %v2925 = vlaneseq
  %v2926 = vshrl.u32 %v2925, 7
  %v2927 = vsub.s32 %v2364, %v2926
  %v2928 = vrot.slane %v2353, %v2927
  %v2929 = vlaneseq
  %v2930 = vshrl.u32 %v2929, 7
  %v2931 = vsub.s32 %v2369, %v2930
  %v2932 = vrot.slane %v2356, %v2931
  %v2933 = vsel %vm2374, %v2932, %v2928
  %v2934 = vlaneseq
  %v2935 = vshrl.u32 %v2934, 7
  %v2936 = vsub.s32 %v2364, %v2935
  %v2937 = vrot.slane %v2359, %v2936
  %v2938 = vlaneseq
  %v2939 = vshrl.u32 %v2938, 7
  %v2940 = vsub.s32 %v2369, %v2939
  %v2941 = vrot.slane %v2362, %v2940
  %v2942 = vsel %vm2374, %v2941, %v2937
  %vm2943 = vcmask 1041409
  %v2944 = vsel %vm2943, %v2384, %v2375
  %vm2945 = vcmask 1042434
  %v2946 = vsel %vm2945, %v2393, %v2944
  %vm2947 = vcmask 1043459
  %v2948 = vsel %vm2947, %v2402, %v2946
  %vm2949 = vcmask 1044484
  %v2950 = vsel %vm2949, %v2411, %v2948
  %vm2951 = vcmask 1045509
  %v2952 = vsel %vm2951, %v2420, %v2950
  %vm2953 = vcmask 1046534
  %v2954 = vsel %vm2953, %v2429, %v2952
  %vm2955 = vcmask 1047559
  %v2956 = vsel %vm2955, %v2438, %v2954
  %v2957 = vsel %vm2943, %v2456, %v2447
  %v2958 = vsel %vm2945, %v2465, %v2957
  %v2959 = vsel %vm2947, %v2474, %v2958
  %v2960 = vsel %vm2949, %v2483, %v2959
  %v2961 = vsel %vm2951, %v2492, %v2960
  %v2962 = vsel %vm2953, %v2501, %v2961
  %v2963 = vsel %vm2955, %v2510, %v2962
  %v2964 = vsel %vm2943, %v2528, %v2519
  %v2965 = vsel %vm2945, %v2537, %v2964
  %v2966 = vsel %vm2947, %v2546, %v2965
  %v2967 = vsel %vm2949, %v2555, %v2966
  %v2968 = vsel %vm2951, %v2564, %v2967
  %v2969 = vsel %vm2953, %v2573, %v2968
  %v2970 = vsel %vm2955, %v2582, %v2969
  %v2971 = vsel %vm2943, %v2600, %v2591
  %v2972 = vsel %vm2945, %v2609, %v2971
  %v2973 = vsel %vm2947, %v2618, %v2972
  %v2974 = vsel %vm2949, %v2627, %v2973
  %v2975 = vsel %vm2951, %v2636, %v2974
  %v2976 = vsel %vm2953, %v2645, %v2975
  %v2977 = vsel %vm2955, %v2654, %v2976
  %v2978 = vsel %vm2943, %v2672, %v2663
  %v2979 = vsel %vm2945, %v2681, %v2978
  %v2980 = vsel %vm2947, %v2690, %v2979
  %v2981 = vsel %vm2949, %v2699, %v2980
  %v2982 = vsel %vm2951, %v2708, %v2981
  %v2983 = vsel %vm2953, %v2717, %v2982
  %v2984 = vsel %vm2955, %v2726, %v2983
  %v2985 = vsel %vm2943, %v2744, %v2735
  %v2986 = vsel %vm2945, %v2753, %v2985
  %v2987 = vsel %vm2947, %v2762, %v2986
  %v2988 = vsel %vm2949, %v2771, %v2987
  %v2989 = vsel %vm2951, %v2780, %v2988
  %v2990 = vsel %vm2953, %v2789, %v2989
  %v2991 = vsel %vm2955, %v2798, %v2990
  %v2992 = vsel %vm2943, %v2816, %v2807
  %v2993 = vsel %vm2945, %v2825, %v2992
  %v2994 = vsel %vm2947, %v2834, %v2993
  %v2995 = vsel %vm2949, %v2843, %v2994
  %v2996 = vsel %vm2951, %v2852, %v2995
  %v2997 = vsel %vm2953, %v2861, %v2996
  %v2998 = vsel %vm2955, %v2870, %v2997
  %v2999 = vsel %vm2943, %v2888, %v2879
  %v3000 = vsel %vm2945, %v2897, %v2999
  %v3001 = vsel %vm2947, %v2906, %v3000
  %v3002 = vsel %vm2949, %v2915, %v3001
  %v3003 = vsel %vm2951, %v2924, %v3002
  %v3004 = vsel %vm2953, %v2933, %v3003
  %v3005 = vsel %vm2955, %v2942, %v3004
  %vm3014 = vcmask 130048
  %v3015 = vsel %vm3014, %v2956, inf
  %3016 = vmin.xlane.f32.xlu0 %v3015
  %v3017 = vpop.xlane.xlu0 %3016
  %v3018 = vsel %vm3014, %v2963, inf
  %3019 = vmin.xlane.f32.xlu0 %v3018
  %v3020 = vpop.xlane.xlu0 %3019
  %v3021 = vsel %vm3014, %v2970, inf
  %3022 = vmin.xlane.f32.xlu0 %v3021
  %v3023 = vpop.xlane.xlu0 %3022
  %v3024 = vsel %vm3014, %v2977, inf
  %3025 = vmin.xlane.f32.xlu0 %v3024
  %v3026 = vpop.xlane.xlu0 %3025
  %v3027 = vsel %vm3014, %v2984, inf
  %3028 = vmin.xlane.f32.xlu0 %v3027
  %v3029 = vpop.xlane.xlu0 %3028
  %v3030 = vsel %vm3014, %v2991, inf
  %3031 = vmin.xlane.f32.xlu0 %v3030
  %v3032 = vpop.xlane.xlu0 %3031
  %v3033 = vsel %vm3014, %v2998, inf
  %3034 = vmin.xlane.f32.xlu0 %v3033
  %v3035 = vpop.xlane.xlu0 %3034
  %v3036 = vsel %vm3014, %v3005, inf
  %3037 = vmin.xlane.f32.xlu0 %v3036
  %v3038 = vpop.xlane.xlu0 %3037
  %v3047 = vlaneseq
  %v3048 = vshrl.u32 %v3047, 7
  %v3049 = vsub.s32 0, %v3048
  %v3050 = vrot.slane %v3017, %v3049
  %v3051 = vlaneseq
  %v3052 = vshrl.u32 %v3051, 7
  %v3053 = vsub.s32 1, %v3052
  %v3054 = vrot.slane %v3017, %v3053
  %v3055 = vlaneseq
  %v3056 = vshrl.u32 %v3055, 7
  %v3057 = vsub.s32 2, %v3056
  %v3058 = vrot.slane %v3017, %v3057
  %v3059 = vlaneseq
  %v3060 = vshrl.u32 %v3059, 7
  %v3061 = vsub.s32 3, %v3060
  %v3062 = vrot.slane %v3017, %v3061
  %v3063 = vlaneseq
  %v3064 = vshrl.u32 %v3063, 7
  %v3065 = vsub.s32 4, %v3064
  %v3066 = vrot.slane %v3017, %v3065
  %v3067 = vlaneseq
  %v3068 = vshrl.u32 %v3067, 7
  %v3069 = vsub.s32 5, %v3068
  %v3070 = vrot.slane %v3017, %v3069
  %v3071 = vlaneseq
  %v3072 = vshrl.u32 %v3071, 7
  %v3073 = vsub.s32 6, %v3072
  %v3074 = vrot.slane %v3017, %v3073
  %v3075 = vlaneseq
  %v3076 = vshrl.u32 %v3075, 7
  %v3077 = vsub.s32 7, %v3076
  %v3078 = vrot.slane %v3017, %v3077
  %v3079 = vlaneseq
  %v3080 = vshrl.u32 %v3079, 7
  %v3081 = vsub.s32 0, %v3080
  %v3082 = vrot.slane %v3020, %v3081
  %v3083 = vlaneseq
  %v3084 = vshrl.u32 %v3083, 7
  %v3085 = vsub.s32 1, %v3084
  %v3086 = vrot.slane %v3020, %v3085
  %v3087 = vlaneseq
  %v3088 = vshrl.u32 %v3087, 7
  %v3089 = vsub.s32 2, %v3088
  %v3090 = vrot.slane %v3020, %v3089
  %v3091 = vlaneseq
  %v3092 = vshrl.u32 %v3091, 7
  %v3093 = vsub.s32 3, %v3092
  %v3094 = vrot.slane %v3020, %v3093
  %v3095 = vlaneseq
  %v3096 = vshrl.u32 %v3095, 7
  %v3097 = vsub.s32 4, %v3096
  %v3098 = vrot.slane %v3020, %v3097
  %v3099 = vlaneseq
  %v3100 = vshrl.u32 %v3099, 7
  %v3101 = vsub.s32 5, %v3100
  %v3102 = vrot.slane %v3020, %v3101
  %v3103 = vlaneseq
  %v3104 = vshrl.u32 %v3103, 7
  %v3105 = vsub.s32 6, %v3104
  %v3106 = vrot.slane %v3020, %v3105
  %v3107 = vlaneseq
  %v3108 = vshrl.u32 %v3107, 7
  %v3109 = vsub.s32 7, %v3108
  %v3110 = vrot.slane %v3020, %v3109
  %v3111 = vlaneseq
  %v3112 = vshrl.u32 %v3111, 7
  %v3113 = vsub.s32 0, %v3112
  %v3114 = vrot.slane %v3023, %v3113
  %v3115 = vlaneseq
  %v3116 = vshrl.u32 %v3115, 7
  %v3117 = vsub.s32 1, %v3116
  %v3118 = vrot.slane %v3023, %v3117
  %v3119 = vlaneseq
  %v3120 = vshrl.u32 %v3119, 7
  %v3121 = vsub.s32 2, %v3120
  %v3122 = vrot.slane %v3023, %v3121
  %v3123 = vlaneseq
  %v3124 = vshrl.u32 %v3123, 7
  %v3125 = vsub.s32 3, %v3124
  %v3126 = vrot.slane %v3023, %v3125
  %v3127 = vlaneseq
  %v3128 = vshrl.u32 %v3127, 7
  %v3129 = vsub.s32 4, %v3128
  %v3130 = vrot.slane %v3023, %v3129
  %v3131 = vlaneseq
  %v3132 = vshrl.u32 %v3131, 7
  %v3133 = vsub.s32 5, %v3132
  %v3134 = vrot.slane %v3023, %v3133
  %v3135 = vlaneseq
  %v3136 = vshrl.u32 %v3135, 7
  %v3137 = vsub.s32 6, %v3136
  %v3138 = vrot.slane %v3023, %v3137
  %v3139 = vlaneseq
  %v3140 = vshrl.u32 %v3139, 7
  %v3141 = vsub.s32 7, %v3140
  %v3142 = vrot.slane %v3023, %v3141
  %v3143 = vlaneseq
  %v3144 = vshrl.u32 %v3143, 7
  %v3145 = vsub.s32 0, %v3144
  %v3146 = vrot.slane %v3026, %v3145
  %v3147 = vlaneseq
  %v3148 = vshrl.u32 %v3147, 7
  %v3149 = vsub.s32 1, %v3148
  %v3150 = vrot.slane %v3026, %v3149
  %v3151 = vlaneseq
  %v3152 = vshrl.u32 %v3151, 7
  %v3153 = vsub.s32 2, %v3152
  %v3154 = vrot.slane %v3026, %v3153
  %v3155 = vlaneseq
  %v3156 = vshrl.u32 %v3155, 7
  %v3157 = vsub.s32 3, %v3156
  %v3158 = vrot.slane %v3026, %v3157
  %v3159 = vlaneseq
  %v3160 = vshrl.u32 %v3159, 7
  %v3161 = vsub.s32 4, %v3160
  %v3162 = vrot.slane %v3026, %v3161
  %v3163 = vlaneseq
  %v3164 = vshrl.u32 %v3163, 7
  %v3165 = vsub.s32 5, %v3164
  %v3166 = vrot.slane %v3026, %v3165
  %v3167 = vlaneseq
  %v3168 = vshrl.u32 %v3167, 7
  %v3169 = vsub.s32 6, %v3168
  %v3170 = vrot.slane %v3026, %v3169
  %v3171 = vlaneseq
  %v3172 = vshrl.u32 %v3171, 7
  %v3173 = vsub.s32 7, %v3172
  %v3174 = vrot.slane %v3026, %v3173
  %v3175 = vlaneseq
  %v3176 = vshrl.u32 %v3175, 7
  %v3177 = vsub.s32 0, %v3176
  %v3178 = vrot.slane %v3029, %v3177
  %v3179 = vlaneseq
  %v3180 = vshrl.u32 %v3179, 7
  %v3181 = vsub.s32 1, %v3180
  %v3182 = vrot.slane %v3029, %v3181
  %v3183 = vlaneseq
  %v3184 = vshrl.u32 %v3183, 7
  %v3185 = vsub.s32 2, %v3184
  %v3186 = vrot.slane %v3029, %v3185
  %v3187 = vlaneseq
  %v3188 = vshrl.u32 %v3187, 7
  %v3189 = vsub.s32 3, %v3188
  %v3190 = vrot.slane %v3029, %v3189
  %v3191 = vlaneseq
  %v3192 = vshrl.u32 %v3191, 7
  %v3193 = vsub.s32 4, %v3192
  %v3194 = vrot.slane %v3029, %v3193
  %v3195 = vlaneseq
  %v3196 = vshrl.u32 %v3195, 7
  %v3197 = vsub.s32 5, %v3196
  %v3198 = vrot.slane %v3029, %v3197
  %v3199 = vlaneseq
  %v3200 = vshrl.u32 %v3199, 7
  %v3201 = vsub.s32 6, %v3200
  %v3202 = vrot.slane %v3029, %v3201
  %v3203 = vlaneseq
  %v3204 = vshrl.u32 %v3203, 7
  %v3205 = vsub.s32 7, %v3204
  %v3206 = vrot.slane %v3029, %v3205
  %v3207 = vlaneseq
  %v3208 = vshrl.u32 %v3207, 7
  %v3209 = vsub.s32 0, %v3208
  %v3210 = vrot.slane %v3032, %v3209
  %v3211 = vlaneseq
  %v3212 = vshrl.u32 %v3211, 7
  %v3213 = vsub.s32 1, %v3212
  %v3214 = vrot.slane %v3032, %v3213
  %v3215 = vlaneseq
  %v3216 = vshrl.u32 %v3215, 7
  %v3217 = vsub.s32 2, %v3216
  %v3218 = vrot.slane %v3032, %v3217
  %v3219 = vlaneseq
  %v3220 = vshrl.u32 %v3219, 7
  %v3221 = vsub.s32 3, %v3220
  %v3222 = vrot.slane %v3032, %v3221
  %v3223 = vlaneseq
  %v3224 = vshrl.u32 %v3223, 7
  %v3225 = vsub.s32 4, %v3224
  %v3226 = vrot.slane %v3032, %v3225
  %v3227 = vlaneseq
  %v3228 = vshrl.u32 %v3227, 7
  %v3229 = vsub.s32 5, %v3228
  %v3230 = vrot.slane %v3032, %v3229
  %v3231 = vlaneseq
  %v3232 = vshrl.u32 %v3231, 7
  %v3233 = vsub.s32 6, %v3232
  %v3234 = vrot.slane %v3032, %v3233
  %v3235 = vlaneseq
  %v3236 = vshrl.u32 %v3235, 7
  %v3237 = vsub.s32 7, %v3236
  %v3238 = vrot.slane %v3032, %v3237
  %v3239 = vlaneseq
  %v3240 = vshrl.u32 %v3239, 7
  %v3241 = vsub.s32 0, %v3240
  %v3242 = vrot.slane %v3035, %v3241
  %v3243 = vlaneseq
  %v3244 = vshrl.u32 %v3243, 7
  %v3245 = vsub.s32 1, %v3244
  %v3246 = vrot.slane %v3035, %v3245
  %v3247 = vlaneseq
  %v3248 = vshrl.u32 %v3247, 7
  %v3249 = vsub.s32 2, %v3248
  %v3250 = vrot.slane %v3035, %v3249
  %v3251 = vlaneseq
  %v3252 = vshrl.u32 %v3251, 7
  %v3253 = vsub.s32 3, %v3252
  %v3254 = vrot.slane %v3035, %v3253
  %v3255 = vlaneseq
  %v3256 = vshrl.u32 %v3255, 7
  %v3257 = vsub.s32 4, %v3256
  %v3258 = vrot.slane %v3035, %v3257
  %v3259 = vlaneseq
  %v3260 = vshrl.u32 %v3259, 7
  %v3261 = vsub.s32 5, %v3260
  %v3262 = vrot.slane %v3035, %v3261
  %v3263 = vlaneseq
  %v3264 = vshrl.u32 %v3263, 7
  %v3265 = vsub.s32 6, %v3264
  %v3266 = vrot.slane %v3035, %v3265
  %v3267 = vlaneseq
  %v3268 = vshrl.u32 %v3267, 7
  %v3269 = vsub.s32 7, %v3268
  %v3270 = vrot.slane %v3035, %v3269
  %v3271 = vlaneseq
  %v3272 = vshrl.u32 %v3271, 7
  %v3273 = vsub.s32 0, %v3272
  %v3274 = vrot.slane %v3038, %v3273
  %v3275 = vlaneseq
  %v3276 = vshrl.u32 %v3275, 7
  %v3277 = vsub.s32 1, %v3276
  %v3278 = vrot.slane %v3038, %v3277
  %v3279 = vlaneseq
  %v3280 = vshrl.u32 %v3279, 7
  %v3281 = vsub.s32 2, %v3280
  %v3282 = vrot.slane %v3038, %v3281
  %v3283 = vlaneseq
  %v3284 = vshrl.u32 %v3283, 7
  %v3285 = vsub.s32 3, %v3284
  %v3286 = vrot.slane %v3038, %v3285
  %v3287 = vlaneseq
  %v3288 = vshrl.u32 %v3287, 7
  %v3289 = vsub.s32 4, %v3288
  %v3290 = vrot.slane %v3038, %v3289
  %v3291 = vlaneseq
  %v3292 = vshrl.u32 %v3291, 7
  %v3293 = vsub.s32 5, %v3292
  %v3294 = vrot.slane %v3038, %v3293
  %v3295 = vlaneseq
  %v3296 = vshrl.u32 %v3295, 7
  %v3297 = vsub.s32 6, %v3296
  %v3298 = vrot.slane %v3038, %v3297
  %v3299 = vlaneseq
  %v3300 = vshrl.u32 %v3299, 7
  %v3301 = vsub.s32 7, %v3300
  %v3302 = vrot.slane %v3038, %v3301
  %vm3367 = vcmp.le.f32.partialorder %v1723, %v3050
  %vm3368 = vcmp.le.f32.partialorder %v1724, %v3050
  %vm3369 = vcmp.le.f32.partialorder %v1725, %v3054
  %vm3370 = vcmp.le.f32.partialorder %v1726, %v3054
  %vm3371 = vcmp.le.f32.partialorder %v1727, %v3058
  %vm3372 = vcmp.le.f32.partialorder %v1728, %v3058
  %vm3373 = vcmp.le.f32.partialorder %v1729, %v3062
  %vm3374 = vcmp.le.f32.partialorder %v1730, %v3062
  %vm3375 = vcmp.le.f32.partialorder %v1731, %v3066
  %vm3376 = vcmp.le.f32.partialorder %v1732, %v3066
  %vm3377 = vcmp.le.f32.partialorder %v1733, %v3070
  %vm3378 = vcmp.le.f32.partialorder %v1734, %v3070
  %vm3379 = vcmp.le.f32.partialorder %v1735, %v3074
  %vm3380 = vcmp.le.f32.partialorder %v1736, %v3074
  %vm3381 = vcmp.le.f32.partialorder %v1737, %v3078
  %vm3382 = vcmp.le.f32.partialorder %v1738, %v3078
  %vm3383 = vcmp.le.f32.partialorder %v1739, %v3082
  %vm3384 = vcmp.le.f32.partialorder %v1740, %v3082
  %vm3385 = vcmp.le.f32.partialorder %v1741, %v3086
  %vm3386 = vcmp.le.f32.partialorder %v1742, %v3086
  %vm3387 = vcmp.le.f32.partialorder %v1743, %v3090
  %vm3388 = vcmp.le.f32.partialorder %v1744, %v3090
  %vm3389 = vcmp.le.f32.partialorder %v1745, %v3094
  %vm3390 = vcmp.le.f32.partialorder %v1746, %v3094
  %vm3391 = vcmp.le.f32.partialorder %v1747, %v3098
  %vm3392 = vcmp.le.f32.partialorder %v1748, %v3098
  %vm3393 = vcmp.le.f32.partialorder %v1749, %v3102
  %vm3394 = vcmp.le.f32.partialorder %v1750, %v3102
  %vm3395 = vcmp.le.f32.partialorder %v1751, %v3106
  %vm3396 = vcmp.le.f32.partialorder %v1752, %v3106
  %vm3397 = vcmp.le.f32.partialorder %v1753, %v3110
  %vm3398 = vcmp.le.f32.partialorder %v1754, %v3110
  %vm3399 = vcmp.le.f32.partialorder %v1755, %v3114
  %vm3400 = vcmp.le.f32.partialorder %v1756, %v3114
  %vm3401 = vcmp.le.f32.partialorder %v1757, %v3118
  %vm3402 = vcmp.le.f32.partialorder %v1758, %v3118
  %vm3403 = vcmp.le.f32.partialorder %v1759, %v3122
  %vm3404 = vcmp.le.f32.partialorder %v1760, %v3122
  %vm3405 = vcmp.le.f32.partialorder %v1761, %v3126
  %vm3406 = vcmp.le.f32.partialorder %v1762, %v3126
  %vm3407 = vcmp.le.f32.partialorder %v1763, %v3130
  %vm3408 = vcmp.le.f32.partialorder %v1764, %v3130
  %vm3409 = vcmp.le.f32.partialorder %v1765, %v3134
  %vm3410 = vcmp.le.f32.partialorder %v1766, %v3134
  %vm3411 = vcmp.le.f32.partialorder %v1767, %v3138
  %vm3412 = vcmp.le.f32.partialorder %v1768, %v3138
  %vm3413 = vcmp.le.f32.partialorder %v1769, %v3142
  %vm3414 = vcmp.le.f32.partialorder %v1770, %v3142
  %vm3415 = vcmp.le.f32.partialorder %v1771, %v3146
  %vm3416 = vcmp.le.f32.partialorder %v1772, %v3146
  %vm3417 = vcmp.le.f32.partialorder %v1773, %v3150
  %vm3418 = vcmp.le.f32.partialorder %v1774, %v3150
  %vm3419 = vcmp.le.f32.partialorder %v1775, %v3154
  %vm3420 = vcmp.le.f32.partialorder %v1776, %v3154
  %vm3421 = vcmp.le.f32.partialorder %v1777, %v3158
  %vm3422 = vcmp.le.f32.partialorder %v1778, %v3158
  %vm3423 = vcmp.le.f32.partialorder %v1779, %v3162
  %vm3424 = vcmp.le.f32.partialorder %v1780, %v3162
  %vm3425 = vcmp.le.f32.partialorder %v1781, %v3166
  %vm3426 = vcmp.le.f32.partialorder %v1782, %v3166
  %vm3427 = vcmp.le.f32.partialorder %v1783, %v3170
  %vm3428 = vcmp.le.f32.partialorder %v1784, %v3170
  %vm3429 = vcmp.le.f32.partialorder %v1785, %v3174
  %vm3430 = vcmp.le.f32.partialorder %v1786, %v3174
  %vm3431 = vcmp.le.f32.partialorder %v1787, %v3178
  %vm3432 = vcmp.le.f32.partialorder %v1788, %v3178
  %vm3433 = vcmp.le.f32.partialorder %v1789, %v3182
  %vm3434 = vcmp.le.f32.partialorder %v1790, %v3182
  %vm3435 = vcmp.le.f32.partialorder %v1791, %v3186
  %vm3436 = vcmp.le.f32.partialorder %v1792, %v3186
  %vm3437 = vcmp.le.f32.partialorder %v1793, %v3190
  %vm3438 = vcmp.le.f32.partialorder %v1794, %v3190
  %vm3439 = vcmp.le.f32.partialorder %v1795, %v3194
  %vm3440 = vcmp.le.f32.partialorder %v1796, %v3194
  %vm3441 = vcmp.le.f32.partialorder %v1797, %v3198
  %vm3442 = vcmp.le.f32.partialorder %v1798, %v3198
  %vm3443 = vcmp.le.f32.partialorder %v1799, %v3202
  %vm3444 = vcmp.le.f32.partialorder %v1800, %v3202
  %vm3445 = vcmp.le.f32.partialorder %v1801, %v3206
  %vm3446 = vcmp.le.f32.partialorder %v1802, %v3206
  %vm3447 = vcmp.le.f32.partialorder %v1803, %v3210
  %vm3448 = vcmp.le.f32.partialorder %v1804, %v3210
  %vm3449 = vcmp.le.f32.partialorder %v1805, %v3214
  %vm3450 = vcmp.le.f32.partialorder %v1806, %v3214
  %vm3451 = vcmp.le.f32.partialorder %v1807, %v3218
  %vm3452 = vcmp.le.f32.partialorder %v1808, %v3218
  %vm3453 = vcmp.le.f32.partialorder %v1809, %v3222
  %vm3454 = vcmp.le.f32.partialorder %v1810, %v3222
  %vm3455 = vcmp.le.f32.partialorder %v1811, %v3226
  %vm3456 = vcmp.le.f32.partialorder %v1812, %v3226
  %vm3457 = vcmp.le.f32.partialorder %v1813, %v3230
  %vm3458 = vcmp.le.f32.partialorder %v1814, %v3230
  %vm3459 = vcmp.le.f32.partialorder %v1815, %v3234
  %vm3460 = vcmp.le.f32.partialorder %v1816, %v3234
  %vm3461 = vcmp.le.f32.partialorder %v1817, %v3238
  %vm3462 = vcmp.le.f32.partialorder %v1818, %v3238
  %vm3463 = vcmp.le.f32.partialorder %v1819, %v3242
  %vm3464 = vcmp.le.f32.partialorder %v1820, %v3242
  %vm3465 = vcmp.le.f32.partialorder %v1821, %v3246
  %vm3466 = vcmp.le.f32.partialorder %v1822, %v3246
  %vm3467 = vcmp.le.f32.partialorder %v1823, %v3250
  %vm3468 = vcmp.le.f32.partialorder %v1824, %v3250
  %vm3469 = vcmp.le.f32.partialorder %v1825, %v3254
  %vm3470 = vcmp.le.f32.partialorder %v1826, %v3254
  %vm3471 = vcmp.le.f32.partialorder %v1827, %v3258
  %vm3472 = vcmp.le.f32.partialorder %v1828, %v3258
  %vm3473 = vcmp.le.f32.partialorder %v1829, %v3262
  %vm3474 = vcmp.le.f32.partialorder %v1830, %v3262
  %vm3475 = vcmp.le.f32.partialorder %v1831, %v3266
  %vm3476 = vcmp.le.f32.partialorder %v1832, %v3266
  %vm3477 = vcmp.le.f32.partialorder %v1833, %v3270
  %vm3478 = vcmp.le.f32.partialorder %v1834, %v3270
  %vm3479 = vcmp.le.f32.partialorder %v1835, %v3274
  %vm3480 = vcmp.le.f32.partialorder %v1836, %v3274
  %vm3481 = vcmp.le.f32.partialorder %v1837, %v3278
  %vm3482 = vcmp.le.f32.partialorder %v1838, %v3278
  %vm3483 = vcmp.le.f32.partialorder %v1839, %v3282
  %vm3484 = vcmp.le.f32.partialorder %v1840, %v3282
  %vm3485 = vcmp.le.f32.partialorder %v1841, %v3286
  %vm3486 = vcmp.le.f32.partialorder %v1842, %v3286
  %vm3487 = vcmp.le.f32.partialorder %v1843, %v3290
  %vm3488 = vcmp.le.f32.partialorder %v1844, %v3290
  %vm3489 = vcmp.le.f32.partialorder %v1845, %v3294
  %vm3490 = vcmp.le.f32.partialorder %v1846, %v3294
  %vm3491 = vcmp.le.f32.partialorder %v1847, %v3298
  %vm3492 = vcmp.le.f32.partialorder %v1848, %v3298
  %vm3493 = vcmp.le.f32.partialorder %v1849, %v3302
  %vm3494 = vcmp.le.f32.partialorder %v1850, %v3302
  %3496 = vbcast.lane.b32.xlu0 %v2364, 256
  %v3497 = vpop.permute.xlu0 %3496
  %s3499 = sor.u32 256, 8
  %3500 = vbcast.lane.b32.xlu0 %v2364, %s3499
  %v3501 = vpop.permute.xlu0 %3500
  %v3502 = vsel %vm3367, %v3497, 16
  %v3503 = vsel %vm3368, %v3501, 16
  %v3504 = vsel %vm3369, %v3497, 16
  %v3505 = vsel %vm3370, %v3501, 16
  %v3506 = vsel %vm3371, %v3497, 16
  %v3507 = vsel %vm3372, %v3501, 16
  %v3508 = vsel %vm3373, %v3497, 16
  %v3509 = vsel %vm3374, %v3501, 16
  %v3510 = vsel %vm3375, %v3497, 16
  %v3511 = vsel %vm3376, %v3501, 16
  %v3512 = vsel %vm3377, %v3497, 16
  %v3513 = vsel %vm3378, %v3501, 16
  %v3514 = vsel %vm3379, %v3497, 16
  %v3515 = vsel %vm3380, %v3501, 16
  %v3516 = vsel %vm3381, %v3497, 16
  %v3517 = vsel %vm3382, %v3501, 16
  %v3518 = vsel %vm3383, %v3497, 16
  %v3519 = vsel %vm3384, %v3501, 16
  %v3520 = vsel %vm3385, %v3497, 16
  %v3521 = vsel %vm3386, %v3501, 16
  %v3522 = vsel %vm3387, %v3497, 16
  %v3523 = vsel %vm3388, %v3501, 16
  %v3524 = vsel %vm3389, %v3497, 16
  %v3525 = vsel %vm3390, %v3501, 16
  %v3526 = vsel %vm3391, %v3497, 16
  %v3527 = vsel %vm3392, %v3501, 16
  %v3528 = vsel %vm3393, %v3497, 16
  %v3529 = vsel %vm3394, %v3501, 16
  %v3530 = vsel %vm3395, %v3497, 16
  %v3531 = vsel %vm3396, %v3501, 16
  %v3532 = vsel %vm3397, %v3497, 16
  %v3533 = vsel %vm3398, %v3501, 16
  %v3534 = vsel %vm3399, %v3497, 16
  %v3535 = vsel %vm3400, %v3501, 16
  %v3536 = vsel %vm3401, %v3497, 16
  %v3537 = vsel %vm3402, %v3501, 16
  %v3538 = vsel %vm3403, %v3497, 16
  %v3539 = vsel %vm3404, %v3501, 16
  %v3540 = vsel %vm3405, %v3497, 16
  %v3541 = vsel %vm3406, %v3501, 16
  %v3542 = vsel %vm3407, %v3497, 16
  %v3543 = vsel %vm3408, %v3501, 16
  %v3544 = vsel %vm3409, %v3497, 16
  %v3545 = vsel %vm3410, %v3501, 16
  %v3546 = vsel %vm3411, %v3497, 16
  %v3547 = vsel %vm3412, %v3501, 16
  %v3548 = vsel %vm3413, %v3497, 16
  %v3549 = vsel %vm3414, %v3501, 16
  %v3550 = vsel %vm3415, %v3497, 16
  %v3551 = vsel %vm3416, %v3501, 16
  %v3552 = vsel %vm3417, %v3497, 16
  %v3553 = vsel %vm3418, %v3501, 16
  %v3554 = vsel %vm3419, %v3497, 16
  %v3555 = vsel %vm3420, %v3501, 16
  %v3556 = vsel %vm3421, %v3497, 16
  %v3557 = vsel %vm3422, %v3501, 16
  %v3558 = vsel %vm3423, %v3497, 16
  %v3559 = vsel %vm3424, %v3501, 16
  %v3560 = vsel %vm3425, %v3497, 16
  %v3561 = vsel %vm3426, %v3501, 16
  %v3562 = vsel %vm3427, %v3497, 16
  %v3563 = vsel %vm3428, %v3501, 16
  %v3564 = vsel %vm3429, %v3497, 16
  %v3565 = vsel %vm3430, %v3501, 16
  %v3566 = vsel %vm3431, %v3497, 16
  %v3567 = vsel %vm3432, %v3501, 16
  %v3568 = vsel %vm3433, %v3497, 16
  %v3569 = vsel %vm3434, %v3501, 16
  %v3570 = vsel %vm3435, %v3497, 16
  %v3571 = vsel %vm3436, %v3501, 16
  %v3572 = vsel %vm3437, %v3497, 16
  %v3573 = vsel %vm3438, %v3501, 16
  %v3574 = vsel %vm3439, %v3497, 16
  %v3575 = vsel %vm3440, %v3501, 16
  %v3576 = vsel %vm3441, %v3497, 16
  %v3577 = vsel %vm3442, %v3501, 16
  %v3578 = vsel %vm3443, %v3497, 16
  %v3579 = vsel %vm3444, %v3501, 16
  %v3580 = vsel %vm3445, %v3497, 16
  %v3581 = vsel %vm3446, %v3501, 16
  %v3582 = vsel %vm3447, %v3497, 16
  %v3583 = vsel %vm3448, %v3501, 16
  %v3584 = vsel %vm3449, %v3497, 16
  %v3585 = vsel %vm3450, %v3501, 16
  %v3586 = vsel %vm3451, %v3497, 16
  %v3587 = vsel %vm3452, %v3501, 16
  %v3588 = vsel %vm3453, %v3497, 16
  %v3589 = vsel %vm3454, %v3501, 16
  %v3590 = vsel %vm3455, %v3497, 16
  %v3591 = vsel %vm3456, %v3501, 16
  %v3592 = vsel %vm3457, %v3497, 16
  %v3593 = vsel %vm3458, %v3501, 16
  %v3594 = vsel %vm3459, %v3497, 16
  %v3595 = vsel %vm3460, %v3501, 16
  %v3596 = vsel %vm3461, %v3497, 16
  %v3597 = vsel %vm3462, %v3501, 16
  %v3598 = vsel %vm3463, %v3497, 16
  %v3599 = vsel %vm3464, %v3501, 16
  %v3600 = vsel %vm3465, %v3497, 16
  %v3601 = vsel %vm3466, %v3501, 16
  %v3602 = vsel %vm3467, %v3497, 16
  %v3603 = vsel %vm3468, %v3501, 16
  %v3604 = vsel %vm3469, %v3497, 16
  %v3605 = vsel %vm3470, %v3501, 16
  %v3606 = vsel %vm3471, %v3497, 16
  %v3607 = vsel %vm3472, %v3501, 16
  %v3608 = vsel %vm3473, %v3497, 16
  %v3609 = vsel %vm3474, %v3501, 16
  %v3610 = vsel %vm3475, %v3497, 16
  %v3611 = vsel %vm3476, %v3501, 16
  %v3612 = vsel %vm3477, %v3497, 16
  %v3613 = vsel %vm3478, %v3501, 16
  %v3614 = vsel %vm3479, %v3497, 16
  %v3615 = vsel %vm3480, %v3501, 16
  %v3616 = vsel %vm3481, %v3497, 16
  %v3617 = vsel %vm3482, %v3501, 16
  %v3618 = vsel %vm3483, %v3497, 16
  %v3619 = vsel %vm3484, %v3501, 16
  %v3620 = vsel %vm3485, %v3497, 16
  %v3621 = vsel %vm3486, %v3501, 16
  %v3622 = vsel %vm3487, %v3497, 16
  %v3623 = vsel %vm3488, %v3501, 16
  %v3624 = vsel %vm3489, %v3497, 16
  %v3625 = vsel %vm3490, %v3501, 16
  %v3626 = vsel %vm3491, %v3497, 16
  %v3627 = vsel %vm3492, %v3501, 16
  %v3628 = vsel %vm3493, %v3497, 16
  %v3629 = vsel %vm3494, %v3501, 16
  %3630 = vset.pattern.permute.xlu0 0
  %3631 = vperm.xlu0 %3630, %v3502
  %v3632 = vpop.permute.xlu0 %3631
  %3633 = vset.pattern.permute.xlu0 0
  %3634 = vperm.xlu0 %3633, %v3503
  %v3635 = vpop.permute.xlu0 %3634
  %3636 = vset.pattern.permute.xlu0 0
  %3637 = vperm.xlu0 %3636, %v3504
  %v3638 = vpop.permute.xlu0 %3637
  %3639 = vset.pattern.permute.xlu0 0
  %3640 = vperm.xlu0 %3639, %v3505
  %v3641 = vpop.permute.xlu0 %3640
  %3642 = vset.pattern.permute.xlu0 0
  %3643 = vperm.xlu0 %3642, %v3506
  %v3644 = vpop.permute.xlu0 %3643
  %3645 = vset.pattern.permute.xlu0 0
  %3646 = vperm.xlu0 %3645, %v3507
  %v3647 = vpop.permute.xlu0 %3646
  %3648 = vset.pattern.permute.xlu0 0
  %3649 = vperm.xlu0 %3648, %v3508
  %v3650 = vpop.permute.xlu0 %3649
  %3651 = vset.pattern.permute.xlu0 0
  %3652 = vperm.xlu0 %3651, %v3509
  %v3653 = vpop.permute.xlu0 %3652
  %3654 = vset.pattern.permute.xlu0 0
  %3655 = vperm.xlu0 %3654, %v3510
  %v3656 = vpop.permute.xlu0 %3655
  %3657 = vset.pattern.permute.xlu0 0
  %3658 = vperm.xlu0 %3657, %v3511
  %v3659 = vpop.permute.xlu0 %3658
  %3660 = vset.pattern.permute.xlu0 0
  %3661 = vperm.xlu0 %3660, %v3512
  %v3662 = vpop.permute.xlu0 %3661
  %3663 = vset.pattern.permute.xlu0 0
  %3664 = vperm.xlu0 %3663, %v3513
  %v3665 = vpop.permute.xlu0 %3664
  %3666 = vset.pattern.permute.xlu0 0
  %3667 = vperm.xlu0 %3666, %v3514
  %v3668 = vpop.permute.xlu0 %3667
  %3669 = vset.pattern.permute.xlu0 0
  %3670 = vperm.xlu0 %3669, %v3515
  %v3671 = vpop.permute.xlu0 %3670
  %3672 = vset.pattern.permute.xlu0 0
  %3673 = vperm.xlu0 %3672, %v3516
  %v3674 = vpop.permute.xlu0 %3673
  %3675 = vset.pattern.permute.xlu0 0
  %3676 = vperm.xlu0 %3675, %v3517
  %v3677 = vpop.permute.xlu0 %3676
  %3678 = vset.pattern.permute.xlu0 0
  %3679 = vperm.xlu0 %3678, %v3518
  %v3680 = vpop.permute.xlu0 %3679
  %3681 = vset.pattern.permute.xlu0 0
  %3682 = vperm.xlu0 %3681, %v3519
  %v3683 = vpop.permute.xlu0 %3682
  %3684 = vset.pattern.permute.xlu0 0
  %3685 = vperm.xlu0 %3684, %v3520
  %v3686 = vpop.permute.xlu0 %3685
  %3687 = vset.pattern.permute.xlu0 0
  %3688 = vperm.xlu0 %3687, %v3521
  %v3689 = vpop.permute.xlu0 %3688
  %3690 = vset.pattern.permute.xlu0 0
  %3691 = vperm.xlu0 %3690, %v3522
  %v3692 = vpop.permute.xlu0 %3691
  %3693 = vset.pattern.permute.xlu0 0
  %3694 = vperm.xlu0 %3693, %v3523
  %v3695 = vpop.permute.xlu0 %3694
  %3696 = vset.pattern.permute.xlu0 0
  %3697 = vperm.xlu0 %3696, %v3524
  %v3698 = vpop.permute.xlu0 %3697
  %3699 = vset.pattern.permute.xlu0 0
  %3700 = vperm.xlu0 %3699, %v3525
  %v3701 = vpop.permute.xlu0 %3700
  %3702 = vset.pattern.permute.xlu0 0
  %3703 = vperm.xlu0 %3702, %v3526
  %v3704 = vpop.permute.xlu0 %3703
  %3705 = vset.pattern.permute.xlu0 0
  %3706 = vperm.xlu0 %3705, %v3527
  %v3707 = vpop.permute.xlu0 %3706
  %3708 = vset.pattern.permute.xlu0 0
  %3709 = vperm.xlu0 %3708, %v3528
  %v3710 = vpop.permute.xlu0 %3709
  %3711 = vset.pattern.permute.xlu0 0
  %3712 = vperm.xlu0 %3711, %v3529
  %v3713 = vpop.permute.xlu0 %3712
  %3714 = vset.pattern.permute.xlu0 0
  %3715 = vperm.xlu0 %3714, %v3530
  %v3716 = vpop.permute.xlu0 %3715
  %3717 = vset.pattern.permute.xlu0 0
  %3718 = vperm.xlu0 %3717, %v3531
  %v3719 = vpop.permute.xlu0 %3718
  %3720 = vset.pattern.permute.xlu0 0
  %3721 = vperm.xlu0 %3720, %v3532
  %v3722 = vpop.permute.xlu0 %3721
  %3723 = vset.pattern.permute.xlu0 0
  %3724 = vperm.xlu0 %3723, %v3533
  %v3725 = vpop.permute.xlu0 %3724
  %3726 = vset.pattern.permute.xlu0 0
  %3727 = vperm.xlu0 %3726, %v3534
  %v3728 = vpop.permute.xlu0 %3727
  %3729 = vset.pattern.permute.xlu0 0
  %3730 = vperm.xlu0 %3729, %v3535
  %v3731 = vpop.permute.xlu0 %3730
  %3732 = vset.pattern.permute.xlu0 0
  %3733 = vperm.xlu0 %3732, %v3536
  %v3734 = vpop.permute.xlu0 %3733
  %3735 = vset.pattern.permute.xlu0 0
  %3736 = vperm.xlu0 %3735, %v3537
  %v3737 = vpop.permute.xlu0 %3736
  %3738 = vset.pattern.permute.xlu0 0
  %3739 = vperm.xlu0 %3738, %v3538
  %v3740 = vpop.permute.xlu0 %3739
  %3741 = vset.pattern.permute.xlu0 0
  %3742 = vperm.xlu0 %3741, %v3539
  %v3743 = vpop.permute.xlu0 %3742
  %3744 = vset.pattern.permute.xlu0 0
  %3745 = vperm.xlu0 %3744, %v3540
  %v3746 = vpop.permute.xlu0 %3745
  %3747 = vset.pattern.permute.xlu0 0
  %3748 = vperm.xlu0 %3747, %v3541
  %v3749 = vpop.permute.xlu0 %3748
  %3750 = vset.pattern.permute.xlu0 0
  %3751 = vperm.xlu0 %3750, %v3542
  %v3752 = vpop.permute.xlu0 %3751
  %3753 = vset.pattern.permute.xlu0 0
  %3754 = vperm.xlu0 %3753, %v3543
  %v3755 = vpop.permute.xlu0 %3754
  %3756 = vset.pattern.permute.xlu0 0
  %3757 = vperm.xlu0 %3756, %v3544
  %v3758 = vpop.permute.xlu0 %3757
  %3759 = vset.pattern.permute.xlu0 0
  %3760 = vperm.xlu0 %3759, %v3545
  %v3761 = vpop.permute.xlu0 %3760
  %3762 = vset.pattern.permute.xlu0 0
  %3763 = vperm.xlu0 %3762, %v3546
  %v3764 = vpop.permute.xlu0 %3763
  %3765 = vset.pattern.permute.xlu0 0
  %3766 = vperm.xlu0 %3765, %v3547
  %v3767 = vpop.permute.xlu0 %3766
  %3768 = vset.pattern.permute.xlu0 0
  %3769 = vperm.xlu0 %3768, %v3548
  %v3770 = vpop.permute.xlu0 %3769
  %3771 = vset.pattern.permute.xlu0 0
  %3772 = vperm.xlu0 %3771, %v3549
  %v3773 = vpop.permute.xlu0 %3772
  %3774 = vset.pattern.permute.xlu0 0
  %3775 = vperm.xlu0 %3774, %v3550
  %v3776 = vpop.permute.xlu0 %3775
  %3777 = vset.pattern.permute.xlu0 0
  %3778 = vperm.xlu0 %3777, %v3551
  %v3779 = vpop.permute.xlu0 %3778
  %3780 = vset.pattern.permute.xlu0 0
  %3781 = vperm.xlu0 %3780, %v3552
  %v3782 = vpop.permute.xlu0 %3781
  %3783 = vset.pattern.permute.xlu0 0
  %3784 = vperm.xlu0 %3783, %v3553
  %v3785 = vpop.permute.xlu0 %3784
  %3786 = vset.pattern.permute.xlu0 0
  %3787 = vperm.xlu0 %3786, %v3554
  %v3788 = vpop.permute.xlu0 %3787
  %3789 = vset.pattern.permute.xlu0 0
  %3790 = vperm.xlu0 %3789, %v3555
  %v3791 = vpop.permute.xlu0 %3790
  %3792 = vset.pattern.permute.xlu0 0
  %3793 = vperm.xlu0 %3792, %v3556
  %v3794 = vpop.permute.xlu0 %3793
  %3795 = vset.pattern.permute.xlu0 0
  %3796 = vperm.xlu0 %3795, %v3557
  %v3797 = vpop.permute.xlu0 %3796
  %3798 = vset.pattern.permute.xlu0 0
  %3799 = vperm.xlu0 %3798, %v3558
  %v3800 = vpop.permute.xlu0 %3799
  %3801 = vset.pattern.permute.xlu0 0
  %3802 = vperm.xlu0 %3801, %v3559
  %v3803 = vpop.permute.xlu0 %3802
  %3804 = vset.pattern.permute.xlu0 0
  %3805 = vperm.xlu0 %3804, %v3560
  %v3806 = vpop.permute.xlu0 %3805
  %3807 = vset.pattern.permute.xlu0 0
  %3808 = vperm.xlu0 %3807, %v3561
  %v3809 = vpop.permute.xlu0 %3808
  %3810 = vset.pattern.permute.xlu0 0
  %3811 = vperm.xlu0 %3810, %v3562
  %v3812 = vpop.permute.xlu0 %3811
  %3813 = vset.pattern.permute.xlu0 0
  %3814 = vperm.xlu0 %3813, %v3563
  %v3815 = vpop.permute.xlu0 %3814
  %3816 = vset.pattern.permute.xlu0 0
  %3817 = vperm.xlu0 %3816, %v3564
  %v3818 = vpop.permute.xlu0 %3817
  %3819 = vset.pattern.permute.xlu0 0
  %3820 = vperm.xlu0 %3819, %v3565
  %v3821 = vpop.permute.xlu0 %3820
  %3822 = vset.pattern.permute.xlu0 0
  %3823 = vperm.xlu0 %3822, %v3566
  %v3824 = vpop.permute.xlu0 %3823
  %3825 = vset.pattern.permute.xlu0 0
  %3826 = vperm.xlu0 %3825, %v3567
  %v3827 = vpop.permute.xlu0 %3826
  %3828 = vset.pattern.permute.xlu0 0
  %3829 = vperm.xlu0 %3828, %v3568
  %v3830 = vpop.permute.xlu0 %3829
  %3831 = vset.pattern.permute.xlu0 0
  %3832 = vperm.xlu0 %3831, %v3569
  %v3833 = vpop.permute.xlu0 %3832
  %3834 = vset.pattern.permute.xlu0 0
  %3835 = vperm.xlu0 %3834, %v3570
  %v3836 = vpop.permute.xlu0 %3835
  %3837 = vset.pattern.permute.xlu0 0
  %3838 = vperm.xlu0 %3837, %v3571
  %v3839 = vpop.permute.xlu0 %3838
  %3840 = vset.pattern.permute.xlu0 0
  %3841 = vperm.xlu0 %3840, %v3572
  %v3842 = vpop.permute.xlu0 %3841
  %3843 = vset.pattern.permute.xlu0 0
  %3844 = vperm.xlu0 %3843, %v3573
  %v3845 = vpop.permute.xlu0 %3844
  %3846 = vset.pattern.permute.xlu0 0
  %3847 = vperm.xlu0 %3846, %v3574
  %v3848 = vpop.permute.xlu0 %3847
  %3849 = vset.pattern.permute.xlu0 0
  %3850 = vperm.xlu0 %3849, %v3575
  %v3851 = vpop.permute.xlu0 %3850
  %3852 = vset.pattern.permute.xlu0 0
  %3853 = vperm.xlu0 %3852, %v3576
  %v3854 = vpop.permute.xlu0 %3853
  %3855 = vset.pattern.permute.xlu0 0
  %3856 = vperm.xlu0 %3855, %v3577
  %v3857 = vpop.permute.xlu0 %3856
  %3858 = vset.pattern.permute.xlu0 0
  %3859 = vperm.xlu0 %3858, %v3578
  %v3860 = vpop.permute.xlu0 %3859
  %3861 = vset.pattern.permute.xlu0 0
  %3862 = vperm.xlu0 %3861, %v3579
  %v3863 = vpop.permute.xlu0 %3862
  %3864 = vset.pattern.permute.xlu0 0
  %3865 = vperm.xlu0 %3864, %v3580
  %v3866 = vpop.permute.xlu0 %3865
  %3867 = vset.pattern.permute.xlu0 0
  %3868 = vperm.xlu0 %3867, %v3581
  %v3869 = vpop.permute.xlu0 %3868
  %3870 = vset.pattern.permute.xlu0 0
  %3871 = vperm.xlu0 %3870, %v3582
  %v3872 = vpop.permute.xlu0 %3871
  %3873 = vset.pattern.permute.xlu0 0
  %3874 = vperm.xlu0 %3873, %v3583
  %v3875 = vpop.permute.xlu0 %3874
  %3876 = vset.pattern.permute.xlu0 0
  %3877 = vperm.xlu0 %3876, %v3584
  %v3878 = vpop.permute.xlu0 %3877
  %3879 = vset.pattern.permute.xlu0 0
  %3880 = vperm.xlu0 %3879, %v3585
  %v3881 = vpop.permute.xlu0 %3880
  %3882 = vset.pattern.permute.xlu0 0
  %3883 = vperm.xlu0 %3882, %v3586
  %v3884 = vpop.permute.xlu0 %3883
  %3885 = vset.pattern.permute.xlu0 0
  %3886 = vperm.xlu0 %3885, %v3587
  %v3887 = vpop.permute.xlu0 %3886
  %3888 = vset.pattern.permute.xlu0 0
  %3889 = vperm.xlu0 %3888, %v3588
  %v3890 = vpop.permute.xlu0 %3889
  %3891 = vset.pattern.permute.xlu0 0
  %3892 = vperm.xlu0 %3891, %v3589
  %v3893 = vpop.permute.xlu0 %3892
  %3894 = vset.pattern.permute.xlu0 0
  %3895 = vperm.xlu0 %3894, %v3590
  %v3896 = vpop.permute.xlu0 %3895
  %3897 = vset.pattern.permute.xlu0 0
  %3898 = vperm.xlu0 %3897, %v3591
  %v3899 = vpop.permute.xlu0 %3898
  %3900 = vset.pattern.permute.xlu0 0
  %3901 = vperm.xlu0 %3900, %v3592
  %v3902 = vpop.permute.xlu0 %3901
  %3903 = vset.pattern.permute.xlu0 0
  %3904 = vperm.xlu0 %3903, %v3593
  %v3905 = vpop.permute.xlu0 %3904
  %3906 = vset.pattern.permute.xlu0 0
  %3907 = vperm.xlu0 %3906, %v3594
  %v3908 = vpop.permute.xlu0 %3907
  %3909 = vset.pattern.permute.xlu0 0
  %3910 = vperm.xlu0 %3909, %v3595
  %v3911 = vpop.permute.xlu0 %3910
  %3912 = vset.pattern.permute.xlu0 0
  %3913 = vperm.xlu0 %3912, %v3596
  %v3914 = vpop.permute.xlu0 %3913
  %3915 = vset.pattern.permute.xlu0 0
  %3916 = vperm.xlu0 %3915, %v3597
  %v3917 = vpop.permute.xlu0 %3916
  %3918 = vset.pattern.permute.xlu0 0
  %3919 = vperm.xlu0 %3918, %v3598
  %v3920 = vpop.permute.xlu0 %3919
  %3921 = vset.pattern.permute.xlu0 0
  %3922 = vperm.xlu0 %3921, %v3599
  %v3923 = vpop.permute.xlu0 %3922
  %3924 = vset.pattern.permute.xlu0 0
  %3925 = vperm.xlu0 %3924, %v3600
  %v3926 = vpop.permute.xlu0 %3925
  %3927 = vset.pattern.permute.xlu0 0
  %3928 = vperm.xlu0 %3927, %v3601
  %v3929 = vpop.permute.xlu0 %3928
  %3930 = vset.pattern.permute.xlu0 0
  %3931 = vperm.xlu0 %3930, %v3602
  %v3932 = vpop.permute.xlu0 %3931
  %3933 = vset.pattern.permute.xlu0 0
  %3934 = vperm.xlu0 %3933, %v3603
  %v3935 = vpop.permute.xlu0 %3934
  %3936 = vset.pattern.permute.xlu0 0
  %3937 = vperm.xlu0 %3936, %v3604
  %v3938 = vpop.permute.xlu0 %3937
  %3939 = vset.pattern.permute.xlu0 0
  %3940 = vperm.xlu0 %3939, %v3605
  %v3941 = vpop.permute.xlu0 %3940
  %3942 = vset.pattern.permute.xlu0 0
  %3943 = vperm.xlu0 %3942, %v3606
  %v3944 = vpop.permute.xlu0 %3943
  %3945 = vset.pattern.permute.xlu0 0
  %3946 = vperm.xlu0 %3945, %v3607
  %v3947 = vpop.permute.xlu0 %3946
  %3948 = vset.pattern.permute.xlu0 0
  %3949 = vperm.xlu0 %3948, %v3608
  %v3950 = vpop.permute.xlu0 %3949
  %3951 = vset.pattern.permute.xlu0 0
  %3952 = vperm.xlu0 %3951, %v3609
  %v3953 = vpop.permute.xlu0 %3952
  %3954 = vset.pattern.permute.xlu0 0
  %3955 = vperm.xlu0 %3954, %v3610
  %v3956 = vpop.permute.xlu0 %3955
  %3957 = vset.pattern.permute.xlu0 0
  %3958 = vperm.xlu0 %3957, %v3611
  %v3959 = vpop.permute.xlu0 %3958
  %3960 = vset.pattern.permute.xlu0 0
  %3961 = vperm.xlu0 %3960, %v3612
  %v3962 = vpop.permute.xlu0 %3961
  %3963 = vset.pattern.permute.xlu0 0
  %3964 = vperm.xlu0 %3963, %v3613
  %v3965 = vpop.permute.xlu0 %3964
  %3966 = vset.pattern.permute.xlu0 0
  %3967 = vperm.xlu0 %3966, %v3614
  %v3968 = vpop.permute.xlu0 %3967
  %3969 = vset.pattern.permute.xlu0 0
  %3970 = vperm.xlu0 %3969, %v3615
  %v3971 = vpop.permute.xlu0 %3970
  %3972 = vset.pattern.permute.xlu0 0
  %3973 = vperm.xlu0 %3972, %v3616
  %v3974 = vpop.permute.xlu0 %3973
  %3975 = vset.pattern.permute.xlu0 0
  %3976 = vperm.xlu0 %3975, %v3617
  %v3977 = vpop.permute.xlu0 %3976
  %3978 = vset.pattern.permute.xlu0 0
  %3979 = vperm.xlu0 %3978, %v3618
  %v3980 = vpop.permute.xlu0 %3979
  %3981 = vset.pattern.permute.xlu0 0
  %3982 = vperm.xlu0 %3981, %v3619
  %v3983 = vpop.permute.xlu0 %3982
  %3984 = vset.pattern.permute.xlu0 0
  %3985 = vperm.xlu0 %3984, %v3620
  %v3986 = vpop.permute.xlu0 %3985
  %3987 = vset.pattern.permute.xlu0 0
  %3988 = vperm.xlu0 %3987, %v3621
  %v3989 = vpop.permute.xlu0 %3988
  %3990 = vset.pattern.permute.xlu0 0
  %3991 = vperm.xlu0 %3990, %v3622
  %v3992 = vpop.permute.xlu0 %3991
  %3993 = vset.pattern.permute.xlu0 0
  %3994 = vperm.xlu0 %3993, %v3623
  %v3995 = vpop.permute.xlu0 %3994
  %3996 = vset.pattern.permute.xlu0 0
  %3997 = vperm.xlu0 %3996, %v3624
  %v3998 = vpop.permute.xlu0 %3997
  %3999 = vset.pattern.permute.xlu0 0
  %4000 = vperm.xlu0 %3999, %v3625
  %v4001 = vpop.permute.xlu0 %4000
  %4002 = vset.pattern.permute.xlu0 0
  %4003 = vperm.xlu0 %4002, %v3626
  %v4004 = vpop.permute.xlu0 %4003
  %4005 = vset.pattern.permute.xlu0 0
  %4006 = vperm.xlu0 %4005, %v3627
  %v4007 = vpop.permute.xlu0 %4006
  %4008 = vset.pattern.permute.xlu0 0
  %4009 = vperm.xlu0 %4008, %v3628
  %v4010 = vpop.permute.xlu0 %4009
  %4011 = vset.pattern.permute.xlu0 0
  %4012 = vperm.xlu0 %4011, %v3629
  %v4013 = vpop.permute.xlu0 %4012
  %v4014 = vlaneseq
  %v4015 = vshrl.u32 %v4014, 7
  %v4016 = vsub.s32 %v2364, %v4015
  %v4017 = vrot.slane %v3632, %v4016
  %v4018 = vlaneseq
  %v4019 = vshrl.u32 %v4018, 7
  %v4020 = vsub.s32 %v2369, %v4019
  %v4021 = vrot.slane %v3635, %v4020
  %v4022 = vsel %vm2374, %v4021, %v4017
  %v4023 = vlaneseq
  %v4024 = vshrl.u32 %v4023, 7
  %v4025 = vsub.s32 %v2364, %v4024
  %v4026 = vrot.slane %v3638, %v4025
  %v4027 = vlaneseq
  %v4028 = vshrl.u32 %v4027, 7
  %v4029 = vsub.s32 %v2369, %v4028
  %v4030 = vrot.slane %v3641, %v4029
  %v4031 = vsel %vm2374, %v4030, %v4026
  %v4032 = vlaneseq
  %v4033 = vshrl.u32 %v4032, 7
  %v4034 = vsub.s32 %v2364, %v4033
  %v4035 = vrot.slane %v3644, %v4034
  %v4036 = vlaneseq
  %v4037 = vshrl.u32 %v4036, 7
  %v4038 = vsub.s32 %v2369, %v4037
  %v4039 = vrot.slane %v3647, %v4038
  %v4040 = vsel %vm2374, %v4039, %v4035
  %v4041 = vlaneseq
  %v4042 = vshrl.u32 %v4041, 7
  %v4043 = vsub.s32 %v2364, %v4042
  %v4044 = vrot.slane %v3650, %v4043
  %v4045 = vlaneseq
  %v4046 = vshrl.u32 %v4045, 7
  %v4047 = vsub.s32 %v2369, %v4046
  %v4048 = vrot.slane %v3653, %v4047
  %v4049 = vsel %vm2374, %v4048, %v4044
  %v4050 = vlaneseq
  %v4051 = vshrl.u32 %v4050, 7
  %v4052 = vsub.s32 %v2364, %v4051
  %v4053 = vrot.slane %v3656, %v4052
  %v4054 = vlaneseq
  %v4055 = vshrl.u32 %v4054, 7
  %v4056 = vsub.s32 %v2369, %v4055
  %v4057 = vrot.slane %v3659, %v4056
  %v4058 = vsel %vm2374, %v4057, %v4053
  %v4059 = vlaneseq
  %v4060 = vshrl.u32 %v4059, 7
  %v4061 = vsub.s32 %v2364, %v4060
  %v4062 = vrot.slane %v3662, %v4061
  %v4063 = vlaneseq
  %v4064 = vshrl.u32 %v4063, 7
  %v4065 = vsub.s32 %v2369, %v4064
  %v4066 = vrot.slane %v3665, %v4065
  %v4067 = vsel %vm2374, %v4066, %v4062
  %v4068 = vlaneseq
  %v4069 = vshrl.u32 %v4068, 7
  %v4070 = vsub.s32 %v2364, %v4069
  %v4071 = vrot.slane %v3668, %v4070
  %v4072 = vlaneseq
  %v4073 = vshrl.u32 %v4072, 7
  %v4074 = vsub.s32 %v2369, %v4073
  %v4075 = vrot.slane %v3671, %v4074
  %v4076 = vsel %vm2374, %v4075, %v4071
  %v4077 = vlaneseq
  %v4078 = vshrl.u32 %v4077, 7
  %v4079 = vsub.s32 %v2364, %v4078
  %v4080 = vrot.slane %v3674, %v4079
  %v4081 = vlaneseq
  %v4082 = vshrl.u32 %v4081, 7
  %v4083 = vsub.s32 %v2369, %v4082
  %v4084 = vrot.slane %v3677, %v4083
  %v4085 = vsel %vm2374, %v4084, %v4080
  %v4086 = vlaneseq
  %v4087 = vshrl.u32 %v4086, 7
  %v4088 = vsub.s32 %v2364, %v4087
  %v4089 = vrot.slane %v3680, %v4088
  %v4090 = vlaneseq
  %v4091 = vshrl.u32 %v4090, 7
  %v4092 = vsub.s32 %v2369, %v4091
  %v4093 = vrot.slane %v3683, %v4092
  %v4094 = vsel %vm2374, %v4093, %v4089
  %v4095 = vlaneseq
  %v4096 = vshrl.u32 %v4095, 7
  %v4097 = vsub.s32 %v2364, %v4096
  %v4098 = vrot.slane %v3686, %v4097
  %v4099 = vlaneseq
  %v4100 = vshrl.u32 %v4099, 7
  %v4101 = vsub.s32 %v2369, %v4100
  %v4102 = vrot.slane %v3689, %v4101
  %v4103 = vsel %vm2374, %v4102, %v4098
  %v4104 = vlaneseq
  %v4105 = vshrl.u32 %v4104, 7
  %v4106 = vsub.s32 %v2364, %v4105
  %v4107 = vrot.slane %v3692, %v4106
  %v4108 = vlaneseq
  %v4109 = vshrl.u32 %v4108, 7
  %v4110 = vsub.s32 %v2369, %v4109
  %v4111 = vrot.slane %v3695, %v4110
  %v4112 = vsel %vm2374, %v4111, %v4107
  %v4113 = vlaneseq
  %v4114 = vshrl.u32 %v4113, 7
  %v4115 = vsub.s32 %v2364, %v4114
  %v4116 = vrot.slane %v3698, %v4115
  %v4117 = vlaneseq
  %v4118 = vshrl.u32 %v4117, 7
  %v4119 = vsub.s32 %v2369, %v4118
  %v4120 = vrot.slane %v3701, %v4119
  %v4121 = vsel %vm2374, %v4120, %v4116
  %v4122 = vlaneseq
  %v4123 = vshrl.u32 %v4122, 7
  %v4124 = vsub.s32 %v2364, %v4123
  %v4125 = vrot.slane %v3704, %v4124
  %v4126 = vlaneseq
  %v4127 = vshrl.u32 %v4126, 7
  %v4128 = vsub.s32 %v2369, %v4127
  %v4129 = vrot.slane %v3707, %v4128
  %v4130 = vsel %vm2374, %v4129, %v4125
  %v4131 = vlaneseq
  %v4132 = vshrl.u32 %v4131, 7
  %v4133 = vsub.s32 %v2364, %v4132
  %v4134 = vrot.slane %v3710, %v4133
  %v4135 = vlaneseq
  %v4136 = vshrl.u32 %v4135, 7
  %v4137 = vsub.s32 %v2369, %v4136
  %v4138 = vrot.slane %v3713, %v4137
  %v4139 = vsel %vm2374, %v4138, %v4134
  %v4140 = vlaneseq
  %v4141 = vshrl.u32 %v4140, 7
  %v4142 = vsub.s32 %v2364, %v4141
  %v4143 = vrot.slane %v3716, %v4142
  %v4144 = vlaneseq
  %v4145 = vshrl.u32 %v4144, 7
  %v4146 = vsub.s32 %v2369, %v4145
  %v4147 = vrot.slane %v3719, %v4146
  %v4148 = vsel %vm2374, %v4147, %v4143
  %v4149 = vlaneseq
  %v4150 = vshrl.u32 %v4149, 7
  %v4151 = vsub.s32 %v2364, %v4150
  %v4152 = vrot.slane %v3722, %v4151
  %v4153 = vlaneseq
  %v4154 = vshrl.u32 %v4153, 7
  %v4155 = vsub.s32 %v2369, %v4154
  %v4156 = vrot.slane %v3725, %v4155
  %v4157 = vsel %vm2374, %v4156, %v4152
  %v4158 = vlaneseq
  %v4159 = vshrl.u32 %v4158, 7
  %v4160 = vsub.s32 %v2364, %v4159
  %v4161 = vrot.slane %v3728, %v4160
  %v4162 = vlaneseq
  %v4163 = vshrl.u32 %v4162, 7
  %v4164 = vsub.s32 %v2369, %v4163
  %v4165 = vrot.slane %v3731, %v4164
  %v4166 = vsel %vm2374, %v4165, %v4161
  %v4167 = vlaneseq
  %v4168 = vshrl.u32 %v4167, 7
  %v4169 = vsub.s32 %v2364, %v4168
  %v4170 = vrot.slane %v3734, %v4169
  %v4171 = vlaneseq
  %v4172 = vshrl.u32 %v4171, 7
  %v4173 = vsub.s32 %v2369, %v4172
  %v4174 = vrot.slane %v3737, %v4173
  %v4175 = vsel %vm2374, %v4174, %v4170
  %v4176 = vlaneseq
  %v4177 = vshrl.u32 %v4176, 7
  %v4178 = vsub.s32 %v2364, %v4177
  %v4179 = vrot.slane %v3740, %v4178
  %v4180 = vlaneseq
  %v4181 = vshrl.u32 %v4180, 7
  %v4182 = vsub.s32 %v2369, %v4181
  %v4183 = vrot.slane %v3743, %v4182
  %v4184 = vsel %vm2374, %v4183, %v4179
  %v4185 = vlaneseq
  %v4186 = vshrl.u32 %v4185, 7
  %v4187 = vsub.s32 %v2364, %v4186
  %v4188 = vrot.slane %v3746, %v4187
  %v4189 = vlaneseq
  %v4190 = vshrl.u32 %v4189, 7
  %v4191 = vsub.s32 %v2369, %v4190
  %v4192 = vrot.slane %v3749, %v4191
  %v4193 = vsel %vm2374, %v4192, %v4188
  %v4194 = vlaneseq
  %v4195 = vshrl.u32 %v4194, 7
  %v4196 = vsub.s32 %v2364, %v4195
  %v4197 = vrot.slane %v3752, %v4196
  %v4198 = vlaneseq
  %v4199 = vshrl.u32 %v4198, 7
  %v4200 = vsub.s32 %v2369, %v4199
  %v4201 = vrot.slane %v3755, %v4200
  %v4202 = vsel %vm2374, %v4201, %v4197
  %v4203 = vlaneseq
  %v4204 = vshrl.u32 %v4203, 7
  %v4205 = vsub.s32 %v2364, %v4204
  %v4206 = vrot.slane %v3758, %v4205
  %v4207 = vlaneseq
  %v4208 = vshrl.u32 %v4207, 7
  %v4209 = vsub.s32 %v2369, %v4208
  %v4210 = vrot.slane %v3761, %v4209
  %v4211 = vsel %vm2374, %v4210, %v4206
  %v4212 = vlaneseq
  %v4213 = vshrl.u32 %v4212, 7
  %v4214 = vsub.s32 %v2364, %v4213
  %v4215 = vrot.slane %v3764, %v4214
  %v4216 = vlaneseq
  %v4217 = vshrl.u32 %v4216, 7
  %v4218 = vsub.s32 %v2369, %v4217
  %v4219 = vrot.slane %v3767, %v4218
  %v4220 = vsel %vm2374, %v4219, %v4215
  %v4221 = vlaneseq
  %v4222 = vshrl.u32 %v4221, 7
  %v4223 = vsub.s32 %v2364, %v4222
  %v4224 = vrot.slane %v3770, %v4223
  %v4225 = vlaneseq
  %v4226 = vshrl.u32 %v4225, 7
  %v4227 = vsub.s32 %v2369, %v4226
  %v4228 = vrot.slane %v3773, %v4227
  %v4229 = vsel %vm2374, %v4228, %v4224
  %v4230 = vlaneseq
  %v4231 = vshrl.u32 %v4230, 7
  %v4232 = vsub.s32 %v2364, %v4231
  %v4233 = vrot.slane %v3776, %v4232
  %v4234 = vlaneseq
  %v4235 = vshrl.u32 %v4234, 7
  %v4236 = vsub.s32 %v2369, %v4235
  %v4237 = vrot.slane %v3779, %v4236
  %v4238 = vsel %vm2374, %v4237, %v4233
  %v4239 = vlaneseq
  %v4240 = vshrl.u32 %v4239, 7
  %v4241 = vsub.s32 %v2364, %v4240
  %v4242 = vrot.slane %v3782, %v4241
  %v4243 = vlaneseq
  %v4244 = vshrl.u32 %v4243, 7
  %v4245 = vsub.s32 %v2369, %v4244
  %v4246 = vrot.slane %v3785, %v4245
  %v4247 = vsel %vm2374, %v4246, %v4242
  %v4248 = vlaneseq
  %v4249 = vshrl.u32 %v4248, 7
  %v4250 = vsub.s32 %v2364, %v4249
  %v4251 = vrot.slane %v3788, %v4250
  %v4252 = vlaneseq
  %v4253 = vshrl.u32 %v4252, 7
  %v4254 = vsub.s32 %v2369, %v4253
  %v4255 = vrot.slane %v3791, %v4254
  %v4256 = vsel %vm2374, %v4255, %v4251
  %v4257 = vlaneseq
  %v4258 = vshrl.u32 %v4257, 7
  %v4259 = vsub.s32 %v2364, %v4258
  %v4260 = vrot.slane %v3794, %v4259
  %v4261 = vlaneseq
  %v4262 = vshrl.u32 %v4261, 7
  %v4263 = vsub.s32 %v2369, %v4262
  %v4264 = vrot.slane %v3797, %v4263
  %v4265 = vsel %vm2374, %v4264, %v4260
  %v4266 = vlaneseq
  %v4267 = vshrl.u32 %v4266, 7
  %v4268 = vsub.s32 %v2364, %v4267
  %v4269 = vrot.slane %v3800, %v4268
  %v4270 = vlaneseq
  %v4271 = vshrl.u32 %v4270, 7
  %v4272 = vsub.s32 %v2369, %v4271
  %v4273 = vrot.slane %v3803, %v4272
  %v4274 = vsel %vm2374, %v4273, %v4269
  %v4275 = vlaneseq
  %v4276 = vshrl.u32 %v4275, 7
  %v4277 = vsub.s32 %v2364, %v4276
  %v4278 = vrot.slane %v3806, %v4277
  %v4279 = vlaneseq
  %v4280 = vshrl.u32 %v4279, 7
  %v4281 = vsub.s32 %v2369, %v4280
  %v4282 = vrot.slane %v3809, %v4281
  %v4283 = vsel %vm2374, %v4282, %v4278
  %v4284 = vlaneseq
  %v4285 = vshrl.u32 %v4284, 7
  %v4286 = vsub.s32 %v2364, %v4285
  %v4287 = vrot.slane %v3812, %v4286
  %v4288 = vlaneseq
  %v4289 = vshrl.u32 %v4288, 7
  %v4290 = vsub.s32 %v2369, %v4289
  %v4291 = vrot.slane %v3815, %v4290
  %v4292 = vsel %vm2374, %v4291, %v4287
  %v4293 = vlaneseq
  %v4294 = vshrl.u32 %v4293, 7
  %v4295 = vsub.s32 %v2364, %v4294
  %v4296 = vrot.slane %v3818, %v4295
  %v4297 = vlaneseq
  %v4298 = vshrl.u32 %v4297, 7
  %v4299 = vsub.s32 %v2369, %v4298
  %v4300 = vrot.slane %v3821, %v4299
  %v4301 = vsel %vm2374, %v4300, %v4296
  %v4302 = vlaneseq
  %v4303 = vshrl.u32 %v4302, 7
  %v4304 = vsub.s32 %v2364, %v4303
  %v4305 = vrot.slane %v3824, %v4304
  %v4306 = vlaneseq
  %v4307 = vshrl.u32 %v4306, 7
  %v4308 = vsub.s32 %v2369, %v4307
  %v4309 = vrot.slane %v3827, %v4308
  %v4310 = vsel %vm2374, %v4309, %v4305
  %v4311 = vlaneseq
  %v4312 = vshrl.u32 %v4311, 7
  %v4313 = vsub.s32 %v2364, %v4312
  %v4314 = vrot.slane %v3830, %v4313
  %v4315 = vlaneseq
  %v4316 = vshrl.u32 %v4315, 7
  %v4317 = vsub.s32 %v2369, %v4316
  %v4318 = vrot.slane %v3833, %v4317
  %v4319 = vsel %vm2374, %v4318, %v4314
  %v4320 = vlaneseq
  %v4321 = vshrl.u32 %v4320, 7
  %v4322 = vsub.s32 %v2364, %v4321
  %v4323 = vrot.slane %v3836, %v4322
  %v4324 = vlaneseq
  %v4325 = vshrl.u32 %v4324, 7
  %v4326 = vsub.s32 %v2369, %v4325
  %v4327 = vrot.slane %v3839, %v4326
  %v4328 = vsel %vm2374, %v4327, %v4323
  %v4329 = vlaneseq
  %v4330 = vshrl.u32 %v4329, 7
  %v4331 = vsub.s32 %v2364, %v4330
  %v4332 = vrot.slane %v3842, %v4331
  %v4333 = vlaneseq
  %v4334 = vshrl.u32 %v4333, 7
  %v4335 = vsub.s32 %v2369, %v4334
  %v4336 = vrot.slane %v3845, %v4335
  %v4337 = vsel %vm2374, %v4336, %v4332
  %v4338 = vlaneseq
  %v4339 = vshrl.u32 %v4338, 7
  %v4340 = vsub.s32 %v2364, %v4339
  %v4341 = vrot.slane %v3848, %v4340
  %v4342 = vlaneseq
  %v4343 = vshrl.u32 %v4342, 7
  %v4344 = vsub.s32 %v2369, %v4343
  %v4345 = vrot.slane %v3851, %v4344
  %v4346 = vsel %vm2374, %v4345, %v4341
  %v4347 = vlaneseq
  %v4348 = vshrl.u32 %v4347, 7
  %v4349 = vsub.s32 %v2364, %v4348
  %v4350 = vrot.slane %v3854, %v4349
  %v4351 = vlaneseq
  %v4352 = vshrl.u32 %v4351, 7
  %v4353 = vsub.s32 %v2369, %v4352
  %v4354 = vrot.slane %v3857, %v4353
  %v4355 = vsel %vm2374, %v4354, %v4350
  %v4356 = vlaneseq
  %v4357 = vshrl.u32 %v4356, 7
  %v4358 = vsub.s32 %v2364, %v4357
  %v4359 = vrot.slane %v3860, %v4358
  %v4360 = vlaneseq
  %v4361 = vshrl.u32 %v4360, 7
  %v4362 = vsub.s32 %v2369, %v4361
  %v4363 = vrot.slane %v3863, %v4362
  %v4364 = vsel %vm2374, %v4363, %v4359
  %v4365 = vlaneseq
  %v4366 = vshrl.u32 %v4365, 7
  %v4367 = vsub.s32 %v2364, %v4366
  %v4368 = vrot.slane %v3866, %v4367
  %v4369 = vlaneseq
  %v4370 = vshrl.u32 %v4369, 7
  %v4371 = vsub.s32 %v2369, %v4370
  %v4372 = vrot.slane %v3869, %v4371
  %v4373 = vsel %vm2374, %v4372, %v4368
  %v4374 = vlaneseq
  %v4375 = vshrl.u32 %v4374, 7
  %v4376 = vsub.s32 %v2364, %v4375
  %v4377 = vrot.slane %v3872, %v4376
  %v4378 = vlaneseq
  %v4379 = vshrl.u32 %v4378, 7
  %v4380 = vsub.s32 %v2369, %v4379
  %v4381 = vrot.slane %v3875, %v4380
  %v4382 = vsel %vm2374, %v4381, %v4377
  %v4383 = vlaneseq
  %v4384 = vshrl.u32 %v4383, 7
  %v4385 = vsub.s32 %v2364, %v4384
  %v4386 = vrot.slane %v3878, %v4385
  %v4387 = vlaneseq
  %v4388 = vshrl.u32 %v4387, 7
  %v4389 = vsub.s32 %v2369, %v4388
  %v4390 = vrot.slane %v3881, %v4389
  %v4391 = vsel %vm2374, %v4390, %v4386
  %v4392 = vlaneseq
  %v4393 = vshrl.u32 %v4392, 7
  %v4394 = vsub.s32 %v2364, %v4393
  %v4395 = vrot.slane %v3884, %v4394
  %v4396 = vlaneseq
  %v4397 = vshrl.u32 %v4396, 7
  %v4398 = vsub.s32 %v2369, %v4397
  %v4399 = vrot.slane %v3887, %v4398
  %v4400 = vsel %vm2374, %v4399, %v4395
  %v4401 = vlaneseq
  %v4402 = vshrl.u32 %v4401, 7
  %v4403 = vsub.s32 %v2364, %v4402
  %v4404 = vrot.slane %v3890, %v4403
  %v4405 = vlaneseq
  %v4406 = vshrl.u32 %v4405, 7
  %v4407 = vsub.s32 %v2369, %v4406
  %v4408 = vrot.slane %v3893, %v4407
  %v4409 = vsel %vm2374, %v4408, %v4404
  %v4410 = vlaneseq
  %v4411 = vshrl.u32 %v4410, 7
  %v4412 = vsub.s32 %v2364, %v4411
  %v4413 = vrot.slane %v3896, %v4412
  %v4414 = vlaneseq
  %v4415 = vshrl.u32 %v4414, 7
  %v4416 = vsub.s32 %v2369, %v4415
  %v4417 = vrot.slane %v3899, %v4416
  %v4418 = vsel %vm2374, %v4417, %v4413
  %v4419 = vlaneseq
  %v4420 = vshrl.u32 %v4419, 7
  %v4421 = vsub.s32 %v2364, %v4420
  %v4422 = vrot.slane %v3902, %v4421
  %v4423 = vlaneseq
  %v4424 = vshrl.u32 %v4423, 7
  %v4425 = vsub.s32 %v2369, %v4424
  %v4426 = vrot.slane %v3905, %v4425
  %v4427 = vsel %vm2374, %v4426, %v4422
  %v4428 = vlaneseq
  %v4429 = vshrl.u32 %v4428, 7
  %v4430 = vsub.s32 %v2364, %v4429
  %v4431 = vrot.slane %v3908, %v4430
  %v4432 = vlaneseq
  %v4433 = vshrl.u32 %v4432, 7
  %v4434 = vsub.s32 %v2369, %v4433
  %v4435 = vrot.slane %v3911, %v4434
  %v4436 = vsel %vm2374, %v4435, %v4431
  %v4437 = vlaneseq
  %v4438 = vshrl.u32 %v4437, 7
  %v4439 = vsub.s32 %v2364, %v4438
  %v4440 = vrot.slane %v3914, %v4439
  %v4441 = vlaneseq
  %v4442 = vshrl.u32 %v4441, 7
  %v4443 = vsub.s32 %v2369, %v4442
  %v4444 = vrot.slane %v3917, %v4443
  %v4445 = vsel %vm2374, %v4444, %v4440
  %v4446 = vlaneseq
  %v4447 = vshrl.u32 %v4446, 7
  %v4448 = vsub.s32 %v2364, %v4447
  %v4449 = vrot.slane %v3920, %v4448
  %v4450 = vlaneseq
  %v4451 = vshrl.u32 %v4450, 7
  %v4452 = vsub.s32 %v2369, %v4451
  %v4453 = vrot.slane %v3923, %v4452
  %v4454 = vsel %vm2374, %v4453, %v4449
  %v4455 = vlaneseq
  %v4456 = vshrl.u32 %v4455, 7
  %v4457 = vsub.s32 %v2364, %v4456
  %v4458 = vrot.slane %v3926, %v4457
  %v4459 = vlaneseq
  %v4460 = vshrl.u32 %v4459, 7
  %v4461 = vsub.s32 %v2369, %v4460
  %v4462 = vrot.slane %v3929, %v4461
  %v4463 = vsel %vm2374, %v4462, %v4458
  %v4464 = vlaneseq
  %v4465 = vshrl.u32 %v4464, 7
  %v4466 = vsub.s32 %v2364, %v4465
  %v4467 = vrot.slane %v3932, %v4466
  %v4468 = vlaneseq
  %v4469 = vshrl.u32 %v4468, 7
  %v4470 = vsub.s32 %v2369, %v4469
  %v4471 = vrot.slane %v3935, %v4470
  %v4472 = vsel %vm2374, %v4471, %v4467
  %v4473 = vlaneseq
  %v4474 = vshrl.u32 %v4473, 7
  %v4475 = vsub.s32 %v2364, %v4474
  %v4476 = vrot.slane %v3938, %v4475
  %v4477 = vlaneseq
  %v4478 = vshrl.u32 %v4477, 7
  %v4479 = vsub.s32 %v2369, %v4478
  %v4480 = vrot.slane %v3941, %v4479
  %v4481 = vsel %vm2374, %v4480, %v4476
  %v4482 = vlaneseq
  %v4483 = vshrl.u32 %v4482, 7
  %v4484 = vsub.s32 %v2364, %v4483
  %v4485 = vrot.slane %v3944, %v4484
  %v4486 = vlaneseq
  %v4487 = vshrl.u32 %v4486, 7
  %v4488 = vsub.s32 %v2369, %v4487
  %v4489 = vrot.slane %v3947, %v4488
  %v4490 = vsel %vm2374, %v4489, %v4485
  %v4491 = vlaneseq
  %v4492 = vshrl.u32 %v4491, 7
  %v4493 = vsub.s32 %v2364, %v4492
  %v4494 = vrot.slane %v3950, %v4493
  %v4495 = vlaneseq
  %v4496 = vshrl.u32 %v4495, 7
  %v4497 = vsub.s32 %v2369, %v4496
  %v4498 = vrot.slane %v3953, %v4497
  %v4499 = vsel %vm2374, %v4498, %v4494
  %v4500 = vlaneseq
  %v4501 = vshrl.u32 %v4500, 7
  %v4502 = vsub.s32 %v2364, %v4501
  %v4503 = vrot.slane %v3956, %v4502
  %v4504 = vlaneseq
  %v4505 = vshrl.u32 %v4504, 7
  %v4506 = vsub.s32 %v2369, %v4505
  %v4507 = vrot.slane %v3959, %v4506
  %v4508 = vsel %vm2374, %v4507, %v4503
  %v4509 = vlaneseq
  %v4510 = vshrl.u32 %v4509, 7
  %v4511 = vsub.s32 %v2364, %v4510
  %v4512 = vrot.slane %v3962, %v4511
  %v4513 = vlaneseq
  %v4514 = vshrl.u32 %v4513, 7
  %v4515 = vsub.s32 %v2369, %v4514
  %v4516 = vrot.slane %v3965, %v4515
  %v4517 = vsel %vm2374, %v4516, %v4512
  %v4518 = vlaneseq
  %v4519 = vshrl.u32 %v4518, 7
  %v4520 = vsub.s32 %v2364, %v4519
  %v4521 = vrot.slane %v3968, %v4520
  %v4522 = vlaneseq
  %v4523 = vshrl.u32 %v4522, 7
  %v4524 = vsub.s32 %v2369, %v4523
  %v4525 = vrot.slane %v3971, %v4524
  %v4526 = vsel %vm2374, %v4525, %v4521
  %v4527 = vlaneseq
  %v4528 = vshrl.u32 %v4527, 7
  %v4529 = vsub.s32 %v2364, %v4528
  %v4530 = vrot.slane %v3974, %v4529
  %v4531 = vlaneseq
  %v4532 = vshrl.u32 %v4531, 7
  %v4533 = vsub.s32 %v2369, %v4532
  %v4534 = vrot.slane %v3977, %v4533
  %v4535 = vsel %vm2374, %v4534, %v4530
  %v4536 = vlaneseq
  %v4537 = vshrl.u32 %v4536, 7
  %v4538 = vsub.s32 %v2364, %v4537
  %v4539 = vrot.slane %v3980, %v4538
  %v4540 = vlaneseq
  %v4541 = vshrl.u32 %v4540, 7
  %v4542 = vsub.s32 %v2369, %v4541
  %v4543 = vrot.slane %v3983, %v4542
  %v4544 = vsel %vm2374, %v4543, %v4539
  %v4545 = vlaneseq
  %v4546 = vshrl.u32 %v4545, 7
  %v4547 = vsub.s32 %v2364, %v4546
  %v4548 = vrot.slane %v3986, %v4547
  %v4549 = vlaneseq
  %v4550 = vshrl.u32 %v4549, 7
  %v4551 = vsub.s32 %v2369, %v4550
  %v4552 = vrot.slane %v3989, %v4551
  %v4553 = vsel %vm2374, %v4552, %v4548
  %v4554 = vlaneseq
  %v4555 = vshrl.u32 %v4554, 7
  %v4556 = vsub.s32 %v2364, %v4555
  %v4557 = vrot.slane %v3992, %v4556
  %v4558 = vlaneseq
  %v4559 = vshrl.u32 %v4558, 7
  %v4560 = vsub.s32 %v2369, %v4559
  %v4561 = vrot.slane %v3995, %v4560
  %v4562 = vsel %vm2374, %v4561, %v4557
  %v4563 = vlaneseq
  %v4564 = vshrl.u32 %v4563, 7
  %v4565 = vsub.s32 %v2364, %v4564
  %v4566 = vrot.slane %v3998, %v4565
  %v4567 = vlaneseq
  %v4568 = vshrl.u32 %v4567, 7
  %v4569 = vsub.s32 %v2369, %v4568
  %v4570 = vrot.slane %v4001, %v4569
  %v4571 = vsel %vm2374, %v4570, %v4566
  %v4572 = vlaneseq
  %v4573 = vshrl.u32 %v4572, 7
  %v4574 = vsub.s32 %v2364, %v4573
  %v4575 = vrot.slane %v4004, %v4574
  %v4576 = vlaneseq
  %v4577 = vshrl.u32 %v4576, 7
  %v4578 = vsub.s32 %v2369, %v4577
  %v4579 = vrot.slane %v4007, %v4578
  %v4580 = vsel %vm2374, %v4579, %v4575
  %v4581 = vlaneseq
  %v4582 = vshrl.u32 %v4581, 7
  %v4583 = vsub.s32 %v2364, %v4582
  %v4584 = vrot.slane %v4010, %v4583
  %v4585 = vlaneseq
  %v4586 = vshrl.u32 %v4585, 7
  %v4587 = vsub.s32 %v2369, %v4586
  %v4588 = vrot.slane %v4013, %v4587
  %v4589 = vsel %vm2374, %v4588, %v4584
  %v4590 = vsel %vm2943, %v4031, %v4022
  %v4591 = vsel %vm2945, %v4040, %v4590
  %v4592 = vsel %vm2947, %v4049, %v4591
  %v4593 = vsel %vm2949, %v4058, %v4592
  %v4594 = vsel %vm2951, %v4067, %v4593
  %v4595 = vsel %vm2953, %v4076, %v4594
  %v4596 = vsel %vm2955, %v4085, %v4595
  %v4597 = vsel %vm2943, %v4103, %v4094
  %v4598 = vsel %vm2945, %v4112, %v4597
  %v4599 = vsel %vm2947, %v4121, %v4598
  %v4600 = vsel %vm2949, %v4130, %v4599
  %v4601 = vsel %vm2951, %v4139, %v4600
  %v4602 = vsel %vm2953, %v4148, %v4601
  %v4603 = vsel %vm2955, %v4157, %v4602
  %v4604 = vsel %vm2943, %v4175, %v4166
  %v4605 = vsel %vm2945, %v4184, %v4604
  %v4606 = vsel %vm2947, %v4193, %v4605
  %v4607 = vsel %vm2949, %v4202, %v4606
  %v4608 = vsel %vm2951, %v4211, %v4607
  %v4609 = vsel %vm2953, %v4220, %v4608
  %v4610 = vsel %vm2955, %v4229, %v4609
  %v4611 = vsel %vm2943, %v4247, %v4238
  %v4612 = vsel %vm2945, %v4256, %v4611
  %v4613 = vsel %vm2947, %v4265, %v4612
  %v4614 = vsel %vm2949, %v4274, %v4613
  %v4615 = vsel %vm2951, %v4283, %v4614
  %v4616 = vsel %vm2953, %v4292, %v4615
  %v4617 = vsel %vm2955, %v4301, %v4616
  %v4618 = vsel %vm2943, %v4319, %v4310
  %v4619 = vsel %vm2945, %v4328, %v4618
  %v4620 = vsel %vm2947, %v4337, %v4619
  %v4621 = vsel %vm2949, %v4346, %v4620
  %v4622 = vsel %vm2951, %v4355, %v4621
  %v4623 = vsel %vm2953, %v4364, %v4622
  %v4624 = vsel %vm2955, %v4373, %v4623
  %v4625 = vsel %vm2943, %v4391, %v4382
  %v4626 = vsel %vm2945, %v4400, %v4625
  %v4627 = vsel %vm2947, %v4409, %v4626
  %v4628 = vsel %vm2949, %v4418, %v4627
  %v4629 = vsel %vm2951, %v4427, %v4628
  %v4630 = vsel %vm2953, %v4436, %v4629
  %v4631 = vsel %vm2955, %v4445, %v4630
  %v4632 = vsel %vm2943, %v4463, %v4454
  %v4633 = vsel %vm2945, %v4472, %v4632
  %v4634 = vsel %vm2947, %v4481, %v4633
  %v4635 = vsel %vm2949, %v4490, %v4634
  %v4636 = vsel %vm2951, %v4499, %v4635
  %v4637 = vsel %vm2953, %v4508, %v4636
  %v4638 = vsel %vm2955, %v4517, %v4637
  %v4639 = vsel %vm2943, %v4535, %v4526
  %v4640 = vsel %vm2945, %v4544, %v4639
  %v4641 = vsel %vm2947, %v4553, %v4640
  %v4642 = vsel %vm2949, %v4562, %v4641
  %v4643 = vsel %vm2951, %v4571, %v4642
  %v4644 = vsel %vm2953, %v4580, %v4643
  %v4645 = vsel %vm2955, %v4589, %v4644
  %v4646 = vsel %vm3014, %v4596, 2147483647
  %v4647 = vand.u32 %v4646, 65535
  %v4648 = vshra.s32 %v4646, 16
  %v4649 = vcvt.s32.f32 %v4647
  %v4650 = vcvt.s32.f32 %v4648
  %4651 = vmin.xlane.f32.xlu0 %v4650
  %v4652 = vpop.xlane.xlu0 %4651
  %vm4653 = vcmp.eq.f32.partialorder %v4650, %v4652
  %v4654 = vsel %vm4653, %v4649, inf
  %4655 = vmin.xlane.f32.xlu0 %v4654
  %v4656 = vpop.xlane.xlu0 %4655
  %v4657 = vcvt.f32.s32 %v4656
  %v4658 = vcvt.f32.s32 %v4652
  %v4659 = vshll.u32 %v4658, 16
  %v4660 = vadd.s32 %v4659, %v4657
  %v4661 = vsel %vm3014, %v4603, 2147483647
  %v4662 = vand.u32 %v4661, 65535
  %v4663 = vshra.s32 %v4661, 16
  %v4664 = vcvt.s32.f32 %v4662
  %v4665 = vcvt.s32.f32 %v4663
  %4666 = vmin.xlane.f32.xlu0 %v4665
  %v4667 = vpop.xlane.xlu0 %4666
  %vm4668 = vcmp.eq.f32.partialorder %v4665, %v4667
  %v4669 = vsel %vm4668, %v4664, inf
  %4670 = vmin.xlane.f32.xlu0 %v4669
  %v4671 = vpop.xlane.xlu0 %4670
  %v4672 = vcvt.f32.s32 %v4671
  %v4673 = vcvt.f32.s32 %v4667
  %v4674 = vshll.u32 %v4673, 16
  %v4675 = vadd.s32 %v4674, %v4672
  %v4676 = vsel %vm3014, %v4610, 2147483647
  %v4677 = vand.u32 %v4676, 65535
  %v4678 = vshra.s32 %v4676, 16
  %v4679 = vcvt.s32.f32 %v4677
  %v4680 = vcvt.s32.f32 %v4678
  %4681 = vmin.xlane.f32.xlu0 %v4680
  %v4682 = vpop.xlane.xlu0 %4681
  %vm4683 = vcmp.eq.f32.partialorder %v4680, %v4682
  %v4684 = vsel %vm4683, %v4679, inf
  %4685 = vmin.xlane.f32.xlu0 %v4684
  %v4686 = vpop.xlane.xlu0 %4685
  %v4687 = vcvt.f32.s32 %v4686
  %v4688 = vcvt.f32.s32 %v4682
  %v4689 = vshll.u32 %v4688, 16
  %v4690 = vadd.s32 %v4689, %v4687
  %v4691 = vsel %vm3014, %v4617, 2147483647
  %v4692 = vand.u32 %v4691, 65535
  %v4693 = vshra.s32 %v4691, 16
  %v4694 = vcvt.s32.f32 %v4692
  %v4695 = vcvt.s32.f32 %v4693
  %4696 = vmin.xlane.f32.xlu0 %v4695
  %v4697 = vpop.xlane.xlu0 %4696
  %vm4698 = vcmp.eq.f32.partialorder %v4695, %v4697
  %v4699 = vsel %vm4698, %v4694, inf
  %4700 = vmin.xlane.f32.xlu0 %v4699
  %v4701 = vpop.xlane.xlu0 %4700
  %v4702 = vcvt.f32.s32 %v4701
  %v4703 = vcvt.f32.s32 %v4697
  %v4704 = vshll.u32 %v4703, 16
  %v4705 = vadd.s32 %v4704, %v4702
  %v4706 = vsel %vm3014, %v4624, 2147483647
  %v4707 = vand.u32 %v4706, 65535
  %v4708 = vshra.s32 %v4706, 16
  %v4709 = vcvt.s32.f32 %v4707
  %v4710 = vcvt.s32.f32 %v4708
  %4711 = vmin.xlane.f32.xlu0 %v4710
  %v4712 = vpop.xlane.xlu0 %4711
  %vm4713 = vcmp.eq.f32.partialorder %v4710, %v4712
  %v4714 = vsel %vm4713, %v4709, inf
  %4715 = vmin.xlane.f32.xlu0 %v4714
  %v4716 = vpop.xlane.xlu0 %4715
  %v4717 = vcvt.f32.s32 %v4716
  %v4718 = vcvt.f32.s32 %v4712
  %v4719 = vshll.u32 %v4718, 16
  %v4720 = vadd.s32 %v4719, %v4717
  %v4721 = vsel %vm3014, %v4631, 2147483647
  %v4722 = vand.u32 %v4721, 65535
  %v4723 = vshra.s32 %v4721, 16
  %v4724 = vcvt.s32.f32 %v4722
  %v4725 = vcvt.s32.f32 %v4723
  %4726 = vmin.xlane.f32.xlu0 %v4725
  %v4727 = vpop.xlane.xlu0 %4726
  %vm4728 = vcmp.eq.f32.partialorder %v4725, %v4727
  %v4729 = vsel %vm4728, %v4724, inf
  %4730 = vmin.xlane.f32.xlu0 %v4729
  %v4731 = vpop.xlane.xlu0 %4730
  %v4732 = vcvt.f32.s32 %v4731
  %v4733 = vcvt.f32.s32 %v4727
  %v4734 = vshll.u32 %v4733, 16
  %v4735 = vadd.s32 %v4734, %v4732
  %v4736 = vsel %vm3014, %v4638, 2147483647
  %v4737 = vand.u32 %v4736, 65535
  %v4738 = vshra.s32 %v4736, 16
  %v4739 = vcvt.s32.f32 %v4737
  %v4740 = vcvt.s32.f32 %v4738
  %4741 = vmin.xlane.f32.xlu0 %v4740
  %v4742 = vpop.xlane.xlu0 %4741
  %vm4743 = vcmp.eq.f32.partialorder %v4740, %v4742
  %v4744 = vsel %vm4743, %v4739, inf
  %4745 = vmin.xlane.f32.xlu0 %v4744
  %v4746 = vpop.xlane.xlu0 %4745
  %v4747 = vcvt.f32.s32 %v4746
  %v4748 = vcvt.f32.s32 %v4742
  %v4749 = vshll.u32 %v4748, 16
  %v4750 = vadd.s32 %v4749, %v4747
  %v4751 = vsel %vm3014, %v4645, 2147483647
  %v4752 = vand.u32 %v4751, 65535
  %v4753 = vshra.s32 %v4751, 16
  %v4754 = vcvt.s32.f32 %v4752
  %v4755 = vcvt.s32.f32 %v4753
  %4756 = vmin.xlane.f32.xlu0 %v4755
  %v4757 = vpop.xlane.xlu0 %4756
  %vm4758 = vcmp.eq.f32.partialorder %v4755, %v4757
  %v4759 = vsel %vm4758, %v4754, inf
  %4760 = vmin.xlane.f32.xlu0 %v4759
  %v4761 = vpop.xlane.xlu0 %4760
  %v4762 = vcvt.f32.s32 %v4761
  %v4763 = vcvt.f32.s32 %v4757
  %v4764 = vshll.u32 %v4763, 16
  %v4765 = vadd.s32 %v4764, %v4762
  %vm4766 = vcmp.eq.s32.totalorder %v2364, %v4660
  %vm4767 = vcmp.eq.s32.totalorder %v2364, %v4675
  %vm4768 = vcmp.eq.s32.totalorder %v2364, %v4690
  %vm4769 = vcmp.eq.s32.totalorder %v2364, %v4705
  %vm4770 = vcmp.eq.s32.totalorder %v2364, %v4720
  %vm4771 = vcmp.eq.s32.totalorder %v2364, %v4735
  %vm4772 = vcmp.eq.s32.totalorder %v2364, %v4750
  %vm4773 = vcmp.eq.s32.totalorder %v2364, %v4765
  %v4774 = vsel %vm4766, 1, 0
  %v4775 = vsel %vm4767, 1, 0
  %v4776 = vsel %vm4768, 1, 0
  %v4777 = vsel %vm4769, 1, 0
  %v4778 = vsel %vm4770, 1, 0
  %v4779 = vsel %vm4771, 1, 0
  %v4780 = vsel %vm4772, 1, 0
  %v4781 = vsel %vm4773, 1, 0
  %v4782 = vcvt.s32.f32 %v4774
  %v4783 = vcvt.s32.f32 %v4775
  %v4784 = vcvt.s32.f32 %v4776
  %v4785 = vcvt.s32.f32 %v4777
  %v4786 = vcvt.s32.f32 %v4778
  %v4787 = vcvt.s32.f32 %v4779
  %v4788 = vcvt.s32.f32 %v4780
  %v4789 = vcvt.s32.f32 %v4781
  %4790 = vst.msk [vmem:[%s7] sm:$0xff] %vm3014, %v4782
  %4791 = vst.msk [vmem:[%s7 + $0x8] sm:$0xff] %vm3014, %v4783
  %4792 = vst.msk [vmem:[%s7 + $0x10] sm:$0xff] %vm3014, %v4784
  %4793 = vst.msk [vmem:[%s7 + $0x18] sm:$0xff] %vm3014, %v4785
  %4794 = vst.msk [vmem:[%s7 + $0x20] sm:$0xff] %vm3014, %v4786
  %4795 = vst.msk [vmem:[%s7 + $0x28] sm:$0xff] %vm3014, %v4787
  %4796 = vst.msk [vmem:[%s7 + $0x30] sm:$0xff] %vm3014, %v4788
  %4797 = vst.msk [vmem:[%s7 + $0x38] sm:$0xff] %vm3014, %v4789
  %v4799 = vsel %vm3014, %v4782, 0
  %v4802 = vsel %vm3014, %v4783, 0
  %v4805 = vsel %vm3014, %v4784, 0
  %v4808 = vsel %vm3014, %v4785, 0
  %v4811 = vsel %vm3014, %v4786, 0
  %v4814 = vsel %vm3014, %v4787, 0
  %v4817 = vsel %vm3014, %v4788, 0
  %v4820 = vsel %vm3014, %v4789, 0
  %4822 = vmatprep.subr.mxu0 0.0
  %4823 = vmatpush1.msra.mxu0 %v730
  %4824 = vmatprep.subr.mxu0 0.0
  %4825 = vmatpush1.msra.mxu0 %v731
  %4826 = vmatprep.subr.mxu0 0.0
  %4827 = vmatpush1.msra.mxu0 0.0
  %4828 = vmatprep.subr.mxu0 0.0
  %4829 = vmatpush1.msra.mxu0 0.0
  %4830 = vmatprep.subr.mxu0 0.0
  %4831 = vmatpush1.msra.mxu0 0.0
  %4832 = vmatprep.subr.mxu0 0.0
  %4833 = vmatpush1.msra.mxu0 0.0
  %4834 = vmatprep.subr.mxu0 0.0
  %4835 = vmatpush1.msra.mxu0 0.0
  %4836 = vmatprep.subr.mxu0 0.0
  %4837 = vmatpush1.msra.mxu0 0.0
  %4838 = vmatprep.subr.mxu0 0.0
  %4839 = vmatpush1.msra.mxu0 0.0
  %4840 = vmatprep.subr.mxu0 0.0
  %4841 = vmatpush1.msra.mxu0 0.0
  %4842 = vmatprep.subr.mxu0 0.0
  %4843 = vmatpush1.msra.mxu0 0.0
  %4844 = vmatprep.subr.mxu0 0.0
  %4845 = vmatpush1.msra.mxu0 0.0
  %4846 = vmatprep.subr.mxu0 0.0
  %4847 = vmatpush1.msra.mxu0 0.0
  %4848 = vmatprep.subr.mxu0 0.0
  %4849 = vmatpush1.msra.mxu0 0.0
  %4850 = vmatprep.subr.mxu0 0.0
  %4851 = vmatpush1.msra.mxu0 0.0
  %4852 = vmatprep.subr.mxu0 0.0
  %4853 = vmatpush1.msra.mxu0 0.0
  %4854 = vmatprep.subr.mxu0 0.0
  %4855 = vmatpush1.msra.mxu0 0.0
  %4856 = vmatprep.subr.mxu0 0.0
  %4857 = vmatpush1.msra.mxu0 0.0
  %4858 = vmatprep.subr.mxu0 0.0
  %4859 = vmatpush1.msra.mxu0 0.0
  %4860 = vmatprep.subr.mxu0 0.0
  %4861 = vmatpush1.msra.mxu0 0.0
  %4862 = vmatprep.subr.mxu0 0.0
  %4863 = vmatpush1.msra.mxu0 0.0
  %4864 = vmatprep.subr.mxu0 0.0
  %4865 = vmatpush1.msra.mxu0 0.0
  %4866 = vmatprep.subr.mxu0 0.0
  %4867 = vmatpush1.msra.mxu0 0.0
  %4868 = vmatprep.subr.mxu0 0.0
  %4869 = vmatpush1.msra.mxu0 0.0
  %4870 = vmatprep.subr.mxu0 0.0
  %4871 = vmatpush1.msra.mxu0 0.0
  %4872 = vmatprep.subr.mxu0 0.0
  %4873 = vmatpush1.msra.mxu0 0.0
  %4874 = vmatprep.subr.mxu0 0.0
  %4875 = vmatpush1.msra.mxu0 0.0
  %4876 = vmatprep.subr.mxu0 0.0
  %4877 = vmatpush1.msra.mxu0 0.0
  %4878 = vmatprep.subr.mxu0 0.0
  %4879 = vmatpush1.msra.mxu0 0.0
  %4880 = vmatprep.subr.mxu0 0.0
  %4881 = vmatpush1.msra.mxu0 0.0
  %4882 = vmatprep.subr.mxu0 0.0
  %4883 = vmatpush1.msra.mxu0 0.0
  %4884 = vmatprep.subr.mxu0 0.0
  %4885 = vmatpush1.msra.mxu0 0.0
  %4886 = vmatprep.mubr.f32.mxu0 0.0
  %4887 = vmatmul.mubr.f32.gmra.mrb[0].mxu0 %v4799
  %v4888 = vpop.f32.mrb[0].mxu0
  %v4889 = vadd.f32 0.0, %v4888
  %v4890 = vpop.f32.mrb[0].mxu0
  %4891 = vmatprep.mubr.f32.mxu0 0.0
  %4892 = vmatmul.mubr.f32.gmra.mrb[0].mxu0 %v4802
  %v4893 = vpop.f32.mrb[0].mxu0
  %v4894 = vadd.f32 0.0, %v4893
  %v4895 = vpop.f32.mrb[0].mxu0
  %4896 = vmatprep.mubr.f32.mxu0 0.0
  %4897 = vmatmul.mubr.f32.gmra.mrb[0].mxu0 %v4805
  %v4898 = vpop.f32.mrb[0].mxu0
  %v4899 = vadd.f32 0.0, %v4898
  %v4900 = vpop.f32.mrb[0].mxu0
  %4901 = vmatprep.mubr.f32.mxu0 0.0
  %4902 = vmatmul.mubr.f32.gmra.mrb[0].mxu0 %v4808
  %v4903 = vpop.f32.mrb[0].mxu0
  %v4904 = vadd.f32 0.0, %v4903
  %v4905 = vpop.f32.mrb[0].mxu0
  %4906 = vmatprep.mubr.f32.mxu0 0.0
  %4907 = vmatmul.mubr.f32.gmra.mrb[0].mxu0 %v4811
  %v4908 = vpop.f32.mrb[0].mxu0
  %v4909 = vadd.f32 0.0, %v4908
  %v4910 = vpop.f32.mrb[0].mxu0
  %4911 = vmatprep.mubr.f32.mxu0 0.0
  %4912 = vmatmul.mubr.f32.gmra.mrb[0].mxu0 %v4814
  %v4913 = vpop.f32.mrb[0].mxu0
  %v4914 = vadd.f32 0.0, %v4913
  %v4915 = vpop.f32.mrb[0].mxu0
  %4916 = vmatprep.mubr.f32.mxu0 0.0
  %4917 = vmatmul.mubr.f32.gmra.mrb[0].mxu0 %v4817
  %v4918 = vpop.f32.mrb[0].mxu0
  %v4919 = vadd.f32 0.0, %v4918
  %v4920 = vpop.f32.mrb[0].mxu0
  %4921 = vmatprep.mubr.f32.mxu0 0.0
  %4922 = vmatmul.mubr.f32.gmra.mrb[0].mxu0 %v4820
  %v4923 = vpop.f32.mrb[0].mxu0
  %v4924 = vadd.f32 0.0, %v4923
  %v4925 = vpop.f32.mrb[0].mxu0
  %4926 = vdwg.mxu0
  %s4927 = sld [smem:[#allocation3 + $0x1]]
  %s4928 = smul.u32 %s4927, 16
  %s4929 = scalar_lea.vmem %s2, %s4928
  %v4930 = vld [vmem:[%s4929] sm:$0xff]
  %v4931 = vld [vmem:[%s4929 + $0x8] sm:$0xff]
  %v4932 = vmul.f32 %v4930, %v4930
  %v4933 = vmul.f32 %v4931, %v4931
  %v4934 = vsel %vm477, %v4932, 0.0
  %4935 = vadd.xlane.f32.xlu0 %v4934
  %v4936 = vpop.xlane.xlu0 %4935
  %v4937 = vsel %vm477, %v4933, 0.0
  %4938 = vadd.xlane.f32.xlu0 %v4937
  %v4939 = vpop.xlane.xlu0 %4938
  %v4941 = vsel %vm477, %v719, 0
  %v4944 = vsel %vm477, %v720, 0
  %v4947 = vsel %vm477, %v721, 0
  %v4950 = vsel %vm477, %v722, 0
  %v4953 = vsel %vm477, %v723, 0
  %v4956 = vsel %vm477, %v724, 0
  %v4959 = vsel %vm477, %v725, 0
  %v4962 = vsel %vm477, %v726, 0
  %v4965 = vsel %vm477, %v4930, 0
  %v4968 = vsel %vm477, %v4931, 0
  %4970 = vmatprep.subr.mxu0 0.0
  %4971 = vmatpush1.xpose.msra.mxu0 %v4965
  %4972 = vmatprep.subr.mxu0 0.0
  %4973 = vmatpush1.xpose.msra.mxu0 %v4968
  %4974 = vmatprep.subr.mxu0 0.0
  %4975 = vmatpush1.xpose.msra.mxu0 0.0
  %4976 = vmatprep.subr.mxu0 0.0
  %4977 = vmatpush1.xpose.msra.mxu0 0.0
  %4978 = vmatprep.subr.mxu0 0.0
  %4979 = vmatpush1.xpose.msra.mxu0 0.0
  %4980 = vmatprep.subr.mxu0 0.0
  %4981 = vmatpush1.xpose.msra.mxu0 0.0
  %4982 = vmatprep.subr.mxu0 0.0
  %4983 = vmatpush1.xpose.msra.mxu0 0.0
  %4984 = vmatprep.subr.mxu0 0.0
  %4985 = vmatpush1.xpose.msra.mxu0 0.0
  %4986 = vmatprep.subr.mxu0 0.0
  %4987 = vmatpush1.xpose.msra.mxu0 0.0
  %4988 = vmatprep.subr.mxu0 0.0
  %4989 = vmatpush1.xpose.msra.mxu0 0.0
  %4990 = vmatprep.subr.mxu0 0.0
  %4991 = vmatpush1.xpose.msra.mxu0 0.0
  %4992 = vmatprep.subr.mxu0 0.0
  %4993 = vmatpush1.xpose.msra.mxu0 0.0
  %4994 = vmatprep.subr.mxu0 0.0
  %4995 = vmatpush1.xpose.msra.mxu0 0.0
  %4996 = vmatprep.subr.mxu0 0.0
  %4997 = vmatpush1.xpose.msra.mxu0 0.0
  %4998 = vmatprep.subr.mxu0 0.0
  %4999 = vmatpush1.xpose.msra.mxu0 0.0
  %5000 = vmatprep.subr.mxu0 0.0
  %5001 = vmatpush1.xpose.msra.mxu0 0.0
  %5002 = vmatprep.subr.mxu0 0.0
  %5003 = vmatpush1.xpose.msra.mxu0 0.0
  %5004 = vmatprep.subr.mxu0 0.0
  %5005 = vmatpush1.xpose.msra.mxu0 0.0
  %5006 = vmatprep.subr.mxu0 0.0
  %5007 = vmatpush1.xpose.msra.mxu0 0.0
  %5008 = vmatprep.subr.mxu0 0.0
  %5009 = vmatpush1.xpose.msra.mxu0 0.0
  %5010 = vmatprep.subr.mxu0 0.0
  %5011 = vmatpush1.xpose.msra.mxu0 0.0
  %5012 = vmatprep.subr.mxu0 0.0
  %5013 = vmatpush1.xpose.msra.mxu0 0.0
  %5014 = vmatprep.subr.mxu0 0.0
  %5015 = vmatpush1.xpose.msra.mxu0 0.0
  %5016 = vmatprep.subr.mxu0 0.0
  %5017 = vmatpush1.xpose.msra.mxu0 0.0
  %5018 = vmatprep.subr.mxu0 0.0
  %5019 = vmatpush1.xpose.msra.mxu0 0.0
  %5020 = vmatprep.subr.mxu0 0.0
  %5021 = vmatpush1.xpose.msra.mxu0 0.0
  %5022 = vmatprep.subr.mxu0 0.0
  %5023 = vmatpush1.xpose.msra.mxu0 0.0
  %5024 = vmatprep.subr.mxu0 0.0
  %5025 = vmatpush1.xpose.msra.mxu0 0.0
  %5026 = vmatprep.subr.mxu0 0.0
  %5027 = vmatpush1.xpose.msra.mxu0 0.0
  %5028 = vmatprep.subr.mxu0 0.0
  %5029 = vmatpush1.xpose.msra.mxu0 0.0
  %5030 = vmatprep.subr.mxu0 0.0
  %5031 = vmatpush1.xpose.msra.mxu0 0.0
  %5032 = vmatprep.subr.mxu0 0.0
  %5033 = vmatpush1.xpose.msra.mxu0 0.0
  %5034 = vmatprep.mubr.f32.mxu0 0.0
  %5035 = vmatmul.mubr.f32.gmra.mrb[0].mxu0 %v4941
  %v5036 = vpop.f32.mrb[0].mxu0
  %v5037 = vadd.f32 0.0, %v5036
  %v5038 = vpop.f32.mrb[0].mxu0
  %5039 = vmatprep.mubr.f32.mxu0 0.0
  %5040 = vmatmul.mubr.f32.gmra.mrb[0].mxu0 %v4944
  %v5041 = vpop.f32.mrb[0].mxu0
  %v5042 = vadd.f32 0.0, %v5041
  %v5043 = vpop.f32.mrb[0].mxu0
  %5044 = vmatprep.mubr.f32.mxu0 0.0
  %5045 = vmatmul.mubr.f32.gmra.mrb[0].mxu0 %v4947
  %v5046 = vpop.f32.mrb[0].mxu0
  %v5047 = vadd.f32 0.0, %v5046
  %v5048 = vpop.f32.mrb[0].mxu0
  %5049 = vmatprep.mubr.f32.mxu0 0.0
  %5050 = vmatmul.mubr.f32.gmra.mrb[0].mxu0 %v4950
  %v5051 = vpop.f32.mrb[0].mxu0
  %v5052 = vadd.f32 0.0, %v5051
  %v5053 = vpop.f32.mrb[0].mxu0
  %5054 = vmatprep.mubr.f32.mxu0 0.0
  %5055 = vmatmul.mubr.f32.gmra.mrb[0].mxu0 %v4953
  %v5056 = vpop.f32.mrb[0].mxu0
  %v5057 = vadd.f32 0.0, %v5056
  %v5058 = vpop.f32.mrb[0].mxu0
  %5059 = vmatprep.mubr.f32.mxu0 0.0
  %5060 = vmatmul.mubr.f32.gmra.mrb[0].mxu0 %v4956
  %v5061 = vpop.f32.mrb[0].mxu0
  %v5062 = vadd.f32 0.0, %v5061
  %v5063 = vpop.f32.mrb[0].mxu0
  %5064 = vmatprep.mubr.f32.mxu0 0.0
  %5065 = vmatmul.mubr.f32.gmra.mrb[0].mxu0 %v4959
  %v5066 = vpop.f32.mrb[0].mxu0
  %v5067 = vadd.f32 0.0, %v5066
  %v5068 = vpop.f32.mrb[0].mxu0
  %5069 = vmatprep.mubr.f32.mxu0 0.0
  %5070 = vmatmul.mubr.f32.gmra.mrb[0].mxu0 %v4962
  %v5071 = vpop.f32.mrb[0].mxu0
  %v5072 = vadd.f32 0.0, %v5071
  %v5073 = vpop.f32.mrb[0].mxu0
  %5074 = vdwg.mxu0
  %v5075 = vmul.f32 %v5037, 2.0
  %v5076 = vmul.f32 %v5042, 2.0
  %v5077 = vmul.f32 %v5047, 2.0
  %v5078 = vmul.f32 %v5052, 2.0
  %v5079 = vmul.f32 %v5057, 2.0
  %v5080 = vmul.f32 %v5062, 2.0
  %v5081 = vmul.f32 %v5067, 2.0
  %v5082 = vmul.f32 %v5072, 2.0
  %v5091 = vlaneseq
  %v5092 = vshrl.u32 %v5091, 7
  %v5093 = vsub.s32 0, %v5092
  %v5094 = vrot.slane %v5075, %v5093
  %5096 = vbcast.lane.b32.xlu0 %v5094, 256
  %v5097 = vpop.permute.xlu0 %5096
  %s5099 = sor.u32 256, 8
  %5100 = vbcast.lane.b32.xlu0 %v5094, %s5099
  %v5101 = vpop.permute.xlu0 %5100
  %v5102 = vlaneseq
  %v5103 = vshrl.u32 %v5102, 7
  %v5104 = vsub.s32 1, %v5103
  %v5105 = vrot.slane %v5075, %v5104
  %5107 = vbcast.lane.b32.xlu0 %v5105, 256
  %v5108 = vpop.permute.xlu0 %5107
  %s5110 = sor.u32 256, 8
  %5111 = vbcast.lane.b32.xlu0 %v5105, %s5110
  %v5112 = vpop.permute.xlu0 %5111
  %v5113 = vlaneseq
  %v5114 = vshrl.u32 %v5113, 7
  %v5115 = vsub.s32 2, %v5114
  %v5116 = vrot.slane %v5075, %v5115
  %5118 = vbcast.lane.b32.xlu0 %v5116, 256
  %v5119 = vpop.permute.xlu0 %5118
  %s5121 = sor.u32 256, 8
  %5122 = vbcast.lane.b32.xlu0 %v5116, %s5121
  %v5123 = vpop.permute.xlu0 %5122
  %v5124 = vlaneseq
  %v5125 = vshrl.u32 %v5124, 7
  %v5126 = vsub.s32 3, %v5125
  %v5127 = vrot.slane %v5075, %v5126
  %5129 = vbcast.lane.b32.xlu0 %v5127, 256
  %v5130 = vpop.permute.xlu0 %5129
  %s5132 = sor.u32 256, 8
  %5133 = vbcast.lane.b32.xlu0 %v5127, %s5132
  %v5134 = vpop.permute.xlu0 %5133
  %v5135 = vlaneseq
  %v5136 = vshrl.u32 %v5135, 7
  %v5137 = vsub.s32 4, %v5136
  %v5138 = vrot.slane %v5075, %v5137
  %5140 = vbcast.lane.b32.xlu0 %v5138, 256
  %v5141 = vpop.permute.xlu0 %5140
  %s5143 = sor.u32 256, 8
  %5144 = vbcast.lane.b32.xlu0 %v5138, %s5143
  %v5145 = vpop.permute.xlu0 %5144
  %v5146 = vlaneseq
  %v5147 = vshrl.u32 %v5146, 7
  %v5148 = vsub.s32 5, %v5147
  %v5149 = vrot.slane %v5075, %v5148
  %5151 = vbcast.lane.b32.xlu0 %v5149, 256
  %v5152 = vpop.permute.xlu0 %5151
  %s5154 = sor.u32 256, 8
  %5155 = vbcast.lane.b32.xlu0 %v5149, %s5154
  %v5156 = vpop.permute.xlu0 %5155
  %v5157 = vlaneseq
  %v5158 = vshrl.u32 %v5157, 7
  %v5159 = vsub.s32 6, %v5158
  %v5160 = vrot.slane %v5075, %v5159
  %5162 = vbcast.lane.b32.xlu0 %v5160, 256
  %v5163 = vpop.permute.xlu0 %5162
  %s5165 = sor.u32 256, 8
  %5166 = vbcast.lane.b32.xlu0 %v5160, %s5165
  %v5167 = vpop.permute.xlu0 %5166
  %v5168 = vlaneseq
  %v5169 = vshrl.u32 %v5168, 7
  %v5170 = vsub.s32 7, %v5169
  %v5171 = vrot.slane %v5075, %v5170
  %5173 = vbcast.lane.b32.xlu0 %v5171, 256
  %v5174 = vpop.permute.xlu0 %5173
  %s5176 = sor.u32 256, 8
  %5177 = vbcast.lane.b32.xlu0 %v5171, %s5176
  %v5178 = vpop.permute.xlu0 %5177
  %v5179 = vlaneseq
  %v5180 = vshrl.u32 %v5179, 7
  %v5181 = vsub.s32 0, %v5180
  %v5182 = vrot.slane %v5076, %v5181
  %5184 = vbcast.lane.b32.xlu0 %v5182, 256
  %v5185 = vpop.permute.xlu0 %5184
  %s5187 = sor.u32 256, 8
  %5188 = vbcast.lane.b32.xlu0 %v5182, %s5187
  %v5189 = vpop.permute.xlu0 %5188
  %v5190 = vlaneseq
  %v5191 = vshrl.u32 %v5190, 7
  %v5192 = vsub.s32 1, %v5191
  %v5193 = vrot.slane %v5076, %v5192
  %5195 = vbcast.lane.b32.xlu0 %v5193, 256
  %v5196 = vpop.permute.xlu0 %5195
  %s5198 = sor.u32 256, 8
  %5199 = vbcast.lane.b32.xlu0 %v5193, %s5198
  %v5200 = vpop.permute.xlu0 %5199
  %v5201 = vlaneseq
  %v5202 = vshrl.u32 %v5201, 7
  %v5203 = vsub.s32 2, %v5202
  %v5204 = vrot.slane %v5076, %v5203
  %5206 = vbcast.lane.b32.xlu0 %v5204, 256
  %v5207 = vpop.permute.xlu0 %5206
  %s5209 = sor.u32 256, 8
  %5210 = vbcast.lane.b32.xlu0 %v5204, %s5209
  %v5211 = vpop.permute.xlu0 %5210
  %v5212 = vlaneseq
  %v5213 = vshrl.u32 %v5212, 7
  %v5214 = vsub.s32 3, %v5213
  %v5215 = vrot.slane %v5076, %v5214
  %5217 = vbcast.lane.b32.xlu0 %v5215, 256
  %v5218 = vpop.permute.xlu0 %5217
  %s5220 = sor.u32 256, 8
  %5221 = vbcast.lane.b32.xlu0 %v5215, %s5220
  %v5222 = vpop.permute.xlu0 %5221
  %v5223 = vlaneseq
  %v5224 = vshrl.u32 %v5223, 7
  %v5225 = vsub.s32 4, %v5224
  %v5226 = vrot.slane %v5076, %v5225
  %5228 = vbcast.lane.b32.xlu0 %v5226, 256
  %v5229 = vpop.permute.xlu0 %5228
  %s5231 = sor.u32 256, 8
  %5232 = vbcast.lane.b32.xlu0 %v5226, %s5231
  %v5233 = vpop.permute.xlu0 %5232
  %v5234 = vlaneseq
  %v5235 = vshrl.u32 %v5234, 7
  %v5236 = vsub.s32 5, %v5235
  %v5237 = vrot.slane %v5076, %v5236
  %5239 = vbcast.lane.b32.xlu0 %v5237, 256
  %v5240 = vpop.permute.xlu0 %5239
  %s5242 = sor.u32 256, 8
  %5243 = vbcast.lane.b32.xlu0 %v5237, %s5242
  %v5244 = vpop.permute.xlu0 %5243
  %v5245 = vlaneseq
  %v5246 = vshrl.u32 %v5245, 7
  %v5247 = vsub.s32 6, %v5246
  %v5248 = vrot.slane %v5076, %v5247
  %5250 = vbcast.lane.b32.xlu0 %v5248, 256
  %v5251 = vpop.permute.xlu0 %5250
  %s5253 = sor.u32 256, 8
  %5254 = vbcast.lane.b32.xlu0 %v5248, %s5253
  %v5255 = vpop.permute.xlu0 %5254
  %v5256 = vlaneseq
  %v5257 = vshrl.u32 %v5256, 7
  %v5258 = vsub.s32 7, %v5257
  %v5259 = vrot.slane %v5076, %v5258
  %5261 = vbcast.lane.b32.xlu0 %v5259, 256
  %v5262 = vpop.permute.xlu0 %5261
  %s5264 = sor.u32 256, 8
  %5265 = vbcast.lane.b32.xlu0 %v5259, %s5264
  %v5266 = vpop.permute.xlu0 %5265
  %v5267 = vlaneseq
  %v5268 = vshrl.u32 %v5267, 7
  %v5269 = vsub.s32 0, %v5268
  %v5270 = vrot.slane %v5077, %v5269
  %5272 = vbcast.lane.b32.xlu0 %v5270, 256
  %v5273 = vpop.permute.xlu0 %5272
  %s5275 = sor.u32 256, 8
  %5276 = vbcast.lane.b32.xlu0 %v5270, %s5275
  %v5277 = vpop.permute.xlu0 %5276
  %v5278 = vlaneseq
  %v5279 = vshrl.u32 %v5278, 7
  %v5280 = vsub.s32 1, %v5279
  %v5281 = vrot.slane %v5077, %v5280
  %5283 = vbcast.lane.b32.xlu0 %v5281, 256
  %v5284 = vpop.permute.xlu0 %5283
  %s5286 = sor.u32 256, 8
  %5287 = vbcast.lane.b32.xlu0 %v5281, %s5286
  %v5288 = vpop.permute.xlu0 %5287
  %v5289 = vlaneseq
  %v5290 = vshrl.u32 %v5289, 7
  %v5291 = vsub.s32 2, %v5290
  %v5292 = vrot.slane %v5077, %v5291
  %5294 = vbcast.lane.b32.xlu0 %v5292, 256
  %v5295 = vpop.permute.xlu0 %5294
  %s5297 = sor.u32 256, 8
  %5298 = vbcast.lane.b32.xlu0 %v5292, %s5297
  %v5299 = vpop.permute.xlu0 %5298
  %v5300 = vlaneseq
  %v5301 = vshrl.u32 %v5300, 7
  %v5302 = vsub.s32 3, %v5301
  %v5303 = vrot.slane %v5077, %v5302
  %5305 = vbcast.lane.b32.xlu0 %v5303, 256
  %v5306 = vpop.permute.xlu0 %5305
  %s5308 = sor.u32 256, 8
  %5309 = vbcast.lane.b32.xlu0 %v5303, %s5308
  %v5310 = vpop.permute.xlu0 %5309
  %v5311 = vlaneseq
  %v5312 = vshrl.u32 %v5311, 7
  %v5313 = vsub.s32 4, %v5312
  %v5314 = vrot.slane %v5077, %v5313
  %5316 = vbcast.lane.b32.xlu0 %v5314, 256
  %v5317 = vpop.permute.xlu0 %5316
  %s5319 = sor.u32 256, 8
  %5320 = vbcast.lane.b32.xlu0 %v5314, %s5319
  %v5321 = vpop.permute.xlu0 %5320
  %v5322 = vlaneseq
  %v5323 = vshrl.u32 %v5322, 7
  %v5324 = vsub.s32 5, %v5323
  %v5325 = vrot.slane %v5077, %v5324
  %5327 = vbcast.lane.b32.xlu0 %v5325, 256
  %v5328 = vpop.permute.xlu0 %5327
  %s5330 = sor.u32 256, 8
  %5331 = vbcast.lane.b32.xlu0 %v5325, %s5330
  %v5332 = vpop.permute.xlu0 %5331
  %v5333 = vlaneseq
  %v5334 = vshrl.u32 %v5333, 7
  %v5335 = vsub.s32 6, %v5334
  %v5336 = vrot.slane %v5077, %v5335
  %5338 = vbcast.lane.b32.xlu0 %v5336, 256
  %v5339 = vpop.permute.xlu0 %5338
  %s5341 = sor.u32 256, 8
  %5342 = vbcast.lane.b32.xlu0 %v5336, %s5341
  %v5343 = vpop.permute.xlu0 %5342
  %v5344 = vlaneseq
  %v5345 = vshrl.u32 %v5344, 7
  %v5346 = vsub.s32 7, %v5345
  %v5347 = vrot.slane %v5077, %v5346
  %5349 = vbcast.lane.b32.xlu0 %v5347, 256
  %v5350 = vpop.permute.xlu0 %5349
  %s5352 = sor.u32 256, 8
  %5353 = vbcast.lane.b32.xlu0 %v5347, %s5352
  %v5354 = vpop.permute.xlu0 %5353
  %v5355 = vlaneseq
  %v5356 = vshrl.u32 %v5355, 7
  %v5357 = vsub.s32 0, %v5356
  %v5358 = vrot.slane %v5078, %v5357
  %5360 = vbcast.lane.b32.xlu0 %v5358, 256
  %v5361 = vpop.permute.xlu0 %5360
  %s5363 = sor.u32 256, 8
  %5364 = vbcast.lane.b32.xlu0 %v5358, %s5363
  %v5365 = vpop.permute.xlu0 %5364
  %v5366 = vlaneseq
  %v5367 = vshrl.u32 %v5366, 7
  %v5368 = vsub.s32 1, %v5367
  %v5369 = vrot.slane %v5078, %v5368
  %5371 = vbcast.lane.b32.xlu0 %v5369, 256
  %v5372 = vpop.permute.xlu0 %5371
  %s5374 = sor.u32 256, 8
  %5375 = vbcast.lane.b32.xlu0 %v5369, %s5374
  %v5376 = vpop.permute.xlu0 %5375
  %v5377 = vlaneseq
  %v5378 = vshrl.u32 %v5377, 7
  %v5379 = vsub.s32 2, %v5378
  %v5380 = vrot.slane %v5078, %v5379
  %5382 = vbcast.lane.b32.xlu0 %v5380, 256
  %v5383 = vpop.permute.xlu0 %5382
  %s5385 = sor.u32 256, 8
  %5386 = vbcast.lane.b32.xlu0 %v5380, %s5385
  %v5387 = vpop.permute.xlu0 %5386
  %v5388 = vlaneseq
  %v5389 = vshrl.u32 %v5388, 7
  %v5390 = vsub.s32 3, %v5389
  %v5391 = vrot.slane %v5078, %v5390
  %5393 = vbcast.lane.b32.xlu0 %v5391, 256
  %v5394 = vpop.permute.xlu0 %5393
  %s5396 = sor.u32 256, 8
  %5397 = vbcast.lane.b32.xlu0 %v5391, %s5396
  %v5398 = vpop.permute.xlu0 %5397
  %v5399 = vlaneseq
  %v5400 = vshrl.u32 %v5399, 7
  %v5401 = vsub.s32 4, %v5400
  %v5402 = vrot.slane %v5078, %v5401
  %5404 = vbcast.lane.b32.xlu0 %v5402, 256
  %v5405 = vpop.permute.xlu0 %5404
  %s5407 = sor.u32 256, 8
  %5408 = vbcast.lane.b32.xlu0 %v5402, %s5407
  %v5409 = vpop.permute.xlu0 %5408
  %v5410 = vlaneseq
  %v5411 = vshrl.u32 %v5410, 7
  %v5412 = vsub.s32 5, %v5411
  %v5413 = vrot.slane %v5078, %v5412
  %5415 = vbcast.lane.b32.xlu0 %v5413, 256
  %v5416 = vpop.permute.xlu0 %5415
  %s5418 = sor.u32 256, 8
  %5419 = vbcast.lane.b32.xlu0 %v5413, %s5418
  %v5420 = vpop.permute.xlu0 %5419
  %v5421 = vlaneseq
  %v5422 = vshrl.u32 %v5421, 7
  %v5423 = vsub.s32 6, %v5422
  %v5424 = vrot.slane %v5078, %v5423
  %5426 = vbcast.lane.b32.xlu0 %v5424, 256
  %v5427 = vpop.permute.xlu0 %5426
  %s5429 = sor.u32 256, 8
  %5430 = vbcast.lane.b32.xlu0 %v5424, %s5429
  %v5431 = vpop.permute.xlu0 %5430
  %v5432 = vlaneseq
  %v5433 = vshrl.u32 %v5432, 7
  %v5434 = vsub.s32 7, %v5433
  %v5435 = vrot.slane %v5078, %v5434
  %5437 = vbcast.lane.b32.xlu0 %v5435, 256
  %v5438 = vpop.permute.xlu0 %5437
  %s5440 = sor.u32 256, 8
  %5441 = vbcast.lane.b32.xlu0 %v5435, %s5440
  %v5442 = vpop.permute.xlu0 %5441
  %v5443 = vlaneseq
  %v5444 = vshrl.u32 %v5443, 7
  %v5445 = vsub.s32 0, %v5444
  %v5446 = vrot.slane %v5079, %v5445
  %5448 = vbcast.lane.b32.xlu0 %v5446, 256
  %v5449 = vpop.permute.xlu0 %5448
  %s5451 = sor.u32 256, 8
  %5452 = vbcast.lane.b32.xlu0 %v5446, %s5451
  %v5453 = vpop.permute.xlu0 %5452
  %v5454 = vlaneseq
  %v5455 = vshrl.u32 %v5454, 7
  %v5456 = vsub.s32 1, %v5455
  %v5457 = vrot.slane %v5079, %v5456
  %5459 = vbcast.lane.b32.xlu0 %v5457, 256
  %v5460 = vpop.permute.xlu0 %5459
  %s5462 = sor.u32 256, 8
  %5463 = vbcast.lane.b32.xlu0 %v5457, %s5462
  %v5464 = vpop.permute.xlu0 %5463
  %v5465 = vlaneseq
  %v5466 = vshrl.u32 %v5465, 7
  %v5467 = vsub.s32 2, %v5466
  %v5468 = vrot.slane %v5079, %v5467
  %5470 = vbcast.lane.b32.xlu0 %v5468, 256
  %v5471 = vpop.permute.xlu0 %5470
  %s5473 = sor.u32 256, 8
  %5474 = vbcast.lane.b32.xlu0 %v5468, %s5473
  %v5475 = vpop.permute.xlu0 %5474
  %v5476 = vlaneseq
  %v5477 = vshrl.u32 %v5476, 7
  %v5478 = vsub.s32 3, %v5477
  %v5479 = vrot.slane %v5079, %v5478
  %5481 = vbcast.lane.b32.xlu0 %v5479, 256
  %v5482 = vpop.permute.xlu0 %5481
  %s5484 = sor.u32 256, 8
  %5485 = vbcast.lane.b32.xlu0 %v5479, %s5484
  %v5486 = vpop.permute.xlu0 %5485
  %v5487 = vlaneseq
  %v5488 = vshrl.u32 %v5487, 7
  %v5489 = vsub.s32 4, %v5488
  %v5490 = vrot.slane %v5079, %v5489
  %5492 = vbcast.lane.b32.xlu0 %v5490, 256
  %v5493 = vpop.permute.xlu0 %5492
  %s5495 = sor.u32 256, 8
  %5496 = vbcast.lane.b32.xlu0 %v5490, %s5495
  %v5497 = vpop.permute.xlu0 %5496
  %v5498 = vlaneseq
  %v5499 = vshrl.u32 %v5498, 7
  %v5500 = vsub.s32 5, %v5499
  %v5501 = vrot.slane %v5079, %v5500
  %5503 = vbcast.lane.b32.xlu0 %v5501, 256
  %v5504 = vpop.permute.xlu0 %5503
  %s5506 = sor.u32 256, 8
  %5507 = vbcast.lane.b32.xlu0 %v5501, %s5506
  %v5508 = vpop.permute.xlu0 %5507
  %v5509 = vlaneseq
  %v5510 = vshrl.u32 %v5509, 7
  %v5511 = vsub.s32 6, %v5510
  %v5512 = vrot.slane %v5079, %v5511
  %5514 = vbcast.lane.b32.xlu0 %v5512, 256
  %v5515 = vpop.permute.xlu0 %5514
  %s5517 = sor.u32 256, 8
  %5518 = vbcast.lane.b32.xlu0 %v5512, %s5517
  %v5519 = vpop.permute.xlu0 %5518
  %v5520 = vlaneseq
  %v5521 = vshrl.u32 %v5520, 7
  %v5522 = vsub.s32 7, %v5521
  %v5523 = vrot.slane %v5079, %v5522
  %5525 = vbcast.lane.b32.xlu0 %v5523, 256
  %v5526 = vpop.permute.xlu0 %5525
  %s5528 = sor.u32 256, 8
  %5529 = vbcast.lane.b32.xlu0 %v5523, %s5528
  %v5530 = vpop.permute.xlu0 %5529
  %v5531 = vlaneseq
  %v5532 = vshrl.u32 %v5531, 7
  %v5533 = vsub.s32 0, %v5532
  %v5534 = vrot.slane %v5080, %v5533
  %5536 = vbcast.lane.b32.xlu0 %v5534, 256
  %v5537 = vpop.permute.xlu0 %5536
  %s5539 = sor.u32 256, 8
  %5540 = vbcast.lane.b32.xlu0 %v5534, %s5539
  %v5541 = vpop.permute.xlu0 %5540
  %v5542 = vlaneseq
  %v5543 = vshrl.u32 %v5542, 7
  %v5544 = vsub.s32 1, %v5543
  %v5545 = vrot.slane %v5080, %v5544
  %5547 = vbcast.lane.b32.xlu0 %v5545, 256
  %v5548 = vpop.permute.xlu0 %5547
  %s5550 = sor.u32 256, 8
  %5551 = vbcast.lane.b32.xlu0 %v5545, %s5550
  %v5552 = vpop.permute.xlu0 %5551
  %v5553 = vlaneseq
  %v5554 = vshrl.u32 %v5553, 7
  %v5555 = vsub.s32 2, %v5554
  %v5556 = vrot.slane %v5080, %v5555
  %5558 = vbcast.lane.b32.xlu0 %v5556, 256
  %v5559 = vpop.permute.xlu0 %5558
  %s5561 = sor.u32 256, 8
  %5562 = vbcast.lane.b32.xlu0 %v5556, %s5561
  %v5563 = vpop.permute.xlu0 %5562
  %v5564 = vlaneseq
  %v5565 = vshrl.u32 %v5564, 7
  %v5566 = vsub.s32 3, %v5565
  %v5567 = vrot.slane %v5080, %v5566
  %5569 = vbcast.lane.b32.xlu0 %v5567, 256
  %v5570 = vpop.permute.xlu0 %5569
  %s5572 = sor.u32 256, 8
  %5573 = vbcast.lane.b32.xlu0 %v5567, %s5572
  %v5574 = vpop.permute.xlu0 %5573
  %v5575 = vlaneseq
  %v5576 = vshrl.u32 %v5575, 7
  %v5577 = vsub.s32 4, %v5576
  %v5578 = vrot.slane %v5080, %v5577
  %5580 = vbcast.lane.b32.xlu0 %v5578, 256
  %v5581 = vpop.permute.xlu0 %5580
  %s5583 = sor.u32 256, 8
  %5584 = vbcast.lane.b32.xlu0 %v5578, %s5583
  %v5585 = vpop.permute.xlu0 %5584
  %v5586 = vlaneseq
  %v5587 = vshrl.u32 %v5586, 7
  %v5588 = vsub.s32 5, %v5587
  %v5589 = vrot.slane %v5080, %v5588
  %5591 = vbcast.lane.b32.xlu0 %v5589, 256
  %v5592 = vpop.permute.xlu0 %5591
  %s5594 = sor.u32 256, 8
  %5595 = vbcast.lane.b32.xlu0 %v5589, %s5594
  %v5596 = vpop.permute.xlu0 %5595
  %v5597 = vlaneseq
  %v5598 = vshrl.u32 %v5597, 7
  %v5599 = vsub.s32 6, %v5598
  %v5600 = vrot.slane %v5080, %v5599
  %5602 = vbcast.lane.b32.xlu0 %v5600, 256
  %v5603 = vpop.permute.xlu0 %5602
  %s5605 = sor.u32 256, 8
  %5606 = vbcast.lane.b32.xlu0 %v5600, %s5605
  %v5607 = vpop.permute.xlu0 %5606
  %v5608 = vlaneseq
  %v5609 = vshrl.u32 %v5608, 7
  %v5610 = vsub.s32 7, %v5609
  %v5611 = vrot.slane %v5080, %v5610
  %5613 = vbcast.lane.b32.xlu0 %v5611, 256
  %v5614 = vpop.permute.xlu0 %5613
  %s5616 = sor.u32 256, 8
  %5617 = vbcast.lane.b32.xlu0 %v5611, %s5616
  %v5618 = vpop.permute.xlu0 %5617
  %v5619 = vlaneseq
  %v5620 = vshrl.u32 %v5619, 7
  %v5621 = vsub.s32 0, %v5620
  %v5622 = vrot.slane %v5081, %v5621
  %5624 = vbcast.lane.b32.xlu0 %v5622, 256
  %v5625 = vpop.permute.xlu0 %5624
  %s5627 = sor.u32 256, 8
  %5628 = vbcast.lane.b32.xlu0 %v5622, %s5627
  %v5629 = vpop.permute.xlu0 %5628
  %v5630 = vlaneseq
  %v5631 = vshrl.u32 %v5630, 7
  %v5632 = vsub.s32 1, %v5631
  %v5633 = vrot.slane %v5081, %v5632
  %5635 = vbcast.lane.b32.xlu0 %v5633, 256
  %v5636 = vpop.permute.xlu0 %5635
  %s5638 = sor.u32 256, 8
  %5639 = vbcast.lane.b32.xlu0 %v5633, %s5638
  %v5640 = vpop.permute.xlu0 %5639
  %v5641 = vlaneseq
  %v5642 = vshrl.u32 %v5641, 7
  %v5643 = vsub.s32 2, %v5642
  %v5644 = vrot.slane %v5081, %v5643
  %5646 = vbcast.lane.b32.xlu0 %v5644, 256
  %v5647 = vpop.permute.xlu0 %5646
  %s5649 = sor.u32 256, 8
  %5650 = vbcast.lane.b32.xlu0 %v5644, %s5649
  %v5651 = vpop.permute.xlu0 %5650
  %v5652 = vlaneseq
  %v5653 = vshrl.u32 %v5652, 7
  %v5654 = vsub.s32 3, %v5653
  %v5655 = vrot.slane %v5081, %v5654
  %5657 = vbcast.lane.b32.xlu0 %v5655, 256
  %v5658 = vpop.permute.xlu0 %5657
  %s5660 = sor.u32 256, 8
  %5661 = vbcast.lane.b32.xlu0 %v5655, %s5660
  %v5662 = vpop.permute.xlu0 %5661
  %v5663 = vlaneseq
  %v5664 = vshrl.u32 %v5663, 7
  %v5665 = vsub.s32 4, %v5664
  %v5666 = vrot.slane %v5081, %v5665
  %5668 = vbcast.lane.b32.xlu0 %v5666, 256
  %v5669 = vpop.permute.xlu0 %5668
  %s5671 = sor.u32 256, 8
  %5672 = vbcast.lane.b32.xlu0 %v5666, %s5671
  %v5673 = vpop.permute.xlu0 %5672
  %v5674 = vlaneseq
  %v5675 = vshrl.u32 %v5674, 7
  %v5676 = vsub.s32 5, %v5675
  %v5677 = vrot.slane %v5081, %v5676
  %5679 = vbcast.lane.b32.xlu0 %v5677, 256
  %v5680 = vpop.permute.xlu0 %5679
  %s5682 = sor.u32 256, 8
  %5683 = vbcast.lane.b32.xlu0 %v5677, %s5682
  %v5684 = vpop.permute.xlu0 %5683
  %v5685 = vlaneseq
  %v5686 = vshrl.u32 %v5685, 7
  %v5687 = vsub.s32 6, %v5686
  %v5688 = vrot.slane %v5081, %v5687
  %5690 = vbcast.lane.b32.xlu0 %v5688, 256
  %v5691 = vpop.permute.xlu0 %5690
  %s5693 = sor.u32 256, 8
  %5694 = vbcast.lane.b32.xlu0 %v5688, %s5693
  %v5695 = vpop.permute.xlu0 %5694
  %v5696 = vlaneseq
  %v5697 = vshrl.u32 %v5696, 7
  %v5698 = vsub.s32 7, %v5697
  %v5699 = vrot.slane %v5081, %v5698
  %5701 = vbcast.lane.b32.xlu0 %v5699, 256
  %v5702 = vpop.permute.xlu0 %5701
  %s5704 = sor.u32 256, 8
  %5705 = vbcast.lane.b32.xlu0 %v5699, %s5704
  %v5706 = vpop.permute.xlu0 %5705
  %v5707 = vlaneseq
  %v5708 = vshrl.u32 %v5707, 7
  %v5709 = vsub.s32 0, %v5708
  %v5710 = vrot.slane %v5082, %v5709
  %5712 = vbcast.lane.b32.xlu0 %v5710, 256
  %v5713 = vpop.permute.xlu0 %5712
  %s5715 = sor.u32 256, 8
  %5716 = vbcast.lane.b32.xlu0 %v5710, %s5715
  %v5717 = vpop.permute.xlu0 %5716
  %v5718 = vlaneseq
  %v5719 = vshrl.u32 %v5718, 7
  %v5720 = vsub.s32 1, %v5719
  %v5721 = vrot.slane %v5082, %v5720
  %5723 = vbcast.lane.b32.xlu0 %v5721, 256
  %v5724 = vpop.permute.xlu0 %5723
  %s5726 = sor.u32 256, 8
  %5727 = vbcast.lane.b32.xlu0 %v5721, %s5726
  %v5728 = vpop.permute.xlu0 %5727
  %v5729 = vlaneseq
  %v5730 = vshrl.u32 %v5729, 7
  %v5731 = vsub.s32 2, %v5730
  %v5732 = vrot.slane %v5082, %v5731
  %5734 = vbcast.lane.b32.xlu0 %v5732, 256
  %v5735 = vpop.permute.xlu0 %5734
  %s5737 = sor.u32 256, 8
  %5738 = vbcast.lane.b32.xlu0 %v5732, %s5737
  %v5739 = vpop.permute.xlu0 %5738
  %v5740 = vlaneseq
  %v5741 = vshrl.u32 %v5740, 7
  %v5742 = vsub.s32 3, %v5741
  %v5743 = vrot.slane %v5082, %v5742
  %5745 = vbcast.lane.b32.xlu0 %v5743, 256
  %v5746 = vpop.permute.xlu0 %5745
  %s5748 = sor.u32 256, 8
  %5749 = vbcast.lane.b32.xlu0 %v5743, %s5748
  %v5750 = vpop.permute.xlu0 %5749
  %v5751 = vlaneseq
  %v5752 = vshrl.u32 %v5751, 7
  %v5753 = vsub.s32 4, %v5752
  %v5754 = vrot.slane %v5082, %v5753
  %5756 = vbcast.lane.b32.xlu0 %v5754, 256
  %v5757 = vpop.permute.xlu0 %5756
  %s5759 = sor.u32 256, 8
  %5760 = vbcast.lane.b32.xlu0 %v5754, %s5759
  %v5761 = vpop.permute.xlu0 %5760
  %v5762 = vlaneseq
  %v5763 = vshrl.u32 %v5762, 7
  %v5764 = vsub.s32 5, %v5763
  %v5765 = vrot.slane %v5082, %v5764
  %5767 = vbcast.lane.b32.xlu0 %v5765, 256
  %v5768 = vpop.permute.xlu0 %5767
  %s5770 = sor.u32 256, 8
  %5771 = vbcast.lane.b32.xlu0 %v5765, %s5770
  %v5772 = vpop.permute.xlu0 %5771
  %v5773 = vlaneseq
  %v5774 = vshrl.u32 %v5773, 7
  %v5775 = vsub.s32 6, %v5774
  %v5776 = vrot.slane %v5082, %v5775
  %5778 = vbcast.lane.b32.xlu0 %v5776, 256
  %v5779 = vpop.permute.xlu0 %5778
  %s5781 = sor.u32 256, 8
  %5782 = vbcast.lane.b32.xlu0 %v5776, %s5781
  %v5783 = vpop.permute.xlu0 %5782
  %v5784 = vlaneseq
  %v5785 = vshrl.u32 %v5784, 7
  %v5786 = vsub.s32 7, %v5785
  %v5787 = vrot.slane %v5082, %v5786
  %5789 = vbcast.lane.b32.xlu0 %v5787, 256
  %v5790 = vpop.permute.xlu0 %5789
  %s5792 = sor.u32 256, 8
  %5793 = vbcast.lane.b32.xlu0 %v5787, %s5792
  %v5794 = vpop.permute.xlu0 %5793
  %v5923 = vsub.f32 %v4936, %v5097
  %v5924 = vsub.f32 %v4939, %v5101
  %v5925 = vsub.f32 %v4936, %v5108
  %v5926 = vsub.f32 %v4939, %v5112
  %v5927 = vsub.f32 %v4936, %v5119
  %v5928 = vsub.f32 %v4939, %v5123
  %v5929 = vsub.f32 %v4936, %v5130
  %v5930 = vsub.f32 %v4939, %v5134
  %v5931 = vsub.f32 %v4936, %v5141
  %v5932 = vsub.f32 %v4939, %v5145
  %v5933 = vsub.f32 %v4936, %v5152
  %v5934 = vsub.f32 %v4939, %v5156
  %v5935 = vsub.f32 %v4936, %v5163
  %v5936 = vsub.f32 %v4939, %v5167
  %v5937 = vsub.f32 %v4936, %v5174
  %v5938 = vsub.f32 %v4939, %v5178
  %v5939 = vsub.f32 %v4936, %v5185
  %v5940 = vsub.f32 %v4939, %v5189
  %v5941 = vsub.f32 %v4936, %v5196
  %v5942 = vsub.f32 %v4939, %v5200
  %v5943 = vsub.f32 %v4936, %v5207
  %v5944 = vsub.f32 %v4939, %v5211
  %v5945 = vsub.f32 %v4936, %v5218
  %v5946 = vsub.f32 %v4939, %v5222
  %v5947 = vsub.f32 %v4936, %v5229
  %v5948 = vsub.f32 %v4939, %v5233
  %v5949 = vsub.f32 %v4936, %v5240
  %v5950 = vsub.f32 %v4939, %v5244
  %v5951 = vsub.f32 %v4936, %v5251
  %v5952 = vsub.f32 %v4939, %v5255
  %v5953 = vsub.f32 %v4936, %v5262
  %v5954 = vsub.f32 %v4939, %v5266
  %v5955 = vsub.f32 %v4936, %v5273
  %v5956 = vsub.f32 %v4939, %v5277
  %v5957 = vsub.f32 %v4936, %v5284
  %v5958 = vsub.f32 %v4939, %v5288
  %v5959 = vsub.f32 %v4936, %v5295
  %v5960 = vsub.f32 %v4939, %v5299
  %v5961 = vsub.f32 %v4936, %v5306
  %v5962 = vsub.f32 %v4939, %v5310
  %v5963 = vsub.f32 %v4936, %v5317
  %v5964 = vsub.f32 %v4939, %v5321
  %v5965 = vsub.f32 %v4936, %v5328
  %v5966 = vsub.f32 %v4939, %v5332
  %v5967 = vsub.f32 %v4936, %v5339
  %v5968 = vsub.f32 %v4939, %v5343
  %v5969 = vsub.f32 %v4936, %v5350
  %v5970 = vsub.f32 %v4939, %v5354
  %v5971 = vsub.f32 %v4936, %v5361
  %v5972 = vsub.f32 %v4939, %v5365
  %v5973 = vsub.f32 %v4936, %v5372
  %v5974 = vsub.f32 %v4939, %v5376
  %v5975 = vsub.f32 %v4936, %v5383
  %v5976 = vsub.f32 %v4939, %v5387
  %v5977 = vsub.f32 %v4936, %v5394
  %v5978 = vsub.f32 %v4939, %v5398
  %v5979 = vsub.f32 %v4936, %v5405
  %v5980 = vsub.f32 %v4939, %v5409
  %v5981 = vsub.f32 %v4936, %v5416
  %v5982 = vsub.f32 %v4939, %v5420
  %v5983 = vsub.f32 %v4936, %v5427
  %v5984 = vsub.f32 %v4939, %v5431
  %v5985 = vsub.f32 %v4936, %v5438
  %v5986 = vsub.f32 %v4939, %v5442
  %v5987 = vsub.f32 %v4936, %v5449
  %v5988 = vsub.f32 %v4939, %v5453
  %v5989 = vsub.f32 %v4936, %v5460
  %v5990 = vsub.f32 %v4939, %v5464
  %v5991 = vsub.f32 %v4936, %v5471
  %v5992 = vsub.f32 %v4939, %v5475
  %v5993 = vsub.f32 %v4936, %v5482
  %v5994 = vsub.f32 %v4939, %v5486
  %v5995 = vsub.f32 %v4936, %v5493
  %v5996 = vsub.f32 %v4939, %v5497
  %v5997 = vsub.f32 %v4936, %v5504
  %v5998 = vsub.f32 %v4939, %v5508
  %v5999 = vsub.f32 %v4936, %v5515
  %v6000 = vsub.f32 %v4939, %v5519
  %v6001 = vsub.f32 %v4936, %v5526
  %v6002 = vsub.f32 %v4939, %v5530
  %v6003 = vsub.f32 %v4936, %v5537
  %v6004 = vsub.f32 %v4939, %v5541
  %v6005 = vsub.f32 %v4936, %v5548
  %v6006 = vsub.f32 %v4939, %v5552
  %v6007 = vsub.f32 %v4936, %v5559
  %v6008 = vsub.f32 %v4939, %v5563
  %v6009 = vsub.f32 %v4936, %v5570
  %v6010 = vsub.f32 %v4939, %v5574
  %v6011 = vsub.f32 %v4936, %v5581
  %v6012 = vsub.f32 %v4939, %v5585
  %v6013 = vsub.f32 %v4936, %v5592
  %v6014 = vsub.f32 %v4939, %v5596
  %v6015 = vsub.f32 %v4936, %v5603
  %v6016 = vsub.f32 %v4939, %v5607
  %v6017 = vsub.f32 %v4936, %v5614
  %v6018 = vsub.f32 %v4939, %v5618
  %v6019 = vsub.f32 %v4936, %v5625
  %v6020 = vsub.f32 %v4939, %v5629
  %v6021 = vsub.f32 %v4936, %v5636
  %v6022 = vsub.f32 %v4939, %v5640
  %v6023 = vsub.f32 %v4936, %v5647
  %v6024 = vsub.f32 %v4939, %v5651
  %v6025 = vsub.f32 %v4936, %v5658
  %v6026 = vsub.f32 %v4939, %v5662
  %v6027 = vsub.f32 %v4936, %v5669
  %v6028 = vsub.f32 %v4939, %v5673
  %v6029 = vsub.f32 %v4936, %v5680
  %v6030 = vsub.f32 %v4939, %v5684
  %v6031 = vsub.f32 %v4936, %v5691
  %v6032 = vsub.f32 %v4939, %v5695
  %v6033 = vsub.f32 %v4936, %v5702
  %v6034 = vsub.f32 %v4939, %v5706
  %v6035 = vsub.f32 %v4936, %v5713
  %v6036 = vsub.f32 %v4939, %v5717
  %v6037 = vsub.f32 %v4936, %v5724
  %v6038 = vsub.f32 %v4939, %v5728
  %v6039 = vsub.f32 %v4936, %v5735
  %v6040 = vsub.f32 %v4939, %v5739
  %v6041 = vsub.f32 %v4936, %v5746
  %v6042 = vsub.f32 %v4939, %v5750
  %v6043 = vsub.f32 %v4936, %v5757
  %v6044 = vsub.f32 %v4939, %v5761
  %v6045 = vsub.f32 %v4936, %v5768
  %v6046 = vsub.f32 %v4939, %v5772
  %v6047 = vsub.f32 %v4936, %v5779
  %v6048 = vsub.f32 %v4939, %v5783
  %v6049 = vsub.f32 %v4936, %v5790
  %v6050 = vsub.f32 %v4939, %v5794
  %6179 = vset.pattern.permute.xlu0 0
  %6180 = vperm.xlu0 %6179, %v5923
  %v6181 = vpop.permute.xlu0 %6180
  %6182 = vset.pattern.permute.xlu0 0
  %6183 = vperm.xlu0 %6182, %v5924
  %v6184 = vpop.permute.xlu0 %6183
  %6185 = vset.pattern.permute.xlu0 0
  %6186 = vperm.xlu0 %6185, %v5925
  %v6187 = vpop.permute.xlu0 %6186
  %6188 = vset.pattern.permute.xlu0 0
  %6189 = vperm.xlu0 %6188, %v5926
  %v6190 = vpop.permute.xlu0 %6189
  %6191 = vset.pattern.permute.xlu0 0
  %6192 = vperm.xlu0 %6191, %v5927
  %v6193 = vpop.permute.xlu0 %6192
  %6194 = vset.pattern.permute.xlu0 0
  %6195 = vperm.xlu0 %6194, %v5928
  %v6196 = vpop.permute.xlu0 %6195
  %6197 = vset.pattern.permute.xlu0 0
  %6198 = vperm.xlu0 %6197, %v5929
  %v6199 = vpop.permute.xlu0 %6198
  %6200 = vset.pattern.permute.xlu0 0
  %6201 = vperm.xlu0 %6200, %v5930
  %v6202 = vpop.permute.xlu0 %6201
  %6203 = vset.pattern.permute.xlu0 0
  %6204 = vperm.xlu0 %6203, %v5931
  %v6205 = vpop.permute.xlu0 %6204
  %6206 = vset.pattern.permute.xlu0 0
  %6207 = vperm.xlu0 %6206, %v5932
  %v6208 = vpop.permute.xlu0 %6207
  %6209 = vset.pattern.permute.xlu0 0
  %6210 = vperm.xlu0 %6209, %v5933
  %v6211 = vpop.permute.xlu0 %6210
  %6212 = vset.pattern.permute.xlu0 0
  %6213 = vperm.xlu0 %6212, %v5934
  %v6214 = vpop.permute.xlu0 %6213
  %6215 = vset.pattern.permute.xlu0 0
  %6216 = vperm.xlu0 %6215, %v5935
  %v6217 = vpop.permute.xlu0 %6216
  %6218 = vset.pattern.permute.xlu0 0
  %6219 = vperm.xlu0 %6218, %v5936
  %v6220 = vpop.permute.xlu0 %6219
  %6221 = vset.pattern.permute.xlu0 0
  %6222 = vperm.xlu0 %6221, %v5937
  %v6223 = vpop.permute.xlu0 %6222
  %6224 = vset.pattern.permute.xlu0 0
  %6225 = vperm.xlu0 %6224, %v5938
  %v6226 = vpop.permute.xlu0 %6225
  %6227 = vset.pattern.permute.xlu0 0
  %6228 = vperm.xlu0 %6227, %v5939
  %v6229 = vpop.permute.xlu0 %6228
  %6230 = vset.pattern.permute.xlu0 0
  %6231 = vperm.xlu0 %6230, %v5940
  %v6232 = vpop.permute.xlu0 %6231
  %6233 = vset.pattern.permute.xlu0 0
  %6234 = vperm.xlu0 %6233, %v5941
  %v6235 = vpop.permute.xlu0 %6234
  %6236 = vset.pattern.permute.xlu0 0
  %6237 = vperm.xlu0 %6236, %v5942
  %v6238 = vpop.permute.xlu0 %6237
  %6239 = vset.pattern.permute.xlu0 0
  %6240 = vperm.xlu0 %6239, %v5943
  %v6241 = vpop.permute.xlu0 %6240
  %6242 = vset.pattern.permute.xlu0 0
  %6243 = vperm.xlu0 %6242, %v5944
  %v6244 = vpop.permute.xlu0 %6243
  %6245 = vset.pattern.permute.xlu0 0
  %6246 = vperm.xlu0 %6245, %v5945
  %v6247 = vpop.permute.xlu0 %6246
  %6248 = vset.pattern.permute.xlu0 0
  %6249 = vperm.xlu0 %6248, %v5946
  %v6250 = vpop.permute.xlu0 %6249
  %6251 = vset.pattern.permute.xlu0 0
  %6252 = vperm.xlu0 %6251, %v5947
  %v6253 = vpop.permute.xlu0 %6252
  %6254 = vset.pattern.permute.xlu0 0
  %6255 = vperm.xlu0 %6254, %v5948
  %v6256 = vpop.permute.xlu0 %6255
  %6257 = vset.pattern.permute.xlu0 0
  %6258 = vperm.xlu0 %6257, %v5949
  %v6259 = vpop.permute.xlu0 %6258
  %6260 = vset.pattern.permute.xlu0 0
  %6261 = vperm.xlu0 %6260, %v5950
  %v6262 = vpop.permute.xlu0 %6261
  %6263 = vset.pattern.permute.xlu0 0
  %6264 = vperm.xlu0 %6263, %v5951
  %v6265 = vpop.permute.xlu0 %6264
  %6266 = vset.pattern.permute.xlu0 0
  %6267 = vperm.xlu0 %6266, %v5952
  %v6268 = vpop.permute.xlu0 %6267
  %6269 = vset.pattern.permute.xlu0 0
  %6270 = vperm.xlu0 %6269, %v5953
  %v6271 = vpop.permute.xlu0 %6270
  %6272 = vset.pattern.permute.xlu0 0
  %6273 = vperm.xlu0 %6272, %v5954
  %v6274 = vpop.permute.xlu0 %6273
  %6275 = vset.pattern.permute.xlu0 0
  %6276 = vperm.xlu0 %6275, %v5955
  %v6277 = vpop.permute.xlu0 %6276
  %6278 = vset.pattern.permute.xlu0 0
  %6279 = vperm.xlu0 %6278, %v5956
  %v6280 = vpop.permute.xlu0 %6279
  %6281 = vset.pattern.permute.xlu0 0
  %6282 = vperm.xlu0 %6281, %v5957
  %v6283 = vpop.permute.xlu0 %6282
  %6284 = vset.pattern.permute.xlu0 0
  %6285 = vperm.xlu0 %6284, %v5958
  %v6286 = vpop.permute.xlu0 %6285
  %6287 = vset.pattern.permute.xlu0 0
  %6288 = vperm.xlu0 %6287, %v5959
  %v6289 = vpop.permute.xlu0 %6288
  %6290 = vset.pattern.permute.xlu0 0
  %6291 = vperm.xlu0 %6290, %v5960
  %v6292 = vpop.permute.xlu0 %6291
  %6293 = vset.pattern.permute.xlu0 0
  %6294 = vperm.xlu0 %6293, %v5961
  %v6295 = vpop.permute.xlu0 %6294
  %6296 = vset.pattern.permute.xlu0 0
  %6297 = vperm.xlu0 %6296, %v5962
  %v6298 = vpop.permute.xlu0 %6297
  %6299 = vset.pattern.permute.xlu0 0
  %6300 = vperm.xlu0 %6299, %v5963
  %v6301 = vpop.permute.xlu0 %6300
  %6302 = vset.pattern.permute.xlu0 0
  %6303 = vperm.xlu0 %6302, %v5964
  %v6304 = vpop.permute.xlu0 %6303
  %6305 = vset.pattern.permute.xlu0 0
  %6306 = vperm.xlu0 %6305, %v5965
  %v6307 = vpop.permute.xlu0 %6306
  %6308 = vset.pattern.permute.xlu0 0
  %6309 = vperm.xlu0 %6308, %v5966
  %v6310 = vpop.permute.xlu0 %6309
  %6311 = vset.pattern.permute.xlu0 0
  %6312 = vperm.xlu0 %6311, %v5967
  %v6313 = vpop.permute.xlu0 %6312
  %6314 = vset.pattern.permute.xlu0 0
  %6315 = vperm.xlu0 %6314, %v5968
  %v6316 = vpop.permute.xlu0 %6315
  %6317 = vset.pattern.permute.xlu0 0
  %6318 = vperm.xlu0 %6317, %v5969
  %v6319 = vpop.permute.xlu0 %6318
  %6320 = vset.pattern.permute.xlu0 0
  %6321 = vperm.xlu0 %6320, %v5970
  %v6322 = vpop.permute.xlu0 %6321
  %6323 = vset.pattern.permute.xlu0 0
  %6324 = vperm.xlu0 %6323, %v5971
  %v6325 = vpop.permute.xlu0 %6324
  %6326 = vset.pattern.permute.xlu0 0
  %6327 = vperm.xlu0 %6326, %v5972
  %v6328 = vpop.permute.xlu0 %6327
  %6329 = vset.pattern.permute.xlu0 0
  %6330 = vperm.xlu0 %6329, %v5973
  %v6331 = vpop.permute.xlu0 %6330
  %6332 = vset.pattern.permute.xlu0 0
  %6333 = vperm.xlu0 %6332, %v5974
  %v6334 = vpop.permute.xlu0 %6333
  %6335 = vset.pattern.permute.xlu0 0
  %6336 = vperm.xlu0 %6335, %v5975
  %v6337 = vpop.permute.xlu0 %6336
  %6338 = vset.pattern.permute.xlu0 0
  %6339 = vperm.xlu0 %6338, %v5976
  %v6340 = vpop.permute.xlu0 %6339
  %6341 = vset.pattern.permute.xlu0 0
  %6342 = vperm.xlu0 %6341, %v5977
  %v6343 = vpop.permute.xlu0 %6342
  %6344 = vset.pattern.permute.xlu0 0
  %6345 = vperm.xlu0 %6344, %v5978
  %v6346 = vpop.permute.xlu0 %6345
  %6347 = vset.pattern.permute.xlu0 0
  %6348 = vperm.xlu0 %6347, %v5979
  %v6349 = vpop.permute.xlu0 %6348
  %6350 = vset.pattern.permute.xlu0 0
  %6351 = vperm.xlu0 %6350, %v5980
  %v6352 = vpop.permute.xlu0 %6351
  %6353 = vset.pattern.permute.xlu0 0
  %6354 = vperm.xlu0 %6353, %v5981
  %v6355 = vpop.permute.xlu0 %6354
  %6356 = vset.pattern.permute.xlu0 0
  %6357 = vperm.xlu0 %6356, %v5982
  %v6358 = vpop.permute.xlu0 %6357
  %6359 = vset.pattern.permute.xlu0 0
  %6360 = vperm.xlu0 %6359, %v5983
  %v6361 = vpop.permute.xlu0 %6360
  %6362 = vset.pattern.permute.xlu0 0
  %6363 = vperm.xlu0 %6362, %v5984
  %v6364 = vpop.permute.xlu0 %6363
  %6365 = vset.pattern.permute.xlu0 0
  %6366 = vperm.xlu0 %6365, %v5985
  %v6367 = vpop.permute.xlu0 %6366
  %6368 = vset.pattern.permute.xlu0 0
  %6369 = vperm.xlu0 %6368, %v5986
  %v6370 = vpop.permute.xlu0 %6369
  %6371 = vset.pattern.permute.xlu0 0
  %6372 = vperm.xlu0 %6371, %v5987
  %v6373 = vpop.permute.xlu0 %6372
  %6374 = vset.pattern.permute.xlu0 0
  %6375 = vperm.xlu0 %6374, %v5988
  %v6376 = vpop.permute.xlu0 %6375
  %6377 = vset.pattern.permute.xlu0 0
  %6378 = vperm.xlu0 %6377, %v5989
  %v6379 = vpop.permute.xlu0 %6378
  %6380 = vset.pattern.permute.xlu0 0
  %6381 = vperm.xlu0 %6380, %v5990
  %v6382 = vpop.permute.xlu0 %6381
  %6383 = vset.pattern.permute.xlu0 0
  %6384 = vperm.xlu0 %6383, %v5991
  %v6385 = vpop.permute.xlu0 %6384
  %6386 = vset.pattern.permute.xlu0 0
  %6387 = vperm.xlu0 %6386, %v5992
  %v6388 = vpop.permute.xlu0 %6387
  %6389 = vset.pattern.permute.xlu0 0
  %6390 = vperm.xlu0 %6389, %v5993
  %v6391 = vpop.permute.xlu0 %6390
  %6392 = vset.pattern.permute.xlu0 0
  %6393 = vperm.xlu0 %6392, %v5994
  %v6394 = vpop.permute.xlu0 %6393
  %6395 = vset.pattern.permute.xlu0 0
  %6396 = vperm.xlu0 %6395, %v5995
  %v6397 = vpop.permute.xlu0 %6396
  %6398 = vset.pattern.permute.xlu0 0
  %6399 = vperm.xlu0 %6398, %v5996
  %v6400 = vpop.permute.xlu0 %6399
  %6401 = vset.pattern.permute.xlu0 0
  %6402 = vperm.xlu0 %6401, %v5997
  %v6403 = vpop.permute.xlu0 %6402
  %6404 = vset.pattern.permute.xlu0 0
  %6405 = vperm.xlu0 %6404, %v5998
  %v6406 = vpop.permute.xlu0 %6405
  %6407 = vset.pattern.permute.xlu0 0
  %6408 = vperm.xlu0 %6407, %v5999
  %v6409 = vpop.permute.xlu0 %6408
  %6410 = vset.pattern.permute.xlu0 0
  %6411 = vperm.xlu0 %6410, %v6000
  %v6412 = vpop.permute.xlu0 %6411
  %6413 = vset.pattern.permute.xlu0 0
  %6414 = vperm.xlu0 %6413, %v6001
  %v6415 = vpop.permute.xlu0 %6414
  %6416 = vset.pattern.permute.xlu0 0
  %6417 = vperm.xlu0 %6416, %v6002
  %v6418 = vpop.permute.xlu0 %6417
  %6419 = vset.pattern.permute.xlu0 0
  %6420 = vperm.xlu0 %6419, %v6003
  %v6421 = vpop.permute.xlu0 %6420
  %6422 = vset.pattern.permute.xlu0 0
  %6423 = vperm.xlu0 %6422, %v6004
  %v6424 = vpop.permute.xlu0 %6423
  %6425 = vset.pattern.permute.xlu0 0
  %6426 = vperm.xlu0 %6425, %v6005
  %v6427 = vpop.permute.xlu0 %6426
  %6428 = vset.pattern.permute.xlu0 0
  %6429 = vperm.xlu0 %6428, %v6006
  %v6430 = vpop.permute.xlu0 %6429
  %6431 = vset.pattern.permute.xlu0 0
  %6432 = vperm.xlu0 %6431, %v6007
  %v6433 = vpop.permute.xlu0 %6432
  %6434 = vset.pattern.permute.xlu0 0
  %6435 = vperm.xlu0 %6434, %v6008
  %v6436 = vpop.permute.xlu0 %6435
  %6437 = vset.pattern.permute.xlu0 0
  %6438 = vperm.xlu0 %6437, %v6009
  %v6439 = vpop.permute.xlu0 %6438
  %6440 = vset.pattern.permute.xlu0 0
  %6441 = vperm.xlu0 %6440, %v6010
  %v6442 = vpop.permute.xlu0 %6441
  %6443 = vset.pattern.permute.xlu0 0
  %6444 = vperm.xlu0 %6443, %v6011
  %v6445 = vpop.permute.xlu0 %6444
  %6446 = vset.pattern.permute.xlu0 0
  %6447 = vperm.xlu0 %6446, %v6012
  %v6448 = vpop.permute.xlu0 %6447
  %6449 = vset.pattern.permute.xlu0 0
  %6450 = vperm.xlu0 %6449, %v6013
  %v6451 = vpop.permute.xlu0 %6450
  %6452 = vset.pattern.permute.xlu0 0
  %6453 = vperm.xlu0 %6452, %v6014
  %v6454 = vpop.permute.xlu0 %6453
  %6455 = vset.pattern.permute.xlu0 0
  %6456 = vperm.xlu0 %6455, %v6015
  %v6457 = vpop.permute.xlu0 %6456
  %6458 = vset.pattern.permute.xlu0 0
  %6459 = vperm.xlu0 %6458, %v6016
  %v6460 = vpop.permute.xlu0 %6459
  %6461 = vset.pattern.permute.xlu0 0
  %6462 = vperm.xlu0 %6461, %v6017
  %v6463 = vpop.permute.xlu0 %6462
  %6464 = vset.pattern.permute.xlu0 0
  %6465 = vperm.xlu0 %6464, %v6018
  %v6466 = vpop.permute.xlu0 %6465
  %6467 = vset.pattern.permute.xlu0 0
  %6468 = vperm.xlu0 %6467, %v6019
  %v6469 = vpop.permute.xlu0 %6468
  %6470 = vset.pattern.permute.xlu0 0
  %6471 = vperm.xlu0 %6470, %v6020
  %v6472 = vpop.permute.xlu0 %6471
  %6473 = vset.pattern.permute.xlu0 0
  %6474 = vperm.xlu0 %6473, %v6021
  %v6475 = vpop.permute.xlu0 %6474
  %6476 = vset.pattern.permute.xlu0 0
  %6477 = vperm.xlu0 %6476, %v6022
  %v6478 = vpop.permute.xlu0 %6477
  %6479 = vset.pattern.permute.xlu0 0
  %6480 = vperm.xlu0 %6479, %v6023
  %v6481 = vpop.permute.xlu0 %6480
  %6482 = vset.pattern.permute.xlu0 0
  %6483 = vperm.xlu0 %6482, %v6024
  %v6484 = vpop.permute.xlu0 %6483
  %6485 = vset.pattern.permute.xlu0 0
  %6486 = vperm.xlu0 %6485, %v6025
  %v6487 = vpop.permute.xlu0 %6486
  %6488 = vset.pattern.permute.xlu0 0
  %6489 = vperm.xlu0 %6488, %v6026
  %v6490 = vpop.permute.xlu0 %6489
  %6491 = vset.pattern.permute.xlu0 0
  %6492 = vperm.xlu0 %6491, %v6027
  %v6493 = vpop.permute.xlu0 %6492
  %6494 = vset.pattern.permute.xlu0 0
  %6495 = vperm.xlu0 %6494, %v6028
  %v6496 = vpop.permute.xlu0 %6495
  %6497 = vset.pattern.permute.xlu0 0
  %6498 = vperm.xlu0 %6497, %v6029
  %v6499 = vpop.permute.xlu0 %6498
  %6500 = vset.pattern.permute.xlu0 0
  %6501 = vperm.xlu0 %6500, %v6030
  %v6502 = vpop.permute.xlu0 %6501
  %6503 = vset.pattern.permute.xlu0 0
  %6504 = vperm.xlu0 %6503, %v6031
  %v6505 = vpop.permute.xlu0 %6504
  %6506 = vset.pattern.permute.xlu0 0
  %6507 = vperm.xlu0 %6506, %v6032
  %v6508 = vpop.permute.xlu0 %6507
  %6509 = vset.pattern.permute.xlu0 0
  %6510 = vperm.xlu0 %6509, %v6033
  %v6511 = vpop.permute.xlu0 %6510
  %6512 = vset.pattern.permute.xlu0 0
  %6513 = vperm.xlu0 %6512, %v6034
  %v6514 = vpop.permute.xlu0 %6513
  %6515 = vset.pattern.permute.xlu0 0
  %6516 = vperm.xlu0 %6515, %v6035
  %v6517 = vpop.permute.xlu0 %6516
  %6518 = vset.pattern.permute.xlu0 0
  %6519 = vperm.xlu0 %6518, %v6036
  %v6520 = vpop.permute.xlu0 %6519
  %6521 = vset.pattern.permute.xlu0 0
  %6522 = vperm.xlu0 %6521, %v6037
  %v6523 = vpop.permute.xlu0 %6522
  %6524 = vset.pattern.permute.xlu0 0
  %6525 = vperm.xlu0 %6524, %v6038
  %v6526 = vpop.permute.xlu0 %6525
  %6527 = vset.pattern.permute.xlu0 0
  %6528 = vperm.xlu0 %6527, %v6039
  %v6529 = vpop.permute.xlu0 %6528
  %6530 = vset.pattern.permute.xlu0 0
  %6531 = vperm.xlu0 %6530, %v6040
  %v6532 = vpop.permute.xlu0 %6531
  %6533 = vset.pattern.permute.xlu0 0
  %6534 = vperm.xlu0 %6533, %v6041
  %v6535 = vpop.permute.xlu0 %6534
  %6536 = vset.pattern.permute.xlu0 0
  %6537 = vperm.xlu0 %6536, %v6042
  %v6538 = vpop.permute.xlu0 %6537
  %6539 = vset.pattern.permute.xlu0 0
  %6540 = vperm.xlu0 %6539, %v6043
  %v6541 = vpop.permute.xlu0 %6540
  %6542 = vset.pattern.permute.xlu0 0
  %6543 = vperm.xlu0 %6542, %v6044
  %v6544 = vpop.permute.xlu0 %6543
  %6545 = vset.pattern.permute.xlu0 0
  %6546 = vperm.xlu0 %6545, %v6045
  %v6547 = vpop.permute.xlu0 %6546
  %6548 = vset.pattern.permute.xlu0 0
  %6549 = vperm.xlu0 %6548, %v6046
  %v6550 = vpop.permute.xlu0 %6549
  %6551 = vset.pattern.permute.xlu0 0
  %6552 = vperm.xlu0 %6551, %v6047
  %v6553 = vpop.permute.xlu0 %6552
  %6554 = vset.pattern.permute.xlu0 0
  %6555 = vperm.xlu0 %6554, %v6048
  %v6556 = vpop.permute.xlu0 %6555
  %6557 = vset.pattern.permute.xlu0 0
  %6558 = vperm.xlu0 %6557, %v6049
  %v6559 = vpop.permute.xlu0 %6558
  %6560 = vset.pattern.permute.xlu0 0
  %6561 = vperm.xlu0 %6560, %v6050
  %v6562 = vpop.permute.xlu0 %6561
  %v6563 = vlaneseq
  %v6564 = vshrl.u32 %v6563, 7
  %v6565 = vsub.s32 %v2364, %v6564
  %v6566 = vrot.slane %v6181, %v6565
  %v6567 = vlaneseq
  %v6568 = vshrl.u32 %v6567, 7
  %v6569 = vsub.s32 %v2369, %v6568
  %v6570 = vrot.slane %v6184, %v6569
  %v6571 = vsel %vm2374, %v6570, %v6566
  %v6572 = vlaneseq
  %v6573 = vshrl.u32 %v6572, 7
  %v6574 = vsub.s32 %v2364, %v6573
  %v6575 = vrot.slane %v6187, %v6574
  %v6576 = vlaneseq
  %v6577 = vshrl.u32 %v6576, 7
  %v6578 = vsub.s32 %v2369, %v6577
  %v6579 = vrot.slane %v6190, %v6578
  %v6580 = vsel %vm2374, %v6579, %v6575
  %v6581 = vlaneseq
  %v6582 = vshrl.u32 %v6581, 7
  %v6583 = vsub.s32 %v2364, %v6582
  %v6584 = vrot.slane %v6193, %v6583
  %v6585 = vlaneseq
  %v6586 = vshrl.u32 %v6585, 7
  %v6587 = vsub.s32 %v2369, %v6586
  %v6588 = vrot.slane %v6196, %v6587
  %v6589 = vsel %vm2374, %v6588, %v6584
  %v6590 = vlaneseq
  %v6591 = vshrl.u32 %v6590, 7
  %v6592 = vsub.s32 %v2364, %v6591
  %v6593 = vrot.slane %v6199, %v6592
  %v6594 = vlaneseq
  %v6595 = vshrl.u32 %v6594, 7
  %v6596 = vsub.s32 %v2369, %v6595
  %v6597 = vrot.slane %v6202, %v6596
  %v6598 = vsel %vm2374, %v6597, %v6593
  %v6599 = vlaneseq
  %v6600 = vshrl.u32 %v6599, 7
  %v6601 = vsub.s32 %v2364, %v6600
  %v6602 = vrot.slane %v6205, %v6601
  %v6603 = vlaneseq
  %v6604 = vshrl.u32 %v6603, 7
  %v6605 = vsub.s32 %v2369, %v6604
  %v6606 = vrot.slane %v6208, %v6605
  %v6607 = vsel %vm2374, %v6606, %v6602
  %v6608 = vlaneseq
  %v6609 = vshrl.u32 %v6608, 7
  %v6610 = vsub.s32 %v2364, %v6609
  %v6611 = vrot.slane %v6211, %v6610
  %v6612 = vlaneseq
  %v6613 = vshrl.u32 %v6612, 7
  %v6614 = vsub.s32 %v2369, %v6613
  %v6615 = vrot.slane %v6214, %v6614
  %v6616 = vsel %vm2374, %v6615, %v6611
  %v6617 = vlaneseq
  %v6618 = vshrl.u32 %v6617, 7
  %v6619 = vsub.s32 %v2364, %v6618
  %v6620 = vrot.slane %v6217, %v6619
  %v6621 = vlaneseq
  %v6622 = vshrl.u32 %v6621, 7
  %v6623 = vsub.s32 %v2369, %v6622
  %v6624 = vrot.slane %v6220, %v6623
  %v6625 = vsel %vm2374, %v6624, %v6620
  %v6626 = vlaneseq
  %v6627 = vshrl.u32 %v6626, 7
  %v6628 = vsub.s32 %v2364, %v6627
  %v6629 = vrot.slane %v6223, %v6628
  %v6630 = vlaneseq
  %v6631 = vshrl.u32 %v6630, 7
  %v6632 = vsub.s32 %v2369, %v6631
  %v6633 = vrot.slane %v6226, %v6632
  %v6634 = vsel %vm2374, %v6633, %v6629
  %v6635 = vlaneseq
  %v6636 = vshrl.u32 %v6635, 7
  %v6637 = vsub.s32 %v2364, %v6636
  %v6638 = vrot.slane %v6229, %v6637
  %v6639 = vlaneseq
  %v6640 = vshrl.u32 %v6639, 7
  %v6641 = vsub.s32 %v2369, %v6640
  %v6642 = vrot.slane %v6232, %v6641
  %v6643 = vsel %vm2374, %v6642, %v6638
  %v6644 = vlaneseq
  %v6645 = vshrl.u32 %v6644, 7
  %v6646 = vsub.s32 %v2364, %v6645
  %v6647 = vrot.slane %v6235, %v6646
  %v6648 = vlaneseq
  %v6649 = vshrl.u32 %v6648, 7
  %v6650 = vsub.s32 %v2369, %v6649
  %v6651 = vrot.slane %v6238, %v6650
  %v6652 = vsel %vm2374, %v6651, %v6647
  %v6653 = vlaneseq
  %v6654 = vshrl.u32 %v6653, 7
  %v6655 = vsub.s32 %v2364, %v6654
  %v6656 = vrot.slane %v6241, %v6655
  %v6657 = vlaneseq
  %v6658 = vshrl.u32 %v6657, 7
  %v6659 = vsub.s32 %v2369, %v6658
  %v6660 = vrot.slane %v6244, %v6659
  %v6661 = vsel %vm2374, %v6660, %v6656
  %v6662 = vlaneseq
  %v6663 = vshrl.u32 %v6662, 7
  %v6664 = vsub.s32 %v2364, %v6663
  %v6665 = vrot.slane %v6247, %v6664
  %v6666 = vlaneseq
  %v6667 = vshrl.u32 %v6666, 7
  %v6668 = vsub.s32 %v2369, %v6667
  %v6669 = vrot.slane %v6250, %v6668
  %v6670 = vsel %vm2374, %v6669, %v6665
  %v6671 = vlaneseq
  %v6672 = vshrl.u32 %v6671, 7
  %v6673 = vsub.s32 %v2364, %v6672
  %v6674 = vrot.slane %v6253, %v6673
  %v6675 = vlaneseq
  %v6676 = vshrl.u32 %v6675, 7
  %v6677 = vsub.s32 %v2369, %v6676
  %v6678 = vrot.slane %v6256, %v6677
  %v6679 = vsel %vm2374, %v6678, %v6674
  %v6680 = vlaneseq
  %v6681 = vshrl.u32 %v6680, 7
  %v6682 = vsub.s32 %v2364, %v6681
  %v6683 = vrot.slane %v6259, %v6682
  %v6684 = vlaneseq
  %v6685 = vshrl.u32 %v6684, 7
  %v6686 = vsub.s32 %v2369, %v6685
  %v6687 = vrot.slane %v6262, %v6686
  %v6688 = vsel %vm2374, %v6687, %v6683
  %v6689 = vlaneseq
  %v6690 = vshrl.u32 %v6689, 7
  %v6691 = vsub.s32 %v2364, %v6690
  %v6692 = vrot.slane %v6265, %v6691
  %v6693 = vlaneseq
  %v6694 = vshrl.u32 %v6693, 7
  %v6695 = vsub.s32 %v2369, %v6694
  %v6696 = vrot.slane %v6268, %v6695
  %v6697 = vsel %vm2374, %v6696, %v6692
  %v6698 = vlaneseq
  %v6699 = vshrl.u32 %v6698, 7
  %v6700 = vsub.s32 %v2364, %v6699
  %v6701 = vrot.slane %v6271, %v6700
  %v6702 = vlaneseq
  %v6703 = vshrl.u32 %v6702, 7
  %v6704 = vsub.s32 %v2369, %v6703
  %v6705 = vrot.slane %v6274, %v6704
  %v6706 = vsel %vm2374, %v6705, %v6701
  %v6707 = vlaneseq
  %v6708 = vshrl.u32 %v6707, 7
  %v6709 = vsub.s32 %v2364, %v6708
  %v6710 = vrot.slane %v6277, %v6709
  %v6711 = vlaneseq
  %v6712 = vshrl.u32 %v6711, 7
  %v6713 = vsub.s32 %v2369, %v6712
  %v6714 = vrot.slane %v6280, %v6713
  %v6715 = vsel %vm2374, %v6714, %v6710
  %v6716 = vlaneseq
  %v6717 = vshrl.u32 %v6716, 7
  %v6718 = vsub.s32 %v2364, %v6717
  %v6719 = vrot.slane %v6283, %v6718
  %v6720 = vlaneseq
  %v6721 = vshrl.u32 %v6720, 7
  %v6722 = vsub.s32 %v2369, %v6721
  %v6723 = vrot.slane %v6286, %v6722
  %v6724 = vsel %vm2374, %v6723, %v6719
  %v6725 = vlaneseq
  %v6726 = vshrl.u32 %v6725, 7
  %v6727 = vsub.s32 %v2364, %v6726
  %v6728 = vrot.slane %v6289, %v6727
  %v6729 = vlaneseq
  %v6730 = vshrl.u32 %v6729, 7
  %v6731 = vsub.s32 %v2369, %v6730
  %v6732 = vrot.slane %v6292, %v6731
  %v6733 = vsel %vm2374, %v6732, %v6728
  %v6734 = vlaneseq
  %v6735 = vshrl.u32 %v6734, 7
  %v6736 = vsub.s32 %v2364, %v6735
  %v6737 = vrot.slane %v6295, %v6736
  %v6738 = vlaneseq
  %v6739 = vshrl.u32 %v6738, 7
  %v6740 = vsub.s32 %v2369, %v6739
  %v6741 = vrot.slane %v6298, %v6740
  %v6742 = vsel %vm2374, %v6741, %v6737
  %v6743 = vlaneseq
  %v6744 = vshrl.u32 %v6743, 7
  %v6745 = vsub.s32 %v2364, %v6744
  %v6746 = vrot.slane %v6301, %v6745
  %v6747 = vlaneseq
  %v6748 = vshrl.u32 %v6747, 7
  %v6749 = vsub.s32 %v2369, %v6748
  %v6750 = vrot.slane %v6304, %v6749
  %v6751 = vsel %vm2374, %v6750, %v6746
  %v6752 = vlaneseq
  %v6753 = vshrl.u32 %v6752, 7
  %v6754 = vsub.s32 %v2364, %v6753
  %v6755 = vrot.slane %v6307, %v6754
  %v6756 = vlaneseq
  %v6757 = vshrl.u32 %v6756, 7
  %v6758 = vsub.s32 %v2369, %v6757
  %v6759 = vrot.slane %v6310, %v6758
  %v6760 = vsel %vm2374, %v6759, %v6755
  %v6761 = vlaneseq
  %v6762 = vshrl.u32 %v6761, 7
  %v6763 = vsub.s32 %v2364, %v6762
  %v6764 = vrot.slane %v6313, %v6763
  %v6765 = vlaneseq
  %v6766 = vshrl.u32 %v6765, 7
  %v6767 = vsub.s32 %v2369, %v6766
  %v6768 = vrot.slane %v6316, %v6767
  %v6769 = vsel %vm2374, %v6768, %v6764
  %v6770 = vlaneseq
  %v6771 = vshrl.u32 %v6770, 7
  %v6772 = vsub.s32 %v2364, %v6771
  %v6773 = vrot.slane %v6319, %v6772
  %v6774 = vlaneseq
  %v6775 = vshrl.u32 %v6774, 7
  %v6776 = vsub.s32 %v2369, %v6775
  %v6777 = vrot.slane %v6322, %v6776
  %v6778 = vsel %vm2374, %v6777, %v6773
  %v6779 = vlaneseq
  %v6780 = vshrl.u32 %v6779, 7
  %v6781 = vsub.s32 %v2364, %v6780
  %v6782 = vrot.slane %v6325, %v6781
  %v6783 = vlaneseq
  %v6784 = vshrl.u32 %v6783, 7
  %v6785 = vsub.s32 %v2369, %v6784
  %v6786 = vrot.slane %v6328, %v6785
  %v6787 = vsel %vm2374, %v6786, %v6782
  %v6788 = vlaneseq
  %v6789 = vshrl.u32 %v6788, 7
  %v6790 = vsub.s32 %v2364, %v6789
  %v6791 = vrot.slane %v6331, %v6790
  %v6792 = vlaneseq
  %v6793 = vshrl.u32 %v6792, 7
  %v6794 = vsub.s32 %v2369, %v6793
  %v6795 = vrot.slane %v6334, %v6794
  %v6796 = vsel %vm2374, %v6795, %v6791
  %v6797 = vlaneseq
  %v6798 = vshrl.u32 %v6797, 7
  %v6799 = vsub.s32 %v2364, %v6798
  %v6800 = vrot.slane %v6337, %v6799
  %v6801 = vlaneseq
  %v6802 = vshrl.u32 %v6801, 7
  %v6803 = vsub.s32 %v2369, %v6802
  %v6804 = vrot.slane %v6340, %v6803
  %v6805 = vsel %vm2374, %v6804, %v6800
  %v6806 = vlaneseq
  %v6807 = vshrl.u32 %v6806, 7
  %v6808 = vsub.s32 %v2364, %v6807
  %v6809 = vrot.slane %v6343, %v6808
  %v6810 = vlaneseq
  %v6811 = vshrl.u32 %v6810, 7
  %v6812 = vsub.s32 %v2369, %v6811
  %v6813 = vrot.slane %v6346, %v6812
  %v6814 = vsel %vm2374, %v6813, %v6809
  %v6815 = vlaneseq
  %v6816 = vshrl.u32 %v6815, 7
  %v6817 = vsub.s32 %v2364, %v6816
  %v6818 = vrot.slane %v6349, %v6817
  %v6819 = vlaneseq
  %v6820 = vshrl.u32 %v6819, 7
  %v6821 = vsub.s32 %v2369, %v6820
  %v6822 = vrot.slane %v6352, %v6821
  %v6823 = vsel %vm2374, %v6822, %v6818
  %v6824 = vlaneseq
  %v6825 = vshrl.u32 %v6824, 7
  %v6826 = vsub.s32 %v2364, %v6825
  %v6827 = vrot.slane %v6355, %v6826
  %v6828 = vlaneseq
  %v6829 = vshrl.u32 %v6828, 7
  %v6830 = vsub.s32 %v2369, %v6829
  %v6831 = vrot.slane %v6358, %v6830
  %v6832 = vsel %vm2374, %v6831, %v6827
  %v6833 = vlaneseq
  %v6834 = vshrl.u32 %v6833, 7
  %v6835 = vsub.s32 %v2364, %v6834
  %v6836 = vrot.slane %v6361, %v6835
  %v6837 = vlaneseq
  %v6838 = vshrl.u32 %v6837, 7
  %v6839 = vsub.s32 %v2369, %v6838
  %v6840 = vrot.slane %v6364, %v6839
  %v6841 = vsel %vm2374, %v6840, %v6836
  %v6842 = vlaneseq
  %v6843 = vshrl.u32 %v6842, 7
  %v6844 = vsub.s32 %v2364, %v6843
  %v6845 = vrot.slane %v6367, %v6844
  %v6846 = vlaneseq
  %v6847 = vshrl.u32 %v6846, 7
  %v6848 = vsub.s32 %v2369, %v6847
  %v6849 = vrot.slane %v6370, %v6848
  %v6850 = vsel %vm2374, %v6849, %v6845
  %v6851 = vlaneseq
  %v6852 = vshrl.u32 %v6851, 7
  %v6853 = vsub.s32 %v2364, %v6852
  %v6854 = vrot.slane %v6373, %v6853
  %v6855 = vlaneseq
  %v6856 = vshrl.u32 %v6855, 7
  %v6857 = vsub.s32 %v2369, %v6856
  %v6858 = vrot.slane %v6376, %v6857
  %v6859 = vsel %vm2374, %v6858, %v6854
  %v6860 = vlaneseq
  %v6861 = vshrl.u32 %v6860, 7
  %v6862 = vsub.s32 %v2364, %v6861
  %v6863 = vrot.slane %v6379, %v6862
  %v6864 = vlaneseq
  %v6865 = vshrl.u32 %v6864, 7
  %v6866 = vsub.s32 %v2369, %v6865
  %v6867 = vrot.slane %v6382, %v6866
  %v6868 = vsel %vm2374, %v6867, %v6863
  %v6869 = vlaneseq
  %v6870 = vshrl.u32 %v6869, 7
  %v6871 = vsub.s32 %v2364, %v6870
  %v6872 = vrot.slane %v6385, %v6871
  %v6873 = vlaneseq
  %v6874 = vshrl.u32 %v6873, 7
  %v6875 = vsub.s32 %v2369, %v6874
  %v6876 = vrot.slane %v6388, %v6875
  %v6877 = vsel %vm2374, %v6876, %v6872
  %v6878 = vlaneseq
  %v6879 = vshrl.u32 %v6878, 7
  %v6880 = vsub.s32 %v2364, %v6879
  %v6881 = vrot.slane %v6391, %v6880
  %v6882 = vlaneseq
  %v6883 = vshrl.u32 %v6882, 7
  %v6884 = vsub.s32 %v2369, %v6883
  %v6885 = vrot.slane %v6394, %v6884
  %v6886 = vsel %vm2374, %v6885, %v6881
  %v6887 = vlaneseq
  %v6888 = vshrl.u32 %v6887, 7
  %v6889 = vsub.s32 %v2364, %v6888
  %v6890 = vrot.slane %v6397, %v6889
  %v6891 = vlaneseq
  %v6892 = vshrl.u32 %v6891, 7
  %v6893 = vsub.s32 %v2369, %v6892
  %v6894 = vrot.slane %v6400, %v6893
  %v6895 = vsel %vm2374, %v6894, %v6890
  %v6896 = vlaneseq
  %v6897 = vshrl.u32 %v6896, 7
  %v6898 = vsub.s32 %v2364, %v6897
  %v6899 = vrot.slane %v6403, %v6898
  %v6900 = vlaneseq
  %v6901 = vshrl.u32 %v6900, 7
  %v6902 = vsub.s32 %v2369, %v6901
  %v6903 = vrot.slane %v6406, %v6902
  %v6904 = vsel %vm2374, %v6903, %v6899
  %v6905 = vlaneseq
  %v6906 = vshrl.u32 %v6905, 7
  %v6907 = vsub.s32 %v2364, %v6906
  %v6908 = vrot.slane %v6409, %v6907
  %v6909 = vlaneseq
  %v6910 = vshrl.u32 %v6909, 7
  %v6911 = vsub.s32 %v2369, %v6910
  %v6912 = vrot.slane %v6412, %v6911
  %v6913 = vsel %vm2374, %v6912, %v6908
  %v6914 = vlaneseq
  %v6915 = vshrl.u32 %v6914, 7
  %v6916 = vsub.s32 %v2364, %v6915
  %v6917 = vrot.slane %v6415, %v6916
  %v6918 = vlaneseq
  %v6919 = vshrl.u32 %v6918, 7
  %v6920 = vsub.s32 %v2369, %v6919
  %v6921 = vrot.slane %v6418, %v6920
  %v6922 = vsel %vm2374, %v6921, %v6917
  %v6923 = vlaneseq
  %v6924 = vshrl.u32 %v6923, 7
  %v6925 = vsub.s32 %v2364, %v6924
  %v6926 = vrot.slane %v6421, %v6925
  %v6927 = vlaneseq
  %v6928 = vshrl.u32 %v6927, 7
  %v6929 = vsub.s32 %v2369, %v6928
  %v6930 = vrot.slane %v6424, %v6929
  %v6931 = vsel %vm2374, %v6930, %v6926
  %v6932 = vlaneseq
  %v6933 = vshrl.u32 %v6932, 7
  %v6934 = vsub.s32 %v2364, %v6933
  %v6935 = vrot.slane %v6427, %v6934
  %v6936 = vlaneseq
  %v6937 = vshrl.u32 %v6936, 7
  %v6938 = vsub.s32 %v2369, %v6937
  %v6939 = vrot.slane %v6430, %v6938
  %v6940 = vsel %vm2374, %v6939, %v6935
  %v6941 = vlaneseq
  %v6942 = vshrl.u32 %v6941, 7
  %v6943 = vsub.s32 %v2364, %v6942
  %v6944 = vrot.slane %v6433, %v6943
  %v6945 = vlaneseq
  %v6946 = vshrl.u32 %v6945, 7
  %v6947 = vsub.s32 %v2369, %v6946
  %v6948 = vrot.slane %v6436, %v6947
  %v6949 = vsel %vm2374, %v6948, %v6944
  %v6950 = vlaneseq
  %v6951 = vshrl.u32 %v6950, 7
  %v6952 = vsub.s32 %v2364, %v6951
  %v6953 = vrot.slane %v6439, %v6952
  %v6954 = vlaneseq
  %v6955 = vshrl.u32 %v6954, 7
  %v6956 = vsub.s32 %v2369, %v6955
  %v6957 = vrot.slane %v6442, %v6956
  %v6958 = vsel %vm2374, %v6957, %v6953
  %v6959 = vlaneseq
  %v6960 = vshrl.u32 %v6959, 7
  %v6961 = vsub.s32 %v2364, %v6960
  %v6962 = vrot.slane %v6445, %v6961
  %v6963 = vlaneseq
  %v6964 = vshrl.u32 %v6963, 7
  %v6965 = vsub.s32 %v2369, %v6964
  %v6966 = vrot.slane %v6448, %v6965
  %v6967 = vsel %vm2374, %v6966, %v6962
  %v6968 = vlaneseq
  %v6969 = vshrl.u32 %v6968, 7
  %v6970 = vsub.s32 %v2364, %v6969
  %v6971 = vrot.slane %v6451, %v6970
  %v6972 = vlaneseq
  %v6973 = vshrl.u32 %v6972, 7
  %v6974 = vsub.s32 %v2369, %v6973
  %v6975 = vrot.slane %v6454, %v6974
  %v6976 = vsel %vm2374, %v6975, %v6971
  %v6977 = vlaneseq
  %v6978 = vshrl.u32 %v6977, 7
  %v6979 = vsub.s32 %v2364, %v6978
  %v6980 = vrot.slane %v6457, %v6979
  %v6981 = vlaneseq
  %v6982 = vshrl.u32 %v6981, 7
  %v6983 = vsub.s32 %v2369, %v6982
  %v6984 = vrot.slane %v6460, %v6983
  %v6985 = vsel %vm2374, %v6984, %v6980
  %v6986 = vlaneseq
  %v6987 = vshrl.u32 %v6986, 7
  %v6988 = vsub.s32 %v2364, %v6987
  %v6989 = vrot.slane %v6463, %v6988
  %v6990 = vlaneseq
  %v6991 = vshrl.u32 %v6990, 7
  %v6992 = vsub.s32 %v2369, %v6991
  %v6993 = vrot.slane %v6466, %v6992
  %v6994 = vsel %vm2374, %v6993, %v6989
  %v6995 = vlaneseq
  %v6996 = vshrl.u32 %v6995, 7
  %v6997 = vsub.s32 %v2364, %v6996
  %v6998 = vrot.slane %v6469, %v6997
  %v6999 = vlaneseq
  %v7000 = vshrl.u32 %v6999, 7
  %v7001 = vsub.s32 %v2369, %v7000
  %v7002 = vrot.slane %v6472, %v7001
  %v7003 = vsel %vm2374, %v7002, %v6998
  %v7004 = vlaneseq
  %v7005 = vshrl.u32 %v7004, 7
  %v7006 = vsub.s32 %v2364, %v7005
  %v7007 = vrot.slane %v6475, %v7006
  %v7008 = vlaneseq
  %v7009 = vshrl.u32 %v7008, 7
  %v7010 = vsub.s32 %v2369, %v7009
  %v7011 = vrot.slane %v6478, %v7010
  %v7012 = vsel %vm2374, %v7011, %v7007
  %v7013 = vlaneseq
  %v7014 = vshrl.u32 %v7013, 7
  %v7015 = vsub.s32 %v2364, %v7014
  %v7016 = vrot.slane %v6481, %v7015
  %v7017 = vlaneseq
  %v7018 = vshrl.u32 %v7017, 7
  %v7019 = vsub.s32 %v2369, %v7018
  %v7020 = vrot.slane %v6484, %v7019
  %v7021 = vsel %vm2374, %v7020, %v7016
  %v7022 = vlaneseq
  %v7023 = vshrl.u32 %v7022, 7
  %v7024 = vsub.s32 %v2364, %v7023
  %v7025 = vrot.slane %v6487, %v7024
  %v7026 = vlaneseq
  %v7027 = vshrl.u32 %v7026, 7
  %v7028 = vsub.s32 %v2369, %v7027
  %v7029 = vrot.slane %v6490, %v7028
  %v7030 = vsel %vm2374, %v7029, %v7025
  %v7031 = vlaneseq
  %v7032 = vshrl.u32 %v7031, 7
  %v7033 = vsub.s32 %v2364, %v7032
  %v7034 = vrot.slane %v6493, %v7033
  %v7035 = vlaneseq
  %v7036 = vshrl.u32 %v7035, 7
  %v7037 = vsub.s32 %v2369, %v7036
  %v7038 = vrot.slane %v6496, %v7037
  %v7039 = vsel %vm2374, %v7038, %v7034
  %v7040 = vlaneseq
  %v7041 = vshrl.u32 %v7040, 7
  %v7042 = vsub.s32 %v2364, %v7041
  %v7043 = vrot.slane %v6499, %v7042
  %v7044 = vlaneseq
  %v7045 = vshrl.u32 %v7044, 7
  %v7046 = vsub.s32 %v2369, %v7045
  %v7047 = vrot.slane %v6502, %v7046
  %v7048 = vsel %vm2374, %v7047, %v7043
  %v7049 = vlaneseq
  %v7050 = vshrl.u32 %v7049, 7
  %v7051 = vsub.s32 %v2364, %v7050
  %v7052 = vrot.slane %v6505, %v7051
  %v7053 = vlaneseq
  %v7054 = vshrl.u32 %v7053, 7
  %v7055 = vsub.s32 %v2369, %v7054
  %v7056 = vrot.slane %v6508, %v7055
  %v7057 = vsel %vm2374, %v7056, %v7052
  %v7058 = vlaneseq
  %v7059 = vshrl.u32 %v7058, 7
  %v7060 = vsub.s32 %v2364, %v7059
  %v7061 = vrot.slane %v6511, %v7060
  %v7062 = vlaneseq
  %v7063 = vshrl.u32 %v7062, 7
  %v7064 = vsub.s32 %v2369, %v7063
  %v7065 = vrot.slane %v6514, %v7064
  %v7066 = vsel %vm2374, %v7065, %v7061
  %v7067 = vlaneseq
  %v7068 = vshrl.u32 %v7067, 7
  %v7069 = vsub.s32 %v2364, %v7068
  %v7070 = vrot.slane %v6517, %v7069
  %v7071 = vlaneseq
  %v7072 = vshrl.u32 %v7071, 7
  %v7073 = vsub.s32 %v2369, %v7072
  %v7074 = vrot.slane %v6520, %v7073
  %v7075 = vsel %vm2374, %v7074, %v7070
  %v7076 = vlaneseq
  %v7077 = vshrl.u32 %v7076, 7
  %v7078 = vsub.s32 %v2364, %v7077
  %v7079 = vrot.slane %v6523, %v7078
  %v7080 = vlaneseq
  %v7081 = vshrl.u32 %v7080, 7
  %v7082 = vsub.s32 %v2369, %v7081
  %v7083 = vrot.slane %v6526, %v7082
  %v7084 = vsel %vm2374, %v7083, %v7079
  %v7085 = vlaneseq
  %v7086 = vshrl.u32 %v7085, 7
  %v7087 = vsub.s32 %v2364, %v7086
  %v7088 = vrot.slane %v6529, %v7087
  %v7089 = vlaneseq
  %v7090 = vshrl.u32 %v7089, 7
  %v7091 = vsub.s32 %v2369, %v7090
  %v7092 = vrot.slane %v6532, %v7091
  %v7093 = vsel %vm2374, %v7092, %v7088
  %v7094 = vlaneseq
  %v7095 = vshrl.u32 %v7094, 7
  %v7096 = vsub.s32 %v2364, %v7095
  %v7097 = vrot.slane %v6535, %v7096
  %v7098 = vlaneseq
  %v7099 = vshrl.u32 %v7098, 7
  %v7100 = vsub.s32 %v2369, %v7099
  %v7101 = vrot.slane %v6538, %v7100
  %v7102 = vsel %vm2374, %v7101, %v7097
  %v7103 = vlaneseq
  %v7104 = vshrl.u32 %v7103, 7
  %v7105 = vsub.s32 %v2364, %v7104
  %v7106 = vrot.slane %v6541, %v7105
  %v7107 = vlaneseq
  %v7108 = vshrl.u32 %v7107, 7
  %v7109 = vsub.s32 %v2369, %v7108
  %v7110 = vrot.slane %v6544, %v7109
  %v7111 = vsel %vm2374, %v7110, %v7106
  %v7112 = vlaneseq
  %v7113 = vshrl.u32 %v7112, 7
  %v7114 = vsub.s32 %v2364, %v7113
  %v7115 = vrot.slane %v6547, %v7114
  %v7116 = vlaneseq
  %v7117 = vshrl.u32 %v7116, 7
  %v7118 = vsub.s32 %v2369, %v7117
  %v7119 = vrot.slane %v6550, %v7118
  %v7120 = vsel %vm2374, %v7119, %v7115
  %v7121 = vlaneseq
  %v7122 = vshrl.u32 %v7121, 7
  %v7123 = vsub.s32 %v2364, %v7122
  %v7124 = vrot.slane %v6553, %v7123
  %v7125 = vlaneseq
  %v7126 = vshrl.u32 %v7125, 7
  %v7127 = vsub.s32 %v2369, %v7126
  %v7128 = vrot.slane %v6556, %v7127
  %v7129 = vsel %vm2374, %v7128, %v7124
  %v7130 = vlaneseq
  %v7131 = vshrl.u32 %v7130, 7
  %v7132 = vsub.s32 %v2364, %v7131
  %v7133 = vrot.slane %v6559, %v7132
  %v7134 = vlaneseq
  %v7135 = vshrl.u32 %v7134, 7
  %v7136 = vsub.s32 %v2369, %v7135
  %v7137 = vrot.slane %v6562, %v7136
  %v7138 = vsel %vm2374, %v7137, %v7133
  %v7139 = vsel %vm2943, %v6580, %v6571
  %v7140 = vsel %vm2945, %v6589, %v7139
  %v7141 = vsel %vm2947, %v6598, %v7140
  %v7142 = vsel %vm2949, %v6607, %v7141
  %v7143 = vsel %vm2951, %v6616, %v7142
  %v7144 = vsel %vm2953, %v6625, %v7143
  %v7145 = vsel %vm2955, %v6634, %v7144
  %v7146 = vsel %vm2943, %v6652, %v6643
  %v7147 = vsel %vm2945, %v6661, %v7146
  %v7148 = vsel %vm2947, %v6670, %v7147
  %v7149 = vsel %vm2949, %v6679, %v7148
  %v7150 = vsel %vm2951, %v6688, %v7149
  %v7151 = vsel %vm2953, %v6697, %v7150
  %v7152 = vsel %vm2955, %v6706, %v7151
  %v7153 = vsel %vm2943, %v6724, %v6715
  %v7154 = vsel %vm2945, %v6733, %v7153
  %v7155 = vsel %vm2947, %v6742, %v7154
  %v7156 = vsel %vm2949, %v6751, %v7155
  %v7157 = vsel %vm2951, %v6760, %v7156
  %v7158 = vsel %vm2953, %v6769, %v7157
  %v7159 = vsel %vm2955, %v6778, %v7158
  %v7160 = vsel %vm2943, %v6796, %v6787
  %v7161 = vsel %vm2945, %v6805, %v7160
  %v7162 = vsel %vm2947, %v6814, %v7161
  %v7163 = vsel %vm2949, %v6823, %v7162
  %v7164 = vsel %vm2951, %v6832, %v7163
  %v7165 = vsel %vm2953, %v6841, %v7164
  %v7166 = vsel %vm2955, %v6850, %v7165
  %v7167 = vsel %vm2943, %v6868, %v6859
  %v7168 = vsel %vm2945, %v6877, %v7167
  %v7169 = vsel %vm2947, %v6886, %v7168
  %v7170 = vsel %vm2949, %v6895, %v7169
  %v7171 = vsel %vm2951, %v6904, %v7170
  %v7172 = vsel %vm2953, %v6913, %v7171
  %v7173 = vsel %vm2955, %v6922, %v7172
  %v7174 = vsel %vm2943, %v6940, %v6931
  %v7175 = vsel %vm2945, %v6949, %v7174
  %v7176 = vsel %vm2947, %v6958, %v7175
  %v7177 = vsel %vm2949, %v6967, %v7176
  %v7178 = vsel %vm2951, %v6976, %v7177
  %v7179 = vsel %vm2953, %v6985, %v7178
  %v7180 = vsel %vm2955, %v6994, %v7179
  %v7181 = vsel %vm2943, %v7012, %v7003
  %v7182 = vsel %vm2945, %v7021, %v7181
  %v7183 = vsel %vm2947, %v7030, %v7182
  %v7184 = vsel %vm2949, %v7039, %v7183
  %v7185 = vsel %vm2951, %v7048, %v7184
  %v7186 = vsel %vm2953, %v7057, %v7185
  %v7187 = vsel %vm2955, %v7066, %v7186
  %v7188 = vsel %vm2943, %v7084, %v7075
  %v7189 = vsel %vm2945, %v7093, %v7188
  %v7190 = vsel %vm2947, %v7102, %v7189
  %v7191 = vsel %vm2949, %v7111, %v7190
  %v7192 = vsel %vm2951, %v7120, %v7191
  %v7193 = vsel %vm2953, %v7129, %v7192
  %v7194 = vsel %vm2955, %v7138, %v7193
  %v7203 = vsel %vm3014, %v7145, inf
  %7204 = vmin.xlane.f32.xlu0 %v7203
  %v7205 = vpop.xlane.xlu0 %7204
  %v7206 = vsel %vm3014, %v7152, inf
  %7207 = vmin.xlane.f32.xlu0 %v7206
  %v7208 = vpop.xlane.xlu0 %7207
  %v7209 = vsel %vm3014, %v7159, inf
  %7210 = vmin.xlane.f32.xlu0 %v7209
  %v7211 = vpop.xlane.xlu0 %7210
  %v7212 = vsel %vm3014, %v7166, inf
  %7213 = vmin.xlane.f32.xlu0 %v7212
  %v7214 = vpop.xlane.xlu0 %7213
  %v7215 = vsel %vm3014, %v7173, inf
  %7216 = vmin.xlane.f32.xlu0 %v7215
  %v7217 = vpop.xlane.xlu0 %7216
  %v7218 = vsel %vm3014, %v7180, inf
  %7219 = vmin.xlane.f32.xlu0 %v7218
  %v7220 = vpop.xlane.xlu0 %7219
  %v7221 = vsel %vm3014, %v7187, inf
  %7222 = vmin.xlane.f32.xlu0 %v7221
  %v7223 = vpop.xlane.xlu0 %7222
  %v7224 = vsel %vm3014, %v7194, inf
  %7225 = vmin.xlane.f32.xlu0 %v7224
  %v7226 = vpop.xlane.xlu0 %7225
  %v7235 = vlaneseq
  %v7236 = vshrl.u32 %v7235, 7
  %v7237 = vsub.s32 0, %v7236
  %v7238 = vrot.slane %v7205, %v7237
  %v7239 = vlaneseq
  %v7240 = vshrl.u32 %v7239, 7
  %v7241 = vsub.s32 1, %v7240
  %v7242 = vrot.slane %v7205, %v7241
  %v7243 = vlaneseq
  %v7244 = vshrl.u32 %v7243, 7
  %v7245 = vsub.s32 2, %v7244
  %v7246 = vrot.slane %v7205, %v7245
  %v7247 = vlaneseq
  %v7248 = vshrl.u32 %v7247, 7
  %v7249 = vsub.s32 3, %v7248
  %v7250 = vrot.slane %v7205, %v7249
  %v7251 = vlaneseq
  %v7252 = vshrl.u32 %v7251, 7
  %v7253 = vsub.s32 4, %v7252
  %v7254 = vrot.slane %v7205, %v7253
  %v7255 = vlaneseq
  %v7256 = vshrl.u32 %v7255, 7
  %v7257 = vsub.s32 5, %v7256
  %v7258 = vrot.slane %v7205, %v7257
  %v7259 = vlaneseq
  %v7260 = vshrl.u32 %v7259, 7
  %v7261 = vsub.s32 6, %v7260
  %v7262 = vrot.slane %v7205, %v7261
  %v7263 = vlaneseq
  %v7264 = vshrl.u32 %v7263, 7
  %v7265 = vsub.s32 7, %v7264
  %v7266 = vrot.slane %v7205, %v7265
  %v7267 = vlaneseq
  %v7268 = vshrl.u32 %v7267, 7
  %v7269 = vsub.s32 0, %v7268
  %v7270 = vrot.slane %v7208, %v7269
  %v7271 = vlaneseq
  %v7272 = vshrl.u32 %v7271, 7
  %v7273 = vsub.s32 1, %v7272
  %v7274 = vrot.slane %v7208, %v7273
  %v7275 = vlaneseq
  %v7276 = vshrl.u32 %v7275, 7
  %v7277 = vsub.s32 2, %v7276
  %v7278 = vrot.slane %v7208, %v7277
  %v7279 = vlaneseq
  %v7280 = vshrl.u32 %v7279, 7
  %v7281 = vsub.s32 3, %v7280
  %v7282 = vrot.slane %v7208, %v7281
  %v7283 = vlaneseq
  %v7284 = vshrl.u32 %v7283, 7
  %v7285 = vsub.s32 4, %v7284
  %v7286 = vrot.slane %v7208, %v7285
  %v7287 = vlaneseq
  %v7288 = vshrl.u32 %v7287, 7
  %v7289 = vsub.s32 5, %v7288
  %v7290 = vrot.slane %v7208, %v7289
  %v7291 = vlaneseq
  %v7292 = vshrl.u32 %v7291, 7
  %v7293 = vsub.s32 6, %v7292
  %v7294 = vrot.slane %v7208, %v7293
  %v7295 = vlaneseq
  %v7296 = vshrl.u32 %v7295, 7
  %v7297 = vsub.s32 7, %v7296
  %v7298 = vrot.slane %v7208, %v7297
  %v7299 = vlaneseq
  %v7300 = vshrl.u32 %v7299, 7
  %v7301 = vsub.s32 0, %v7300
  %v7302 = vrot.slane %v7211, %v7301
  %v7303 = vlaneseq
  %v7304 = vshrl.u32 %v7303, 7
  %v7305 = vsub.s32 1, %v7304
  %v7306 = vrot.slane %v7211, %v7305
  %v7307 = vlaneseq
  %v7308 = vshrl.u32 %v7307, 7
  %v7309 = vsub.s32 2, %v7308
  %v7310 = vrot.slane %v7211, %v7309
  %v7311 = vlaneseq
  %v7312 = vshrl.u32 %v7311, 7
  %v7313 = vsub.s32 3, %v7312
  %v7314 = vrot.slane %v7211, %v7313
  %v7315 = vlaneseq
  %v7316 = vshrl.u32 %v7315, 7
  %v7317 = vsub.s32 4, %v7316
  %v7318 = vrot.slane %v7211, %v7317
  %v7319 = vlaneseq
  %v7320 = vshrl.u32 %v7319, 7
  %v7321 = vsub.s32 5, %v7320
  %v7322 = vrot.slane %v7211, %v7321
  %v7323 = vlaneseq
  %v7324 = vshrl.u32 %v7323, 7
  %v7325 = vsub.s32 6, %v7324
  %v7326 = vrot.slane %v7211, %v7325
  %v7327 = vlaneseq
  %v7328 = vshrl.u32 %v7327, 7
  %v7329 = vsub.s32 7, %v7328
  %v7330 = vrot.slane %v7211, %v7329
  %v7331 = vlaneseq
  %v7332 = vshrl.u32 %v7331, 7
  %v7333 = vsub.s32 0, %v7332
  %v7334 = vrot.slane %v7214, %v7333
  %v7335 = vlaneseq
  %v7336 = vshrl.u32 %v7335, 7
  %v7337 = vsub.s32 1, %v7336
  %v7338 = vrot.slane %v7214, %v7337
  %v7339 = vlaneseq
  %v7340 = vshrl.u32 %v7339, 7
  %v7341 = vsub.s32 2, %v7340
  %v7342 = vrot.slane %v7214, %v7341
  %v7343 = vlaneseq
  %v7344 = vshrl.u32 %v7343, 7
  %v7345 = vsub.s32 3, %v7344
  %v7346 = vrot.slane %v7214, %v7345
  %v7347 = vlaneseq
  %v7348 = vshrl.u32 %v7347, 7
  %v7349 = vsub.s32 4, %v7348
  %v7350 = vrot.slane %v7214, %v7349
  %v7351 = vlaneseq
  %v7352 = vshrl.u32 %v7351, 7
  %v7353 = vsub.s32 5, %v7352
  %v7354 = vrot.slane %v7214, %v7353
  %v7355 = vlaneseq
  %v7356 = vshrl.u32 %v7355, 7
  %v7357 = vsub.s32 6, %v7356
  %v7358 = vrot.slane %v7214, %v7357
  %v7359 = vlaneseq
  %v7360 = vshrl.u32 %v7359, 7
  %v7361 = vsub.s32 7, %v7360
  %v7362 = vrot.slane %v7214, %v7361
  %v7363 = vlaneseq
  %v7364 = vshrl.u32 %v7363, 7
  %v7365 = vsub.s32 0, %v7364
  %v7366 = vrot.slane %v7217, %v7365
  %v7367 = vlaneseq
  %v7368 = vshrl.u32 %v7367, 7
  %v7369 = vsub.s32 1, %v7368
  %v7370 = vrot.slane %v7217, %v7369
  %v7371 = vlaneseq
  %v7372 = vshrl.u32 %v7371, 7
  %v7373 = vsub.s32 2, %v7372
  %v7374 = vrot.slane %v7217, %v7373
  %v7375 = vlaneseq
  %v7376 = vshrl.u32 %v7375, 7
  %v7377 = vsub.s32 3, %v7376
  %v7378 = vrot.slane %v7217, %v7377
  %v7379 = vlaneseq
  %v7380 = vshrl.u32 %v7379, 7
  %v7381 = vsub.s32 4, %v7380
  %v7382 = vrot.slane %v7217, %v7381
  %v7383 = vlaneseq
  %v7384 = vshrl.u32 %v7383, 7
  %v7385 = vsub.s32 5, %v7384
  %v7386 = vrot.slane %v7217, %v7385
  %v7387 = vlaneseq
  %v7388 = vshrl.u32 %v7387, 7
  %v7389 = vsub.s32 6, %v7388
  %v7390 = vrot.slane %v7217, %v7389
  %v7391 = vlaneseq
  %v7392 = vshrl.u32 %v7391, 7
  %v7393 = vsub.s32 7, %v7392
  %v7394 = vrot.slane %v7217, %v7393
  %v7395 = vlaneseq
  %v7396 = vshrl.u32 %v7395, 7
  %v7397 = vsub.s32 0, %v7396
  %v7398 = vrot.slane %v7220, %v7397
  %v7399 = vlaneseq
  %v7400 = vshrl.u32 %v7399, 7
  %v7401 = vsub.s32 1, %v7400
  %v7402 = vrot.slane %v7220, %v7401
  %v7403 = vlaneseq
  %v7404 = vshrl.u32 %v7403, 7
  %v7405 = vsub.s32 2, %v7404
  %v7406 = vrot.slane %v7220, %v7405
  %v7407 = vlaneseq
  %v7408 = vshrl.u32 %v7407, 7
  %v7409 = vsub.s32 3, %v7408
  %v7410 = vrot.slane %v7220, %v7409
  %v7411 = vlaneseq
  %v7412 = vshrl.u32 %v7411, 7
  %v7413 = vsub.s32 4, %v7412
  %v7414 = vrot.slane %v7220, %v7413
  %v7415 = vlaneseq
  %v7416 = vshrl.u32 %v7415, 7
  %v7417 = vsub.s32 5, %v7416
  %v7418 = vrot.slane %v7220, %v7417
  %v7419 = vlaneseq
  %v7420 = vshrl.u32 %v7419, 7
  %v7421 = vsub.s32 6, %v7420
  %v7422 = vrot.slane %v7220, %v7421
  %v7423 = vlaneseq
  %v7424 = vshrl.u32 %v7423, 7
  %v7425 = vsub.s32 7, %v7424
  %v7426 = vrot.slane %v7220, %v7425
  %v7427 = vlaneseq
  %v7428 = vshrl.u32 %v7427, 7
  %v7429 = vsub.s32 0, %v7428
  %v7430 = vrot.slane %v7223, %v7429
  %v7431 = vlaneseq
  %v7432 = vshrl.u32 %v7431, 7
  %v7433 = vsub.s32 1, %v7432
  %v7434 = vrot.slane %v7223, %v7433
  %v7435 = vlaneseq
  %v7436 = vshrl.u32 %v7435, 7
  %v7437 = vsub.s32 2, %v7436
  %v7438 = vrot.slane %v7223, %v7437
  %v7439 = vlaneseq
  %v7440 = vshrl.u32 %v7439, 7
  %v7441 = vsub.s32 3, %v7440
  %v7442 = vrot.slane %v7223, %v7441
  %v7443 = vlaneseq
  %v7444 = vshrl.u32 %v7443, 7
  %v7445 = vsub.s32 4, %v7444
  %v7446 = vrot.slane %v7223, %v7445
  %v7447 = vlaneseq
  %v7448 = vshrl.u32 %v7447, 7
  %v7449 = vsub.s32 5, %v7448
  %v7450 = vrot.slane %v7223, %v7449
  %v7451 = vlaneseq
  %v7452 = vshrl.u32 %v7451, 7
  %v7453 = vsub.s32 6, %v7452
  %v7454 = vrot.slane %v7223, %v7453
  %v7455 = vlaneseq
  %v7456 = vshrl.u32 %v7455, 7
  %v7457 = vsub.s32 7, %v7456
  %v7458 = vrot.slane %v7223, %v7457
  %v7459 = vlaneseq
  %v7460 = vshrl.u32 %v7459, 7
  %v7461 = vsub.s32 0, %v7460
  %v7462 = vrot.slane %v7226, %v7461
  %v7463 = vlaneseq
  %v7464 = vshrl.u32 %v7463, 7
  %v7465 = vsub.s32 1, %v7464
  %v7466 = vrot.slane %v7226, %v7465
  %v7467 = vlaneseq
  %v7468 = vshrl.u32 %v7467, 7
  %v7469 = vsub.s32 2, %v7468
  %v7470 = vrot.slane %v7226, %v7469
  %v7471 = vlaneseq
  %v7472 = vshrl.u32 %v7471, 7
  %v7473 = vsub.s32 3, %v7472
  %v7474 = vrot.slane %v7226, %v7473
  %v7475 = vlaneseq
  %v7476 = vshrl.u32 %v7475, 7
  %v7477 = vsub.s32 4, %v7476
  %v7478 = vrot.slane %v7226, %v7477
  %v7479 = vlaneseq
  %v7480 = vshrl.u32 %v7479, 7
  %v7481 = vsub.s32 5, %v7480
  %v7482 = vrot.slane %v7226, %v7481
  %v7483 = vlaneseq
  %v7484 = vshrl.u32 %v7483, 7
  %v7485 = vsub.s32 6, %v7484
  %v7486 = vrot.slane %v7226, %v7485
  %v7487 = vlaneseq
  %v7488 = vshrl.u32 %v7487, 7
  %v7489 = vsub.s32 7, %v7488
  %v7490 = vrot.slane %v7226, %v7489
  %vm7555 = vcmp.le.f32.partialorder %v5923, %v7238
  %vm7556 = vcmp.le.f32.partialorder %v5924, %v7238
  %vm7557 = vcmp.le.f32.partialorder %v5925, %v7242
  %vm7558 = vcmp.le.f32.partialorder %v5926, %v7242
  %vm7559 = vcmp.le.f32.partialorder %v5927, %v7246
  %vm7560 = vcmp.le.f32.partialorder %v5928, %v7246
  %vm7561 = vcmp.le.f32.partialorder %v5929, %v7250
  %vm7562 = vcmp.le.f32.partialorder %v5930, %v7250
  %vm7563 = vcmp.le.f32.partialorder %v5931, %v7254
  %vm7564 = vcmp.le.f32.partialorder %v5932, %v7254
  %vm7565 = vcmp.le.f32.partialorder %v5933, %v7258
  %vm7566 = vcmp.le.f32.partialorder %v5934, %v7258
  %vm7567 = vcmp.le.f32.partialorder %v5935, %v7262
  %vm7568 = vcmp.le.f32.partialorder %v5936, %v7262
  %vm7569 = vcmp.le.f32.partialorder %v5937, %v7266
  %vm7570 = vcmp.le.f32.partialorder %v5938, %v7266
  %vm7571 = vcmp.le.f32.partialorder %v5939, %v7270
  %vm7572 = vcmp.le.f32.partialorder %v5940, %v7270
  %vm7573 = vcmp.le.f32.partialorder %v5941, %v7274
  %vm7574 = vcmp.le.f32.partialorder %v5942, %v7274
  %vm7575 = vcmp.le.f32.partialorder %v5943, %v7278
  %vm7576 = vcmp.le.f32.partialorder %v5944, %v7278
  %vm7577 = vcmp.le.f32.partialorder %v5945, %v7282
  %vm7578 = vcmp.le.f32.partialorder %v5946, %v7282
  %vm7579 = vcmp.le.f32.partialorder %v5947, %v7286
  %vm7580 = vcmp.le.f32.partialorder %v5948, %v7286
  %vm7581 = vcmp.le.f32.partialorder %v5949, %v7290
  %vm7582 = vcmp.le.f32.partialorder %v5950, %v7290
  %vm7583 = vcmp.le.f32.partialorder %v5951, %v7294
  %vm7584 = vcmp.le.f32.partialorder %v5952, %v7294
  %vm7585 = vcmp.le.f32.partialorder %v5953, %v7298
  %vm7586 = vcmp.le.f32.partialorder %v5954, %v7298
  %vm7587 = vcmp.le.f32.partialorder %v5955, %v7302
  %vm7588 = vcmp.le.f32.partialorder %v5956, %v7302
  %vm7589 = vcmp.le.f32.partialorder %v5957, %v7306
  %vm7590 = vcmp.le.f32.partialorder %v5958, %v7306
  %vm7591 = vcmp.le.f32.partialorder %v5959, %v7310
  %vm7592 = vcmp.le.f32.partialorder %v5960, %v7310
  %vm7593 = vcmp.le.f32.partialorder %v5961, %v7314
  %vm7594 = vcmp.le.f32.partialorder %v5962, %v7314
  %vm7595 = vcmp.le.f32.partialorder %v5963, %v7318
  %vm7596 = vcmp.le.f32.partialorder %v5964, %v7318
  %vm7597 = vcmp.le.f32.partialorder %v5965, %v7322
  %vm7598 = vcmp.le.f32.partialorder %v5966, %v7322
  %vm7599 = vcmp.le.f32.partialorder %v5967, %v7326
  %vm7600 = vcmp.le.f32.partialorder %v5968, %v7326
  %vm7601 = vcmp.le.f32.partialorder %v5969, %v7330
  %vm7602 = vcmp.le.f32.partialorder %v5970, %v7330
  %vm7603 = vcmp.le.f32.partialorder %v5971, %v7334
  %vm7604 = vcmp.le.f32.partialorder %v5972, %v7334
  %vm7605 = vcmp.le.f32.partialorder %v5973, %v7338
  %vm7606 = vcmp.le.f32.partialorder %v5974, %v7338
  %vm7607 = vcmp.le.f32.partialorder %v5975, %v7342
  %vm7608 = vcmp.le.f32.partialorder %v5976, %v7342
  %vm7609 = vcmp.le.f32.partialorder %v5977, %v7346
  %vm7610 = vcmp.le.f32.partialorder %v5978, %v7346
  %vm7611 = vcmp.le.f32.partialorder %v5979, %v7350
  %vm7612 = vcmp.le.f32.partialorder %v5980, %v7350
  %vm7613 = vcmp.le.f32.partialorder %v5981, %v7354
  %vm7614 = vcmp.le.f32.partialorder %v5982, %v7354
  %vm7615 = vcmp.le.f32.partialorder %v5983, %v7358
  %vm7616 = vcmp.le.f32.partialorder %v5984, %v7358
  %vm7617 = vcmp.le.f32.partialorder %v5985, %v7362
  %vm7618 = vcmp.le.f32.partialorder %v5986, %v7362
  %vm7619 = vcmp.le.f32.partialorder %v5987, %v7366
  %vm7620 = vcmp.le.f32.partialorder %v5988, %v7366
  %vm7621 = vcmp.le.f32.partialorder %v5989, %v7370
  %vm7622 = vcmp.le.f32.partialorder %v5990, %v7370
  %vm7623 = vcmp.le.f32.partialorder %v5991, %v7374
  %vm7624 = vcmp.le.f32.partialorder %v5992, %v7374
  %vm7625 = vcmp.le.f32.partialorder %v5993, %v7378
  %vm7626 = vcmp.le.f32.partialorder %v5994, %v7378
  %vm7627 = vcmp.le.f32.partialorder %v5995, %v7382
  %vm7628 = vcmp.le.f32.partialorder %v5996, %v7382
  %vm7629 = vcmp.le.f32.partialorder %v5997, %v7386
  %vm7630 = vcmp.le.f32.partialorder %v5998, %v7386
  %vm7631 = vcmp.le.f32.partialorder %v5999, %v7390
  %vm7632 = vcmp.le.f32.partialorder %v6000, %v7390
  %vm7633 = vcmp.le.f32.partialorder %v6001, %v7394
  %vm7634 = vcmp.le.f32.partialorder %v6002, %v7394
  %vm7635 = vcmp.le.f32.partialorder %v6003, %v7398
  %vm7636 = vcmp.le.f32.partialorder %v6004, %v7398
  %vm7637 = vcmp.le.f32.partialorder %v6005, %v7402
  %vm7638 = vcmp.le.f32.partialorder %v6006, %v7402
  %vm7639 = vcmp.le.f32.partialorder %v6007, %v7406
  %vm7640 = vcmp.le.f32.partialorder %v6008, %v7406
  %vm7641 = vcmp.le.f32.partialorder %v6009, %v7410
  %vm7642 = vcmp.le.f32.partialorder %v6010, %v7410
  %vm7643 = vcmp.le.f32.partialorder %v6011, %v7414
  %vm7644 = vcmp.le.f32.partialorder %v6012, %v7414
  %vm7645 = vcmp.le.f32.partialorder %v6013, %v7418
  %vm7646 = vcmp.le.f32.partialorder %v6014, %v7418
  %vm7647 = vcmp.le.f32.partialorder %v6015, %v7422
  %vm7648 = vcmp.le.f32.partialorder %v6016, %v7422
  %vm7649 = vcmp.le.f32.partialorder %v6017, %v7426
  %vm7650 = vcmp.le.f32.partialorder %v6018, %v7426
  %vm7651 = vcmp.le.f32.partialorder %v6019, %v7430
  %vm7652 = vcmp.le.f32.partialorder %v6020, %v7430
  %vm7653 = vcmp.le.f32.partialorder %v6021, %v7434
  %vm7654 = vcmp.le.f32.partialorder %v6022, %v7434
  %vm7655 = vcmp.le.f32.partialorder %v6023, %v7438
  %vm7656 = vcmp.le.f32.partialorder %v6024, %v7438
  %vm7657 = vcmp.le.f32.partialorder %v6025, %v7442
  %vm7658 = vcmp.le.f32.partialorder %v6026, %v7442
  %vm7659 = vcmp.le.f32.partialorder %v6027, %v7446
  %vm7660 = vcmp.le.f32.partialorder %v6028, %v7446
  %vm7661 = vcmp.le.f32.partialorder %v6029, %v7450
  %vm7662 = vcmp.le.f32.partialorder %v6030, %v7450
  %vm7663 = vcmp.le.f32.partialorder %v6031, %v7454
  %vm7664 = vcmp.le.f32.partialorder %v6032, %v7454
  %vm7665 = vcmp.le.f32.partialorder %v6033, %v7458
  %vm7666 = vcmp.le.f32.partialorder %v6034, %v7458
  %vm7667 = vcmp.le.f32.partialorder %v6035, %v7462
  %vm7668 = vcmp.le.f32.partialorder %v6036, %v7462
  %vm7669 = vcmp.le.f32.partialorder %v6037, %v7466
  %vm7670 = vcmp.le.f32.partialorder %v6038, %v7466
  %vm7671 = vcmp.le.f32.partialorder %v6039, %v7470
  %vm7672 = vcmp.le.f32.partialorder %v6040, %v7470
  %vm7673 = vcmp.le.f32.partialorder %v6041, %v7474
  %vm7674 = vcmp.le.f32.partialorder %v6042, %v7474
  %vm7675 = vcmp.le.f32.partialorder %v6043, %v7478
  %vm7676 = vcmp.le.f32.partialorder %v6044, %v7478
  %vm7677 = vcmp.le.f32.partialorder %v6045, %v7482
  %vm7678 = vcmp.le.f32.partialorder %v6046, %v7482
  %vm7679 = vcmp.le.f32.partialorder %v6047, %v7486
  %vm7680 = vcmp.le.f32.partialorder %v6048, %v7486
  %vm7681 = vcmp.le.f32.partialorder %v6049, %v7490
  %vm7682 = vcmp.le.f32.partialorder %v6050, %v7490
  %v7683 = vsel %vm7555, %v3497, 16
  %v7684 = vsel %vm7556, %v3501, 16
  %v7685 = vsel %vm7557, %v3497, 16
  %v7686 = vsel %vm7558, %v3501, 16
  %v7687 = vsel %vm7559, %v3497, 16
  %v7688 = vsel %vm7560, %v3501, 16
  %v7689 = vsel %vm7561, %v3497, 16
  %v7690 = vsel %vm7562, %v3501, 16
  %v7691 = vsel %vm7563, %v3497, 16
  %v7692 = vsel %vm7564, %v3501, 16
  %v7693 = vsel %vm7565, %v3497, 16
  %v7694 = vsel %vm7566, %v3501, 16
  %v7695 = vsel %vm7567, %v3497, 16
  %v7696 = vsel %vm7568, %v3501, 16
  %v7697 = vsel %vm7569, %v3497, 16
  %v7698 = vsel %vm7570, %v3501, 16
  %v7699 = vsel %vm7571, %v3497, 16
  %v7700 = vsel %vm7572, %v3501, 16
  %v7701 = vsel %vm7573, %v3497, 16
  %v7702 = vsel %vm7574, %v3501, 16
  %v7703 = vsel %vm7575, %v3497, 16
  %v7704 = vsel %vm7576, %v3501, 16
  %v7705 = vsel %vm7577, %v3497, 16
  %v7706 = vsel %vm7578, %v3501, 16
  %v7707 = vsel %vm7579, %v3497, 16
  %v7708 = vsel %vm7580, %v3501, 16
  %v7709 = vsel %vm7581, %v3497, 16
  %v7710 = vsel %vm7582, %v3501, 16
  %v7711 = vsel %vm7583, %v3497, 16
  %v7712 = vsel %vm7584, %v3501, 16
  %v7713 = vsel %vm7585, %v3497, 16
  %v7714 = vsel %vm7586, %v3501, 16
  %v7715 = vsel %vm7587, %v3497, 16
  %v7716 = vsel %vm7588, %v3501, 16
  %v7717 = vsel %vm7589, %v3497, 16
  %v7718 = vsel %vm7590, %v3501, 16
  %v7719 = vsel %vm7591, %v3497, 16
  %v7720 = vsel %vm7592, %v3501, 16
  %v7721 = vsel %vm7593, %v3497, 16
  %v7722 = vsel %vm7594, %v3501, 16
  %v7723 = vsel %vm7595, %v3497, 16
  %v7724 = vsel %vm7596, %v3501, 16
  %v7725 = vsel %vm7597, %v3497, 16
  %v7726 = vsel %vm7598, %v3501, 16
  %v7727 = vsel %vm7599, %v3497, 16
  %v7728 = vsel %vm7600, %v3501, 16
  %v7729 = vsel %vm7601, %v3497, 16
  %v7730 = vsel %vm7602, %v3501, 16
  %v7731 = vsel %vm7603, %v3497, 16
  %v7732 = vsel %vm7604, %v3501, 16
  %v7733 = vsel %vm7605, %v3497, 16
  %v7734 = vsel %vm7606, %v3501, 16
  %v7735 = vsel %vm7607, %v3497, 16
  %v7736 = vsel %vm7608, %v3501, 16
  %v7737 = vsel %vm7609, %v3497, 16
  %v7738 = vsel %vm7610, %v3501, 16
  %v7739 = vsel %vm7611, %v3497, 16
  %v7740 = vsel %vm7612, %v3501, 16
  %v7741 = vsel %vm7613, %v3497, 16
  %v7742 = vsel %vm7614, %v3501, 16
  %v7743 = vsel %vm7615, %v3497, 16
  %v7744 = vsel %vm7616, %v3501, 16
  %v7745 = vsel %vm7617, %v3497, 16
  %v7746 = vsel %vm7618, %v3501, 16
  %v7747 = vsel %vm7619, %v3497, 16
  %v7748 = vsel %vm7620, %v3501, 16
  %v7749 = vsel %vm7621, %v3497, 16
  %v7750 = vsel %vm7622, %v3501, 16
  %v7751 = vsel %vm7623, %v3497, 16
  %v7752 = vsel %vm7624, %v3501, 16
  %v7753 = vsel %vm7625, %v3497, 16
  %v7754 = vsel %vm7626, %v3501, 16
  %v7755 = vsel %vm7627, %v3497, 16
  %v7756 = vsel %vm7628, %v3501, 16
  %v7757 = vsel %vm7629, %v3497, 16
  %v7758 = vsel %vm7630, %v3501, 16
  %v7759 = vsel %vm7631, %v3497, 16
  %v7760 = vsel %vm7632, %v3501, 16
  %v7761 = vsel %vm7633, %v3497, 16
  %v7762 = vsel %vm7634, %v3501, 16
  %v7763 = vsel %vm7635, %v3497, 16
  %v7764 = vsel %vm7636, %v3501, 16
  %v7765 = vsel %vm7637, %v3497, 16
  %v7766 = vsel %vm7638, %v3501, 16
  %v7767 = vsel %vm7639, %v3497, 16
  %v7768 = vsel %vm7640, %v3501, 16
  %v7769 = vsel %vm7641, %v3497, 16
  %v7770 = vsel %vm7642, %v3501, 16
  %v7771 = vsel %vm7643, %v3497, 16
  %v7772 = vsel %vm7644, %v3501, 16
  %v7773 = vsel %vm7645, %v3497, 16
  %v7774 = vsel %vm7646, %v3501, 16
  %v7775 = vsel %vm7647, %v3497, 16
  %v7776 = vsel %vm7648, %v3501, 16
  %v7777 = vsel %vm7649, %v3497, 16
  %v7778 = vsel %vm7650, %v3501, 16
  %v7779 = vsel %vm7651, %v3497, 16
  %v7780 = vsel %vm7652, %v3501, 16
  %v7781 = vsel %vm7653, %v3497, 16
  %v7782 = vsel %vm7654, %v3501, 16
  %v7783 = vsel %vm7655, %v3497, 16
  %v7784 = vsel %vm7656, %v3501, 16
  %v7785 = vsel %vm7657, %v3497, 16
  %v7786 = vsel %vm7658, %v3501, 16
  %v7787 = vsel %vm7659, %v3497, 16
  %v7788 = vsel %vm7660, %v3501, 16
  %v7789 = vsel %vm7661, %v3497, 16
  %v7790 = vsel %vm7662, %v3501, 16
  %v7791 = vsel %vm7663, %v3497, 16
  %v7792 = vsel %vm7664, %v3501, 16
  %v7793 = vsel %vm7665, %v3497, 16
  %v7794 = vsel %vm7666, %v3501, 16
  %v7795 = vsel %vm7667, %v3497, 16
  %v7796 = vsel %vm7668, %v3501, 16
  %v7797 = vsel %vm7669, %v3497, 16
  %v7798 = vsel %vm7670, %v3501, 16
  %v7799 = vsel %vm7671, %v3497, 16
  %v7800 = vsel %vm7672, %v3501, 16
  %v7801 = vsel %vm7673, %v3497, 16
  %v7802 = vsel %vm7674, %v3501, 16
  %v7803 = vsel %vm7675, %v3497, 16
  %v7804 = vsel %vm7676, %v3501, 16
  %v7805 = vsel %vm7677, %v3497, 16
  %v7806 = vsel %vm7678, %v3501, 16
  %v7807 = vsel %vm7679, %v3497, 16
  %v7808 = vsel %vm7680, %v3501, 16
  %v7809 = vsel %vm7681, %v3497, 16
  %v7810 = vsel %vm7682, %v3501, 16
  %7811 = vset.pattern.permute.xlu0 0
  %7812 = vperm.xlu0 %7811, %v7683
  %v7813 = vpop.permute.xlu0 %7812
  %7814 = vset.pattern.permute.xlu0 0
  %7815 = vperm.xlu0 %7814, %v7684
  %v7816 = vpop.permute.xlu0 %7815
  %7817 = vset.pattern.permute.xlu0 0
  %7818 = vperm.xlu0 %7817, %v7685
  %v7819 = vpop.permute.xlu0 %7818
  %7820 = vset.pattern.permute.xlu0 0
  %7821 = vperm.xlu0 %7820, %v7686
  %v7822 = vpop.permute.xlu0 %7821
  %7823 = vset.pattern.permute.xlu0 0
  %7824 = vperm.xlu0 %7823, %v7687
  %v7825 = vpop.permute.xlu0 %7824
  %7826 = vset.pattern.permute.xlu0 0
  %7827 = vperm.xlu0 %7826, %v7688
  %v7828 = vpop.permute.xlu0 %7827
  %7829 = vset.pattern.permute.xlu0 0
  %7830 = vperm.xlu0 %7829, %v7689
  %v7831 = vpop.permute.xlu0 %7830
  %7832 = vset.pattern.permute.xlu0 0
  %7833 = vperm.xlu0 %7832, %v7690
  %v7834 = vpop.permute.xlu0 %7833
  %7835 = vset.pattern.permute.xlu0 0
  %7836 = vperm.xlu0 %7835, %v7691
  %v7837 = vpop.permute.xlu0 %7836
  %7838 = vset.pattern.permute.xlu0 0
  %7839 = vperm.xlu0 %7838, %v7692
  %v7840 = vpop.permute.xlu0 %7839
  %7841 = vset.pattern.permute.xlu0 0
  %7842 = vperm.xlu0 %7841, %v7693
  %v7843 = vpop.permute.xlu0 %7842
  %7844 = vset.pattern.permute.xlu0 0
  %7845 = vperm.xlu0 %7844, %v7694
  %v7846 = vpop.permute.xlu0 %7845
  %7847 = vset.pattern.permute.xlu0 0
  %7848 = vperm.xlu0 %7847, %v7695
  %v7849 = vpop.permute.xlu0 %7848
  %7850 = vset.pattern.permute.xlu0 0
  %7851 = vperm.xlu0 %7850, %v7696
  %v7852 = vpop.permute.xlu0 %7851
  %7853 = vset.pattern.permute.xlu0 0
  %7854 = vperm.xlu0 %7853, %v7697
  %v7855 = vpop.permute.xlu0 %7854
  %7856 = vset.pattern.permute.xlu0 0
  %7857 = vperm.xlu0 %7856, %v7698
  %v7858 = vpop.permute.xlu0 %7857
  %7859 = vset.pattern.permute.xlu0 0
  %7860 = vperm.xlu0 %7859, %v7699
  %v7861 = vpop.permute.xlu0 %7860
  %7862 = vset.pattern.permute.xlu0 0
  %7863 = vperm.xlu0 %7862, %v7700
  %v7864 = vpop.permute.xlu0 %7863
  %7865 = vset.pattern.permute.xlu0 0
  %7866 = vperm.xlu0 %7865, %v7701
  %v7867 = vpop.permute.xlu0 %7866
  %7868 = vset.pattern.permute.xlu0 0
  %7869 = vperm.xlu0 %7868, %v7702
  %v7870 = vpop.permute.xlu0 %7869
  %7871 = vset.pattern.permute.xlu0 0
  %7872 = vperm.xlu0 %7871, %v7703
  %v7873 = vpop.permute.xlu0 %7872
  %7874 = vset.pattern.permute.xlu0 0
  %7875 = vperm.xlu0 %7874, %v7704
  %v7876 = vpop.permute.xlu0 %7875
  %7877 = vset.pattern.permute.xlu0 0
  %7878 = vperm.xlu0 %7877, %v7705
  %v7879 = vpop.permute.xlu0 %7878
  %7880 = vset.pattern.permute.xlu0 0
  %7881 = vperm.xlu0 %7880, %v7706
  %v7882 = vpop.permute.xlu0 %7881
  %7883 = vset.pattern.permute.xlu0 0
  %7884 = vperm.xlu0 %7883, %v7707
  %v7885 = vpop.permute.xlu0 %7884
  %7886 = vset.pattern.permute.xlu0 0
  %7887 = vperm.xlu0 %7886, %v7708
  %v7888 = vpop.permute.xlu0 %7887
  %7889 = vset.pattern.permute.xlu0 0
  %7890 = vperm.xlu0 %7889, %v7709
  %v7891 = vpop.permute.xlu0 %7890
  %7892 = vset.pattern.permute.xlu0 0
  %7893 = vperm.xlu0 %7892, %v7710
  %v7894 = vpop.permute.xlu0 %7893
  %7895 = vset.pattern.permute.xlu0 0
  %7896 = vperm.xlu0 %7895, %v7711
  %v7897 = vpop.permute.xlu0 %7896
  %7898 = vset.pattern.permute.xlu0 0
  %7899 = vperm.xlu0 %7898, %v7712
  %v7900 = vpop.permute.xlu0 %7899
  %7901 = vset.pattern.permute.xlu0 0
  %7902 = vperm.xlu0 %7901, %v7713
  %v7903 = vpop.permute.xlu0 %7902
  %7904 = vset.pattern.permute.xlu0 0
  %7905 = vperm.xlu0 %7904, %v7714
  %v7906 = vpop.permute.xlu0 %7905
  %7907 = vset.pattern.permute.xlu0 0
  %7908 = vperm.xlu0 %7907, %v7715
  %v7909 = vpop.permute.xlu0 %7908
  %7910 = vset.pattern.permute.xlu0 0
  %7911 = vperm.xlu0 %7910, %v7716
  %v7912 = vpop.permute.xlu0 %7911
  %7913 = vset.pattern.permute.xlu0 0
  %7914 = vperm.xlu0 %7913, %v7717
  %v7915 = vpop.permute.xlu0 %7914
  %7916 = vset.pattern.permute.xlu0 0
  %7917 = vperm.xlu0 %7916, %v7718
  %v7918 = vpop.permute.xlu0 %7917
  %7919 = vset.pattern.permute.xlu0 0
  %7920 = vperm.xlu0 %7919, %v7719
  %v7921 = vpop.permute.xlu0 %7920
  %7922 = vset.pattern.permute.xlu0 0
  %7923 = vperm.xlu0 %7922, %v7720
  %v7924 = vpop.permute.xlu0 %7923
  %7925 = vset.pattern.permute.xlu0 0
  %7926 = vperm.xlu0 %7925, %v7721
  %v7927 = vpop.permute.xlu0 %7926
  %7928 = vset.pattern.permute.xlu0 0
  %7929 = vperm.xlu0 %7928, %v7722
  %v7930 = vpop.permute.xlu0 %7929
  %7931 = vset.pattern.permute.xlu0 0
  %7932 = vperm.xlu0 %7931, %v7723
  %v7933 = vpop.permute.xlu0 %7932
  %7934 = vset.pattern.permute.xlu0 0
  %7935 = vperm.xlu0 %7934, %v7724
  %v7936 = vpop.permute.xlu0 %7935
  %7937 = vset.pattern.permute.xlu0 0
  %7938 = vperm.xlu0 %7937, %v7725
  %v7939 = vpop.permute.xlu0 %7938
  %7940 = vset.pattern.permute.xlu0 0
  %7941 = vperm.xlu0 %7940, %v7726
  %v7942 = vpop.permute.xlu0 %7941
  %7943 = vset.pattern.permute.xlu0 0
  %7944 = vperm.xlu0 %7943, %v7727
  %v7945 = vpop.permute.xlu0 %7944
  %7946 = vset.pattern.permute.xlu0 0
  %7947 = vperm.xlu0 %7946, %v7728
  %v7948 = vpop.permute.xlu0 %7947
  %7949 = vset.pattern.permute.xlu0 0
  %7950 = vperm.xlu0 %7949, %v7729
  %v7951 = vpop.permute.xlu0 %7950
  %7952 = vset.pattern.permute.xlu0 0
  %7953 = vperm.xlu0 %7952, %v7730
  %v7954 = vpop.permute.xlu0 %7953
  %7955 = vset.pattern.permute.xlu0 0
  %7956 = vperm.xlu0 %7955, %v7731
  %v7957 = vpop.permute.xlu0 %7956
  %7958 = vset.pattern.permute.xlu0 0
  %7959 = vperm.xlu0 %7958, %v7732
  %v7960 = vpop.permute.xlu0 %7959
  %7961 = vset.pattern.permute.xlu0 0
  %7962 = vperm.xlu0 %7961, %v7733
  %v7963 = vpop.permute.xlu0 %7962
  %7964 = vset.pattern.permute.xlu0 0
  %7965 = vperm.xlu0 %7964, %v7734
  %v7966 = vpop.permute.xlu0 %7965
  %7967 = vset.pattern.permute.xlu0 0
  %7968 = vperm.xlu0 %7967, %v7735
  %v7969 = vpop.permute.xlu0 %7968
  %7970 = vset.pattern.permute.xlu0 0
  %7971 = vperm.xlu0 %7970, %v7736
  %v7972 = vpop.permute.xlu0 %7971
  %7973 = vset.pattern.permute.xlu0 0
  %7974 = vperm.xlu0 %7973, %v7737
  %v7975 = vpop.permute.xlu0 %7974
  %7976 = vset.pattern.permute.xlu0 0
  %7977 = vperm.xlu0 %7976, %v7738
  %v7978 = vpop.permute.xlu0 %7977
  %7979 = vset.pattern.permute.xlu0 0
  %7980 = vperm.xlu0 %7979, %v7739
  %v7981 = vpop.permute.xlu0 %7980
  %7982 = vset.pattern.permute.xlu0 0
  %7983 = vperm.xlu0 %7982, %v7740
  %v7984 = vpop.permute.xlu0 %7983
  %7985 = vset.pattern.permute.xlu0 0
  %7986 = vperm.xlu0 %7985, %v7741
  %v7987 = vpop.permute.xlu0 %7986
  %7988 = vset.pattern.permute.xlu0 0
  %7989 = vperm.xlu0 %7988, %v7742
  %v7990 = vpop.permute.xlu0 %7989
  %7991 = vset.pattern.permute.xlu0 0
  %7992 = vperm.xlu0 %7991, %v7743
  %v7993 = vpop.permute.xlu0 %7992
  %7994 = vset.pattern.permute.xlu0 0
  %7995 = vperm.xlu0 %7994, %v7744
  %v7996 = vpop.permute.xlu0 %7995
  %7997 = vset.pattern.permute.xlu0 0
  %7998 = vperm.xlu0 %7997, %v7745
  %v7999 = vpop.permute.xlu0 %7998
  %8000 = vset.pattern.permute.xlu0 0
  %8001 = vperm.xlu0 %8000, %v7746
  %v8002 = vpop.permute.xlu0 %8001
  %8003 = vset.pattern.permute.xlu0 0
  %8004 = vperm.xlu0 %8003, %v7747
  %v8005 = vpop.permute.xlu0 %8004
  %8006 = vset.pattern.permute.xlu0 0
  %8007 = vperm.xlu0 %8006, %v7748
  %v8008 = vpop.permute.xlu0 %8007
  %8009 = vset.pattern.permute.xlu0 0
  %8010 = vperm.xlu0 %8009, %v7749
  %v8011 = vpop.permute.xlu0 %8010
  %8012 = vset.pattern.permute.xlu0 0
  %8013 = vperm.xlu0 %8012, %v7750
  %v8014 = vpop.permute.xlu0 %8013
  %8015 = vset.pattern.permute.xlu0 0
  %8016 = vperm.xlu0 %8015, %v7751
  %v8017 = vpop.permute.xlu0 %8016
  %8018 = vset.pattern.permute.xlu0 0
  %8019 = vperm.xlu0 %8018, %v7752
  %v8020 = vpop.permute.xlu0 %8019
  %8021 = vset.pattern.permute.xlu0 0
  %8022 = vperm.xlu0 %8021, %v7753
  %v8023 = vpop.permute.xlu0 %8022
  %8024 = vset.pattern.permute.xlu0 0
  %8025 = vperm.xlu0 %8024, %v7754
  %v8026 = vpop.permute.xlu0 %8025
  %8027 = vset.pattern.permute.xlu0 0
  %8028 = vperm.xlu0 %8027, %v7755
  %v8029 = vpop.permute.xlu0 %8028
  %8030 = vset.pattern.permute.xlu0 0
  %8031 = vperm.xlu0 %8030, %v7756
  %v8032 = vpop.permute.xlu0 %8031
  %8033 = vset.pattern.permute.xlu0 0
  %8034 = vperm.xlu0 %8033, %v7757
  %v8035 = vpop.permute.xlu0 %8034
  %8036 = vset.pattern.permute.xlu0 0
  %8037 = vperm.xlu0 %8036, %v7758
  %v8038 = vpop.permute.xlu0 %8037
  %8039 = vset.pattern.permute.xlu0 0
  %8040 = vperm.xlu0 %8039, %v7759
  %v8041 = vpop.permute.xlu0 %8040
  %8042 = vset.pattern.permute.xlu0 0
  %8043 = vperm.xlu0 %8042, %v7760
  %v8044 = vpop.permute.xlu0 %8043
  %8045 = vset.pattern.permute.xlu0 0
  %8046 = vperm.xlu0 %8045, %v7761
  %v8047 = vpop.permute.xlu0 %8046
  %8048 = vset.pattern.permute.xlu0 0
  %8049 = vperm.xlu0 %8048, %v7762
  %v8050 = vpop.permute.xlu0 %8049
  %8051 = vset.pattern.permute.xlu0 0
  %8052 = vperm.xlu0 %8051, %v7763
  %v8053 = vpop.permute.xlu0 %8052
  %8054 = vset.pattern.permute.xlu0 0
  %8055 = vperm.xlu0 %8054, %v7764
  %v8056 = vpop.permute.xlu0 %8055
  %8057 = vset.pattern.permute.xlu0 0
  %8058 = vperm.xlu0 %8057, %v7765
  %v8059 = vpop.permute.xlu0 %8058
  %8060 = vset.pattern.permute.xlu0 0
  %8061 = vperm.xlu0 %8060, %v7766
  %v8062 = vpop.permute.xlu0 %8061
  %8063 = vset.pattern.permute.xlu0 0
  %8064 = vperm.xlu0 %8063, %v7767
  %v8065 = vpop.permute.xlu0 %8064
  %8066 = vset.pattern.permute.xlu0 0
  %8067 = vperm.xlu0 %8066, %v7768
  %v8068 = vpop.permute.xlu0 %8067
  %8069 = vset.pattern.permute.xlu0 0
  %8070 = vperm.xlu0 %8069, %v7769
  %v8071 = vpop.permute.xlu0 %8070
  %8072 = vset.pattern.permute.xlu0 0
  %8073 = vperm.xlu0 %8072, %v7770
  %v8074 = vpop.permute.xlu0 %8073
  %8075 = vset.pattern.permute.xlu0 0
  %8076 = vperm.xlu0 %8075, %v7771
  %v8077 = vpop.permute.xlu0 %8076
  %8078 = vset.pattern.permute.xlu0 0
  %8079 = vperm.xlu0 %8078, %v7772
  %v8080 = vpop.permute.xlu0 %8079
  %8081 = vset.pattern.permute.xlu0 0
  %8082 = vperm.xlu0 %8081, %v7773
  %v8083 = vpop.permute.xlu0 %8082
  %8084 = vset.pattern.permute.xlu0 0
  %8085 = vperm.xlu0 %8084, %v7774
  %v8086 = vpop.permute.xlu0 %8085
  %8087 = vset.pattern.permute.xlu0 0
  %8088 = vperm.xlu0 %8087, %v7775
  %v8089 = vpop.permute.xlu0 %8088
  %8090 = vset.pattern.permute.xlu0 0
  %8091 = vperm.xlu0 %8090, %v7776
  %v8092 = vpop.permute.xlu0 %8091
  %8093 = vset.pattern.permute.xlu0 0
  %8094 = vperm.xlu0 %8093, %v7777
  %v8095 = vpop.permute.xlu0 %8094
  %8096 = vset.pattern.permute.xlu0 0
  %8097 = vperm.xlu0 %8096, %v7778
  %v8098 = vpop.permute.xlu0 %8097
  %8099 = vset.pattern.permute.xlu0 0
  %8100 = vperm.xlu0 %8099, %v7779
  %v8101 = vpop.permute.xlu0 %8100
  %8102 = vset.pattern.permute.xlu0 0
  %8103 = vperm.xlu0 %8102, %v7780
  %v8104 = vpop.permute.xlu0 %8103
  %8105 = vset.pattern.permute.xlu0 0
  %8106 = vperm.xlu0 %8105, %v7781
  %v8107 = vpop.permute.xlu0 %8106
  %8108 = vset.pattern.permute.xlu0 0
  %8109 = vperm.xlu0 %8108, %v7782
  %v8110 = vpop.permute.xlu0 %8109
  %8111 = vset.pattern.permute.xlu0 0
  %8112 = vperm.xlu0 %8111, %v7783
  %v8113 = vpop.permute.xlu0 %8112
  %8114 = vset.pattern.permute.xlu0 0
  %8115 = vperm.xlu0 %8114, %v7784
  %v8116 = vpop.permute.xlu0 %8115
  %8117 = vset.pattern.permute.xlu0 0
  %8118 = vperm.xlu0 %8117, %v7785
  %v8119 = vpop.permute.xlu0 %8118
  %8120 = vset.pattern.permute.xlu0 0
  %8121 = vperm.xlu0 %8120, %v7786
  %v8122 = vpop.permute.xlu0 %8121
  %8123 = vset.pattern.permute.xlu0 0
  %8124 = vperm.xlu0 %8123, %v7787
  %v8125 = vpop.permute.xlu0 %8124
  %8126 = vset.pattern.permute.xlu0 0
  %8127 = vperm.xlu0 %8126, %v7788
  %v8128 = vpop.permute.xlu0 %8127
  %8129 = vset.pattern.permute.xlu0 0
  %8130 = vperm.xlu0 %8129, %v7789
  %v8131 = vpop.permute.xlu0 %8130
  %8132 = vset.pattern.permute.xlu0 0
  %8133 = vperm.xlu0 %8132, %v7790
  %v8134 = vpop.permute.xlu0 %8133
  %8135 = vset.pattern.permute.xlu0 0
  %8136 = vperm.xlu0 %8135, %v7791
  %v8137 = vpop.permute.xlu0 %8136
  %8138 = vset.pattern.permute.xlu0 0
  %8139 = vperm.xlu0 %8138, %v7792
  %v8140 = vpop.permute.xlu0 %8139
  %8141 = vset.pattern.permute.xlu0 0
  %8142 = vperm.xlu0 %8141, %v7793
  %v8143 = vpop.permute.xlu0 %8142
  %8144 = vset.pattern.permute.xlu0 0
  %8145 = vperm.xlu0 %8144, %v7794
  %v8146 = vpop.permute.xlu0 %8145
  %8147 = vset.pattern.permute.xlu0 0
  %8148 = vperm.xlu0 %8147, %v7795
  %v8149 = vpop.permute.xlu0 %8148
  %8150 = vset.pattern.permute.xlu0 0
  %8151 = vperm.xlu0 %8150, %v7796
  %v8152 = vpop.permute.xlu0 %8151
  %8153 = vset.pattern.permute.xlu0 0
  %8154 = vperm.xlu0 %8153, %v7797
  %v8155 = vpop.permute.xlu0 %8154
  %8156 = vset.pattern.permute.xlu0 0
  %8157 = vperm.xlu0 %8156, %v7798
  %v8158 = vpop.permute.xlu0 %8157
  %8159 = vset.pattern.permute.xlu0 0
  %8160 = vperm.xlu0 %8159, %v7799
  %v8161 = vpop.permute.xlu0 %8160
  %8162 = vset.pattern.permute.xlu0 0
  %8163 = vperm.xlu0 %8162, %v7800
  %v8164 = vpop.permute.xlu0 %8163
  %8165 = vset.pattern.permute.xlu0 0
  %8166 = vperm.xlu0 %8165, %v7801
  %v8167 = vpop.permute.xlu0 %8166
  %8168 = vset.pattern.permute.xlu0 0
  %8169 = vperm.xlu0 %8168, %v7802
  %v8170 = vpop.permute.xlu0 %8169
  %8171 = vset.pattern.permute.xlu0 0
  %8172 = vperm.xlu0 %8171, %v7803
  %v8173 = vpop.permute.xlu0 %8172
  %8174 = vset.pattern.permute.xlu0 0
  %8175 = vperm.xlu0 %8174, %v7804
  %v8176 = vpop.permute.xlu0 %8175
  %8177 = vset.pattern.permute.xlu0 0
  %8178 = vperm.xlu0 %8177, %v7805
  %v8179 = vpop.permute.xlu0 %8178
  %8180 = vset.pattern.permute.xlu0 0
  %8181 = vperm.xlu0 %8180, %v7806
  %v8182 = vpop.permute.xlu0 %8181
  %8183 = vset.pattern.permute.xlu0 0
  %8184 = vperm.xlu0 %8183, %v7807
  %v8185 = vpop.permute.xlu0 %8184
  %8186 = vset.pattern.permute.xlu0 0
  %8187 = vperm.xlu0 %8186, %v7808
  %v8188 = vpop.permute.xlu0 %8187
  %8189 = vset.pattern.permute.xlu0 0
  %8190 = vperm.xlu0 %8189, %v7809
  %v8191 = vpop.permute.xlu0 %8190
  %8192 = vset.pattern.permute.xlu0 0
  %8193 = vperm.xlu0 %8192, %v7810
  %v8194 = vpop.permute.xlu0 %8193
  %v8195 = vlaneseq
  %v8196 = vshrl.u32 %v8195, 7
  %v8197 = vsub.s32 %v2364, %v8196
  %v8198 = vrot.slane %v7813, %v8197
  %v8199 = vlaneseq
  %v8200 = vshrl.u32 %v8199, 7
  %v8201 = vsub.s32 %v2369, %v8200
  %v8202 = vrot.slane %v7816, %v8201
  %v8203 = vsel %vm2374, %v8202, %v8198
  %v8204 = vlaneseq
  %v8205 = vshrl.u32 %v8204, 7
  %v8206 = vsub.s32 %v2364, %v8205
  %v8207 = vrot.slane %v7819, %v8206
  %v8208 = vlaneseq
  %v8209 = vshrl.u32 %v8208, 7
  %v8210 = vsub.s32 %v2369, %v8209
  %v8211 = vrot.slane %v7822, %v8210
  %v8212 = vsel %vm2374, %v8211, %v8207
  %v8213 = vlaneseq
  %v8214 = vshrl.u32 %v8213, 7
  %v8215 = vsub.s32 %v2364, %v8214
  %v8216 = vrot.slane %v7825, %v8215
  %v8217 = vlaneseq
  %v8218 = vshrl.u32 %v8217, 7
  %v8219 = vsub.s32 %v2369, %v8218
  %v8220 = vrot.slane %v7828, %v8219
  %v8221 = vsel %vm2374, %v8220, %v8216
  %v8222 = vlaneseq
  %v8223 = vshrl.u32 %v8222, 7
  %v8224 = vsub.s32 %v2364, %v8223
  %v8225 = vrot.slane %v7831, %v8224
  %v8226 = vlaneseq
  %v8227 = vshrl.u32 %v8226, 7
  %v8228 = vsub.s32 %v2369, %v8227
  %v8229 = vrot.slane %v7834, %v8228
  %v8230 = vsel %vm2374, %v8229, %v8225
  %v8231 = vlaneseq
  %v8232 = vshrl.u32 %v8231, 7
  %v8233 = vsub.s32 %v2364, %v8232
  %v8234 = vrot.slane %v7837, %v8233
  %v8235 = vlaneseq
  %v8236 = vshrl.u32 %v8235, 7
  %v8237 = vsub.s32 %v2369, %v8236
  %v8238 = vrot.slane %v7840, %v8237
  %v8239 = vsel %vm2374, %v8238, %v8234
  %v8240 = vlaneseq
  %v8241 = vshrl.u32 %v8240, 7
  %v8242 = vsub.s32 %v2364, %v8241
  %v8243 = vrot.slane %v7843, %v8242
  %v8244 = vlaneseq
  %v8245 = vshrl.u32 %v8244, 7
  %v8246 = vsub.s32 %v2369, %v8245
  %v8247 = vrot.slane %v7846, %v8246
  %v8248 = vsel %vm2374, %v8247, %v8243
  %v8249 = vlaneseq
  %v8250 = vshrl.u32 %v8249, 7
  %v8251 = vsub.s32 %v2364, %v8250
  %v8252 = vrot.slane %v7849, %v8251
  %v8253 = vlaneseq
  %v8254 = vshrl.u32 %v8253, 7
  %v8255 = vsub.s32 %v2369, %v8254
  %v8256 = vrot.slane %v7852, %v8255
  %v8257 = vsel %vm2374, %v8256, %v8252
  %v8258 = vlaneseq
  %v8259 = vshrl.u32 %v8258, 7
  %v8260 = vsub.s32 %v2364, %v8259
  %v8261 = vrot.slane %v7855, %v8260
  %v8262 = vlaneseq
  %v8263 = vshrl.u32 %v8262, 7
  %v8264 = vsub.s32 %v2369, %v8263
  %v8265 = vrot.slane %v7858, %v8264
  %v8266 = vsel %vm2374, %v8265, %v8261
  %v8267 = vlaneseq
  %v8268 = vshrl.u32 %v8267, 7
  %v8269 = vsub.s32 %v2364, %v8268
  %v8270 = vrot.slane %v7861, %v8269
  %v8271 = vlaneseq
  %v8272 = vshrl.u32 %v8271, 7
  %v8273 = vsub.s32 %v2369, %v8272
  %v8274 = vrot.slane %v7864, %v8273
  %v8275 = vsel %vm2374, %v8274, %v8270
  %v8276 = vlaneseq
  %v8277 = vshrl.u32 %v8276, 7
  %v8278 = vsub.s32 %v2364, %v8277
  %v8279 = vrot.slane %v7867, %v8278
  %v8280 = vlaneseq
  %v8281 = vshrl.u32 %v8280, 7
  %v8282 = vsub.s32 %v2369, %v8281
  %v8283 = vrot.slane %v7870, %v8282
  %v8284 = vsel %vm2374, %v8283, %v8279
  %v8285 = vlaneseq
  %v8286 = vshrl.u32 %v8285, 7
  %v8287 = vsub.s32 %v2364, %v8286
  %v8288 = vrot.slane %v7873, %v8287
  %v8289 = vlaneseq
  %v8290 = vshrl.u32 %v8289, 7
  %v8291 = vsub.s32 %v2369, %v8290
  %v8292 = vrot.slane %v7876, %v8291
  %v8293 = vsel %vm2374, %v8292, %v8288
  %v8294 = vlaneseq
  %v8295 = vshrl.u32 %v8294, 7
  %v8296 = vsub.s32 %v2364, %v8295
  %v8297 = vrot.slane %v7879, %v8296
  %v8298 = vlaneseq
  %v8299 = vshrl.u32 %v8298, 7
  %v8300 = vsub.s32 %v2369, %v8299
  %v8301 = vrot.slane %v7882, %v8300
  %v8302 = vsel %vm2374, %v8301, %v8297
  %v8303 = vlaneseq
  %v8304 = vshrl.u32 %v8303, 7
  %v8305 = vsub.s32 %v2364, %v8304
  %v8306 = vrot.slane %v7885, %v8305
  %v8307 = vlaneseq
  %v8308 = vshrl.u32 %v8307, 7
  %v8309 = vsub.s32 %v2369, %v8308
  %v8310 = vrot.slane %v7888, %v8309
  %v8311 = vsel %vm2374, %v8310, %v8306
  %v8312 = vlaneseq
  %v8313 = vshrl.u32 %v8312, 7
  %v8314 = vsub.s32 %v2364, %v8313
  %v8315 = vrot.slane %v7891, %v8314
  %v8316 = vlaneseq
  %v8317 = vshrl.u32 %v8316, 7
  %v8318 = vsub.s32 %v2369, %v8317
  %v8319 = vrot.slane %v7894, %v8318
  %v8320 = vsel %vm2374, %v8319, %v8315
  %v8321 = vlaneseq
  %v8322 = vshrl.u32 %v8321, 7
  %v8323 = vsub.s32 %v2364, %v8322
  %v8324 = vrot.slane %v7897, %v8323
  %v8325 = vlaneseq
  %v8326 = vshrl.u32 %v8325, 7
  %v8327 = vsub.s32 %v2369, %v8326
  %v8328 = vrot.slane %v7900, %v8327
  %v8329 = vsel %vm2374, %v8328, %v8324
  %v8330 = vlaneseq
  %v8331 = vshrl.u32 %v8330, 7
  %v8332 = vsub.s32 %v2364, %v8331
  %v8333 = vrot.slane %v7903, %v8332
  %v8334 = vlaneseq
  %v8335 = vshrl.u32 %v8334, 7
  %v8336 = vsub.s32 %v2369, %v8335
  %v8337 = vrot.slane %v7906, %v8336
  %v8338 = vsel %vm2374, %v8337, %v8333
  %v8339 = vlaneseq
  %v8340 = vshrl.u32 %v8339, 7
  %v8341 = vsub.s32 %v2364, %v8340
  %v8342 = vrot.slane %v7909, %v8341
  %v8343 = vlaneseq
  %v8344 = vshrl.u32 %v8343, 7
  %v8345 = vsub.s32 %v2369, %v8344
  %v8346 = vrot.slane %v7912, %v8345
  %v8347 = vsel %vm2374, %v8346, %v8342
  %v8348 = vlaneseq
  %v8349 = vshrl.u32 %v8348, 7
  %v8350 = vsub.s32 %v2364, %v8349
  %v8351 = vrot.slane %v7915, %v8350
  %v8352 = vlaneseq
  %v8353 = vshrl.u32 %v8352, 7
  %v8354 = vsub.s32 %v2369, %v8353
  %v8355 = vrot.slane %v7918, %v8354
  %v8356 = vsel %vm2374, %v8355, %v8351
  %v8357 = vlaneseq
  %v8358 = vshrl.u32 %v8357, 7
  %v8359 = vsub.s32 %v2364, %v8358
  %v8360 = vrot.slane %v7921, %v8359
  %v8361 = vlaneseq
  %v8362 = vshrl.u32 %v8361, 7
  %v8363 = vsub.s32 %v2369, %v8362
  %v8364 = vrot.slane %v7924, %v8363
  %v8365 = vsel %vm2374, %v8364, %v8360
  %v8366 = vlaneseq
  %v8367 = vshrl.u32 %v8366, 7
  %v8368 = vsub.s32 %v2364, %v8367
  %v8369 = vrot.slane %v7927, %v8368
  %v8370 = vlaneseq
  %v8371 = vshrl.u32 %v8370, 7
  %v8372 = vsub.s32 %v2369, %v8371
  %v8373 = vrot.slane %v7930, %v8372
  %v8374 = vsel %vm2374, %v8373, %v8369
  %v8375 = vlaneseq
  %v8376 = vshrl.u32 %v8375, 7
  %v8377 = vsub.s32 %v2364, %v8376
  %v8378 = vrot.slane %v7933, %v8377
  %v8379 = vlaneseq
  %v8380 = vshrl.u32 %v8379, 7
  %v8381 = vsub.s32 %v2369, %v8380
  %v8382 = vrot.slane %v7936, %v8381
  %v8383 = vsel %vm2374, %v8382, %v8378
  %v8384 = vlaneseq
  %v8385 = vshrl.u32 %v8384, 7
  %v8386 = vsub.s32 %v2364, %v8385
  %v8387 = vrot.slane %v7939, %v8386
  %v8388 = vlaneseq
  %v8389 = vshrl.u32 %v8388, 7
  %v8390 = vsub.s32 %v2369, %v8389
  %v8391 = vrot.slane %v7942, %v8390
  %v8392 = vsel %vm2374, %v8391, %v8387
  %v8393 = vlaneseq
  %v8394 = vshrl.u32 %v8393, 7
  %v8395 = vsub.s32 %v2364, %v8394
  %v8396 = vrot.slane %v7945, %v8395
  %v8397 = vlaneseq
  %v8398 = vshrl.u32 %v8397, 7
  %v8399 = vsub.s32 %v2369, %v8398
  %v8400 = vrot.slane %v7948, %v8399
  %v8401 = vsel %vm2374, %v8400, %v8396
  %v8402 = vlaneseq
  %v8403 = vshrl.u32 %v8402, 7
  %v8404 = vsub.s32 %v2364, %v8403
  %v8405 = vrot.slane %v7951, %v8404
  %v8406 = vlaneseq
  %v8407 = vshrl.u32 %v8406, 7
  %v8408 = vsub.s32 %v2369, %v8407
  %v8409 = vrot.slane %v7954, %v8408
  %v8410 = vsel %vm2374, %v8409, %v8405
  %v8411 = vlaneseq
  %v8412 = vshrl.u32 %v8411, 7
  %v8413 = vsub.s32 %v2364, %v8412
  %v8414 = vrot.slane %v7957, %v8413
  %v8415 = vlaneseq
  %v8416 = vshrl.u32 %v8415, 7
  %v8417 = vsub.s32 %v2369, %v8416
  %v8418 = vrot.slane %v7960, %v8417
  %v8419 = vsel %vm2374, %v8418, %v8414
  %v8420 = vlaneseq
  %v8421 = vshrl.u32 %v8420, 7
  %v8422 = vsub.s32 %v2364, %v8421
  %v8423 = vrot.slane %v7963, %v8422
  %v8424 = vlaneseq
  %v8425 = vshrl.u32 %v8424, 7
  %v8426 = vsub.s32 %v2369, %v8425
  %v8427 = vrot.slane %v7966, %v8426
  %v8428 = vsel %vm2374, %v8427, %v8423
  %v8429 = vlaneseq
  %v8430 = vshrl.u32 %v8429, 7
  %v8431 = vsub.s32 %v2364, %v8430
  %v8432 = vrot.slane %v7969, %v8431
  %v8433 = vlaneseq
  %v8434 = vshrl.u32 %v8433, 7
  %v8435 = vsub.s32 %v2369, %v8434
  %v8436 = vrot.slane %v7972, %v8435
  %v8437 = vsel %vm2374, %v8436, %v8432
  %v8438 = vlaneseq
  %v8439 = vshrl.u32 %v8438, 7
  %v8440 = vsub.s32 %v2364, %v8439
  %v8441 = vrot.slane %v7975, %v8440
  %v8442 = vlaneseq
  %v8443 = vshrl.u32 %v8442, 7
  %v8444 = vsub.s32 %v2369, %v8443
  %v8445 = vrot.slane %v7978, %v8444
  %v8446 = vsel %vm2374, %v8445, %v8441
  %v8447 = vlaneseq
  %v8448 = vshrl.u32 %v8447, 7
  %v8449 = vsub.s32 %v2364, %v8448
  %v8450 = vrot.slane %v7981, %v8449
  %v8451 = vlaneseq
  %v8452 = vshrl.u32 %v8451, 7
  %v8453 = vsub.s32 %v2369, %v8452
  %v8454 = vrot.slane %v7984, %v8453
  %v8455 = vsel %vm2374, %v8454, %v8450
  %v8456 = vlaneseq
  %v8457 = vshrl.u32 %v8456, 7
  %v8458 = vsub.s32 %v2364, %v8457
  %v8459 = vrot.slane %v7987, %v8458
  %v8460 = vlaneseq
  %v8461 = vshrl.u32 %v8460, 7
  %v8462 = vsub.s32 %v2369, %v8461
  %v8463 = vrot.slane %v7990, %v8462
  %v8464 = vsel %vm2374, %v8463, %v8459
  %v8465 = vlaneseq
  %v8466 = vshrl.u32 %v8465, 7
  %v8467 = vsub.s32 %v2364, %v8466
  %v8468 = vrot.slane %v7993, %v8467
  %v8469 = vlaneseq
  %v8470 = vshrl.u32 %v8469, 7
  %v8471 = vsub.s32 %v2369, %v8470
  %v8472 = vrot.slane %v7996, %v8471
  %v8473 = vsel %vm2374, %v8472, %v8468
  %v8474 = vlaneseq
  %v8475 = vshrl.u32 %v8474, 7
  %v8476 = vsub.s32 %v2364, %v8475
  %v8477 = vrot.slane %v7999, %v8476
  %v8478 = vlaneseq
  %v8479 = vshrl.u32 %v8478, 7
  %v8480 = vsub.s32 %v2369, %v8479
  %v8481 = vrot.slane %v8002, %v8480
  %v8482 = vsel %vm2374, %v8481, %v8477
  %v8483 = vlaneseq
  %v8484 = vshrl.u32 %v8483, 7
  %v8485 = vsub.s32 %v2364, %v8484
  %v8486 = vrot.slane %v8005, %v8485
  %v8487 = vlaneseq
  %v8488 = vshrl.u32 %v8487, 7
  %v8489 = vsub.s32 %v2369, %v8488
  %v8490 = vrot.slane %v8008, %v8489
  %v8491 = vsel %vm2374, %v8490, %v8486
  %v8492 = vlaneseq
  %v8493 = vshrl.u32 %v8492, 7
  %v8494 = vsub.s32 %v2364, %v8493
  %v8495 = vrot.slane %v8011, %v8494
  %v8496 = vlaneseq
  %v8497 = vshrl.u32 %v8496, 7
  %v8498 = vsub.s32 %v2369, %v8497
  %v8499 = vrot.slane %v8014, %v8498
  %v8500 = vsel %vm2374, %v8499, %v8495
  %v8501 = vlaneseq
  %v8502 = vshrl.u32 %v8501, 7
  %v8503 = vsub.s32 %v2364, %v8502
  %v8504 = vrot.slane %v8017, %v8503
  %v8505 = vlaneseq
  %v8506 = vshrl.u32 %v8505, 7
  %v8507 = vsub.s32 %v2369, %v8506
  %v8508 = vrot.slane %v8020, %v8507
  %v8509 = vsel %vm2374, %v8508, %v8504
  %v8510 = vlaneseq
  %v8511 = vshrl.u32 %v8510, 7
  %v8512 = vsub.s32 %v2364, %v8511
  %v8513 = vrot.slane %v8023, %v8512
  %v8514 = vlaneseq
  %v8515 = vshrl.u32 %v8514, 7
  %v8516 = vsub.s32 %v2369, %v8515
  %v8517 = vrot.slane %v8026, %v8516
  %v8518 = vsel %vm2374, %v8517, %v8513
  %v8519 = vlaneseq
  %v8520 = vshrl.u32 %v8519, 7
  %v8521 = vsub.s32 %v2364, %v8520
  %v8522 = vrot.slane %v8029, %v8521
  %v8523 = vlaneseq
  %v8524 = vshrl.u32 %v8523, 7
  %v8525 = vsub.s32 %v2369, %v8524
  %v8526 = vrot.slane %v8032, %v8525
  %v8527 = vsel %vm2374, %v8526, %v8522
  %v8528 = vlaneseq
  %v8529 = vshrl.u32 %v8528, 7
  %v8530 = vsub.s32 %v2364, %v8529
  %v8531 = vrot.slane %v8035, %v8530
  %v8532 = vlaneseq
  %v8533 = vshrl.u32 %v8532, 7
  %v8534 = vsub.s32 %v2369, %v8533
  %v8535 = vrot.slane %v8038, %v8534
  %v8536 = vsel %vm2374, %v8535, %v8531
  %v8537 = vlaneseq
  %v8538 = vshrl.u32 %v8537, 7
  %v8539 = vsub.s32 %v2364, %v8538
  %v8540 = vrot.slane %v8041, %v8539
  %v8541 = vlaneseq
  %v8542 = vshrl.u32 %v8541, 7
  %v8543 = vsub.s32 %v2369, %v8542
  %v8544 = vrot.slane %v8044, %v8543
  %v8545 = vsel %vm2374, %v8544, %v8540
  %v8546 = vlaneseq
  %v8547 = vshrl.u32 %v8546, 7
  %v8548 = vsub.s32 %v2364, %v8547
  %v8549 = vrot.slane %v8047, %v8548
  %v8550 = vlaneseq
  %v8551 = vshrl.u32 %v8550, 7
  %v8552 = vsub.s32 %v2369, %v8551
  %v8553 = vrot.slane %v8050, %v8552
  %v8554 = vsel %vm2374, %v8553, %v8549
  %v8555 = vlaneseq
  %v8556 = vshrl.u32 %v8555, 7
  %v8557 = vsub.s32 %v2364, %v8556
  %v8558 = vrot.slane %v8053, %v8557
  %v8559 = vlaneseq
  %v8560 = vshrl.u32 %v8559, 7
  %v8561 = vsub.s32 %v2369, %v8560
  %v8562 = vrot.slane %v8056, %v8561
  %v8563 = vsel %vm2374, %v8562, %v8558
  %v8564 = vlaneseq
  %v8565 = vshrl.u32 %v8564, 7
  %v8566 = vsub.s32 %v2364, %v8565
  %v8567 = vrot.slane %v8059, %v8566
  %v8568 = vlaneseq
  %v8569 = vshrl.u32 %v8568, 7
  %v8570 = vsub.s32 %v2369, %v8569
  %v8571 = vrot.slane %v8062, %v8570
  %v8572 = vsel %vm2374, %v8571, %v8567
  %v8573 = vlaneseq
  %v8574 = vshrl.u32 %v8573, 7
  %v8575 = vsub.s32 %v2364, %v8574
  %v8576 = vrot.slane %v8065, %v8575
  %v8577 = vlaneseq
  %v8578 = vshrl.u32 %v8577, 7
  %v8579 = vsub.s32 %v2369, %v8578
  %v8580 = vrot.slane %v8068, %v8579
  %v8581 = vsel %vm2374, %v8580, %v8576
  %v8582 = vlaneseq
  %v8583 = vshrl.u32 %v8582, 7
  %v8584 = vsub.s32 %v2364, %v8583
  %v8585 = vrot.slane %v8071, %v8584
  %v8586 = vlaneseq
  %v8587 = vshrl.u32 %v8586, 7
  %v8588 = vsub.s32 %v2369, %v8587
  %v8589 = vrot.slane %v8074, %v8588
  %v8590 = vsel %vm2374, %v8589, %v8585
  %v8591 = vlaneseq
  %v8592 = vshrl.u32 %v8591, 7
  %v8593 = vsub.s32 %v2364, %v8592
  %v8594 = vrot.slane %v8077, %v8593
  %v8595 = vlaneseq
  %v8596 = vshrl.u32 %v8595, 7
  %v8597 = vsub.s32 %v2369, %v8596
  %v8598 = vrot.slane %v8080, %v8597
  %v8599 = vsel %vm2374, %v8598, %v8594
  %v8600 = vlaneseq
  %v8601 = vshrl.u32 %v8600, 7
  %v8602 = vsub.s32 %v2364, %v8601
  %v8603 = vrot.slane %v8083, %v8602
  %v8604 = vlaneseq
  %v8605 = vshrl.u32 %v8604, 7
  %v8606 = vsub.s32 %v2369, %v8605
  %v8607 = vrot.slane %v8086, %v8606
  %v8608 = vsel %vm2374, %v8607, %v8603
  %v8609 = vlaneseq
  %v8610 = vshrl.u32 %v8609, 7
  %v8611 = vsub.s32 %v2364, %v8610
  %v8612 = vrot.slane %v8089, %v8611
  %v8613 = vlaneseq
  %v8614 = vshrl.u32 %v8613, 7
  %v8615 = vsub.s32 %v2369, %v8614
  %v8616 = vrot.slane %v8092, %v8615
  %v8617 = vsel %vm2374, %v8616, %v8612
  %v8618 = vlaneseq
  %v8619 = vshrl.u32 %v8618, 7
  %v8620 = vsub.s32 %v2364, %v8619
  %v8621 = vrot.slane %v8095, %v8620
  %v8622 = vlaneseq
  %v8623 = vshrl.u32 %v8622, 7
  %v8624 = vsub.s32 %v2369, %v8623
  %v8625 = vrot.slane %v8098, %v8624
  %v8626 = vsel %vm2374, %v8625, %v8621
  %v8627 = vlaneseq
  %v8628 = vshrl.u32 %v8627, 7
  %v8629 = vsub.s32 %v2364, %v8628
  %v8630 = vrot.slane %v8101, %v8629
  %v8631 = vlaneseq
  %v8632 = vshrl.u32 %v8631, 7
  %v8633 = vsub.s32 %v2369, %v8632
  %v8634 = vrot.slane %v8104, %v8633
  %v8635 = vsel %vm2374, %v8634, %v8630
  %v8636 = vlaneseq
  %v8637 = vshrl.u32 %v8636, 7
  %v8638 = vsub.s32 %v2364, %v8637
  %v8639 = vrot.slane %v8107, %v8638
  %v8640 = vlaneseq
  %v8641 = vshrl.u32 %v8640, 7
  %v8642 = vsub.s32 %v2369, %v8641
  %v8643 = vrot.slane %v8110, %v8642
  %v8644 = vsel %vm2374, %v8643, %v8639
  %v8645 = vlaneseq
  %v8646 = vshrl.u32 %v8645, 7
  %v8647 = vsub.s32 %v2364, %v8646
  %v8648 = vrot.slane %v8113, %v8647
  %v8649 = vlaneseq
  %v8650 = vshrl.u32 %v8649, 7
  %v8651 = vsub.s32 %v2369, %v8650
  %v8652 = vrot.slane %v8116, %v8651
  %v8653 = vsel %vm2374, %v8652, %v8648
  %v8654 = vlaneseq
  %v8655 = vshrl.u32 %v8654, 7
  %v8656 = vsub.s32 %v2364, %v8655
  %v8657 = vrot.slane %v8119, %v8656
  %v8658 = vlaneseq
  %v8659 = vshrl.u32 %v8658, 7
  %v8660 = vsub.s32 %v2369, %v8659
  %v8661 = vrot.slane %v8122, %v8660
  %v8662 = vsel %vm2374, %v8661, %v8657
  %v8663 = vlaneseq
  %v8664 = vshrl.u32 %v8663, 7
  %v8665 = vsub.s32 %v2364, %v8664
  %v8666 = vrot.slane %v8125, %v8665
  %v8667 = vlaneseq
  %v8668 = vshrl.u32 %v8667, 7
  %v8669 = vsub.s32 %v2369, %v8668
  %v8670 = vrot.slane %v8128, %v8669
  %v8671 = vsel %vm2374, %v8670, %v8666
  %v8672 = vlaneseq
  %v8673 = vshrl.u32 %v8672, 7
  %v8674 = vsub.s32 %v2364, %v8673
  %v8675 = vrot.slane %v8131, %v8674
  %v8676 = vlaneseq
  %v8677 = vshrl.u32 %v8676, 7
  %v8678 = vsub.s32 %v2369, %v8677
  %v8679 = vrot.slane %v8134, %v8678
  %v8680 = vsel %vm2374, %v8679, %v8675
  %v8681 = vlaneseq
  %v8682 = vshrl.u32 %v8681, 7
  %v8683 = vsub.s32 %v2364, %v8682
  %v8684 = vrot.slane %v8137, %v8683
  %v8685 = vlaneseq
  %v8686 = vshrl.u32 %v8685, 7
  %v8687 = vsub.s32 %v2369, %v8686
  %v8688 = vrot.slane %v8140, %v8687
  %v8689 = vsel %vm2374, %v8688, %v8684
  %v8690 = vlaneseq
  %v8691 = vshrl.u32 %v8690, 7
  %v8692 = vsub.s32 %v2364, %v8691
  %v8693 = vrot.slane %v8143, %v8692
  %v8694 = vlaneseq
  %v8695 = vshrl.u32 %v8694, 7
  %v8696 = vsub.s32 %v2369, %v8695
  %v8697 = vrot.slane %v8146, %v8696
  %v8698 = vsel %vm2374, %v8697, %v8693
  %v8699 = vlaneseq
  %v8700 = vshrl.u32 %v8699, 7
  %v8701 = vsub.s32 %v2364, %v8700
  %v8702 = vrot.slane %v8149, %v8701
  %v8703 = vlaneseq
  %v8704 = vshrl.u32 %v8703, 7
  %v8705 = vsub.s32 %v2369, %v8704
  %v8706 = vrot.slane %v8152, %v8705
  %v8707 = vsel %vm2374, %v8706, %v8702
  %v8708 = vlaneseq
  %v8709 = vshrl.u32 %v8708, 7
  %v8710 = vsub.s32 %v2364, %v8709
  %v8711 = vrot.slane %v8155, %v8710
  %v8712 = vlaneseq
  %v8713 = vshrl.u32 %v8712, 7
  %v8714 = vsub.s32 %v2369, %v8713
  %v8715 = vrot.slane %v8158, %v8714
  %v8716 = vsel %vm2374, %v8715, %v8711
  %v8717 = vlaneseq
  %v8718 = vshrl.u32 %v8717, 7
  %v8719 = vsub.s32 %v2364, %v8718
  %v8720 = vrot.slane %v8161, %v8719
  %v8721 = vlaneseq
  %v8722 = vshrl.u32 %v8721, 7
  %v8723 = vsub.s32 %v2369, %v8722
  %v8724 = vrot.slane %v8164, %v8723
  %v8725 = vsel %vm2374, %v8724, %v8720
  %v8726 = vlaneseq
  %v8727 = vshrl.u32 %v8726, 7
  %v8728 = vsub.s32 %v2364, %v8727
  %v8729 = vrot.slane %v8167, %v8728
  %v8730 = vlaneseq
  %v8731 = vshrl.u32 %v8730, 7
  %v8732 = vsub.s32 %v2369, %v8731
  %v8733 = vrot.slane %v8170, %v8732
  %v8734 = vsel %vm2374, %v8733, %v8729
  %v8735 = vlaneseq
  %v8736 = vshrl.u32 %v8735, 7
  %v8737 = vsub.s32 %v2364, %v8736
  %v8738 = vrot.slane %v8173, %v8737
  %v8739 = vlaneseq
  %v8740 = vshrl.u32 %v8739, 7
  %v8741 = vsub.s32 %v2369, %v8740
  %v8742 = vrot.slane %v8176, %v8741
  %v8743 = vsel %vm2374, %v8742, %v8738
  %v8744 = vlaneseq
  %v8745 = vshrl.u32 %v8744, 7
  %v8746 = vsub.s32 %v2364, %v8745
  %v8747 = vrot.slane %v8179, %v8746
  %v8748 = vlaneseq
  %v8749 = vshrl.u32 %v8748, 7
  %v8750 = vsub.s32 %v2369, %v8749
  %v8751 = vrot.slane %v8182, %v8750
  %v8752 = vsel %vm2374, %v8751, %v8747
  %v8753 = vlaneseq
  %v8754 = vshrl.u32 %v8753, 7
  %v8755 = vsub.s32 %v2364, %v8754
  %v8756 = vrot.slane %v8185, %v8755
  %v8757 = vlaneseq
  %v8758 = vshrl.u32 %v8757, 7
  %v8759 = vsub.s32 %v2369, %v8758
  %v8760 = vrot.slane %v8188, %v8759
  %v8761 = vsel %vm2374, %v8760, %v8756
  %v8762 = vlaneseq
  %v8763 = vshrl.u32 %v8762, 7
  %v8764 = vsub.s32 %v2364, %v8763
  %v8765 = vrot.slane %v8191, %v8764
  %v8766 = vlaneseq
  %v8767 = vshrl.u32 %v8766, 7
  %v8768 = vsub.s32 %v2369, %v8767
  %v8769 = vrot.slane %v8194, %v8768
  %v8770 = vsel %vm2374, %v8769, %v8765
  %v8771 = vsel %vm2943, %v8212, %v8203
  %v8772 = vsel %vm2945, %v8221, %v8771
  %v8773 = vsel %vm2947, %v8230, %v8772
  %v8774 = vsel %vm2949, %v8239, %v8773
  %v8775 = vsel %vm2951, %v8248, %v8774
  %v8776 = vsel %vm2953, %v8257, %v8775
  %v8777 = vsel %vm2955, %v8266, %v8776
  %v8778 = vsel %vm2943, %v8284, %v8275
  %v8779 = vsel %vm2945, %v8293, %v8778
  %v8780 = vsel %vm2947, %v8302, %v8779
  %v8781 = vsel %vm2949, %v8311, %v8780
  %v8782 = vsel %vm2951, %v8320, %v8781
  %v8783 = vsel %vm2953, %v8329, %v8782
  %v8784 = vsel %vm2955, %v8338, %v8783
  %v8785 = vsel %vm2943, %v8356, %v8347
  %v8786 = vsel %vm2945, %v8365, %v8785
  %v8787 = vsel %vm2947, %v8374, %v8786
  %v8788 = vsel %vm2949, %v8383, %v8787
  %v8789 = vsel %vm2951, %v8392, %v8788
  %v8790 = vsel %vm2953, %v8401, %v8789
  %v8791 = vsel %vm2955, %v8410, %v8790
  %v8792 = vsel %vm2943, %v8428, %v8419
  %v8793 = vsel %vm2945, %v8437, %v8792
  %v8794 = vsel %vm2947, %v8446, %v8793
  %v8795 = vsel %vm2949, %v8455, %v8794
  %v8796 = vsel %vm2951, %v8464, %v8795
  %v8797 = vsel %vm2953, %v8473, %v8796
  %v8798 = vsel %vm2955, %v8482, %v8797
  %v8799 = vsel %vm2943, %v8500, %v8491
  %v8800 = vsel %vm2945, %v8509, %v8799
  %v8801 = vsel %vm2947, %v8518, %v8800
  %v8802 = vsel %vm2949, %v8527, %v8801
  %v8803 = vsel %vm2951, %v8536, %v8802
  %v8804 = vsel %vm2953, %v8545, %v8803
  %v8805 = vsel %vm2955, %v8554, %v8804
  %v8806 = vsel %vm2943, %v8572, %v8563
  %v8807 = vsel %vm2945, %v8581, %v8806
  %v8808 = vsel %vm2947, %v8590, %v8807
  %v8809 = vsel %vm2949, %v8599, %v8808
  %v8810 = vsel %vm2951, %v8608, %v8809
  %v8811 = vsel %vm2953, %v8617, %v8810
  %v8812 = vsel %vm2955, %v8626, %v8811
  %v8813 = vsel %vm2943, %v8644, %v8635
  %v8814 = vsel %vm2945, %v8653, %v8813
  %v8815 = vsel %vm2947, %v8662, %v8814
  %v8816 = vsel %vm2949, %v8671, %v8815
  %v8817 = vsel %vm2951, %v8680, %v8816
  %v8818 = vsel %vm2953, %v8689, %v8817
  %v8819 = vsel %vm2955, %v8698, %v8818
  %v8820 = vsel %vm2943, %v8716, %v8707
  %v8821 = vsel %vm2945, %v8725, %v8820
  %v8822 = vsel %vm2947, %v8734, %v8821
  %v8823 = vsel %vm2949, %v8743, %v8822
  %v8824 = vsel %vm2951, %v8752, %v8823
  %v8825 = vsel %vm2953, %v8761, %v8824
  %v8826 = vsel %vm2955, %v8770, %v8825
  %v8827 = vsel %vm3014, %v8777, 2147483647
  %v8828 = vand.u32 %v8827, 65535
  %v8829 = vshra.s32 %v8827, 16
  %v8830 = vcvt.s32.f32 %v8828
  %v8831 = vcvt.s32.f32 %v8829
  %8832 = vmin.xlane.f32.xlu0 %v8831
  %v8833 = vpop.xlane.xlu0 %8832
  %vm8834 = vcmp.eq.f32.partialorder %v8831, %v8833
  %v8835 = vsel %vm8834, %v8830, inf
  %8836 = vmin.xlane.f32.xlu0 %v8835
  %v8837 = vpop.xlane.xlu0 %8836
  %v8838 = vcvt.f32.s32 %v8837
  %v8839 = vcvt.f32.s32 %v8833
  %v8840 = vshll.u32 %v8839, 16
  %v8841 = vadd.s32 %v8840, %v8838
  %v8842 = vsel %vm3014, %v8784, 2147483647
  %v8843 = vand.u32 %v8842, 65535
  %v8844 = vshra.s32 %v8842, 16
  %v8845 = vcvt.s32.f32 %v8843
  %v8846 = vcvt.s32.f32 %v8844
  %8847 = vmin.xlane.f32.xlu0 %v8846
  %v8848 = vpop.xlane.xlu0 %8847
  %vm8849 = vcmp.eq.f32.partialorder %v8846, %v8848
  %v8850 = vsel %vm8849, %v8845, inf
  %8851 = vmin.xlane.f32.xlu0 %v8850
  %v8852 = vpop.xlane.xlu0 %8851
  %v8853 = vcvt.f32.s32 %v8852
  %v8854 = vcvt.f32.s32 %v8848
  %v8855 = vshll.u32 %v8854, 16
  %v8856 = vadd.s32 %v8855, %v8853
  %v8857 = vsel %vm3014, %v8791, 2147483647
  %v8858 = vand.u32 %v8857, 65535
  %v8859 = vshra.s32 %v8857, 16
  %v8860 = vcvt.s32.f32 %v8858
  %v8861 = vcvt.s32.f32 %v8859
  %8862 = vmin.xlane.f32.xlu0 %v8861
  %v8863 = vpop.xlane.xlu0 %8862
  %vm8864 = vcmp.eq.f32.partialorder %v8861, %v8863
  %v8865 = vsel %vm8864, %v8860, inf
  %8866 = vmin.xlane.f32.xlu0 %v8865
  %v8867 = vpop.xlane.xlu0 %8866
  %v8868 = vcvt.f32.s32 %v8867
  %v8869 = vcvt.f32.s32 %v8863
  %v8870 = vshll.u32 %v8869, 16
  %v8871 = vadd.s32 %v8870, %v8868
  %v8872 = vsel %vm3014, %v8798, 2147483647
  %v8873 = vand.u32 %v8872, 65535
  %v8874 = vshra.s32 %v8872, 16
  %v8875 = vcvt.s32.f32 %v8873
  %v8876 = vcvt.s32.f32 %v8874
  %8877 = vmin.xlane.f32.xlu0 %v8876
  %v8878 = vpop.xlane.xlu0 %8877
  %vm8879 = vcmp.eq.f32.partialorder %v8876, %v8878
  %v8880 = vsel %vm8879, %v8875, inf
  %8881 = vmin.xlane.f32.xlu0 %v8880
  %v8882 = vpop.xlane.xlu0 %8881
  %v8883 = vcvt.f32.s32 %v8882
  %v8884 = vcvt.f32.s32 %v8878
  %v8885 = vshll.u32 %v8884, 16
  %v8886 = vadd.s32 %v8885, %v8883
  %v8887 = vsel %vm3014, %v8805, 2147483647
  %v8888 = vand.u32 %v8887, 65535
  %v8889 = vshra.s32 %v8887, 16
  %v8890 = vcvt.s32.f32 %v8888
  %v8891 = vcvt.s32.f32 %v8889
  %8892 = vmin.xlane.f32.xlu0 %v8891
  %v8893 = vpop.xlane.xlu0 %8892
  %vm8894 = vcmp.eq.f32.partialorder %v8891, %v8893
  %v8895 = vsel %vm8894, %v8890, inf
  %8896 = vmin.xlane.f32.xlu0 %v8895
  %v8897 = vpop.xlane.xlu0 %8896
  %v8898 = vcvt.f32.s32 %v8897
  %v8899 = vcvt.f32.s32 %v8893
  %v8900 = vshll.u32 %v8899, 16
  %v8901 = vadd.s32 %v8900, %v8898
  %v8902 = vsel %vm3014, %v8812, 2147483647
  %v8903 = vand.u32 %v8902, 65535
  %v8904 = vshra.s32 %v8902, 16
  %v8905 = vcvt.s32.f32 %v8903
  %v8906 = vcvt.s32.f32 %v8904
  %8907 = vmin.xlane.f32.xlu0 %v8906
  %v8908 = vpop.xlane.xlu0 %8907
  %vm8909 = vcmp.eq.f32.partialorder %v8906, %v8908
  %v8910 = vsel %vm8909, %v8905, inf
  %8911 = vmin.xlane.f32.xlu0 %v8910
  %v8912 = vpop.xlane.xlu0 %8911
  %v8913 = vcvt.f32.s32 %v8912
  %v8914 = vcvt.f32.s32 %v8908
  %v8915 = vshll.u32 %v8914, 16
  %v8916 = vadd.s32 %v8915, %v8913
  %v8917 = vsel %vm3014, %v8819, 2147483647
  %v8918 = vand.u32 %v8917, 65535
  %v8919 = vshra.s32 %v8917, 16
  %v8920 = vcvt.s32.f32 %v8918
  %v8921 = vcvt.s32.f32 %v8919
  %8922 = vmin.xlane.f32.xlu0 %v8921
  %v8923 = vpop.xlane.xlu0 %8922
  %vm8924 = vcmp.eq.f32.partialorder %v8921, %v8923
  %v8925 = vsel %vm8924, %v8920, inf
  %8926 = vmin.xlane.f32.xlu0 %v8925
  %v8927 = vpop.xlane.xlu0 %8926
  %v8928 = vcvt.f32.s32 %v8927
  %v8929 = vcvt.f32.s32 %v8923
  %v8930 = vshll.u32 %v8929, 16
  %v8931 = vadd.s32 %v8930, %v8928
  %v8932 = vsel %vm3014, %v8826, 2147483647
  %v8933 = vand.u32 %v8932, 65535
  %v8934 = vshra.s32 %v8932, 16
  %v8935 = vcvt.s32.f32 %v8933
  %v8936 = vcvt.s32.f32 %v8934
  %8937 = vmin.xlane.f32.xlu0 %v8936
  %v8938 = vpop.xlane.xlu0 %8937
  %vm8939 = vcmp.eq.f32.partialorder %v8936, %v8938
  %v8940 = vsel %vm8939, %v8935, inf
  %8941 = vmin.xlane.f32.xlu0 %v8940
  %v8942 = vpop.xlane.xlu0 %8941
  %v8943 = vcvt.f32.s32 %v8942
  %v8944 = vcvt.f32.s32 %v8938
  %v8945 = vshll.u32 %v8944, 16
  %v8946 = vadd.s32 %v8945, %v8943
  %vm8947 = vcmp.eq.s32.totalorder %v2364, %v8841
  %vm8948 = vcmp.eq.s32.totalorder %v2364, %v8856
  %vm8949 = vcmp.eq.s32.totalorder %v2364, %v8871
  %vm8950 = vcmp.eq.s32.totalorder %v2364, %v8886
  %vm8951 = vcmp.eq.s32.totalorder %v2364, %v8901
  %vm8952 = vcmp.eq.s32.totalorder %v2364, %v8916
  %vm8953 = vcmp.eq.s32.totalorder %v2364, %v8931
  %vm8954 = vcmp.eq.s32.totalorder %v2364, %v8946
  %v8955 = vsel %vm8947, 1, 0
  %v8956 = vsel %vm8948, 1, 0
  %v8957 = vsel %vm8949, 1, 0
  %v8958 = vsel %vm8950, 1, 0
  %v8959 = vsel %vm8951, 1, 0
  %v8960 = vsel %vm8952, 1, 0
  %v8961 = vsel %vm8953, 1, 0
  %v8962 = vsel %vm8954, 1, 0
  %v8963 = vcvt.s32.f32 %v8955
  %v8964 = vcvt.s32.f32 %v8956
  %v8965 = vcvt.s32.f32 %v8957
  %v8966 = vcvt.s32.f32 %v8958
  %v8967 = vcvt.s32.f32 %v8959
  %v8968 = vcvt.s32.f32 %v8960
  %v8969 = vcvt.s32.f32 %v8961
  %v8970 = vcvt.s32.f32 %v8962
  %8971 = vst.msk [vmem:[%s7 + $0x40] sm:$0xff] %vm3014, %v8963
  %8972 = vst.msk [vmem:[%s7 + $0x48] sm:$0xff] %vm3014, %v8964
  %8973 = vst.msk [vmem:[%s7 + $0x50] sm:$0xff] %vm3014, %v8965
  %8974 = vst.msk [vmem:[%s7 + $0x58] sm:$0xff] %vm3014, %v8966
  %8975 = vst.msk [vmem:[%s7 + $0x60] sm:$0xff] %vm3014, %v8967
  %8976 = vst.msk [vmem:[%s7 + $0x68] sm:$0xff] %vm3014, %v8968
  %8977 = vst.msk [vmem:[%s7 + $0x70] sm:$0xff] %vm3014, %v8969
  %8978 = vst.msk [vmem:[%s7 + $0x78] sm:$0xff] %vm3014, %v8970
  %v8980 = vsel %vm3014, %v8963, 0
  %v8983 = vsel %vm3014, %v8964, 0
  %v8986 = vsel %vm3014, %v8965, 0
  %v8989 = vsel %vm3014, %v8966, 0
  %v8992 = vsel %vm3014, %v8967, 0
  %v8995 = vsel %vm3014, %v8968, 0
  %v8998 = vsel %vm3014, %v8969, 0
  %v9001 = vsel %vm3014, %v8970, 0
  %9003 = vmatprep.subr.mxu0 0.0
  %9004 = vmatpush1.msra.mxu0 %v4930
  %9005 = vmatprep.subr.mxu0 0.0
  %9006 = vmatpush1.msra.mxu0 %v4931
  %9007 = vmatprep.subr.mxu0 0.0
  %9008 = vmatpush1.msra.mxu0 0.0
  %9009 = vmatprep.subr.mxu0 0.0
  %9010 = vmatpush1.msra.mxu0 0.0
  %9011 = vmatprep.subr.mxu0 0.0
  %9012 = vmatpush1.msra.mxu0 0.0
  %9013 = vmatprep.subr.mxu0 0.0
  %9014 = vmatpush1.msra.mxu0 0.0
  %9015 = vmatprep.subr.mxu0 0.0
  %9016 = vmatpush1.msra.mxu0 0.0
  %9017 = vmatprep.subr.mxu0 0.0
  %9018 = vmatpush1.msra.mxu0 0.0
  %9019 = vmatprep.subr.mxu0 0.0
  %9020 = vmatpush1.msra.mxu0 0.0
  %9021 = vmatprep.subr.mxu0 0.0
  %9022 = vmatpush1.msra.mxu0 0.0
  %9023 = vmatprep.subr.mxu0 0.0
  %9024 = vmatpush1.msra.mxu0 0.0
  %9025 = vmatprep.subr.mxu0 0.0
  %9026 = vmatpush1.msra.mxu0 0.0
  %9027 = vmatprep.subr.mxu0 0.0
  %9028 = vmatpush1.msra.mxu0 0.0
  %9029 = vmatprep.subr.mxu0 0.0
  %9030 = vmatpush1.msra.mxu0 0.0
  %9031 = vmatprep.subr.mxu0 0.0
  %9032 = vmatpush1.msra.mxu0 0.0
  %9033 = vmatprep.subr.mxu0 0.0
  %9034 = vmatpush1.msra.mxu0 0.0
  %9035 = vmatprep.subr.mxu0 0.0
  %9036 = vmatpush1.msra.mxu0 0.0
  %9037 = vmatprep.subr.mxu0 0.0
  %9038 = vmatpush1.msra.mxu0 0.0
  %9039 = vmatprep.subr.mxu0 0.0
  %9040 = vmatpush1.msra.mxu0 0.0
  %9041 = vmatprep.subr.mxu0 0.0
  %9042 = vmatpush1.msra.mxu0 0.0
  %9043 = vmatprep.subr.mxu0 0.0
  %9044 = vmatpush1.msra.mxu0 0.0
  %9045 = vmatprep.subr.mxu0 0.0
  %9046 = vmatpush1.msra.mxu0 0.0
  %9047 = vmatprep.subr.mxu0 0.0
  %9048 = vmatpush1.msra.mxu0 0.0
  %9049 = vmatprep.subr.mxu0 0.0
  %9050 = vmatpush1.msra.mxu0 0.0
  %9051 = vmatprep.subr.mxu0 0.0
  %9052 = vmatpush1.msra.mxu0 0.0
  %9053 = vmatprep.subr.mxu0 0.0
  %9054 = vmatpush1.msra.mxu0 0.0
  %9055 = vmatprep.subr.mxu0 0.0
  %9056 = vmatpush1.msra.mxu0 0.0
  %9057 = vmatprep.subr.mxu0 0.0
  %9058 = vmatpush1.msra.mxu0 0.0
  %9059 = vmatprep.subr.mxu0 0.0
  %9060 = vmatpush1.msra.mxu0 0.0
  %9061 = vmatprep.subr.mxu0 0.0
  %9062 = vmatpush1.msra.mxu0 0.0
  %9063 = vmatprep.subr.mxu0 0.0
  %9064 = vmatpush1.msra.mxu0 0.0
  %9065 = vmatprep.subr.mxu0 0.0
  %9066 = vmatpush1.msra.mxu0 0.0
  %9067 = vmatprep.mubr.f32.mxu0 0.0
  %9068 = vmatmul.mubr.f32.gmra.mrb[0].mxu0 %v8980
  %v9069 = vpop.f32.mrb[0].mxu0
  %v9070 = vadd.f32 0.0, %v9069
  %v9071 = vpop.f32.mrb[0].mxu0
  %9072 = vmatprep.mubr.f32.mxu0 0.0
  %9073 = vmatmul.mubr.f32.gmra.mrb[0].mxu0 %v8983
  %v9074 = vpop.f32.mrb[0].mxu0
  %v9075 = vadd.f32 0.0, %v9074
  %v9076 = vpop.f32.mrb[0].mxu0
  %9077 = vmatprep.mubr.f32.mxu0 0.0
  %9078 = vmatmul.mubr.f32.gmra.mrb[0].mxu0 %v8986
  %v9079 = vpop.f32.mrb[0].mxu0
  %v9080 = vadd.f32 0.0, %v9079
  %v9081 = vpop.f32.mrb[0].mxu0
  %9082 = vmatprep.mubr.f32.mxu0 0.0
  %9083 = vmatmul.mubr.f32.gmra.mrb[0].mxu0 %v8989
  %v9084 = vpop.f32.mrb[0].mxu0
  %v9085 = vadd.f32 0.0, %v9084
  %v9086 = vpop.f32.mrb[0].mxu0
  %9087 = vmatprep.mubr.f32.mxu0 0.0
  %9088 = vmatmul.mubr.f32.gmra.mrb[0].mxu0 %v8992
  %v9089 = vpop.f32.mrb[0].mxu0
  %v9090 = vadd.f32 0.0, %v9089
  %v9091 = vpop.f32.mrb[0].mxu0
  %9092 = vmatprep.mubr.f32.mxu0 0.0
  %9093 = vmatmul.mubr.f32.gmra.mrb[0].mxu0 %v8995
  %v9094 = vpop.f32.mrb[0].mxu0
  %v9095 = vadd.f32 0.0, %v9094
  %v9096 = vpop.f32.mrb[0].mxu0
  %9097 = vmatprep.mubr.f32.mxu0 0.0
  %9098 = vmatmul.mubr.f32.gmra.mrb[0].mxu0 %v8998
  %v9099 = vpop.f32.mrb[0].mxu0
  %v9100 = vadd.f32 0.0, %v9099
  %v9101 = vpop.f32.mrb[0].mxu0
  %9102 = vmatprep.mubr.f32.mxu0 0.0
  %9103 = vmatmul.mubr.f32.gmra.mrb[0].mxu0 %v9001
  %v9104 = vpop.f32.mrb[0].mxu0
  %v9105 = vadd.f32 0.0, %v9104
  %v9106 = vpop.f32.mrb[0].mxu0
  %9107 = vdwg.mxu0
  %v9108 = vlaneseq
  %v9109 = vshrl.u32 %v9108, 7
  %v9110 = vsub.s32 0, %v9109
  %v9111 = vrot.slane %v56, %v9110
  %v9113 = vsel %vm477, %v4889, 0
  %v9116 = vsel %vm477, %v4894, 0
  %v9119 = vsel %vm477, %v4899, 0
  %v9122 = vsel %vm477, %v4904, 0
  %v9125 = vsel %vm477, %v4909, 0
  %v9128 = vsel %vm477, %v4914, 0
  %v9131 = vsel %vm477, %v4919, 0
  %v9134 = vsel %vm477, %v4924, 0
  %v9137 = vsel %vm477, %v9070, 0
  %v9140 = vsel %vm477, %v9075, 0
  %v9143 = vsel %vm477, %v9080, 0
  %v9146 = vsel %vm477, %v9085, 0
  %v9149 = vsel %vm477, %v9090, 0
  %v9152 = vsel %vm477, %v9095, 0
  %v9155 = vsel %vm477, %v9100, 0
  %v9158 = vsel %vm477, %v9105, 0
  %9160 = vmatprep.subr.mxu0 0.0
  %9161 = vmatpush1.msra.mxu0 %v53
  %9162 = vmatprep.subr.mxu0 0.0
  %9163 = vmatpush1.msra.mxu0 0.0
  %9164 = vmatprep.subr.mxu0 0.0
  %9165 = vmatpush1.msra.mxu0 0.0
  %9166 = vmatprep.subr.mxu0 0.0
  %9167 = vmatpush1.msra.mxu0 0.0
  %9168 = vmatprep.subr.mxu0 0.0
  %9169 = vmatpush1.msra.mxu0 0.0
  %9170 = vmatprep.subr.mxu0 0.0
  %9171 = vmatpush1.msra.mxu0 0.0
  %9172 = vmatprep.subr.mxu0 0.0
  %9173 = vmatpush1.msra.mxu0 0.0
  %9174 = vmatprep.subr.mxu0 0.0
  %9175 = vmatpush1.msra.mxu0 0.0
  %9176 = vmatprep.subr.mxu0 0.0
  %9177 = vmatpush1.msra.mxu0 0.0
  %9178 = vmatprep.subr.mxu0 0.0
  %9179 = vmatpush1.msra.mxu0 0.0
  %9180 = vmatprep.subr.mxu0 0.0
  %9181 = vmatpush1.msra.mxu0 0.0
  %9182 = vmatprep.subr.mxu0 0.0
  %9183 = vmatpush1.msra.mxu0 0.0
  %9184 = vmatprep.subr.mxu0 0.0
  %9185 = vmatpush1.msra.mxu0 0.0
  %9186 = vmatprep.subr.mxu0 0.0
  %9187 = vmatpush1.msra.mxu0 0.0
  %9188 = vmatprep.subr.mxu0 0.0
  %9189 = vmatpush1.msra.mxu0 0.0
  %9190 = vmatprep.subr.mxu0 0.0
  %9191 = vmatpush1.msra.mxu0 0.0
  %9192 = vmatprep.subr.mxu0 0.0
  %9193 = vmatpush1.msra.mxu0 0.0
  %9194 = vmatprep.subr.mxu0 0.0
  %9195 = vmatpush1.msra.mxu0 0.0
  %9196 = vmatprep.subr.mxu0 0.0
  %9197 = vmatpush1.msra.mxu0 0.0
  %9198 = vmatprep.subr.mxu0 0.0
  %9199 = vmatpush1.msra.mxu0 0.0
  %9200 = vmatprep.subr.mxu0 0.0
  %9201 = vmatpush1.msra.mxu0 0.0
  %9202 = vmatprep.subr.mxu0 0.0
  %9203 = vmatpush1.msra.mxu0 0.0
  %9204 = vmatprep.subr.mxu0 0.0
  %9205 = vmatpush1.msra.mxu0 0.0
  %9206 = vmatprep.subr.mxu0 0.0
  %9207 = vmatpush1.msra.mxu0 0.0
  %9208 = vmatprep.subr.mxu0 0.0
  %9209 = vmatpush1.msra.mxu0 0.0
  %9210 = vmatprep.subr.mxu0 0.0
  %9211 = vmatpush1.msra.mxu0 0.0
  %9212 = vmatprep.subr.mxu0 0.0
  %9213 = vmatpush1.msra.mxu0 0.0
  %9214 = vmatprep.subr.mxu0 0.0
  %9215 = vmatpush1.msra.mxu0 0.0
  %9216 = vmatprep.subr.mxu0 0.0
  %9217 = vmatpush1.msra.mxu0 0.0
  %9218 = vmatprep.subr.mxu0 0.0
  %9219 = vmatpush1.msra.mxu0 0.0
  %9220 = vmatprep.subr.mxu0 0.0
  %9221 = vmatpush1.msra.mxu0 0.0
  %9222 = vmatprep.subr.mxu0 0.0
  %9223 = vmatpush1.msra.mxu0 0.0
  %9224 = vmatprep.mubr.f32.mxu0 0.0
  %9225 = vmatmul.mubr.f32.gmra.mrb[0].mxu0 %v9113
  %v9226 = vpop.f32.mrb[0].mxu0
  %v9227 = vadd.f32 %v9111, %v9226
  %v9228 = vpop.f32.mrb[0].mxu0
  %9229 = vmatprep.mubr.f32.mxu0 0.0
  %9230 = vmatmul.mubr.f32.gmra.mrb[0].mxu0 %v9116
  %v9231 = vpop.f32.mrb[0].mxu0
  %v9232 = vadd.f32 %v9111, %v9231
  %v9233 = vpop.f32.mrb[0].mxu0
  %9234 = vmatprep.mubr.f32.mxu0 0.0
  %9235 = vmatmul.mubr.f32.gmra.mrb[0].mxu0 %v9119
  %v9236 = vpop.f32.mrb[0].mxu0
  %v9237 = vadd.f32 %v9111, %v9236
  %v9238 = vpop.f32.mrb[0].mxu0
  %9239 = vmatprep.mubr.f32.mxu0 0.0
  %9240 = vmatmul.mubr.f32.gmra.mrb[0].mxu0 %v9122
  %v9241 = vpop.f32.mrb[0].mxu0
  %v9242 = vadd.f32 %v9111, %v9241
  %v9243 = vpop.f32.mrb[0].mxu0
  %9244 = vmatprep.mubr.f32.mxu0 0.0
  %9245 = vmatmul.mubr.f32.gmra.mrb[0].mxu0 %v9125
  %v9246 = vpop.f32.mrb[0].mxu0
  %v9247 = vadd.f32 %v9111, %v9246
  %v9248 = vpop.f32.mrb[0].mxu0
  %9249 = vmatprep.mubr.f32.mxu0 0.0
  %9250 = vmatmul.mubr.f32.gmra.mrb[0].mxu0 %v9128
  %v9251 = vpop.f32.mrb[0].mxu0
  %v9252 = vadd.f32 %v9111, %v9251
  %v9253 = vpop.f32.mrb[0].mxu0
  %9254 = vmatprep.mubr.f32.mxu0 0.0
  %9255 = vmatmul.mubr.f32.gmra.mrb[0].mxu0 %v9131
  %v9256 = vpop.f32.mrb[0].mxu0
  %v9257 = vadd.f32 %v9111, %v9256
  %v9258 = vpop.f32.mrb[0].mxu0
  %9259 = vmatprep.mubr.f32.mxu0 0.0
  %9260 = vmatmul.mubr.f32.gmra.mrb[0].mxu0 %v9134
  %v9261 = vpop.f32.mrb[0].mxu0
  %v9262 = vadd.f32 %v9111, %v9261
  %v9263 = vpop.f32.mrb[0].mxu0
  %9264 = vmatprep.mubr.f32.mxu0 0.0
  %9265 = vmatmul.mubr.f32.gmra.mrb[0].mxu0 %v9137
  %v9266 = vpop.f32.mrb[0].mxu0
  %v9267 = vadd.f32 %v9111, %v9266
  %v9268 = vpop.f32.mrb[0].mxu0
  %9269 = vmatprep.mubr.f32.mxu0 0.0
  %9270 = vmatmul.mubr.f32.gmra.mrb[0].mxu0 %v9140
  %v9271 = vpop.f32.mrb[0].mxu0
  %v9272 = vadd.f32 %v9111, %v9271
  %v9273 = vpop.f32.mrb[0].mxu0
  %9274 = vmatprep.mubr.f32.mxu0 0.0
  %9275 = vmatmul.mubr.f32.gmra.mrb[0].mxu0 %v9143
  %v9276 = vpop.f32.mrb[0].mxu0
  %v9277 = vadd.f32 %v9111, %v9276
  %v9278 = vpop.f32.mrb[0].mxu0
  %9279 = vmatprep.mubr.f32.mxu0 0.0
  %9280 = vmatmul.mubr.f32.gmra.mrb[0].mxu0 %v9146
  %v9281 = vpop.f32.mrb[0].mxu0
  %v9282 = vadd.f32 %v9111, %v9281
  %v9283 = vpop.f32.mrb[0].mxu0
  %9284 = vmatprep.mubr.f32.mxu0 0.0
  %9285 = vmatmul.mubr.f32.gmra.mrb[0].mxu0 %v9149
  %v9286 = vpop.f32.mrb[0].mxu0
  %v9287 = vadd.f32 %v9111, %v9286
  %v9288 = vpop.f32.mrb[0].mxu0
  %9289 = vmatprep.mubr.f32.mxu0 0.0
  %9290 = vmatmul.mubr.f32.gmra.mrb[0].mxu0 %v9152
  %v9291 = vpop.f32.mrb[0].mxu0
  %v9292 = vadd.f32 %v9111, %v9291
  %v9293 = vpop.f32.mrb[0].mxu0
  %9294 = vmatprep.mubr.f32.mxu0 0.0
  %9295 = vmatmul.mubr.f32.gmra.mrb[0].mxu0 %v9155
  %v9296 = vpop.f32.mrb[0].mxu0
  %v9297 = vadd.f32 %v9111, %v9296
  %v9298 = vpop.f32.mrb[0].mxu0
  %9299 = vmatprep.mubr.f32.mxu0 0.0
  %9300 = vmatmul.mubr.f32.gmra.mrb[0].mxu0 %v9158
  %v9301 = vpop.f32.mrb[0].mxu0
  %v9302 = vadd.f32 %v9111, %v9301
  %v9303 = vpop.f32.mrb[0].mxu0
  %9304 = vdwg.mxu0
  %v9305 = vmax.f32 %v9227, 0.0
  %v9306 = vmax.f32 %v9232, 0.0
  %v9307 = vmax.f32 %v9237, 0.0
  %v9308 = vmax.f32 %v9242, 0.0
  %v9309 = vmax.f32 %v9247, 0.0
  %v9310 = vmax.f32 %v9252, 0.0
  %v9311 = vmax.f32 %v9257, 0.0
  %v9312 = vmax.f32 %v9262, 0.0
  %v9313 = vmax.f32 %v9267, 0.0
  %v9314 = vmax.f32 %v9272, 0.0
  %v9315 = vmax.f32 %v9277, 0.0
  %v9316 = vmax.f32 %v9282, 0.0
  %v9317 = vmax.f32 %v9287, 0.0
  %v9318 = vmax.f32 %v9292, 0.0
  %v9319 = vmax.f32 %v9297, 0.0
  %v9320 = vmax.f32 %v9302, 0.0
  %v9321 = vlaneseq
  %v9322 = vshrl.u32 %v9321, 7
  %v9323 = vsub.s32 0, %v9322
  %v9324 = vrot.slane %v57, %v9323
  %v9326 = vsel %vm67, %v9305, 0
  %v9329 = vsel %vm67, %v9306, 0
  %v9332 = vsel %vm67, %v9307, 0
  %v9335 = vsel %vm67, %v9308, 0
  %v9338 = vsel %vm67, %v9309, 0
  %v9341 = vsel %vm67, %v9310, 0
  %v9344 = vsel %vm67, %v9311, 0
  %v9347 = vsel %vm67, %v9312, 0
  %v9350 = vsel %vm67, %v9313, 0
  %v9353 = vsel %vm67, %v9314, 0
  %v9356 = vsel %vm67, %v9315, 0
  %v9359 = vsel %vm67, %v9316, 0
  %v9362 = vsel %vm67, %v9317, 0
  %v9365 = vsel %vm67, %v9318, 0
  %v9368 = vsel %vm67, %v9319, 0
  %v9371 = vsel %vm67, %v9320, 0
  %9373 = vmatprep.subr.mxu0 0.0
  %9374 = vmatpush1.msra.mxu0 %v49
  %9375 = vmatprep.subr.mxu0 0.0
  %9376 = vmatpush1.msra.mxu0 %v50
  %9377 = vmatprep.subr.mxu0 0.0
  %9378 = vmatpush1.msra.mxu0 %v51
  %9379 = vmatprep.subr.mxu0 0.0
  %9380 = vmatpush1.msra.mxu0 %v52
  %9381 = vmatprep.subr.mxu0 0.0
  %9382 = vmatpush1.msra.mxu0 0.0
  %9383 = vmatprep.subr.mxu0 0.0
  %9384 = vmatpush1.msra.mxu0 0.0
  %9385 = vmatprep.subr.mxu0 0.0
  %9386 = vmatpush1.msra.mxu0 0.0
  %9387 = vmatprep.subr.mxu0 0.0
  %9388 = vmatpush1.msra.mxu0 0.0
  %9389 = vmatprep.subr.mxu0 0.0
  %9390 = vmatpush1.msra.mxu0 0.0
  %9391 = vmatprep.subr.mxu0 0.0
  %9392 = vmatpush1.msra.mxu0 0.0
  %9393 = vmatprep.subr.mxu0 0.0
  %9394 = vmatpush1.msra.mxu0 0.0
  %9395 = vmatprep.subr.mxu0 0.0
  %9396 = vmatpush1.msra.mxu0 0.0
  %9397 = vmatprep.subr.mxu0 0.0
  %9398 = vmatpush1.msra.mxu0 0.0
  %9399 = vmatprep.subr.mxu0 0.0
  %9400 = vmatpush1.msra.mxu0 0.0
  %9401 = vmatprep.subr.mxu0 0.0
  %9402 = vmatpush1.msra.mxu0 0.0
  %9403 = vmatprep.subr.mxu0 0.0
  %9404 = vmatpush1.msra.mxu0 0.0
  %9405 = vmatprep.subr.mxu0 0.0
  %9406 = vmatpush1.msra.mxu0 0.0
  %9407 = vmatprep.subr.mxu0 0.0
  %9408 = vmatpush1.msra.mxu0 0.0
  %9409 = vmatprep.subr.mxu0 0.0
  %9410 = vmatpush1.msra.mxu0 0.0
  %9411 = vmatprep.subr.mxu0 0.0
  %9412 = vmatpush1.msra.mxu0 0.0
  %9413 = vmatprep.subr.mxu0 0.0
  %9414 = vmatpush1.msra.mxu0 0.0
  %9415 = vmatprep.subr.mxu0 0.0
  %9416 = vmatpush1.msra.mxu0 0.0
  %9417 = vmatprep.subr.mxu0 0.0
  %9418 = vmatpush1.msra.mxu0 0.0
  %9419 = vmatprep.subr.mxu0 0.0
  %9420 = vmatpush1.msra.mxu0 0.0
  %9421 = vmatprep.subr.mxu0 0.0
  %9422 = vmatpush1.msra.mxu0 0.0
  %9423 = vmatprep.subr.mxu0 0.0
  %9424 = vmatpush1.msra.mxu0 0.0
  %9425 = vmatprep.subr.mxu0 0.0
  %9426 = vmatpush1.msra.mxu0 0.0
  %9427 = vmatprep.subr.mxu0 0.0
  %9428 = vmatpush1.msra.mxu0 0.0
  %9429 = vmatprep.subr.mxu0 0.0
  %9430 = vmatpush1.msra.mxu0 0.0
  %9431 = vmatprep.subr.mxu0 0.0
  %9432 = vmatpush1.msra.mxu0 0.0
  %9433 = vmatprep.subr.mxu0 0.0
  %9434 = vmatpush1.msra.mxu0 0.0
  %9435 = vmatprep.subr.mxu0 0.0
  %9436 = vmatpush1.msra.mxu0 0.0
  %9437 = vmatprep.mubr.f32.mxu0 0.0
  %9438 = vmatmul.mubr.f32.gmra.mrb[0].mxu0 %v9326
  %v9439 = vpop.f32.mrb[0].mxu0
  %v9440 = vadd.f32 %v9324, %v9439
  %v9441 = vpop.f32.mrb[0].mxu0
  %9442 = vmatprep.mubr.f32.mxu0 0.0
  %9443 = vmatmul.mubr.f32.gmra.mrb[0].mxu0 %v9329
  %v9444 = vpop.f32.mrb[0].mxu0
  %v9445 = vadd.f32 %v9324, %v9444
  %v9446 = vpop.f32.mrb[0].mxu0
  %9447 = vmatprep.mubr.f32.mxu0 0.0
  %9448 = vmatmul.mubr.f32.gmra.mrb[0].mxu0 %v9332
  %v9449 = vpop.f32.mrb[0].mxu0
  %v9450 = vadd.f32 %v9324, %v9449
  %v9451 = vpop.f32.mrb[0].mxu0
  %9452 = vmatprep.mubr.f32.mxu0 0.0
  %9453 = vmatmul.mubr.f32.gmra.mrb[0].mxu0 %v9335
  %v9454 = vpop.f32.mrb[0].mxu0
  %v9455 = vadd.f32 %v9324, %v9454
  %v9456 = vpop.f32.mrb[0].mxu0
  %9457 = vmatprep.mubr.f32.mxu0 0.0
  %9458 = vmatmul.mubr.f32.gmra.mrb[0].mxu0 %v9338
  %v9459 = vpop.f32.mrb[0].mxu0
  %v9460 = vadd.f32 %v9324, %v9459
  %v9461 = vpop.f32.mrb[0].mxu0
  %9462 = vmatprep.mubr.f32.mxu0 0.0
  %9463 = vmatmul.mubr.f32.gmra.mrb[0].mxu0 %v9341
  %v9464 = vpop.f32.mrb[0].mxu0
  %v9465 = vadd.f32 %v9324, %v9464
  %v9466 = vpop.f32.mrb[0].mxu0
  %9467 = vmatprep.mubr.f32.mxu0 0.0
  %9468 = vmatmul.mubr.f32.gmra.mrb[0].mxu0 %v9344
  %v9469 = vpop.f32.mrb[0].mxu0
  %v9470 = vadd.f32 %v9324, %v9469
  %v9471 = vpop.f32.mrb[0].mxu0
  %9472 = vmatprep.mubr.f32.mxu0 0.0
  %9473 = vmatmul.mubr.f32.gmra.mrb[0].mxu0 %v9347
  %v9474 = vpop.f32.mrb[0].mxu0
  %v9475 = vadd.f32 %v9324, %v9474
  %v9476 = vpop.f32.mrb[0].mxu0
  %9477 = vmatprep.mubr.f32.mxu0 0.0
  %9478 = vmatmul.mubr.f32.gmra.mrb[0].mxu0 %v9350
  %v9479 = vpop.f32.mrb[0].mxu0
  %v9480 = vadd.f32 %v9324, %v9479
  %v9481 = vpop.f32.mrb[0].mxu0
  %9482 = vmatprep.mubr.f32.mxu0 0.0
  %9483 = vmatmul.mubr.f32.gmra.mrb[0].mxu0 %v9353
  %v9484 = vpop.f32.mrb[0].mxu0
  %v9485 = vadd.f32 %v9324, %v9484
  %v9486 = vpop.f32.mrb[0].mxu0
  %9487 = vmatprep.mubr.f32.mxu0 0.0
  %9488 = vmatmul.mubr.f32.gmra.mrb[0].mxu0 %v9356
  %v9489 = vpop.f32.mrb[0].mxu0
  %v9490 = vadd.f32 %v9324, %v9489
  %v9491 = vpop.f32.mrb[0].mxu0
  %9492 = vmatprep.mubr.f32.mxu0 0.0
  %9493 = vmatmul.mubr.f32.gmra.mrb[0].mxu0 %v9359
  %v9494 = vpop.f32.mrb[0].mxu0
  %v9495 = vadd.f32 %v9324, %v9494
  %v9496 = vpop.f32.mrb[0].mxu0
  %9497 = vmatprep.mubr.f32.mxu0 0.0
  %9498 = vmatmul.mubr.f32.gmra.mrb[0].mxu0 %v9362
  %v9499 = vpop.f32.mrb[0].mxu0
  %v9500 = vadd.f32 %v9324, %v9499
  %v9501 = vpop.f32.mrb[0].mxu0
  %9502 = vmatprep.mubr.f32.mxu0 0.0
  %9503 = vmatmul.mubr.f32.gmra.mrb[0].mxu0 %v9365
  %v9504 = vpop.f32.mrb[0].mxu0
  %v9505 = vadd.f32 %v9324, %v9504
  %v9506 = vpop.f32.mrb[0].mxu0
  %9507 = vmatprep.mubr.f32.mxu0 0.0
  %9508 = vmatmul.mubr.f32.gmra.mrb[0].mxu0 %v9368
  %v9509 = vpop.f32.mrb[0].mxu0
  %v9510 = vadd.f32 %v9324, %v9509
  %v9511 = vpop.f32.mrb[0].mxu0
  %9512 = vmatprep.mubr.f32.mxu0 0.0
  %9513 = vmatmul.mubr.f32.gmra.mrb[0].mxu0 %v9371
  %v9514 = vpop.f32.mrb[0].mxu0
  %v9515 = vadd.f32 %v9324, %v9514
  %v9516 = vpop.f32.mrb[0].mxu0
  %9517 = vdwg.mxu0
  %v9518 = vsel %vm67, %v9440, 0.0
  %9519 = vadd.xlane.f32.xlu0 %v9518
  %v9520 = vpop.xlane.xlu0 %9519
  %v9521 = vsel %vm67, %v9445, 0.0
  %9522 = vadd.xlane.f32.xlu0 %v9521
  %v9523 = vpop.xlane.xlu0 %9522
  %v9524 = vsel %vm67, %v9450, 0.0
  %9525 = vadd.xlane.f32.xlu0 %v9524
  %v9526 = vpop.xlane.xlu0 %9525
  %v9527 = vsel %vm67, %v9455, 0.0
  %9528 = vadd.xlane.f32.xlu0 %v9527
  %v9529 = vpop.xlane.xlu0 %9528
  %v9530 = vsel %vm67, %v9460, 0.0
  %9531 = vadd.xlane.f32.xlu0 %v9530
  %v9532 = vpop.xlane.xlu0 %9531
  %v9533 = vsel %vm67, %v9465, 0.0
  %9534 = vadd.xlane.f32.xlu0 %v9533
  %v9535 = vpop.xlane.xlu0 %9534
  %v9536 = vsel %vm67, %v9470, 0.0
  %9537 = vadd.xlane.f32.xlu0 %v9536
  %v9538 = vpop.xlane.xlu0 %9537
  %v9539 = vsel %vm67, %v9475, 0.0
  %9540 = vadd.xlane.f32.xlu0 %v9539
  %v9541 = vpop.xlane.xlu0 %9540
  %v9542 = vsel %vm67, %v9480, 0.0
  %9543 = vadd.xlane.f32.xlu0 %v9542
  %v9544 = vpop.xlane.xlu0 %9543
  %v9545 = vsel %vm67, %v9485, 0.0
  %9546 = vadd.xlane.f32.xlu0 %v9545
  %v9547 = vpop.xlane.xlu0 %9546
  %v9548 = vsel %vm67, %v9490, 0.0
  %9549 = vadd.xlane.f32.xlu0 %v9548
  %v9550 = vpop.xlane.xlu0 %9549
  %v9551 = vsel %vm67, %v9495, 0.0
  %9552 = vadd.xlane.f32.xlu0 %v9551
  %v9553 = vpop.xlane.xlu0 %9552
  %v9554 = vsel %vm67, %v9500, 0.0
  %9555 = vadd.xlane.f32.xlu0 %v9554
  %v9556 = vpop.xlane.xlu0 %9555
  %v9557 = vsel %vm67, %v9505, 0.0
  %9558 = vadd.xlane.f32.xlu0 %v9557
  %v9559 = vpop.xlane.xlu0 %9558
  %v9560 = vsel %vm67, %v9510, 0.0
  %9561 = vadd.xlane.f32.xlu0 %v9560
  %v9562 = vpop.xlane.xlu0 %9561
  %v9563 = vsel %vm67, %v9515, 0.0
  %9564 = vadd.xlane.f32.xlu0 %v9563
  %v9565 = vpop.xlane.xlu0 %9564
  %v9566 = vrcp.pop 32.0
  %v9567 = vmul.f32 %v9520, %v9566
  %v9568 = vmul.f32 %v9523, %v9566
  %v9569 = vmul.f32 %v9526, %v9566
  %v9570 = vmul.f32 %v9529, %v9566
  %v9571 = vmul.f32 %v9532, %v9566
  %v9572 = vmul.f32 %v9535, %v9566
  %v9573 = vmul.f32 %v9538, %v9566
  %v9574 = vmul.f32 %v9541, %v9566
  %v9575 = vmul.f32 %v9544, %v9566
  %v9576 = vmul.f32 %v9547, %v9566
  %v9577 = vmul.f32 %v9550, %v9566
  %v9578 = vmul.f32 %v9553, %v9566
  %v9579 = vmul.f32 %v9556, %v9566
  %v9580 = vmul.f32 %v9559, %v9566
  %v9581 = vmul.f32 %v9562, %v9566
  %v9582 = vmul.f32 %v9565, %v9566
  %v9583 = vsub.f32 %v9440, %v9567
  %v9584 = vsub.f32 %v9445, %v9568
  %v9585 = vsub.f32 %v9450, %v9569
  %v9586 = vsub.f32 %v9455, %v9570
  %v9587 = vsub.f32 %v9460, %v9571
  %v9588 = vsub.f32 %v9465, %v9572
  %v9589 = vsub.f32 %v9470, %v9573
  %v9590 = vsub.f32 %v9475, %v9574
  %v9591 = vsub.f32 %v9480, %v9575
  %v9592 = vsub.f32 %v9485, %v9576
  %v9593 = vsub.f32 %v9490, %v9577
  %v9594 = vsub.f32 %v9495, %v9578
  %v9595 = vsub.f32 %v9500, %v9579
  %v9596 = vsub.f32 %v9505, %v9580
  %v9597 = vsub.f32 %v9510, %v9581
  %v9598 = vsub.f32 %v9515, %v9582
  %v9599 = vmul.f32 %v9583, %v9583
  %v9600 = vmul.f32 %v9584, %v9584
  %v9601 = vmul.f32 %v9585, %v9585
  %v9602 = vmul.f32 %v9586, %v9586
  %v9603 = vmul.f32 %v9587, %v9587
  %v9604 = vmul.f32 %v9588, %v9588
  %v9605 = vmul.f32 %v9589, %v9589
  %v9606 = vmul.f32 %v9590, %v9590
  %v9607 = vmul.f32 %v9591, %v9591
  %v9608 = vmul.f32 %v9592, %v9592
  %v9609 = vmul.f32 %v9593, %v9593
  %v9610 = vmul.f32 %v9594, %v9594
  %v9611 = vmul.f32 %v9595, %v9595
  %v9612 = vmul.f32 %v9596, %v9596
  %v9613 = vmul.f32 %v9597, %v9597
  %v9614 = vmul.f32 %v9598, %v9598
  %v9615 = vsel %vm67, %v9599, 0.0
  %9616 = vadd.xlane.f32.xlu0 %v9615
  %v9617 = vpop.xlane.xlu0 %9616
  %v9618 = vsel %vm67, %v9600, 0.0
  %9619 = vadd.xlane.f32.xlu0 %v9618
  %v9620 = vpop.xlane.xlu0 %9619
  %v9621 = vsel %vm67, %v9601, 0.0
  %9622 = vadd.xlane.f32.xlu0 %v9621
  %v9623 = vpop.xlane.xlu0 %9622
  %v9624 = vsel %vm67, %v9602, 0.0
  %9625 = vadd.xlane.f32.xlu0 %v9624
  %v9626 = vpop.xlane.xlu0 %9625
  %v9627 = vsel %vm67, %v9603, 0.0
  %9628 = vadd.xlane.f32.xlu0 %v9627
  %v9629 = vpop.xlane.xlu0 %9628
  %v9630 = vsel %vm67, %v9604, 0.0
  %9631 = vadd.xlane.f32.xlu0 %v9630
  %v9632 = vpop.xlane.xlu0 %9631
  %v9633 = vsel %vm67, %v9605, 0.0
  %9634 = vadd.xlane.f32.xlu0 %v9633
  %v9635 = vpop.xlane.xlu0 %9634
  %v9636 = vsel %vm67, %v9606, 0.0
  %9637 = vadd.xlane.f32.xlu0 %v9636
  %v9638 = vpop.xlane.xlu0 %9637
  %v9639 = vsel %vm67, %v9607, 0.0
  %9640 = vadd.xlane.f32.xlu0 %v9639
  %v9641 = vpop.xlane.xlu0 %9640
  %v9642 = vsel %vm67, %v9608, 0.0
  %9643 = vadd.xlane.f32.xlu0 %v9642
  %v9644 = vpop.xlane.xlu0 %9643
  %v9645 = vsel %vm67, %v9609, 0.0
  %9646 = vadd.xlane.f32.xlu0 %v9645
  %v9647 = vpop.xlane.xlu0 %9646
  %v9648 = vsel %vm67, %v9610, 0.0
  %9649 = vadd.xlane.f32.xlu0 %v9648
  %v9650 = vpop.xlane.xlu0 %9649
  %v9651 = vsel %vm67, %v9611, 0.0
  %9652 = vadd.xlane.f32.xlu0 %v9651
  %v9653 = vpop.xlane.xlu0 %9652
  %v9654 = vsel %vm67, %v9612, 0.0
  %9655 = vadd.xlane.f32.xlu0 %v9654
  %v9656 = vpop.xlane.xlu0 %9655
  %v9657 = vsel %vm67, %v9613, 0.0
  %9658 = vadd.xlane.f32.xlu0 %v9657
  %v9659 = vpop.xlane.xlu0 %9658
  %v9660 = vsel %vm67, %v9614, 0.0
  %9661 = vadd.xlane.f32.xlu0 %v9660
  %v9662 = vpop.xlane.xlu0 %9661
  %v9663 = vmul.f32 %v9617, %v9566
  %v9664 = vmul.f32 %v9620, %v9566
  %v9665 = vmul.f32 %v9623, %v9566
  %v9666 = vmul.f32 %v9626, %v9566
  %v9667 = vmul.f32 %v9629, %v9566
  %v9668 = vmul.f32 %v9632, %v9566
  %v9669 = vmul.f32 %v9635, %v9566
  %v9670 = vmul.f32 %v9638, %v9566
  %v9671 = vmul.f32 %v9641, %v9566
  %v9672 = vmul.f32 %v9644, %v9566
  %v9673 = vmul.f32 %v9647, %v9566
  %v9674 = vmul.f32 %v9650, %v9566
  %v9675 = vmul.f32 %v9653, %v9566
  %v9676 = vmul.f32 %v9656, %v9566
  %v9677 = vmul.f32 %v9659, %v9566
  %v9678 = vmul.f32 %v9662, %v9566
  %v9679 = vadd.f32 %v9663, 1e-05
  %v9680 = vadd.f32 %v9664, 1e-05
  %v9681 = vadd.f32 %v9665, 1e-05
  %v9682 = vadd.f32 %v9666, 1e-05
  %v9683 = vadd.f32 %v9667, 1e-05
  %v9684 = vadd.f32 %v9668, 1e-05
  %v9685 = vadd.f32 %v9669, 1e-05
  %v9686 = vadd.f32 %v9670, 1e-05
  %v9687 = vadd.f32 %v9671, 1e-05
  %v9688 = vadd.f32 %v9672, 1e-05
  %v9689 = vadd.f32 %v9673, 1e-05
  %v9690 = vadd.f32 %v9674, 1e-05
  %v9691 = vadd.f32 %v9675, 1e-05
  %v9692 = vadd.f32 %v9676, 1e-05
  %v9693 = vadd.f32 %v9677, 1e-05
  %v9694 = vadd.f32 %v9678, 1e-05
  %v9695 = vrsqrt.pop %v9679
  %v9696 = vrsqrt.pop %v9680
  %v9697 = vrsqrt.pop %v9681
  %v9698 = vrsqrt.pop %v9682
  %v9699 = vrsqrt.pop %v9683
  %v9700 = vrsqrt.pop %v9684
  %v9701 = vrsqrt.pop %v9685
  %v9702 = vrsqrt.pop %v9686
  %v9703 = vrsqrt.pop %v9687
  %v9704 = vrsqrt.pop %v9688
  %v9705 = vrsqrt.pop %v9689
  %v9706 = vrsqrt.pop %v9690
  %v9707 = vrsqrt.pop %v9691
  %v9708 = vrsqrt.pop %v9692
  %v9709 = vrsqrt.pop %v9693
  %v9710 = vrsqrt.pop %v9694
  %v9711 = vmul.f32 %v9583, %v9695
  %v9712 = vmul.f32 %v9584, %v9696
  %v9713 = vmul.f32 %v9585, %v9697
  %v9714 = vmul.f32 %v9586, %v9698
  %v9715 = vmul.f32 %v9587, %v9699
  %v9716 = vmul.f32 %v9588, %v9700
  %v9717 = vmul.f32 %v9589, %v9701
  %v9718 = vmul.f32 %v9590, %v9702
  %v9719 = vmul.f32 %v9591, %v9703
  %v9720 = vmul.f32 %v9592, %v9704
  %v9721 = vmul.f32 %v9593, %v9705
  %v9722 = vmul.f32 %v9594, %v9706
  %v9723 = vmul.f32 %v9595, %v9707
  %v9724 = vmul.f32 %v9596, %v9708
  %v9725 = vmul.f32 %v9597, %v9709
  %v9726 = vmul.f32 %v9598, %v9710
  %v9727 = vlaneseq
  %v9728 = vshrl.u32 %v9727, 7
  %v9729 = vsub.s32 0, %v9728
  %v9730 = vrot.slane %v58, %v9729
  %v9731 = vmul.f32 %v9711, %v9730
  %v9732 = vmul.f32 %v9712, %v9730
  %v9733 = vmul.f32 %v9713, %v9730
  %v9734 = vmul.f32 %v9714, %v9730
  %v9735 = vmul.f32 %v9715, %v9730
  %v9736 = vmul.f32 %v9716, %v9730
  %v9737 = vmul.f32 %v9717, %v9730
  %v9738 = vmul.f32 %v9718, %v9730
  %v9739 = vmul.f32 %v9719, %v9730
  %v9740 = vmul.f32 %v9720, %v9730
  %v9741 = vmul.f32 %v9721, %v9730
  %v9742 = vmul.f32 %v9722, %v9730
  %v9743 = vmul.f32 %v9723, %v9730
  %v9744 = vmul.f32 %v9724, %v9730
  %v9745 = vmul.f32 %v9725, %v9730
  %v9746 = vmul.f32 %v9726, %v9730
  %v9747 = vlaneseq
  %v9748 = vshrl.u32 %v9747, 7
  %v9749 = vsub.s32 0, %v9748
  %v9750 = vrot.slane %v59, %v9749
  %v9751 = vadd.f32 %v9731, %v9750
  %v9752 = vadd.f32 %v9732, %v9750
  %v9753 = vadd.f32 %v9733, %v9750
  %v9754 = vadd.f32 %v9734, %v9750
  %v9755 = vadd.f32 %v9735, %v9750
  %v9756 = vadd.f32 %v9736, %v9750
  %v9757 = vadd.f32 %v9737, %v9750
  %v9758 = vadd.f32 %v9738, %v9750
  %v9759 = vadd.f32 %v9739, %v9750
  %v9760 = vadd.f32 %v9740, %v9750
  %v9761 = vadd.f32 %v9741, %v9750
  %v9762 = vadd.f32 %v9742, %v9750
  %v9763 = vadd.f32 %v9743, %v9750
  %v9764 = vadd.f32 %v9744, %v9750
  %v9765 = vadd.f32 %v9745, %v9750
  %v9766 = vadd.f32 %v9746, %v9750
  %9767 = vst.msk [vmem:[%s6] sm:$0xff] %vm67, %v9751
  %9768 = vst.msk [vmem:[%s6 + $0x8] sm:$0xff] %vm67, %v9752
  %9769 = vst.msk [vmem:[%s6 + $0x10] sm:$0xff] %vm67, %v9753
  %9770 = vst.msk [vmem:[%s6 + $0x18] sm:$0xff] %vm67, %v9754
  %9771 = vst.msk [vmem:[%s6 + $0x20] sm:$0xff] %vm67, %v9755
  %9772 = vst.msk [vmem:[%s6 + $0x28] sm:$0xff] %vm67, %v9756
  %9773 = vst.msk [vmem:[%s6 + $0x30] sm:$0xff] %vm67, %v9757
  %9774 = vst.msk [vmem:[%s6 + $0x38] sm:$0xff] %vm67, %v9758
  %9775 = vst.msk [vmem:[%s6 + $0x40] sm:$0xff] %vm67, %v9759
  %9776 = vst.msk [vmem:[%s6 + $0x48] sm:$0xff] %vm67, %v9760
  %9777 = vst.msk [vmem:[%s6 + $0x50] sm:$0xff] %vm67, %v9761
  %9778 = vst.msk [vmem:[%s6 + $0x58] sm:$0xff] %vm67, %v9762
  %9779 = vst.msk [vmem:[%s6 + $0x60] sm:$0xff] %vm67, %v9763
  %9780 = vst.msk [vmem:[%s6 + $0x68] sm:$0xff] %vm67, %v9764
  %9781 = vst.msk [vmem:[%s6 + $0x70] sm:$0xff] %vm67, %v9765
  %9782 = vst.msk [vmem:[%s6 + $0x78] sm:$0xff] %vm67, %v9766
  // Predicated region
  $region22: #{tpu_custom_call.1} parent=0 // pred_check
    _
  $region23: #{tpu_custom_call.1} parent=0 // pred_check_branch
    %9784 = sbr.rel (0) target = $region25
  $region24: #{tpu_custom_call.1} parent=0 // pred_region
    _
  $region25: #{tpu_custom_call.1} parent=0 // pred_fallthru
    _
  // Predicated region
  $region26: #{tpu_custom_call.1} parent=0 // pred_check
    _
  $region27: #{tpu_custom_call.1} parent=0 // pred_check_branch
    %9786 = sbr.rel (0) target = $region29
  $region28: #{tpu_custom_call.1} parent=0 // pred_region
    _
  $region29: #{tpu_custom_call.1} parent=0 // pred_fallthru
    _
  // Predicated region
  $region30: #{tpu_custom_call.1} parent=0 // pred_check
    _
  $region31: #{tpu_custom_call.1} parent=0 // pred_check_branch
    %9788 = sbr.rel (0) target = $region33
  $region32: #{tpu_custom_call.1} parent=0 // pred_region
    _
  $region33: #{tpu_custom_call.1} parent=0 // pred_fallthru
    _
  // Predicated region
  $region34: #{tpu_custom_call.1} parent=0 // pred_check
    _
  $region35: #{tpu_custom_call.1} parent=0 // pred_check_branch
    %9790 = sbr.rel (0) target = $region37
  $region36: #{tpu_custom_call.1} parent=0 // pred_region
    _
  $region37: #{tpu_custom_call.1} parent=0 // pred_fallthru
    _

</llo_original>
